<compile_context>
chip_gen: v7x
topology: tpu7x:2x2x1
jax: 0.10.0
libtpu: 0.0.40
codegen_flags: <defaults>
</compile_context>

<pallas_src>
import functools
import math

import jax
import jax.numpy as jnp
import numpy as np
from jax.experimental import pallas as pl
from jax.experimental.pallas import tpu as pltpu

# ----------------------- config (small synthetic BERT) -----------------------
B = 2          # batch
S = 16         # sequence length
H = 256        # hidden size          (768 in real module)
NH = 4         # attention heads
DH = H // NH   # head dim
FF = 1024      # intermediate size
V = 1024       # vocab / classify out (21128 real -> must be padded to %128, see TODO)
NLAYERS = 2    # encoder layers       (12 in real module)
MAXPOS = 64
EPS = 1e-12


def _gelu(x):
    # tanh approximation of BERT's gelu (erf); fp32 math, tanh on the EUP.
    return 0.5 * x * (1.0 + jnp.tanh(0.7978845608028654 * (x + 0.044715 * x * x * x)))


def _pick_tile(dim, pref=512):
    """Largest lane-aligned tile from {pref, 512, 256, 128} that divides dim."""
    for t in (pref, 512, 256, 128):
        if t <= dim and dim % t == 0:
            return t
    if dim > 1024:
        # TODO(synk): real vocab (21128) must be padded to a %128 multiple (pad columns
        # masked with -inf bias) before the classify kernels are called.
        raise ValueError(f"dim {dim} is not a multiple of 128; pad it first")
    return dim


def _row_tile(m, pref=256):
    """Row (sublane) tile: as large as possible while keeping >=2 steps on the
    'parallel' row grid axis so both v7x TensorCores get work."""
    for t in (pref, 256, 128, 64, 32, 16):
        if t <= m and m % t == 0 and m // t >= 2:
            return t
    return m


def _params(sem, blocks):
    """Compiler params with an explicit scoped-VMEM limit sized from the actual
    (double-buffered) block working set, clamped under v7x's 64 MiB physical VMEM."""
    nbytes = sum(math.prod(shape) * np.dtype(dt).itemsize for shape, dt in blocks)
    limit = int(min(max(2 * nbytes + (4 << 20), 16 << 20), 48 << 20))
    return pltpu.CompilerParams(dimension_semantics=sem, vmem_limit_bytes=limit)


# ----------------------------- Pallas kernels --------------------------------
def _dense_kernel(x_ref, w_ref, b_ref, o_ref, *, act):
    acc = jnp.dot(x_ref[...], w_ref[...], preferred_element_type=jnp.float32)
    acc = acc + b_ref[...]
    if act == "gelu":
        acc = _gelu(acc)
    o_ref[...] = acc.astype(o_ref.dtype)


def dense(x, w, b, act=None):
    """y = act(x @ w + b); bf16 in / bf16 out, fp32 accumulate. Tiled over M and N."""
    M, K = x.shape
    N = w.shape[1]
    tm = _row_tile(M)
    tn = _pick_tile(N, 512)
    blocks = [((tm, K), jnp.bfloat16), ((K, tn), jnp.bfloat16),
              ((1, tn), jnp.float32), ((tm, tn), jnp.bfloat16)]
    return pl.pallas_call(
        functools.partial(_dense_kernel, act=act),
        grid=(M // tm, N // tn),
        in_specs=[
            pl.BlockSpec((tm, K), lambda i, j: (i, 0)),
            pl.BlockSpec((K, tn), lambda i, j: (0, j)),
            pl.BlockSpec((1, tn), lambda i, j: (0, j)),
        ],
        out_specs=pl.BlockSpec((tm, tn), lambda i, j: (i, j)),
        out_shape=jax.ShapeDtypeStruct((M, N), jnp.bfloat16),
        compiler_params=_params(("parallel", "parallel"), blocks),
    )(x, w, b.reshape(1, N))


def _dense_add_ln_kernel(x_ref, w_ref, b_ref, r_ref, g_ref, bb_ref, o_ref, acc_ref):
    # K-tiled projection matmul; residual-add + LayerNorm epilogue on the last K step.
    k = pl.program_id(1)

    @pl.when(k == 0)
    def _():
        acc_ref[...] = jnp.zeros_like(acc_ref)

    acc_ref[...] += jnp.dot(x_ref[...], w_ref[...], preferred_element_type=jnp.float32)

    @pl.when(k == pl.num_programs(1) - 1)
    def _():
        acc = acc_ref[...] + b_ref[...] + r_ref[...].astype(jnp.float32)
        mu = jnp.mean(acc, axis=-1, keepdims=True)
        xc = acc - mu
        var = jnp.mean(xc * xc, axis=-1, keepdims=True)
        y = xc * jax.lax.rsqrt(var + EPS) * g_ref[...] + bb_ref[...]
        o_ref[...] = y.astype(o_ref.dtype)


def dense_add_ln(x, w, b, res, gamma, beta):
    """LayerNorm((x @ w + b) + res). Output width = full H so LN reduces in-block;
    K is tiled so the resident weight block stays small (v7x / v5e VMEM budgets)."""
    M, K = x.shape
    N = w.shape[1]
    tm = _row_tile(M)
    tk = _pick_tile(K, 512)
    blocks = [((tm, tk), jnp.bfloat16), ((tk, N), jnp.bfloat16), ((1, N), jnp.float32),
              ((tm, N), jnp.bfloat16), ((1, N), jnp.float32), ((1, N), jnp.float32),
              ((tm, N), jnp.bfloat16), ((tm, N), jnp.float32)]
    return pl.pallas_call(
        _dense_add_ln_kernel,
        grid=(M // tm, K // tk),
        in_specs=[
            pl.BlockSpec((tm, tk), lambda i, k: (i, k)),
            pl.BlockSpec((tk, N), lambda i, k: (k, 0)),
            pl.BlockSpec((1, N), lambda i, k: (0, 0)),
            pl.BlockSpec((tm, N), lambda i, k: (i, 0)),
            pl.BlockSpec((1, N), lambda i, k: (0, 0)),
            pl.BlockSpec((1, N), lambda i, k: (0, 0)),
        ],
        out_specs=pl.BlockSpec((tm, N), lambda i, k: (i, 0)),
        out_shape=jax.ShapeDtypeStruct((M, N), jnp.bfloat16),
        scratch_shapes=[pltpu.VMEM((tm, N), jnp.float32)],
        compiler_params=_params(("parallel", "arbitrary"), blocks),
    )(x, w, b.reshape(1, N), res, gamma.reshape(1, N), beta.reshape(1, N))


def _ln_kernel(x_ref, g_ref, b_ref, o_ref):
    x = x_ref[...].astype(jnp.float32)
    mu = jnp.mean(x, axis=-1, keepdims=True)
    xc = x - mu
    var = jnp.mean(xc * xc, axis=-1, keepdims=True)
    o_ref[...] = (xc * jax.lax.rsqrt(var + EPS) * g_ref[...] + b_ref[...]).astype(o_ref.dtype)


def layernorm(x, gamma, beta):
    """Residual-free LayerNorm (embedding path); bf16 in/out, f32 stats."""
    M, N = x.shape
    tm = _row_tile(M)
    blocks = [((tm, N), jnp.bfloat16), ((1, N), jnp.float32), ((1, N), jnp.float32),
              ((tm, N), jnp.bfloat16)]
    return pl.pallas_call(
        _ln_kernel,
        grid=(M // tm,),
        in_specs=[
            pl.BlockSpec((tm, N), lambda i: (i, 0)),
            pl.BlockSpec((1, N), lambda i: (0, 0)),
            pl.BlockSpec((1, N), lambda i: (0, 0)),
        ],
        out_specs=pl.BlockSpec((tm, N), lambda i: (i, 0)),
        out_shape=jax.ShapeDtypeStruct((M, N), jnp.bfloat16),
        compiler_params=_params(("parallel",), blocks),
    )(x, gamma.reshape(1, N), beta.reshape(1, N))


def _attn_kernel(q_ref, k_ref, v_ref, bias_ref, o_ref, *, scale):
    # One grid step = one (batch row, head); blocks are per-head-contiguous 2-D tiles,
    # so there is no in-kernel head slicing, loop, or concat.
    q = q_ref[0, 0] * scale                      # scale folded into q: O(S*DH), not O(S^2)
    k = k_ref[0, 0]
    v = v_ref[0, 0]
    s = jax.lax.dot_general(q, k, (((1,), (1,)), ((), ())),
                            preferred_element_type=jnp.float32)
    s = s + bias_ref[0]                          # (1, S) additive key mask
    m = jnp.max(s, axis=-1, keepdims=True)
    p = jnp.exp(s - m)
    # approx reciprocal: attention rows sum to 1 within ~1e-3 (documented deviation).
    p = p * pl.reciprocal(jnp.sum(p, axis=-1, keepdims=True), approx=True)
    ctx = jnp.dot(p.astype(v.dtype), v, preferred_element_type=jnp.float32)
    o_ref[0, 0] = ctx.astype(o_ref.dtype)


def attention(q, k, v, bias):
    """q,k,v: (B, NH, S, DH) bf16; bias: (B, 1, S) f32 additive mask -> (B, NH, S, DH)."""
    Bq, nh, Sq, dh = q.shape
    blocks = [((1, 1, Sq, dh), jnp.bfloat16)] * 4 + [((1, 1, Sq), jnp.float32)]
    return pl.pallas_call(
        functools.partial(_attn_kernel, scale=1.0 / math.sqrt(dh)),
        grid=(Bq, nh),
        in_specs=[
            pl.BlockSpec((1, 1, Sq, dh), lambda b, h: (b, h, 0, 0)),
            pl.BlockSpec((1, 1, Sq, dh), lambda b, h: (b, h, 0, 0)),
            pl.BlockSpec((1, 1, Sq, dh), lambda b, h: (b, h, 0, 0)),
            pl.BlockSpec((1, 1, Sq), lambda b, h: (b, 0, 0)),
        ],
        out_specs=pl.BlockSpec((1, 1, Sq, dh), lambda b, h: (b, h, 0, 0)),
        out_shape=jax.ShapeDtypeStruct((Bq, nh, Sq, dh), jnp.bfloat16),
        compiler_params=_params(("parallel", "parallel"), blocks),
    )(q, k, v, bias)


def _logits_lse_kernel(x_ref, w_ref, b_ref, logits_ref, lse_ref, m_sc, l_sc):
    # Vocab-tiled classify matmul + online logsumexp; logits stored bf16 (f32 math).
    j = pl.program_id(1)

    @pl.when(j == 0)
    def _():
        m_sc[...] = jnp.full_like(m_sc, -jnp.inf)
        l_sc[...] = jnp.zeros_like(l_sc)

    logits = jnp.dot(x_ref[...], w_ref[...], preferred_element_type=jnp.float32)
    logits = logits + b_ref[...]
    logits_ref[...] = logits.astype(logits_ref.dtype)

    m_new = jnp.maximum(m_sc[...], jnp.max(logits, axis=-1, keepdims=True))
    l_sc[...] = (jnp.exp(m_sc[...] - m_new) * l_sc[...]
                 + jnp.sum(jnp.exp(logits - m_new), axis=-1, keepdims=True))
    m_sc[...] = m_new

    @pl.when(j == pl.num_programs(1) - 1)
    def _():
        lse_ref[...] = m_sc[...] + jnp.log(l_sc[...])


def classify_logits_lse(x, w, b):
    """Inference path: (logits (M,V) bf16, logsumexp (M,1) f32); never holds (K,V) in VMEM."""
    M, K = x.shape
    Vv = w.shape[1]
    tm = _row_tile(M)
    tv = _pick_tile(Vv, 512)
    blocks = [((tm, K), jnp.bfloat16), ((K, tv), jnp.bfloat16), ((1, tv), jnp.float32),
              ((tm, tv), jnp.bfloat16), ((tm, 1), jnp.float32),
              ((tm, 1), jnp.float32), ((tm, 1), jnp.float32)]
    return pl.pallas_call(
        _logits_lse_kernel,
        grid=(M // tm, Vv // tv),
        in_specs=[
            pl.BlockSpec((tm, K), lambda i, j: (i, 0)),
            pl.BlockSpec((K, tv), lambda i, j: (0, j)),
            pl.BlockSpec((1, tv), lambda i, j: (0, j)),
        ],
        out_specs=[
            pl.BlockSpec((tm, tv), lambda i, j: (i, j)),
            pl.BlockSpec((tm, 1), lambda i, j: (i, 0)),
        ],
        out_shape=[
            jax.ShapeDtypeStruct((M, Vv), jnp.bfloat16),
            jax.ShapeDtypeStruct((M, 1), jnp.float32),
        ],
        scratch_shapes=[pltpu.VMEM((tm, 1), jnp.float32),
                        pltpu.VMEM((tm, 1), jnp.float32)],
        compiler_params=_params(("parallel", "arbitrary"), blocks),
    )(x, w, b.reshape(1, Vv))


def _lse_pick_kernel(x_ref, w_ref, b_ref, lab_ref, lse_ref, pick_ref, m_sc, l_sc):
    # Loss path: online logsumexp + in-kernel gather of logit[label] while the label's
    # vocab tile is resident; the (M, V) logits never touch HBM.
    j = pl.program_id(1)
    tv = w_ref.shape[1]

    @pl.when(j == 0)
    def _():
        m_sc[...] = jnp.full_like(m_sc, -jnp.inf)
        l_sc[...] = jnp.zeros_like(l_sc)
        pick_ref[...] = jnp.zeros_like(pick_ref)

    logits = jnp.dot(x_ref[...], w_ref[...], preferred_element_type=jnp.float32)
    logits = logits + b_ref[...]

    m_new = jnp.maximum(m_sc[...], jnp.max(logits, axis=-1, keepdims=True))
    l_sc[...] = (jnp.exp(m_sc[...] - m_new) * l_sc[...]
                 + jnp.sum(jnp.exp(logits - m_new), axis=-1, keepdims=True))
    m_sc[...] = m_new

    col = jax.lax.broadcasted_iota(jnp.int32, logits.shape, 1) + j * tv
    hit = col == lab_ref[...]
    pick_ref[...] += jnp.sum(jnp.where(hit, logits, 0.0), axis=-1, keepdims=True)

    @pl.when(j == pl.num_programs(1) - 1)
    def _():
        lse_ref[...] = m_sc[...] + jnp.log(l_sc[...])


def classify_lse_pick(x, w, b, labels):
    """Loss path: returns (lse (M,1) f32, picked logit (M,1) f32); no logits in HBM."""
    M, K = x.shape
    Vv = w.shape[1]
    tm = _row_tile(M)
    tv = _pick_tile(Vv, 512)
    blocks = [((tm, K), jnp.bfloat16), ((K, tv), jnp.bfloat16), ((1, tv), jnp.float32),
              ((tm, 1), jnp.int32), ((tm, 1), jnp.float32), ((tm, 1), jnp.float32),
              ((tm, 1), jnp.float32), ((tm, 1), jnp.float32)]
    return pl.pallas_call(
        _lse_pick_kernel,
        grid=(M // tm, Vv // tv),
        in_specs=[
            pl.BlockSpec((tm, K), lambda i, j: (i, 0)),
            pl.BlockSpec((K, tv), lambda i, j: (0, j)),
            pl.BlockSpec((1, tv), lambda i, j: (0, j)),
            pl.BlockSpec((tm, 1), lambda i, j: (i, 0)),
        ],
        out_specs=[
            pl.BlockSpec((tm, 1), lambda i, j: (i, 0)),
            pl.BlockSpec((tm, 1), lambda i, j: (i, 0)),
        ],
        out_shape=[
            jax.ShapeDtypeStruct((M, 1), jnp.float32),
            jax.ShapeDtypeStruct((M, 1), jnp.float32),
        ],
        scratch_shapes=[pltpu.VMEM((tm, 1), jnp.float32),
                        pltpu.VMEM((tm, 1), jnp.float32)],
        compiler_params=_params(("parallel", "arbitrary"), blocks),
    )(x, w, b.reshape(1, Vv), labels.reshape(M, 1).astype(jnp.int32))


def _softmax_norm_kernel(logits_ref, lse_ref, o_ref):
    x = logits_ref[...].astype(jnp.float32) - lse_ref[...]
    o_ref[...] = jnp.exp(x).astype(o_ref.dtype)


def softmax_from_lse(logits, lse):
    """probs = exp(logits - lse), tiled over (M, V); bf16 read / bf16 write."""
    # TODO(synk): fuse this normalization pass into the lse kernel (second vocab sweep)
    # to drop the bf16 logits round-trip entirely.
    M, Vv = logits.shape
    tm = _row_tile(M)
    tv = _pick_tile(Vv, 512)
    blocks = [((tm, tv), jnp.bfloat16), ((tm, 1), jnp.float32), ((tm, tv), jnp.bfloat16)]
    return pl.pallas_call(
        _softmax_norm_kernel,
        grid=(M // tm, Vv // tv),
        in_specs=[
            pl.BlockSpec((tm, tv), lambda i, j: (i, j)),
            pl.BlockSpec((tm, 1), lambda i, j: (i, 0)),
        ],
        out_specs=pl.BlockSpec((tm, tv), lambda i, j: (i, j)),
        out_shape=jax.ShapeDtypeStruct((M, Vv), jnp.bfloat16),
        compiler_params=_params(("parallel", "parallel"), blocks),
    )(logits, lse)


# ------------------------------ parameters -----------------------------------
def init_params(key):
    kit = iter(jax.random.split(key, 64))

    def nrm(shape, dtype=jnp.bfloat16):
        return (0.02 * jax.random.normal(next(kit), shape, jnp.float32)).astype(dtype)

    p = {
        "word_emb": nrm((V, H)),       # bf16 tables: halve embedding / LN DMA traffic
        "pos_emb": nrm((MAXPOS, H)),
        "type_emb": nrm((2, H)),
        "emb_ln_g": jnp.ones((H,), jnp.float32),
        "emb_ln_b": jnp.zeros((H,), jnp.float32),
        "layers": [],
    }
    for _ in range(NLAYERS):
        p["layers"].append({
            # fused QKV weight (H, 3H): [Wq | Wk | Wv], per-head-contiguous within each
            "w_qkv": nrm((H, 3 * H)), "b_qkv": jnp.zeros((3 * H,), jnp.float32),
            "wo": nrm((H, H)), "bo": jnp.zeros((H,), jnp.float32),
            "w1": nrm((H, FF)), "b1": jnp.zeros((FF,), jnp.float32),
            "w2": nrm((FF, H)), "b2": jnp.zeros((H,), jnp.float32),
            "attn_ln_g": jnp.ones((H,), jnp.float32),
            "attn_ln_b": jnp.zeros((H,), jnp.float32),
            "ffn_ln_g": jnp.ones((H,), jnp.float32),
            "ffn_ln_b": jnp.zeros((H,), jnp.float32),
        })
    p["wc"] = nrm((H, V))
    p["bc"] = jnp.zeros((V,), jnp.float32)
    return p


# ------------------------------- forward --------------------------------------
def language_model(params, x_ids, mask, y=None):
    Bq, Sq = x_ids.shape
    M = Bq * Sq

    # BERT embeddings (bf16 gather in glue) + LayerNorm (Pallas, f32 stats)
    pos = jnp.arange(Sq)
    emb = (jnp.take(params["word_emb"], x_ids, axis=0)
           + params["pos_emb"][pos][None, :, :]
           + params["type_emb"][0][None, None, :])
    h = layernorm(emb.reshape(M, H), params["emb_ln_g"], params["emb_ln_b"])   # (M,H) bf16

    # extended attention mask: (1 - mask) * -10000 added to scores
    bias = ((1.0 - mask.astype(jnp.float32)) * -10000.0).reshape(Bq, 1, Sq)

    for L in params["layers"]:
        qkv = dense(h, L["w_qkv"], L["b_qkv"])                     # fused Q/K/V (M, 3H)
        # head split to per-head-contiguous (B, NH, S, DH) — plain XLA glue so the
        # attention kernel sees lane-dense 2-D blocks with no in-kernel slicing.
        qkv4 = qkv.reshape(Bq, Sq, 3, NH, DH)
        q = jnp.transpose(qkv4[:, :, 0], (0, 2, 1, 3))
        k = jnp.transpose(qkv4[:, :, 1], (0, 2, 1, 3))
        v = jnp.transpose(qkv4[:, :, 2], (0, 2, 1, 3))
        ctx = attention(q, k, v, bias)                             # (B, NH, S, DH)
        ctx = jnp.transpose(ctx, (0, 2, 1, 3)).reshape(M, H)       # merge heads (glue)
        h = dense_add_ln(ctx, L["wo"], L["bo"],
                         h, L["attn_ln_g"], L["attn_ln_b"])        # out-proj + res + LN
        ff = dense(h, L["w1"], L["b1"], act="gelu")
        h = dense_add_ln(ff, L["w2"], L["b2"],
                         h, L["ffn_ln_g"], L["ffn_ln_b"])          # ffn-proj + res + LN

    if y is None:
        logits, lse = classify_logits_lse(h, params["wc"], params["bc"])
        probs = softmax_from_lse(logits, lse)                      # softmax (inference)
        return probs.reshape(Bq, Sq, V)
    else:
        # cross_entropy(y_pred.view(-1,V), y.view(-1)) == mean(lse - logit[label]);
        # matches torch defaults (mean over ALL positions, no ignore_index).
        lse, picked = classify_lse_pick(h, params["wc"], params["bc"], y.reshape(-1))
        return jnp.mean(lse[:, 0] - picked[:, 0])


# --------------------------------- main ---------------------------------------
if __name__ == "__main__":
    key = jax.random.PRNGKey(0)
    pkey, xkey, ykey = jax.random.split(key, 3)
    params = init_params(pkey)

    x_ids = jax.random.randint(xkey, (B, S), 0, V, dtype=jnp.int32)
    mask = jnp.ones((B, S), jnp.float32).at[:, S - 4:].set(0.0)  # last 4 tokens padded
    y = jax.random.randint(ykey, (B, S), 0, V, dtype=jnp.int32)

    infer_fn = jax.jit(lambda p, x, m: language_model(p, x, m))
    loss_fn = jax.jit(lambda p, x, m, yy: language_model(p, x, m, yy))

    probs = infer_fn(params, x_ids, mask)
    jax.block_until_ready(probs)
    loss = loss_fn(params, x_ids, mask, y)
    jax.block_until_ready(loss)

    assert probs.shape == (B, S, V)
    psum = probs.astype(jnp.float32).sum(-1)
    assert bool(jnp.all(jnp.isfinite(psum)))
    # probs are stored bf16, so row sums match 1.0 to within bf16 storage error
    assert bool(jnp.allclose(psum, 1.0, atol=5e-3))
    assert bool(jnp.isfinite(loss))
    print("KERNEL_OK")
</pallas_src>

<mosaic_0001>
module attributes {stable_mosaic.version = 11 : i64} {
  func.func @_ln_kernel(%arg0: i32, %arg1: memref<16x256xbf16, #tpu.memory_space<vmem>>, %arg2: memref<1x256xf32, #tpu.memory_space<vmem>>, %arg3: memref<1x256xf32, #tpu.memory_space<vmem>>, %arg4: memref<16x256xbf16, #tpu.memory_space<vmem>>) attributes {dimension_semantics = [#tpu.dimension_semantics<parallel>], iteration_bounds = array<i64: 2>, scalar_prefetch = 0 : i64, scratch_operands = 0 : i64, tpu.core_type = #tpu.core_type<tc>, window_params = [{transform_indices = @transform_0, window_bounds = array<i64: 16, 256>}, {pipeline_mode = #tpu.pipeline_mode<synchronous>, transform_indices = @transform_1, window_bounds = array<i64: 1, 256>}, {pipeline_mode = #tpu.pipeline_mode<synchronous>, transform_indices = @transform_2, window_bounds = array<i64: 1, 256>}, {transform_indices = @transform_3, window_bounds = array<i64: 16, 256>}]} {
    %c0 = arith.constant 0 : index
    %c0_0 = arith.constant 0 : index
    %0 = vector.load %arg1[%c0, %c0_0] : memref<16x256xbf16, #tpu.memory_space<vmem>>, vector<16x256xbf16>
    %1 = arith.extf %0 : vector<16x256xbf16> to vector<16x256xf32>
    %cst = arith.constant dense<0.000000e+00> : vector<16xf32>
    %2 = vector.multi_reduction <add>, %1, %cst [1] : vector<16x256xf32> to vector<16xf32>
    %3 = vector.shape_cast %2 : vector<16xf32> to vector<16x1xf32>
    %cst_1 = arith.constant 2.560000e+02 : f32
    %4 = vector.broadcast %cst_1 : f32 to vector<16x1xf32>
    %5 = arith.divf %3, %4 : vector<16x1xf32>
    %6 = vector.broadcast %5 : vector<16x1xf32> to vector<16x256xf32>
    %7 = arith.subf %1, %6 : vector<16x256xf32>
    %8 = arith.mulf %7, %7 : vector<16x256xf32>
    %cst_2 = arith.constant dense<0.000000e+00> : vector<16xf32>
    %9 = vector.multi_reduction <add>, %8, %cst_2 [1] : vector<16x256xf32> to vector<16xf32>
    %10 = vector.shape_cast %9 : vector<16xf32> to vector<16x1xf32>
    %cst_3 = arith.constant 2.560000e+02 : f32
    %11 = vector.broadcast %cst_3 : f32 to vector<16x1xf32>
    %12 = arith.divf %10, %11 : vector<16x1xf32>
    %cst_4 = arith.constant 9.99999996E-13 : f32
    %13 = vector.broadcast %cst_4 : f32 to vector<16x1xf32>
    %14 = arith.addf %12, %13 : vector<16x1xf32>
    %15 = math.rsqrt %14 : vector<16x1xf32>
    %16 = vector.broadcast %15 : vector<16x1xf32> to vector<16x256xf32>
    %17 = arith.mulf %7, %16 : vector<16x256xf32>
    %c0_5 = arith.constant 0 : index
    %c0_6 = arith.constant 0 : index
    %18 = vector.load %arg2[%c0_5, %c0_6] : memref<1x256xf32, #tpu.memory_space<vmem>>, vector<1x256xf32>
    %19 = vector.broadcast %18 : vector<1x256xf32> to vector<16x256xf32>
    %20 = arith.mulf %17, %19 : vector<16x256xf32>
    %c0_7 = arith.constant 0 : index
    %c0_8 = arith.constant 0 : index
    %21 = vector.load %arg3[%c0_7, %c0_8] : memref<1x256xf32, #tpu.memory_space<vmem>>, vector<1x256xf32>
    %22 = vector.broadcast %21 : vector<1x256xf32> to vector<16x256xf32>
    %23 = arith.addf %20, %22 : vector<16x256xf32>
    %24 = arith.truncf %23 : vector<16x256xf32> to vector<16x256xbf16>
    %c0_9 = arith.constant 0 : index
    %c0_10 = arith.constant 0 : index
    %25 = vector.load %arg4[%c0_9, %c0_10] : memref<16x256xbf16, #tpu.memory_space<vmem>>, vector<16x256xbf16>
    tpu.vector_store %arg4[%c0_9, %c0_10], %24 {strides = array<i32>} : memref<16x256xbf16, #tpu.memory_space<vmem>>, vector<16x256xbf16>,
    return
  }
  func.func @transform_0(%arg0: i32) -> (i32, i32) {
    %c0_i32 = arith.constant 0 : i32
    %c0_i32_0 = arith.constant 0 : i32
    return %arg0, %c0_i32 : i32, i32
  }
  func.func @transform_1(%arg0: i32) -> (i32, i32) {
    %c0_i32 = arith.constant 0 : i32
    %c0_i32_0 = arith.constant 0 : i32
    %c0_i32_1 = arith.constant 0 : i32
    return %c0_i32, %c0_i32_0 : i32, i32
  }
  func.func @transform_2(%arg0: i32) -> (i32, i32) {
    %c0_i32 = arith.constant 0 : i32
    %c0_i32_0 = arith.constant 0 : i32
    %c0_i32_1 = arith.constant 0 : i32
    return %c0_i32, %c0_i32_0 : i32, i32
  }
  func.func @transform_3(%arg0: i32) -> (i32, i32) {
    %c0_i32 = arith.constant 0 : i32
    %c0_i32_0 = arith.constant 0 : i32
    return %arg0, %c0_i32 : i32, i32
  }
}

module attributes {stable_mosaic.version = 11 : i64} {
  func.func @_dense_kernel(%arg0: i32, %arg1: i32, %arg2: memref<16x256xbf16, #tpu.memory_space<vmem>>, %arg3: memref<256x256xbf16, #tpu.memory_space<vmem>>, %arg4: memref<1x256xf32, #tpu.memory_space<vmem>>, %arg5: memref<16x256xbf16, #tpu.memory_space<vmem>>) attributes {dimension_semantics = [#tpu.dimension_semantics<parallel>, #tpu.dimension_semantics<parallel>], iteration_bounds = array<i64: 2, 3>, scalar_prefetch = 0 : i64, scratch_operands = 0 : i64, tpu.core_type = #tpu.core_type<tc>, window_params = [{transform_indices = @transform_0, window_bounds = array<i64: 16, 256>}, {transform_indices = @transform_1, window_bounds = array<i64: 256, 256>}, {transform_indices = @transform_2, window_bounds = array<i64: 1, 256>}, {transform_indices = @transform_3, window_bounds = array<i64: 16, 256>}]} {
    %c0 = arith.constant 0 : index
    %c0_0 = arith.constant 0 : index
    %0 = vector.load %arg2[%c0, %c0_0] : memref<16x256xbf16, #tpu.memory_space<vmem>>, vector<16x256xbf16>
    %c0_1 = arith.constant 0 : index
    %c0_2 = arith.constant 0 : index
    %1 = vector.load %arg3[%c0_1, %c0_2] : memref<256x256xbf16, #tpu.memory_space<vmem>>, vector<256x256xbf16>
    %cst = arith.constant dense<0.000000e+00> : vector<16x256xf32>
    %2 = tpu.matmul %0, %1, %cst {dimension_numbers = #tpu.dot_dimension_numbers<[1], [0], [0], [1], [0, 0, 1, 1], [], []>} : vector<16x256xbf16>, vector<256x256xbf16>, vector<16x256xf32> -> vector<16x256xf32>
    %c0_3 = arith.constant 0 : index
    %c0_4 = arith.constant 0 : index
    %3 = vector.load %arg4[%c0_3, %c0_4] : memref<1x256xf32, #tpu.memory_space<vmem>>, vector<1x256xf32>
    %4 = vector.broadcast %3 : vector<1x256xf32> to vector<16x256xf32>
    %5 = arith.addf %2, %4 : vector<16x256xf32>
    %6 = arith.truncf %5 : vector<16x256xf32> to vector<16x256xbf16>
    %c0_5 = arith.constant 0 : index
    %c0_6 = arith.constant 0 : index
    %7 = vector.load %arg5[%c0_5, %c0_6] : memref<16x256xbf16, #tpu.memory_space<vmem>>, vector<16x256xbf16>
    tpu.vector_store %arg5[%c0_5, %c0_6], %6 {strides = array<i32>} : memref<16x256xbf16, #tpu.memory_space<vmem>>, vector<16x256xbf16>,
    return
  }
  func.func @transform_0(%arg0: i32, %arg1: i32) -> (i32, i32) {
    %c0_i32 = arith.constant 0 : i32
    %c0_i32_0 = arith.constant 0 : i32
    return %arg0, %c0_i32 : i32, i32
  }
  func.func @transform_1(%arg0: i32, %arg1: i32) -> (i32, i32) {
    %c0_i32 = arith.constant 0 : i32
    %c0_i32_0 = arith.constant 0 : i32
    return %c0_i32, %arg1 : i32, i32
  }
  func.func @transform_2(%arg0: i32, %arg1: i32) -> (i32, i32) {
    %c0_i32 = arith.constant 0 : i32
    %c0_i32_0 = arith.constant 0 : i32
    return %c0_i32, %arg1 : i32, i32
  }
  func.func @transform_3(%arg0: i32, %arg1: i32) -> (i32, i32) {
    %c0_i32 = arith.constant 0 : i32
    return %arg0, %arg1 : i32, i32
  }
}

module attributes {stable_mosaic.version = 11 : i64} {
  func.func @_attn_kernel(%arg0: i32, %arg1: i32, %arg2: memref<1x1x16x64xbf16, #tpu.memory_space<vmem>>, %arg3: memref<1x1x16x64xbf16, #tpu.memory_space<vmem>>, %arg4: memref<1x1x16x64xbf16, #tpu.memory_space<vmem>>, %arg5: memref<1x1x16xf32, #tpu.memory_space<vmem>>, %arg6: memref<1x1x16x64xbf16, #tpu.memory_space<vmem>>) attributes {dimension_semantics = [#tpu.dimension_semantics<parallel>, #tpu.dimension_semantics<parallel>], iteration_bounds = array<i64: 2, 4>, scalar_prefetch = 0 : i64, scratch_operands = 0 : i64, tpu.core_type = #tpu.core_type<tc>, window_params = [{transform_indices = @transform_0, window_bounds = array<i64: 1, 1, 16, 64>}, {transform_indices = @transform_1, window_bounds = array<i64: 1, 1, 16, 64>}, {transform_indices = @transform_2, window_bounds = array<i64: 1, 1, 16, 64>}, {transform_indices = @transform_3, window_bounds = array<i64: 1, 1, 16>}, {transform_indices = @transform_4, window_bounds = array<i64: 1, 1, 16, 64>}]} {
    %c0 = arith.constant 0 : index
    %c0_0 = arith.constant 0 : index
    %c0_1 = arith.constant 0 : index
    %c0_2 = arith.constant 0 : index
    %0 = vector.load %arg2[%c0, %c0_0, %c0_1, %c0_2] : memref<1x1x16x64xbf16, #tpu.memory_space<vmem>>, vector<1x1x16x64xbf16>
    %1 = vector.shape_cast %0 : vector<1x1x16x64xbf16> to vector<16x64xbf16>
    %cst = arith.constant 1.250000e-01 : bf16
    %2 = vector.broadcast %cst : bf16 to vector<16x64xbf16>
    %3 = arith.mulf %1, %2 : vector<16x64xbf16>
    %c0_3 = arith.constant 0 : index
    %c0_4 = arith.constant 0 : index
    %c0_5 = arith.constant 0 : index
    %c0_6 = arith.constant 0 : index
    %4 = vector.load %arg3[%c0_3, %c0_4, %c0_5, %c0_6] : memref<1x1x16x64xbf16, #tpu.memory_space<vmem>>, vector<1x1x16x64xbf16>
    %5 = vector.shape_cast %4 : vector<1x1x16x64xbf16> to vector<16x64xbf16>
    %c0_7 = arith.constant 0 : index
    %c0_8 = arith.constant 0 : index
    %c0_9 = arith.constant 0 : index
    %c0_10 = arith.constant 0 : index
    %6 = vector.load %arg4[%c0_7, %c0_8, %c0_9, %c0_10] : memref<1x1x16x64xbf16, #tpu.memory_space<vmem>>, vector<1x1x16x64xbf16>
    %7 = vector.shape_cast %6 : vector<1x1x16x64xbf16> to vector<16x64xbf16>
    %cst_11 = arith.constant dense<0.000000e+00> : vector<16x16xf32>
    %8 = tpu.matmul %3, %5, %cst_11 {dimension_numbers = #tpu.dot_dimension_numbers<[1], [1], [0], [0], [0, 0, 1, 0], [], []>} : vector<16x64xbf16>, vector<16x64xbf16>, vector<16x16xf32> -> vector<16x16xf32>
    %c0_12 = arith.constant 0 : index
    %c0_13 = arith.constant 0 : index
    %c0_14 = arith.constant 0 : index
    %9 = vector.load %arg5[%c0_12, %c0_13, %c0_14] : memref<1x1x16xf32, #tpu.memory_space<vmem>>, vector<1x1x16xf32>
    %10 = vector.shape_cast %9 : vector<1x1x16xf32> to vector<1x16xf32>
    %11 = vector.broadcast %10 : vector<1x16xf32> to vector<16x16xf32>
    %12 = arith.addf %8, %11 : vector<16x16xf32>
    %cst_15 = arith.constant dense<0xFF800000> : vector<16xf32>
    %13 = vector.multi_reduction <maximumf>, %12, %cst_15 [1] : vector<16x16xf32> to vector<16xf32>
    %14 = vector.shape_cast %13 : vector<16xf32> to vector<16x1xf32>
    %15 = vector.broadcast %14 : vector<16x1xf32> to vector<16x16xf32>
    %16 = arith.subf %12, %15 : vector<16x16xf32>
    %17 = math.exp %16 : vector<16x16xf32>
    %cst_16 = arith.constant dense<0.000000e+00> : vector<16xf32>
    %18 = vector.multi_reduction <add>, %17, %cst_16 [1] : vector<16x16xf32> to vector<16xf32>
    %19 = vector.shape_cast %18 : vector<16xf32> to vector<16x1xf32>
    %20 = tpu.reciprocal %19 {approx = true} : vector<16x1xf32> -> vector<16x1xf32>
    %21 = vector.broadcast %20 : vector<16x1xf32> to vector<16x16xf32>
    %22 = arith.mulf %17, %21 : vector<16x16xf32>
    %23 = arith.truncf %22 : vector<16x16xf32> to vector<16x16xbf16>
    %cst_17 = arith.constant dense<0.000000e+00> : vector<16x64xf32>
    %24 = tpu.matmul %23, %7, %cst_17 {dimension_numbers = #tpu.dot_dimension_numbers<[1], [0], [0], [1], [0, 0, 1, 1], [], []>} : vector<16x16xbf16>, vector<16x64xbf16>, vector<16x64xf32> -> vector<16x64xf32>
    %25 = arith.truncf %24 : vector<16x64xf32> to vector<16x64xbf16>
    %c0_18 = arith.constant 0 : index
    %c0_19 = arith.constant 0 : index
    %c0_20 = arith.constant 0 : index
    %c0_21 = arith.constant 0 : index
    %26 = vector.load %arg6[%c0_18, %c0_19, %c0_20, %c0_21] : memref<1x1x16x64xbf16, #tpu.memory_space<vmem>>, vector<1x1x16x64xbf16>
    %27 = vector.shape_cast %26 : vector<1x1x16x64xbf16> to vector<16x64xbf16>
    %28 = vector.shape_cast %25 : vector<16x64xbf16> to vector<1x1x16x64xbf16>
    tpu.vector_store %arg6[%c0_18, %c0_19, %c0_20, %c0_21], %28 {strides = array<i32>} : memref<1x1x16x64xbf16, #tpu.memory_space<vmem>>, vector<1x1x16x64xbf16>,
    return
  }
  func.func @transform_0(%arg0: i32, %arg1: i32) -> (i32, i32, i32, i32) {
    %c0_i32 = arith.constant 0 : i32
    %c0_i32_0 = arith.constant 0 : i32
    %c0_i32_1 = arith.constant 0 : i32
    return %arg0, %arg1, %c0_i32, %c0_i32_0 : i32, i32, i32, i32
  }
  func.func @transform_1(%arg0: i32, %arg1: i32) -> (i32, i32, i32, i32) {
    %c0_i32 = arith.constant 0 : i32
    %c0_i32_0 = arith.constant 0 : i32
    %c0_i32_1 = arith.constant 0 : i32
    return %arg0, %arg1, %c0_i32, %c0_i32_0 : i32, i32, i32, i32
  }
  func.func @transform_2(%arg0: i32, %arg1: i32) -> (i32, i32, i32, i32) {
    %c0_i32 = arith.constant 0 : i32
    %c0_i32_0 = arith.constant 0 : i32
    %c0_i32_1 = arith.constant 0 : i32
    return %arg0, %arg1, %c0_i32, %c0_i32_0 : i32, i32, i32, i32
  }
  func.func @transform_3(%arg0: i32, %arg1: i32) -> (i32, i32, i32) {
    %c0_i32 = arith.constant 0 : i32
    %c0_i32_0 = arith.constant 0 : i32
    %c0_i32_1 = arith.constant 0 : i32
    return %arg0, %c0_i32, %c0_i32_0 : i32, i32, i32
  }
  func.func @transform_4(%arg0: i32, %arg1: i32) -> (i32, i32, i32, i32) {
    %c0_i32 = arith.constant 0 : i32
    %c0_i32_0 = arith.constant 0 : i32
    %c0_i32_1 = arith.constant 0 : i32
    return %arg0, %arg1, %c0_i32, %c0_i32_0 : i32, i32, i32, i32
  }
}

module attributes {stable_mosaic.version = 11 : i64} {
  func.func @_dense_add_ln_kernel(%arg0: i32, %arg1: i32, %arg2: memref<16x256xbf16, #tpu.memory_space<vmem>>, %arg3: memref<256x256xbf16, #tpu.memory_space<vmem>>, %arg4: memref<1x256xf32, #tpu.memory_space<vmem>>, %arg5: memref<16x256xbf16, #tpu.memory_space<vmem>>, %arg6: memref<1x256xf32, #tpu.memory_space<vmem>>, %arg7: memref<1x256xf32, #tpu.memory_space<vmem>>, %arg8: memref<16x256xbf16, #tpu.memory_space<vmem>>, %arg9: memref<16x256xf32, #tpu.memory_space<vmem>>) attributes {dimension_semantics = [#tpu.dimension_semantics<parallel>, #tpu.dimension_semantics<arbitrary>], iteration_bounds = array<i64: 2, 1>, scalar_prefetch = 0 : i64, scratch_operands = 1 : i64, tpu.core_type = #tpu.core_type<tc>, window_params = [{transform_indices = @transform_0, window_bounds = array<i64: 16, 256>}, {transform_indices = @transform_1, window_bounds = array<i64: 256, 256>}, {pipeline_mode = #tpu.pipeline_mode<synchronous>, transform_indices = @transform_2, window_bounds = array<i64: 1, 256>}, {transform_indices = @transform_3, window_bounds = array<i64: 16, 256>}, {pipeline_mode = #tpu.pipeline_mode<synchronous>, transform_indices = @transform_4, window_bounds = array<i64: 1, 256>}, {pipeline_mode = #tpu.pipeline_mode<synchronous>, transform_indices = @transform_5, window_bounds = array<i64: 1, 256>}, {transform_indices = @transform_6, window_bounds = array<i64: 16, 256>}]} {
    %c0_i32 = arith.constant 0 : i32
    %0 = arith.cmpi eq, %arg1, %c0_i32 : i32
    %1 = arith.extui %0 : i1 to i32
    %c0_i32_0 = arith.constant 0 : i32
    %2 = arith.cmpi ne, %1, %c0_i32_0 : i32
    scf.if %2 {
      %cst_10 = arith.constant 0.000000e+00 : f32
      %12 = vector.broadcast %cst_10 : f32 to vector<16x256xf32>
      %c0_11 = arith.constant 0 : index
      %c0_12 = arith.constant 0 : index
      %13 = vector.load %arg9[%c0_11, %c0_12] : memref<16x256xf32, #tpu.memory_space<vmem>>, vector<16x256xf32>
      tpu.vector_store %arg9[%c0_11, %c0_12], %12 {strides = array<i32>} : memref<16x256xf32, #tpu.memory_space<vmem>>, vector<16x256xf32>,
    } else {
    }
    %c0 = arith.constant 0 : index
    %c0_1 = arith.constant 0 : index
    %3 = vector.load %arg9[%c0, %c0_1] : memref<16x256xf32, #tpu.memory_space<vmem>>, vector<16x256xf32>
    %c0_2 = arith.constant 0 : index
    %c0_3 = arith.constant 0 : index
    %4 = vector.load %arg2[%c0_2, %c0_3] : memref<16x256xbf16, #tpu.memory_space<vmem>>, vector<16x256xbf16>
    %c0_4 = arith.constant 0 : index
    %c0_5 = arith.constant 0 : index
    %5 = vector.load %arg3[%c0_4, %c0_5] : memref<256x256xbf16, #tpu.memory_space<vmem>>, vector<256x256xbf16>
    %cst = arith.constant dense<0.000000e+00> : vector<16x256xf32>
    %6 = tpu.matmul %4, %5, %cst {dimension_numbers = #tpu.dot_dimension_numbers<[1], [0], [0], [1], [0, 0, 1, 1], [], []>} : vector<16x256xbf16>, vector<256x256xbf16>, vector<16x256xf32> -> vector<16x256xf32>
    %7 = arith.addf %3, %6 : vector<16x256xf32>
    %c0_6 = arith.constant 0 : index
    %c0_7 = arith.constant 0 : index
    %8 = vector.load %arg9[%c0_6, %c0_7] : memref<16x256xf32, #tpu.memory_space<vmem>>, vector<16x256xf32>
    tpu.vector_store %arg9[%c0_6, %c0_7], %7 {strides = array<i32>} : memref<16x256xf32, #tpu.memory_space<vmem>>, vector<16x256xf32>,
    %c0_i32_8 = arith.constant 0 : i32
    %9 = arith.cmpi eq, %arg1, %c0_i32_8 : i32
    %10 = arith.extui %9 : i1 to i32
    %c0_i32_9 = arith.constant 0 : i32
    %11 = arith.cmpi ne, %10, %c0_i32_9 : i32
    scf.if %11 {
      %c0_10 = arith.constant 0 : index
      %c0_11 = arith.constant 0 : index
      %12 = vector.load %arg9[%c0_10, %c0_11] : memref<16x256xf32, #tpu.memory_space<vmem>>, vector<16x256xf32>
      %c0_12 = arith.constant 0 : index
      %c0_13 = arith.constant 0 : index
      %13 = vector.load %arg4[%c0_12, %c0_13] : memref<1x256xf32, #tpu.memory_space<vmem>>, vector<1x256xf32>
      %14 = vector.broadcast %13 : vector<1x256xf32> to vector<16x256xf32>
      %15 = arith.addf %12, %14 : vector<16x256xf32>
      %c0_14 = arith.constant 0 : index
      %c0_15 = arith.constant 0 : index
      %16 = vector.load %arg5[%c0_14, %c0_15] : memref<16x256xbf16, #tpu.memory_space<vmem>>, vector<16x256xbf16>
      %17 = arith.extf %16 : vector<16x256xbf16> to vector<16x256xf32>
      %18 = arith.addf %15, %17 : vector<16x256xf32>
      %cst_16 = arith.constant dense<0.000000e+00> : vector<16xf32>
      %19 = vector.multi_reduction <add>, %18, %cst_16 [1] : vector<16x256xf32> to vector<16xf32>
      %20 = vector.shape_cast %19 : vector<16xf32> to vector<16x1xf32>
      %cst_17 = arith.constant 2.560000e+02 : f32
      %21 = vector.broadcast %cst_17 : f32 to vector<16x1xf32>
      %22 = arith.divf %20, %21 : vector<16x1xf32>
      %23 = vector.broadcast %22 : vector<16x1xf32> to vector<16x256xf32>
      %24 = arith.subf %18, %23 : vector<16x256xf32>
      %25 = arith.mulf %24, %24 : vector<16x256xf32>
      %cst_18 = arith.constant dense<0.000000e+00> : vector<16xf32>
      %26 = vector.multi_reduction <add>, %25, %cst_18 [1] : vector<16x256xf32> to vector<16xf32>
      %27 = vector.shape_cast %26 : vector<16xf32> to vector<16x1xf32>
      %cst_19 = arith.constant 2.560000e+02 : f32
      %28 = vector.broadcast %cst_19 : f32 to vector<16x1xf32>
      %29 = arith.divf %27, %28 : vector<16x1xf32>
      %cst_20 = arith.constant 9.99999996E-13 : f32
      %30 = vector.broadcast %cst_20 : f32 to vector<16x1xf32>
      %31 = arith.addf %29, %30 : vector<16x1xf32>
      %32 = math.rsqrt %31 : vector<16x1xf32>
      %33 = vector.broadcast %32 : vector<16x1xf32> to vector<16x256xf32>
      %34 = arith.mulf %24, %33 : vector<16x256xf32>
      %c0_21 = arith.constant 0 : index
      %c0_22 = arith.constant 0 : index
      %35 = vector.load %arg6[%c0_21, %c0_22] : memref<1x256xf32, #tpu.memory_space<vmem>>, vector<1x256xf32>
      %36 = vector.broadcast %35 : vector<1x256xf32> to vector<16x256xf32>
      %37 = arith.mulf %34, %36 : vector<16x256xf32>
      %c0_23 = arith.constant 0 : index
      %c0_24 = arith.constant 0 : index
      %38 = vector.load %arg7[%c0_23, %c0_24] : memref<1x256xf32, #tpu.memory_space<vmem>>, vector<1x256xf32>
      %39 = vector.broadcast %38 : vector<1x256xf32> to vector<16x256xf32>
      %40 = arith.addf %37, %39 : vector<16x256xf32>
      %41 = arith.truncf %40 : vector<16x256xf32> to vector<16x256xbf16>
      %c0_25 = arith.constant 0 : index
      %c0_26 = arith.constant 0 : index
      %42 = vector.load %arg8[%c0_25, %c0_26] : memref<16x256xbf16, #tpu.memory_space<vmem>>, vector<16x256xbf16>
      tpu.vector_store %arg8[%c0_25, %c0_26], %41 {strides = array<i32>} : memref<16x256xbf16, #tpu.memory_space<vmem>>, vector<16x256xbf16>,
    } else {
    }
    return
  }
  func.func @transform_0(%arg0: i32, %arg1: i32) -> (i32, i32) {
    %c0_i32 = arith.constant 0 : i32
    return %arg0, %arg1 : i32, i32
  }
  func.func @transform_1(%arg0: i32, %arg1: i32) -> (i32, i32) {
    %c0_i32 = arith.constant 0 : i32
    %c0_i32_0 = arith.constant 0 : i32
    return %arg1, %c0_i32 : i32, i32
  }
  func.func @transform_2(%arg0: i32, %arg1: i32) -> (i32, i32) {
    %c0_i32 = arith.constant 0 : i32
    %c0_i32_0 = arith.constant 0 : i32
    %c0_i32_1 = arith.constant 0 : i32
    return %c0_i32, %c0_i32_0 : i32, i32
  }
  func.func @transform_3(%arg0: i32, %arg1: i32) -> (i32, i32) {
    %c0_i32 = arith.constant 0 : i32
    %c0_i32_0 = arith.constant 0 : i32
    return %arg0, %c0_i32 : i32, i32
  }
  func.func @transform_4(%arg0: i32, %arg1: i32) -> (i32, i32) {
    %c0_i32 = arith.constant 0 : i32
    %c0_i32_0 = arith.constant 0 : i32
    %c0_i32_1 = arith.constant 0 : i32
    return %c0_i32, %c0_i32_0 : i32, i32
  }
  func.func @transform_5(%arg0: i32, %arg1: i32) -> (i32, i32) {
    %c0_i32 = arith.constant 0 : i32
    %c0_i32_0 = arith.constant 0 : i32
    %c0_i32_1 = arith.constant 0 : i32
    return %c0_i32, %c0_i32_0 : i32, i32
  }
  func.func @transform_6(%arg0: i32, %arg1: i32) -> (i32, i32) {
    %c0_i32 = arith.constant 0 : i32
    %c0_i32_0 = arith.constant 0 : i32
    return %arg0, %c0_i32 : i32, i32
  }
}

module attributes {stable_mosaic.version = 11 : i64} {
  func.func @_dense_add_ln_kernel(%arg0: i32, %arg1: i32, %arg2: memref<16x512xbf16, #tpu.memory_space<vmem>>, %arg3: memref<512x256xbf16, #tpu.memory_space<vmem>>, %arg4: memref<1x256xf32, #tpu.memory_space<vmem>>, %arg5: memref<16x256xbf16, #tpu.memory_space<vmem>>, %arg6: memref<1x256xf32, #tpu.memory_space<vmem>>, %arg7: memref<1x256xf32, #tpu.memory_space<vmem>>, %arg8: memref<16x256xbf16, #tpu.memory_space<vmem>>, %arg9: memref<16x256xf32, #tpu.memory_space<vmem>>) attributes {dimension_semantics = [#tpu.dimension_semantics<parallel>, #tpu.dimension_semantics<arbitrary>], iteration_bounds = array<i64: 2, 2>, scalar_prefetch = 0 : i64, scratch_operands = 1 : i64, tpu.core_type = #tpu.core_type<tc>, window_params = [{transform_indices = @transform_0, window_bounds = array<i64: 16, 512>}, {transform_indices = @transform_1, window_bounds = array<i64: 512, 256>}, {pipeline_mode = #tpu.pipeline_mode<synchronous>, transform_indices = @transform_2, window_bounds = array<i64: 1, 256>}, {transform_indices = @transform_3, window_bounds = array<i64: 16, 256>}, {pipeline_mode = #tpu.pipeline_mode<synchronous>, transform_indices = @transform_4, window_bounds = array<i64: 1, 256>}, {pipeline_mode = #tpu.pipeline_mode<synchronous>, transform_indices = @transform_5, window_bounds = array<i64: 1, 256>}, {transform_indices = @transform_6, window_bounds = array<i64: 16, 256>}]} {
    %c0_i32 = arith.constant 0 : i32
    %0 = arith.cmpi eq, %arg1, %c0_i32 : i32
    %1 = arith.extui %0 : i1 to i32
    %c0_i32_0 = arith.constant 0 : i32
    %2 = arith.cmpi ne, %1, %c0_i32_0 : i32
    scf.if %2 {
      %cst_9 = arith.constant 0.000000e+00 : f32
      %12 = vector.broadcast %cst_9 : f32 to vector<16x256xf32>
      %c0_10 = arith.constant 0 : index
      %c0_11 = arith.constant 0 : index
      %13 = vector.load %arg9[%c0_10, %c0_11] : memref<16x256xf32, #tpu.memory_space<vmem>>, vector<16x256xf32>
      tpu.vector_store %arg9[%c0_10, %c0_11], %12 {strides = array<i32>} : memref<16x256xf32, #tpu.memory_space<vmem>>, vector<16x256xf32>,
    } else {
    }
    %c0 = arith.constant 0 : index
    %c0_1 = arith.constant 0 : index
    %3 = vector.load %arg9[%c0, %c0_1] : memref<16x256xf32, #tpu.memory_space<vmem>>, vector<16x256xf32>
    %c0_2 = arith.constant 0 : index
    %c0_3 = arith.constant 0 : index
    %4 = vector.load %arg2[%c0_2, %c0_3] : memref<16x512xbf16, #tpu.memory_space<vmem>>, vector<16x512xbf16>
    %c0_4 = arith.constant 0 : index
    %c0_5 = arith.constant 0 : index
    %5 = vector.load %arg3[%c0_4, %c0_5] : memref<512x256xbf16, #tpu.memory_space<vmem>>, vector<512x256xbf16>
    %cst = arith.constant dense<0.000000e+00> : vector<16x256xf32>
    %6 = tpu.matmul %4, %5, %cst {dimension_numbers = #tpu.dot_dimension_numbers<[1], [0], [0], [1], [0, 0, 1, 1], [], []>} : vector<16x512xbf16>, vector<512x256xbf16>, vector<16x256xf32> -> vector<16x256xf32>
    %7 = arith.addf %3, %6 : vector<16x256xf32>
    %c0_6 = arith.constant 0 : index
    %c0_7 = arith.constant 0 : index
    %8 = vector.load %arg9[%c0_6, %c0_7] : memref<16x256xf32, #tpu.memory_space<vmem>>, vector<16x256xf32>
    tpu.vector_store %arg9[%c0_6, %c0_7], %7 {strides = array<i32>} : memref<16x256xf32, #tpu.memory_space<vmem>>, vector<16x256xf32>,
    %c1_i32 = arith.constant 1 : i32
    %9 = arith.cmpi eq, %arg1, %c1_i32 : i32
    %10 = arith.extui %9 : i1 to i32
    %c0_i32_8 = arith.constant 0 : i32
    %11 = arith.cmpi ne, %10, %c0_i32_8 : i32
    scf.if %11 {
      %c0_9 = arith.constant 0 : index
      %c0_10 = arith.constant 0 : index
      %12 = vector.load %arg9[%c0_9, %c0_10] : memref<16x256xf32, #tpu.memory_space<vmem>>, vector<16x256xf32>
      %c0_11 = arith.constant 0 : index
      %c0_12 = arith.constant 0 : index
      %13 = vector.load %arg4[%c0_11, %c0_12] : memref<1x256xf32, #tpu.memory_space<vmem>>, vector<1x256xf32>
      %14 = vector.broadcast %13 : vector<1x256xf32> to vector<16x256xf32>
      %15 = arith.addf %12, %14 : vector<16x256xf32>
      %c0_13 = arith.constant 0 : index
      %c0_14 = arith.constant 0 : index
      %16 = vector.load %arg5[%c0_13, %c0_14] : memref<16x256xbf16, #tpu.memory_space<vmem>>, vector<16x256xbf16>
      %17 = arith.extf %16 : vector<16x256xbf16> to vector<16x256xf32>
      %18 = arith.addf %15, %17 : vector<16x256xf32>
      %cst_15 = arith.constant dense<0.000000e+00> : vector<16xf32>
      %19 = vector.multi_reduction <add>, %18, %cst_15 [1] : vector<16x256xf32> to vector<16xf32>
      %20 = vector.shape_cast %19 : vector<16xf32> to vector<16x1xf32>
      %cst_16 = arith.constant 2.560000e+02 : f32
      %21 = vector.broadcast %cst_16 : f32 to vector<16x1xf32>
      %22 = arith.divf %20, %21 : vector<16x1xf32>
      %23 = vector.broadcast %22 : vector<16x1xf32> to vector<16x256xf32>
      %24 = arith.subf %18, %23 : vector<16x256xf32>
      %25 = arith.mulf %24, %24 : vector<16x256xf32>
      %cst_17 = arith.constant dense<0.000000e+00> : vector<16xf32>
      %26 = vector.multi_reduction <add>, %25, %cst_17 [1] : vector<16x256xf32> to vector<16xf32>
      %27 = vector.shape_cast %26 : vector<16xf32> to vector<16x1xf32>
      %cst_18 = arith.constant 2.560000e+02 : f32
      %28 = vector.broadcast %cst_18 : f32 to vector<16x1xf32>
      %29 = arith.divf %27, %28 : vector<16x1xf32>
      %cst_19 = arith.constant 9.99999996E-13 : f32
      %30 = vector.broadcast %cst_19 : f32 to vector<16x1xf32>
      %31 = arith.addf %29, %30 : vector<16x1xf32>
      %32 = math.rsqrt %31 : vector<16x1xf32>
      %33 = vector.broadcast %32 : vector<16x1xf32> to vector<16x256xf32>
      %34 = arith.mulf %24, %33 : vector<16x256xf32>
      %c0_20 = arith.constant 0 : index
      %c0_21 = arith.constant 0 : index
      %35 = vector.load %arg6[%c0_20, %c0_21] : memref<1x256xf32, #tpu.memory_space<vmem>>, vector<1x256xf32>
      %36 = vector.broadcast %35 : vector<1x256xf32> to vector<16x256xf32>
      %37 = arith.mulf %34, %36 : vector<16x256xf32>
      %c0_22 = arith.constant 0 : index
      %c0_23 = arith.constant 0 : index
      %38 = vector.load %arg7[%c0_22, %c0_23] : memref<1x256xf32, #tpu.memory_space<vmem>>, vector<1x256xf32>
      %39 = vector.broadcast %38 : vector<1x256xf32> to vector<16x256xf32>
      %40 = arith.addf %37, %39 : vector<16x256xf32>
      %41 = arith.truncf %40 : vector<16x256xf32> to vector<16x256xbf16>
      %c0_24 = arith.constant 0 : index
      %c0_25 = arith.constant 0 : index
      %42 = vector.load %arg8[%c0_24, %c0_25] : memref<16x256xbf16, #tpu.memory_space<vmem>>, vector<16x256xbf16>
      tpu.vector_store %arg8[%c0_24, %c0_25], %41 {strides = array<i32>} : memref<16x256xbf16, #tpu.memory_space<vmem>>, vector<16x256xbf16>,
    } else {
    }
    return
  }
  func.func @transform_0(%arg0: i32, %arg1: i32) -> (i32, i32) {
    %c0_i32 = arith.constant 0 : i32
    return %arg0, %arg1 : i32, i32
  }
  func.func @transform_1(%arg0: i32, %arg1: i32) -> (i32, i32) {
    %c0_i32 = arith.constant 0 : i32
    %c0_i32_0 = arith.constant 0 : i32
    return %arg1, %c0_i32 : i32, i32
  }
  func.func @transform_2(%arg0: i32, %arg1: i32) -> (i32, i32) {
    %c0_i32 = arith.constant 0 : i32
    %c0_i32_0 = arith.constant 0 : i32
    %c0_i32_1 = arith.constant 0 : i32
    return %c0_i32, %c0_i32_0 : i32, i32
  }
  func.func @transform_3(%arg0: i32, %arg1: i32) -> (i32, i32) {
    %c0_i32 = arith.constant 0 : i32
    %c0_i32_0 = arith.constant 0 : i32
    return %arg0, %c0_i32 : i32, i32
  }
  func.func @transform_4(%arg0: i32, %arg1: i32) -> (i32, i32) {
    %c0_i32 = arith.constant 0 : i32
    %c0_i32_0 = arith.constant 0 : i32
    %c0_i32_1 = arith.constant 0 : i32
    return %c0_i32, %c0_i32_0 : i32, i32
  }
  func.func @transform_5(%arg0: i32, %arg1: i32) -> (i32, i32) {
    %c0_i32 = arith.constant 0 : i32
    %c0_i32_0 = arith.constant 0 : i32
    %c0_i32_1 = arith.constant 0 : i32
    return %c0_i32, %c0_i32_0 : i32, i32
  }
  func.func @transform_6(%arg0: i32, %arg1: i32) -> (i32, i32) {
    %c0_i32 = arith.constant 0 : i32
    %c0_i32_0 = arith.constant 0 : i32
    return %arg0, %c0_i32 : i32, i32
  }
}

module attributes {stable_mosaic.version = 11 : i64} {
  func.func @_dense_kernel(%arg0: i32, %arg1: i32, %arg2: memref<16x256xbf16, #tpu.memory_space<vmem>>, %arg3: memref<256x512xbf16, #tpu.memory_space<vmem>>, %arg4: memref<1x512xf32, #tpu.memory_space<vmem>>, %arg5: memref<16x512xbf16, #tpu.memory_space<vmem>>) attributes {dimension_semantics = [#tpu.dimension_semantics<parallel>, #tpu.dimension_semantics<parallel>], iteration_bounds = array<i64: 2, 2>, scalar_prefetch = 0 : i64, scratch_operands = 0 : i64, tpu.core_type = #tpu.core_type<tc>, window_params = [{transform_indices = @transform_0, window_bounds = array<i64: 16, 256>}, {transform_indices = @transform_1, window_bounds = array<i64: 256, 512>}, {transform_indices = @transform_2, window_bounds = array<i64: 1, 512>}, {transform_indices = @transform_3, window_bounds = array<i64: 16, 512>}]} {
    %c0 = arith.constant 0 : index
    %c0_0 = arith.constant 0 : index
    %0 = vector.load %arg2[%c0, %c0_0] : memref<16x256xbf16, #tpu.memory_space<vmem>>, vector<16x256xbf16>
    %c0_1 = arith.constant 0 : index
    %c0_2 = arith.constant 0 : index
    %1 = vector.load %arg3[%c0_1, %c0_2] : memref<256x512xbf16, #tpu.memory_space<vmem>>, vector<256x512xbf16>
    %cst = arith.constant dense<0.000000e+00> : vector<16x512xf32>
    %2 = tpu.matmul %0, %1, %cst {dimension_numbers = #tpu.dot_dimension_numbers<[1], [0], [0], [1], [0, 0, 1, 1], [], []>} : vector<16x256xbf16>, vector<256x512xbf16>, vector<16x512xf32> -> vector<16x512xf32>
    %c0_3 = arith.constant 0 : index
    %c0_4 = arith.constant 0 : index
    %3 = vector.load %arg4[%c0_3, %c0_4] : memref<1x512xf32, #tpu.memory_space<vmem>>, vector<1x512xf32>
    %4 = vector.broadcast %3 : vector<1x512xf32> to vector<16x512xf32>
    %5 = arith.addf %2, %4 : vector<16x512xf32>
    %cst_5 = arith.constant 5.000000e-01 : f32
    %6 = vector.broadcast %cst_5 : f32 to vector<16x512xf32>
    %7 = arith.mulf %6, %5 : vector<16x512xf32>
    %cst_6 = arith.constant 4.471500e-02 : f32
    %8 = vector.broadcast %cst_6 : f32 to vector<16x512xf32>
    %9 = arith.mulf %8, %5 : vector<16x512xf32>
    %10 = arith.mulf %9, %5 : vector<16x512xf32>
    %11 = arith.mulf %10, %5 : vector<16x512xf32>
    %12 = arith.addf %5, %11 : vector<16x512xf32>
    %cst_7 = arith.constant 0.797884583 : f32
    %13 = vector.broadcast %cst_7 : f32 to vector<16x512xf32>
    %14 = arith.mulf %13, %12 : vector<16x512xf32>
    %15 = math.tanh %14 : vector<16x512xf32>
    %cst_8 = arith.constant 1.000000e+00 : f32
    %16 = vector.broadcast %cst_8 : f32 to vector<16x512xf32>
    %17 = arith.addf %16, %15 : vector<16x512xf32>
    %18 = arith.mulf %7, %17 : vector<16x512xf32>
    %19 = arith.truncf %18 : vector<16x512xf32> to vector<16x512xbf16>
    %c0_9 = arith.constant 0 : index
    %c0_10 = arith.constant 0 : index
    %20 = vector.load %arg5[%c0_9, %c0_10] : memref<16x512xbf16, #tpu.memory_space<vmem>>, vector<16x512xbf16>
    tpu.vector_store %arg5[%c0_9, %c0_10], %19 {strides = array<i32>} : memref<16x512xbf16, #tpu.memory_space<vmem>>, vector<16x512xbf16>,
    return
  }
  func.func @transform_0(%arg0: i32, %arg1: i32) -> (i32, i32) {
    %c0_i32 = arith.constant 0 : i32
    %c0_i32_0 = arith.constant 0 : i32
    return %arg0, %c0_i32 : i32, i32
  }
  func.func @transform_1(%arg0: i32, %arg1: i32) -> (i32, i32) {
    %c0_i32 = arith.constant 0 : i32
    %c0_i32_0 = arith.constant 0 : i32
    return %c0_i32, %arg1 : i32, i32
  }
  func.func @transform_2(%arg0: i32, %arg1: i32) -> (i32, i32) {
    %c0_i32 = arith.constant 0 : i32
    %c0_i32_0 = arith.constant 0 : i32
    return %c0_i32, %arg1 : i32, i32
  }
  func.func @transform_3(%arg0: i32, %arg1: i32) -> (i32, i32) {
    %c0_i32 = arith.constant 0 : i32
    return %arg0, %arg1 : i32, i32
  }
}

module attributes {stable_mosaic.version = 11 : i64} {
  func.func @_logits_lse_kernel(%arg0: i32, %arg1: i32, %arg2: memref<16x256xbf16, #tpu.memory_space<vmem>>, %arg3: memref<256x512xbf16, #tpu.memory_space<vmem>>, %arg4: memref<1x512xf32, #tpu.memory_space<vmem>>, %arg5: memref<16x512xbf16, #tpu.memory_space<vmem>>, %arg6: memref<16x1xf32, #tpu.memory_space<vmem>>, %arg7: memref<16x1xf32, #tpu.memory_space<vmem>>, %arg8: memref<16x1xf32, #tpu.memory_space<vmem>>) attributes {dimension_semantics = [#tpu.dimension_semantics<parallel>, #tpu.dimension_semantics<arbitrary>], iteration_bounds = array<i64: 2, 2>, scalar_prefetch = 0 : i64, scratch_operands = 2 : i64, tpu.core_type = #tpu.core_type<tc>, window_params = [{transform_indices = @transform_0, window_bounds = array<i64: 16, 256>}, {transform_indices = @transform_1, window_bounds = array<i64: 256, 512>}, {transform_indices = @transform_2, window_bounds = array<i64: 1, 512>}, {transform_indices = @transform_3, window_bounds = array<i64: 16, 512>}, {transform_indices = @transform_4, window_bounds = array<i64: 16, 1>}]} {
    %c0_i32 = arith.constant 0 : i32
    %0 = arith.cmpi eq, %arg1, %c0_i32 : i32
    %1 = arith.extui %0 : i1 to i32
    %c0_i32_0 = arith.constant 0 : i32
    %2 = arith.cmpi ne, %1, %c0_i32_0 : i32
    scf.if %2 {
      %cst_21 = arith.constant 0xFF800000 : f32
      %31 = vector.broadcast %cst_21 : f32 to vector<16x1xf32>
      %c0_22 = arith.constant 0 : index
      %c0_23 = arith.constant 0 : index
      %32 = vector.load %arg7[%c0_22, %c0_23] : memref<16x1xf32, #tpu.memory_space<vmem>>, vector<16x1xf32>
      tpu.vector_store %arg7[%c0_22, %c0_23], %31 {strides = array<i32>} : memref<16x1xf32, #tpu.memory_space<vmem>>, vector<16x1xf32>,
      %cst_24 = arith.constant 0.000000e+00 : f32
      %33 = vector.broadcast %cst_24 : f32 to vector<16x1xf32>
      %c0_25 = arith.constant 0 : index
      %c0_26 = arith.constant 0 : index
      %34 = vector.load %arg8[%c0_25, %c0_26] : memref<16x1xf32, #tpu.memory_space<vmem>>, vector<16x1xf32>
      tpu.vector_store %arg8[%c0_25, %c0_26], %33 {strides = array<i32>} : memref<16x1xf32, #tpu.memory_space<vmem>>, vector<16x1xf32>,
    } else {
    }
    %c0 = arith.constant 0 : index
    %c0_1 = arith.constant 0 : index
    %3 = vector.load %arg2[%c0, %c0_1] : memref<16x256xbf16, #tpu.memory_space<vmem>>, vector<16x256xbf16>
    %c0_2 = arith.constant 0 : index
    %c0_3 = arith.constant 0 : index
    %4 = vector.load %arg3[%c0_2, %c0_3] : memref<256x512xbf16, #tpu.memory_space<vmem>>, vector<256x512xbf16>
    %cst = arith.constant dense<0.000000e+00> : vector<16x512xf32>
    %5 = tpu.matmul %3, %4, %cst {dimension_numbers = #tpu.dot_dimension_numbers<[1], [0], [0], [1], [0, 0, 1, 1], [], []>} : vector<16x256xbf16>, vector<256x512xbf16>, vector<16x512xf32> -> vector<16x512xf32>
    %c0_4 = arith.constant 0 : index
    %c0_5 = arith.constant 0 : index
    %6 = vector.load %arg4[%c0_4, %c0_5] : memref<1x512xf32, #tpu.memory_space<vmem>>, vector<1x512xf32>
    %7 = vector.broadcast %6 : vector<1x512xf32> to vector<16x512xf32>
    %8 = arith.addf %5, %7 : vector<16x512xf32>
    %9 = arith.truncf %8 : vector<16x512xf32> to vector<16x512xbf16>
    %c0_6 = arith.constant 0 : index
    %c0_7 = arith.constant 0 : index
    %10 = vector.load %arg5[%c0_6, %c0_7] : memref<16x512xbf16, #tpu.memory_space<vmem>>, vector<16x512xbf16>
    tpu.vector_store %arg5[%c0_6, %c0_7], %9 {strides = array<i32>} : memref<16x512xbf16, #tpu.memory_space<vmem>>, vector<16x512xbf16>,
    %c0_8 = arith.constant 0 : index
    %c0_9 = arith.constant 0 : index
    %11 = vector.load %arg7[%c0_8, %c0_9] : memref<16x1xf32, #tpu.memory_space<vmem>>, vector<16x1xf32>
    %cst_10 = arith.constant dense<0xFF800000> : vector<16xf32>
    %12 = vector.multi_reduction <maximumf>, %8, %cst_10 [1] : vector<16x512xf32> to vector<16xf32>
    %13 = vector.shape_cast %12 : vector<16xf32> to vector<16x1xf32>
    %14 = arith.maximumf %11, %13 : vector<16x1xf32>
    %c0_11 = arith.constant 0 : index
    %c0_12 = arith.constant 0 : index
    %15 = vector.load %arg7[%c0_11, %c0_12] : memref<16x1xf32, #tpu.memory_space<vmem>>, vector<16x1xf32>
    %16 = arith.subf %15, %14 : vector<16x1xf32>
    %17 = math.exp %16 : vector<16x1xf32>
    %c0_13 = arith.constant 0 : index
    %c0_14 = arith.constant 0 : index
    %18 = vector.load %arg8[%c0_13, %c0_14] : memref<16x1xf32, #tpu.memory_space<vmem>>, vector<16x1xf32>
    %19 = arith.mulf %17, %18 : vector<16x1xf32>
    %20 = vector.broadcast %14 : vector<16x1xf32> to vector<16x512xf32>
    %21 = arith.subf %8, %20 : vector<16x512xf32>
    %22 = math.exp %21 : vector<16x512xf32>
    %cst_15 = arith.constant dense<0.000000e+00> : vector<16xf32>
    %23 = vector.multi_reduction <add>, %22, %cst_15 [1] : vector<16x512xf32> to vector<16xf32>
    %24 = vector.shape_cast %23 : vector<16xf32> to vector<16x1xf32>
    %25 = arith.addf %19, %24 : vector<16x1xf32>
    %c0_16 = arith.constant 0 : index
    %c0_17 = arith.constant 0 : index
    %26 = vector.load %arg8[%c0_16, %c0_17] : memref<16x1xf32, #tpu.memory_space<vmem>>, vector<16x1xf32>
    tpu.vector_store %arg8[%c0_16, %c0_17], %25 {strides = array<i32>} : memref<16x1xf32, #tpu.memory_space<vmem>>, vector<16x1xf32>,
    %c0_18 = arith.constant 0 : index
    %c0_19 = arith.constant 0 : index
    %27 = vector.load %arg7[%c0_18, %c0_19] : memref<16x1xf32, #tpu.memory_space<vmem>>, vector<16x1xf32>
    tpu.vector_store %arg7[%c0_18, %c0_19], %14 {strides = array<i32>} : memref<16x1xf32, #tpu.memory_space<vmem>>, vector<16x1xf32>,
    %c1_i32 = arith.constant 1 : i32
    %28 = arith.cmpi eq, %arg1, %c1_i32 : i32
    %29 = arith.extui %28 : i1 to i32
    %c0_i32_20 = arith.constant 0 : i32
    %30 = arith.cmpi ne, %29, %c0_i32_20 : i32
    scf.if %30 {
      %c0_21 = arith.constant 0 : index
      %c0_22 = arith.constant 0 : index
      %31 = vector.load %arg7[%c0_21, %c0_22] : memref<16x1xf32, #tpu.memory_space<vmem>>, vector<16x1xf32>
      %c0_23 = arith.constant 0 : index
      %c0_24 = arith.constant 0 : index
      %32 = vector.load %arg8[%c0_23, %c0_24] : memref<16x1xf32, #tpu.memory_space<vmem>>, vector<16x1xf32>
      %33 = math.log %32 : vector<16x1xf32>
      %34 = arith.addf %31, %33 : vector<16x1xf32>
      %c0_25 = arith.constant 0 : index
      %c0_26 = arith.constant 0 : index
      %35 = vector.load %arg6[%c0_25, %c0_26] : memref<16x1xf32, #tpu.memory_space<vmem>>, vector<16x1xf32>
      tpu.vector_store %arg6[%c0_25, %c0_26], %34 {strides = array<i32>} : memref<16x1xf32, #tpu.memory_space<vmem>>, vector<16x1xf32>,
    } else {
    }
    return
  }
  func.func @transform_0(%arg0: i32, %arg1: i32) -> (i32, i32) {
    %c0_i32 = arith.constant 0 : i32
    %c0_i32_0 = arith.constant 0 : i32
    return %arg0, %c0_i32 : i32, i32
  }
  func.func @transform_1(%arg0: i32, %arg1: i32) -> (i32, i32) {
    %c0_i32 = arith.constant 0 : i32
    %c0_i32_0 = arith.constant 0 : i32
    return %c0_i32, %arg1 : i32, i32
  }
  func.func @transform_2(%arg0: i32, %arg1: i32) -> (i32, i32) {
    %c0_i32 = arith.constant 0 : i32
    %c0_i32_0 = arith.constant 0 : i32
    return %c0_i32, %arg1 : i32, i32
  }
  func.func @transform_3(%arg0: i32, %arg1: i32) -> (i32, i32) {
    %c0_i32 = arith.constant 0 : i32
    return %arg0, %arg1 : i32, i32
  }
  func.func @transform_4(%arg0: i32, %arg1: i32) -> (i32, i32) {
    %c0_i32 = arith.constant 0 : i32
    %c0_i32_0 = arith.constant 0 : i32
    return %arg0, %c0_i32 : i32, i32
  }
}

module attributes {stable_mosaic.version = 11 : i64} {
  func.func @_softmax_norm_kernel(%arg0: i32, %arg1: i32, %arg2: memref<16x512xbf16, #tpu.memory_space<vmem>>, %arg3: memref<16x1xf32, #tpu.memory_space<vmem>>, %arg4: memref<16x512xbf16, #tpu.memory_space<vmem>>) attributes {dimension_semantics = [#tpu.dimension_semantics<parallel>, #tpu.dimension_semantics<parallel>], iteration_bounds = array<i64: 2, 2>, scalar_prefetch = 0 : i64, scratch_operands = 0 : i64, tpu.core_type = #tpu.core_type<tc>, window_params = [{transform_indices = @transform_0, window_bounds = array<i64: 16, 512>}, {transform_indices = @transform_1, window_bounds = array<i64: 16, 1>}, {transform_indices = @transform_2, window_bounds = array<i64: 16, 512>}]} {
    %c0 = arith.constant 0 : index
    %c0_0 = arith.constant 0 : index
    %0 = vector.load %arg2[%c0, %c0_0] : memref<16x512xbf16, #tpu.memory_space<vmem>>, vector<16x512xbf16>
    %1 = arith.extf %0 : vector<16x512xbf16> to vector<16x512xf32>
    %c0_1 = arith.constant 0 : index
    %c0_2 = arith.constant 0 : index
    %2 = vector.load %arg3[%c0_1, %c0_2] : memref<16x1xf32, #tpu.memory_space<vmem>>, vector<16x1xf32>
    %3 = vector.broadcast %2 : vector<16x1xf32> to vector<16x512xf32>
    %4 = arith.subf %1, %3 : vector<16x512xf32>
    %5 = math.exp %4 : vector<16x512xf32>
    %6 = arith.truncf %5 : vector<16x512xf32> to vector<16x512xbf16>
    %c0_3 = arith.constant 0 : index
    %c0_4 = arith.constant 0 : index
    %7 = vector.load %arg4[%c0_3, %c0_4] : memref<16x512xbf16, #tpu.memory_space<vmem>>, vector<16x512xbf16>
    tpu.vector_store %arg4[%c0_3, %c0_4], %6 {strides = array<i32>} : memref<16x512xbf16, #tpu.memory_space<vmem>>, vector<16x512xbf16>,
    return
  }
  func.func @transform_0(%arg0: i32, %arg1: i32) -> (i32, i32) {
    %c0_i32 = arith.constant 0 : i32
    return %arg0, %arg1 : i32, i32
  }
  func.func @transform_1(%arg0: i32, %arg1: i32) -> (i32, i32) {
    %c0_i32 = arith.constant 0 : i32
    %c0_i32_0 = arith.constant 0 : i32
    return %arg0, %c0_i32 : i32, i32
  }
  func.func @transform_2(%arg0: i32, %arg1: i32) -> (i32, i32) {
    %c0_i32 = arith.constant 0 : i32
    return %arg0, %arg1 : i32, i32
  }
}

</mosaic_0001>

<llo_original>
// kernel: _lambda_.13
$region0: #{_lambda_.13}
  #allocation0 [shape = 'u32[]', space=smem, size = 0x4, offset = 0x4, fixed_abs, tag = 'smem constant byte address 0x4 - core index']
  #allocation1 [shape = 'u32[144,128]{1,0:T(1,128)}', space=vmem, size = 0x12000, scoped, tag = 'internal scratch']
  %s0 = inlined_call_operand.vmem [shape: bf16[32,256], index: 0, kind: input, shape index: {}]
  %s1 = inlined_call_operand.hbm [shape: f32[1,256], index: 1, kind: input, shape index: {}]
  %s2 = inlined_call_operand.hbm [shape: f32[1,256], index: 2, kind: input, shape index: {}]
  %s3 = inlined_call_operand.vmem [shape: bf16[32,256], index: 3, kind: output, shape index: {}]
  %s4 = sld [smem:[#allocation0]]
  $region53: #{_lambda_.13} parent=0
    _
  %s6 = ssub.s32 1, %s4
  %s7 = scalar_select 0, %s6, %s4
  $region1: #{_lambda_.13} parent=0
    #allocation2 [shape = 'u8[1024]{0}', space=vmem, size = 0x400, scoped, tag = 'input window, operand 1, single buffered']
    #allocation3 [shape = 's32[2]{0}', space=sflag, size = 0x8, scoped, tag = 'scoped memory for _lambda_.13']
    #allocation4 [shape = 'u8[1024]{0}', space=vmem, size = 0x400, scoped, tag = 'input window, operand 2, single buffered']
    #allocation5 [shape = 's32[1]{0}', space=sflag, size = 0x4, scoped, tag = 'scoped memory for _lambda_.13']
    %8 = vsyncpa [#allocation3], 0
    %9 = vsyncpa [#allocation5], 0
    loop: start=0, step=1, limit=4
    $region2: #{_lambda_.13} parent=1 // loop_pre_header
      _
    $region3: #{_lambda_.13} parent=1 // loop_header
      %s11 = sphi 0, %s15
      %p12 = scmp.ge.s32.totalorder %s11, 4
      %s21 = sphi 0, %s23
      %s24 = sphi 0, %s21
      %s25 = sphi 0, %s24
      %s41 = sphi 0, %s25
      %s45 = sphi 0, %s45
      %s47 = sphi 0, %s45
      %s48 = sphi 0, %s47
      %s62 = sphi 0, %s48
      %s66 = sphi 0, %s66
      %s68 = sphi 0, %s66
      %s69 = sphi 0, %s68
      %s83 = sphi 0, %s69
      %s89 = sphi 0, %s91
      %s92 = sphi 0, %s89
      %s93 = sphi 0, %s92
      %s109 = sphi 0, %s93
    $region4: #{_lambda_.13} parent=1 // loop_header_branch
      %14 = sbr.rel (%p12) target = $region8
    $region5: #{_lambda_.13} parent=1 // loop_body
      %s16 = ssub.s32 %s11, 1
      %s17 = ssub.s32 %s11, 2
      %s18 = sadd.s32 %s11, 1
      %s19 = ssub.s32 %s11, %s18
      %p20 = scmp.eq.s32.totalorder %s19, 0
      %s22 = sadd.s32 %s21, 1
      %s23 = scalar_select %p20, %s21, %s22
      %p26 = pneg %p20
      %p27 = scmp.eq.s32.totalorder %s11, 1
      %p28 = por %p26, %p27
      %p29 = scmp.ne.s32.totalorder %s21, %s24
      %p30 = scmp.eq.s32.totalorder %s11, 0
      %p31 = por %p29, %p30
      %p32 = scmp.ne.s32.totalorder %s21, %s24
      %p33 = scmp.eq.s32.totalorder %s16, 1
      %p34 = por %p32, %p33
      %p35 = scmp.ne.s32.totalorder %s24, %s25
      %p36 = scmp.eq.s32.totalorder %s16, 0
      %p37 = por %p35, %p36
      %p38 = scmp.ne.s32.totalorder %s24, %s25
      %p39 = scmp.eq.s32.totalorder %s17, 1
      %p40 = por %p38, %p39
      %p42 = scmp.ne.s32.totalorder %s25, %s41
      %p43 = scmp.eq.s32.totalorder %s17, 0
      %p44 = por %p42, %p43
      %s46 = sadd.s32 %s45, 1
      %p49 = scmp.eq.s32.totalorder %s11, 1
      %p50 = scmp.ne.s32.totalorder %s45, %s47
      %p51 = scmp.eq.s32.totalorder %s11, 0
      %p52 = por %p50, %p51
      %p53 = scmp.ne.s32.totalorder %s45, %s47
      %p54 = scmp.eq.s32.totalorder %s16, 1
      %p55 = por %p53, %p54
      %p56 = scmp.ne.s32.totalorder %s47, %s48
      %p57 = scmp.eq.s32.totalorder %s16, 0
      %p58 = por %p56, %p57
      %p59 = scmp.ne.s32.totalorder %s47, %s48
      %p60 = scmp.eq.s32.totalorder %s17, 1
      %p61 = por %p59, %p60
      %p63 = scmp.ne.s32.totalorder %s48, %s62
      %p64 = scmp.eq.s32.totalorder %s17, 0
      %p65 = por %p63, %p64
      %s67 = sadd.s32 %s66, 1
      %p70 = scmp.eq.s32.totalorder %s11, 1
      %p71 = scmp.ne.s32.totalorder %s66, %s68
      %p72 = scmp.eq.s32.totalorder %s11, 0
      %p73 = por %p71, %p72
      %p74 = scmp.ne.s32.totalorder %s66, %s68
      %p75 = scmp.eq.s32.totalorder %s16, 1
      %p76 = por %p74, %p75
      %p77 = scmp.ne.s32.totalorder %s68, %s69
      %p78 = scmp.eq.s32.totalorder %s16, 0
      %p79 = por %p77, %p78
      %p80 = scmp.ne.s32.totalorder %s68, %s69
      %p81 = scmp.eq.s32.totalorder %s17, 1
      %p82 = por %p80, %p81
      %p84 = scmp.ne.s32.totalorder %s69, %s83
      %p85 = scmp.eq.s32.totalorder %s17, 0
      %p86 = por %p84, %p85
      %s87 = ssub.s32 %s11, %s18
      %p88 = scmp.eq.s32.totalorder %s87, 0
      %s90 = sadd.s32 %s89, 1
      %s91 = scalar_select %p88, %s89, %s90
      %p94 = pneg %p88
      %p95 = scmp.eq.s32.totalorder %s11, 1
      %p96 = por %p94, %p95
      %p97 = scmp.ne.s32.totalorder %s89, %s92
      %p98 = scmp.eq.s32.totalorder %s11, 0
      %p99 = por %p97, %p98
      %p100 = scmp.ne.s32.totalorder %s89, %s92
      %p101 = scmp.eq.s32.totalorder %s16, 1
      %p102 = por %p100, %p101
      %p103 = scmp.ne.s32.totalorder %s92, %s93
      %p104 = scmp.eq.s32.totalorder %s16, 0
      %p105 = por %p103, %p104
      %p106 = scmp.ne.s32.totalorder %s92, %s93
      %p107 = scmp.eq.s32.totalorder %s17, 1
      %p108 = por %p106, %p107
      %p110 = scmp.ne.s32.totalorder %s93, %s109
      %p111 = scmp.eq.s32.totalorder %s17, 0
      %p112 = por %p110, %p111
      %p113 = scmp.le.s32.totalorder 1, %s11
      %p114 = scmp.lt.s32.totalorder %s11, 3
      %p115 = pnand %p113, %p114
      %p116 = pneg %p115
      // Predicated region
      $region9: #{_lambda_.13} parent=5 // pred_check
        _
      $region10: #{_lambda_.13} parent=5 // pred_check_branch
        %118 = sbr.rel (%p115) target = $region12
      $region11: #{_lambda_.13} parent=5 // pred_region
        %s119 = ssub.s32 %s11, 1
        // Predicated region
        $region13: #{_lambda_.13} parent=11 // pred_check
          %p120 = pneg %p58
        $region14: #{_lambda_.13} parent=11 // pred_check_branch
          %122 = sbr.rel (%p120) target = $region16
        $region15: #{_lambda_.13} parent=11 // pred_region
          %s124 = ssub.s32 32, 32
          %125 = vsyncadd [#allocation3], %s124
          %s127 = sshll.u32 [#allocation2], 4
          %s128 = int_to_ptr.vmem [resolvable:$true] %s127
          %130 = dma.hbm_to_vmem [thread:$0]  %s1, 32, %s128, [#allocation3]
        $region16: #{_lambda_.13} parent=11 // pred_fallthru
          _
        // Predicated region
        $region17: #{_lambda_.13} parent=11 // pred_check
          %p131 = pneg %p79
        $region18: #{_lambda_.13} parent=11 // pred_check_branch
          %133 = sbr.rel (%p131) target = $region20
        $region19: #{_lambda_.13} parent=11 // pred_region
          %s135 = ssub.s32 32, 32
          %136 = vsyncadd [#allocation5], %s135
          %s138 = sshll.u32 [#allocation4], 4
          %s139 = int_to_ptr.vmem [resolvable:$true] %s138
          %141 = dma.hbm_to_vmem [thread:$0]  %s2, 32, %s139, [#allocation5]
        $region20: #{_lambda_.13} parent=11 // pred_fallthru
          _
      $region12: #{_lambda_.13} parent=5 // pred_fallthru
        _
      %p142 = scmp.lt.s32.totalorder %s11, 2
      // Predicated region
      $region21: #{_lambda_.13} parent=5 // pred_check
        %p143 = pneg %p142
      $region22: #{_lambda_.13} parent=5 // pred_check_branch
        %145 = sbr.rel (%p143) target = $region24
      $region23: #{_lambda_.13} parent=5 // pred_region
        // Predicated region
        $region25: #{_lambda_.13} parent=23 // pred_check
          %p146 = pneg %p31
        $region26: #{_lambda_.13} parent=23 // pred_check_branch
          %148 = sbr.rel (%p146) target = $region28
        $region27: #{_lambda_.13} parent=23 // pred_region
          %s149 = smul.u32 2, %s11
          %p150 = scmp.lt.s32.totalorder %s149, 3
          %s151 = scalar_select %p150, %s149, 3
          %s152 = smul.addr %s151, 2
          %s153 = smul.addr %s152, 4
          %s154 = scalar_lea.vmem %s0, %s153
          %s155 = smul.u32 2, %s11
        $region28: #{_lambda_.13} parent=23 // pred_fallthru
          _
      $region24: #{_lambda_.13} parent=5 // pred_fallthru
        _
      %p156 = scmp.le.s32.totalorder 1, %s11
      %p157 = scmp.lt.s32.totalorder %s11, 3
      %p158 = pnand %p156, %p157
      %p159 = pneg %p158
      // Predicated region
      $region29: #{_lambda_.13} parent=5 // pred_check
        _
      $region30: #{_lambda_.13} parent=5 // pred_check_branch
        %161 = sbr.rel (%p158) target = $region32
      $region31: #{_lambda_.13} parent=5 // pred_region
        %s162 = ssub.s32 %s11, 1
        // Predicated region
        $region33: #{_lambda_.13} parent=31 // pred_check
          %p163 = pneg %p58
        $region34: #{_lambda_.13} parent=31 // pred_check_branch
          %165 = sbr.rel (%p163) target = $region36
        $region35: #{_lambda_.13} parent=31 // pred_region
          %166 = dma.done [#allocation3], 32
        $region36: #{_lambda_.13} parent=31 // pred_fallthru
          _
        // Predicated region
        $region37: #{_lambda_.13} parent=31 // pred_check
          %p167 = pneg %p79
        $region38: #{_lambda_.13} parent=31 // pred_check_branch
          %169 = sbr.rel (%p167) target = $region40
        $region39: #{_lambda_.13} parent=31 // pred_region
          %170 = dma.done [#allocation5], 32
        $region40: #{_lambda_.13} parent=31 // pred_fallthru
          _
        %s171 = smul.u32 2, %s16
        %p172 = scmp.lt.s32.totalorder %s171, 3
        %s173 = scalar_select %p172, %s171, 3
        %s174 = smul.addr %s173, 2
        %s175 = smul.addr %s174, 4
        %s176 = scalar_lea.vmem %s0, %s175
        %p177 = pneg %p37
        %p178 = pneg %p34
        %p179 = pneg %p58
        %p180 = pneg %p55
        %p181 = pneg %p79
        %p182 = pneg %p76
        %p183 = pneg %p105
        %p184 = pneg %p102
        %s185 = smul.u32 2, %s16
        %p186 = scmp.lt.s32.totalorder %s185, 3
        %s187 = scalar_select %p186, %s185, 3
        %s188 = smul.addr %s187, 2
        %s189 = smul.addr %s188, 4
        %s190 = scalar_lea.vmem %s3, %s189
        %s191 = smul.u32 2, %s16
        %p192 = scmp.lt.s32.totalorder %s191, 3
        %s193 = scalar_select %p192, %s191, 3
        %s194 = smul.addr %s193, 2
        %s195 = smul.addr %s194, 4
        %s196 = scalar_lea.vmem %s0, %s195
        %s197 = smul.u32 2, %s16
        %s198 = smul.u32 2, %s16
        %p199 = scmp.lt.s32.totalorder %s198, 3
        %s200 = scalar_select %p199, %s198, 3
        %s201 = smul.addr %s200, 2
        %s202 = smul.addr %s201, 4
        %s203 = scalar_lea.vmem %s3, %s202
        %s204 = smul.u32 2, %s16
        %v205 = vld [vmem:[%s196] sm:$0xff]
        %v206 = vld [vmem:[%s196 + $0x8] sm:$0xff]
        %v207 = vunpack.c.l.bf16 %v205
        %v208 = vunpack.c.h.bf16 %v205
        %v209 = vunpack.c.l.bf16 %v206
        %v210 = vunpack.c.h.bf16 %v206
        %v211 = vadd.f32 %v207, %v208
        %212 = vadd.xlane.f32.xlu0 %v211
        %v213 = vpop.xlane.xlu0 %212
        %v214 = vadd.f32 %v209, %v210
        %215 = vadd.xlane.f32.xlu0 %v214
        %v216 = vpop.xlane.xlu0 %215
        %v217 = vrcp.pop 256.0
        %v218 = vmul.f32 %v213, %v217
        %v219 = vmul.f32 %v216, %v217
        %v220 = vsub.f32 %v207, %v218
        %v221 = vsub.f32 %v208, %v218
        %v222 = vsub.f32 %v209, %v219
        %v223 = vsub.f32 %v210, %v219
        %v224 = vmul.f32 %v220, %v220
        %v225 = vmul.f32 %v221, %v221
        %v226 = vmul.f32 %v222, %v222
        %v227 = vmul.f32 %v223, %v223
        %v228 = vadd.f32 %v224, %v225
        %229 = vadd.xlane.f32.xlu0 %v228
        %v230 = vpop.xlane.xlu0 %229
        %v231 = vadd.f32 %v226, %v227
        %232 = vadd.xlane.f32.xlu0 %v231
        %v233 = vpop.xlane.xlu0 %232
        %v234 = vmul.f32 %v230, %v217
        %v235 = vmul.f32 %v233, %v217
        %v236 = vadd.f32 %v234, 1e-12
        %v237 = vadd.f32 %v235, 1e-12
        %v238 = vrsqrt.pop %v236
        %v239 = vrsqrt.pop %v237
        %v240 = vmul.f32 %v220, %v238
        %v241 = vmul.f32 %v221, %v238
        %v242 = vmul.f32 %v222, %v239
        %v243 = vmul.f32 %v223, %v239
        %v244 = vld [vmem:[#allocation2] sm:$0x3]
        %v246 = vlaneseq
        %v247 = vshrl.u32 %v246, 7
        %v248 = vsub.s32 0, %v247
        %v249 = vrot.slane %v244, %v248
        %v250 = vlaneseq
        %v251 = vshrl.u32 %v250, 7
        %v252 = vsub.s32 1, %v251
        %v253 = vrot.slane %v244, %v252
        %v256 = vmul.f32 %v240, %v249
        %v257 = vmul.f32 %v241, %v253
        %v258 = vmul.f32 %v242, %v249
        %v259 = vmul.f32 %v243, %v253
        %v260 = vld [vmem:[#allocation4] sm:$0x3]
        %v262 = vlaneseq
        %v263 = vshrl.u32 %v262, 7
        %v264 = vsub.s32 0, %v263
        %v265 = vrot.slane %v260, %v264
        %v266 = vlaneseq
        %v267 = vshrl.u32 %v266, 7
        %v268 = vsub.s32 1, %v267
        %v269 = vrot.slane %v260, %v268
        %v272 = vadd.f32 %v256, %v265
        %v273 = vadd.f32 %v257, %v269
        %v274 = vadd.f32 %v258, %v265
        %v275 = vadd.f32 %v259, %v269
        %v276 = vpack.c.bf16 %v274, %v272
        %v277 = vpack.c.bf16 %v275, %v273
        %v280 = vunpack.c.l.b16 %v276
        %v281 = vunpack.c.l.b16 %v277
        %v282 = vunpack.c.h.b16 %v276
        %v283 = vunpack.c.h.b16 %v277
        %v284 = vpack.c.b16 %v281, %v280
        %v285 = vpack.c.b16 %v283, %v282
        %288 = vst [vmem:[%s203] sm:$0xff] %v284
        %289 = vst [vmem:[%s203 + $0x8] sm:$0xff] %v285
        %s290 = smul.u32 2, %s16
        %p291 = scmp.lt.s32.totalorder %s290, 3
        %s292 = scalar_select %p291, %s290, 3
        %s293 = smul.addr %s292, 2
        %s294 = smul.addr %s293, 4
        %s295 = scalar_lea.vmem %s3, %s294
        // Predicated region
        $region41: #{_lambda_.13} parent=31 // pred_check
          %p296 = pneg %p102
        $region42: #{_lambda_.13} parent=31 // pred_check_branch
          %298 = sbr.rel (%p296) target = $region44
        $region43: #{_lambda_.13} parent=31 // pred_region
          %s299 = smul.u32 2, %s16
        $region44: #{_lambda_.13} parent=31 // pred_fallthru
          _
      $region32: #{_lambda_.13} parent=5 // pred_fallthru
        _
      %p300 = scmp.le.s32.totalorder 2, %s11
      // Predicated region
      $region45: #{_lambda_.13} parent=5 // pred_check
        %p301 = pneg %p300
      $region46: #{_lambda_.13} parent=5 // pred_check_branch
        %303 = sbr.rel (%p301) target = $region48
      $region47: #{_lambda_.13} parent=5 // pred_region
        %s304 = ssub.s32 %s11, 2
        // Predicated region
        $region49: #{_lambda_.13} parent=47 // pred_check
          %p305 = pneg %p108
        $region50: #{_lambda_.13} parent=47 // pred_check_branch
          %307 = sbr.rel (%p305) target = $region52
        $region51: #{_lambda_.13} parent=47 // pred_region
          %s308 = smul.u32 2, %s17
          %p309 = scmp.lt.s32.totalorder %s308, 3
          %s310 = scalar_select %p309, %s308, 3
          %s311 = smul.addr %s310, 2
          %s312 = smul.addr %s311, 4
          %s313 = scalar_lea.vmem %s3, %s312
        $region52: #{_lambda_.13} parent=47 // pred_fallthru
          _
      $region48: #{_lambda_.13} parent=5 // pred_fallthru
        _
    $region6: #{_lambda_.13} parent=1 // loop_footer
      %s15 = sadd.s32 1, %s11
    $region7: #{_lambda_.13} parent=1 // loop_footer_branch
      %10 = sbr.rel target = $region3
    $region8: #{_lambda_.13} parent=1 // loop_exit
      _
    %314 = vsyncpa [#allocation3], 1
    %s315 = scalar_lea.sflag [#allocation3], 1
    %316 = vsyncpa %s315, 1
    %317 = vsyncpa [#allocation5], 1

// kernel: _lambda_.14
$region0: #{_lambda_.14}
  #allocation0 [shape = 'u32[]', space=smem, size = 0x4, offset = 0x4, fixed_abs, tag = 'smem constant byte address 0x4 - core index']
  #allocation1 [shape = 'u32[144,128]{1,0:T(1,128)}', space=vmem, size = 0x12000, scoped, tag = 'internal scratch']
  %s0 = inlined_call_operand.vmem [shape: bf16[32,256], index: 0, kind: input, shape index: {}]
  %s1 = inlined_call_operand.vmem [shape: bf16[256,768], index: 1, kind: input, shape index: {}]
  %s2 = inlined_call_operand.vmem [shape: f32[1,768], index: 2, kind: input, shape index: {}]
  %s3 = inlined_call_operand.vmem [shape: bf16[32,768], index: 3, kind: output, shape index: {}]
  %s4 = sld [smem:[#allocation0]]
  $region117: #{_lambda_.14} parent=0
    _
  %s6 = ssub.s32 1, %s4
  %s7 = scalar_select 0, %s6, %s4
  $region1: #{_lambda_.14} parent=0
    #allocation2 [shape = 'u8[262144]{0}', space=vmem, size = 0x40000, scoped, tag = 'input window, operand 1']
    #allocation3 [shape = 'u8[16384]{0}', space=vmem, size = 0x4000, scoped, tag = 'output window, operand 0']
    loop: start=0, step=1, limit=8
    $region2: #{_lambda_.14} parent=1 // loop_pre_header
      _
    $region3: #{_lambda_.14} parent=1 // loop_header
      %s9 = sphi 0, %s13
      %p10 = scmp.ge.s32.totalorder %s9, 8
      %s16 = sphi 0, %s28
      %s17 = sphi 0, %s24
      %s18 = sphi 0, %s16
      %s19 = sphi 0, %s17
      %s20 = sphi 0, %s18
      %s21 = sphi 0, %s19
      %s31 = sphi 0, %s33
      %s34 = sphi 0, %s31
      %s35 = sphi 0, %s34
      %s51 = sphi 0, %s35
      %s57 = sphi 0, %s59
      %s60 = sphi 0, %s57
      %s61 = sphi 0, %s60
      %s77 = sphi 0, %s61
      %s83 = sphi 0, %s85
      %s86 = sphi 0, %s83
      %s87 = sphi 0, %s86
      %s103 = sphi 0, %s87
      %s111 = sphi 0, %s113
      %s114 = sphi 0, %s111
      %s115 = sphi 0, %s114
      %s131 = sphi 0, %s115
    $region4: #{_lambda_.14} parent=1 // loop_header_branch
      %12 = sbr.rel (%p10) target = $region8
    $region5: #{_lambda_.14} parent=1 // loop_body
      %s14 = ssub.s32 %s9, 1
      %s15 = ssub.s32 %s9, 2
      %s22 = sadd.s32 1, %s17
      %p23 = scmp.ge.s32.totalorder %s22, 3
      %s24 = scalar_select %p23, 0, %s22
      %s25 = sadd.s32 1, %s16
      %s26 = scalar_select %p23, %s25, %s16
      %p27 = scmp.ge.s32.totalorder %s26, 2
      %s28 = scalar_select %p27, 0, %s26
      %s29 = ssub.s32 %s16, %s28
      %p30 = scmp.eq.s32.totalorder %s29, 0
      %s32 = sadd.s32 %s31, 1
      %s33 = scalar_select %p30, %s31, %s32
      %p36 = pneg %p30
      %p37 = scmp.eq.s32.totalorder %s9, 5
      %p38 = por %p36, %p37
      %p39 = scmp.ne.s32.totalorder %s31, %s34
      %p40 = scmp.eq.s32.totalorder %s9, 0
      %p41 = por %p39, %p40
      %p42 = scmp.ne.s32.totalorder %s31, %s34
      %p43 = scmp.eq.s32.totalorder %s14, 5
      %p44 = por %p42, %p43
      %p45 = scmp.ne.s32.totalorder %s34, %s35
      %p46 = scmp.eq.s32.totalorder %s14, 0
      %p47 = por %p45, %p46
      %p48 = scmp.ne.s32.totalorder %s34, %s35
      %p49 = scmp.eq.s32.totalorder %s15, 5
      %p50 = por %p48, %p49
      %p52 = scmp.ne.s32.totalorder %s35, %s51
      %p53 = scmp.eq.s32.totalorder %s15, 0
      %p54 = por %p52, %p53
      %s55 = ssub.s32 %s17, %s24
      %p56 = scmp.eq.s32.totalorder %s55, 0
      %s58 = sadd.s32 %s57, 1
      %s59 = scalar_select %p56, %s57, %s58
      %p62 = pneg %p56
      %p63 = scmp.eq.s32.totalorder %s9, 5
      %p64 = por %p62, %p63
      %p65 = scmp.ne.s32.totalorder %s57, %s60
      %p66 = scmp.eq.s32.totalorder %s9, 0
      %p67 = por %p65, %p66
      %p68 = scmp.ne.s32.totalorder %s57, %s60
      %p69 = scmp.eq.s32.totalorder %s14, 5
      %p70 = por %p68, %p69
      %p71 = scmp.ne.s32.totalorder %s60, %s61
      %p72 = scmp.eq.s32.totalorder %s14, 0
      %p73 = por %p71, %p72
      %p74 = scmp.ne.s32.totalorder %s60, %s61
      %p75 = scmp.eq.s32.totalorder %s15, 5
      %p76 = por %p74, %p75
      %p78 = scmp.ne.s32.totalorder %s61, %s77
      %p79 = scmp.eq.s32.totalorder %s15, 0
      %p80 = por %p78, %p79
      %s81 = ssub.s32 %s17, %s24
      %p82 = scmp.eq.s32.totalorder %s81, 0
      %s84 = sadd.s32 %s83, 1
      %s85 = scalar_select %p82, %s83, %s84
      %p88 = pneg %p82
      %p89 = scmp.eq.s32.totalorder %s9, 5
      %p90 = por %p88, %p89
      %p91 = scmp.ne.s32.totalorder %s83, %s86
      %p92 = scmp.eq.s32.totalorder %s9, 0
      %p93 = por %p91, %p92
      %p94 = scmp.ne.s32.totalorder %s83, %s86
      %p95 = scmp.eq.s32.totalorder %s14, 5
      %p96 = por %p94, %p95
      %p97 = scmp.ne.s32.totalorder %s86, %s87
      %p98 = scmp.eq.s32.totalorder %s14, 0
      %p99 = por %p97, %p98
      %p100 = scmp.ne.s32.totalorder %s86, %s87
      %p101 = scmp.eq.s32.totalorder %s15, 5
      %p102 = por %p100, %p101
      %p104 = scmp.ne.s32.totalorder %s87, %s103
      %p105 = scmp.eq.s32.totalorder %s15, 0
      %p106 = por %p104, %p105
      %s107 = ssub.s32 %s16, %s28
      %s108 = ssub.s32 %s17, %s24
      %s109 = sor.u32 %s107, %s108
      %p110 = scmp.eq.s32.totalorder %s109, 0
      %s112 = sadd.s32 %s111, 1
      %s113 = scalar_select %p110, %s111, %s112
      %p116 = pneg %p110
      %p117 = scmp.eq.s32.totalorder %s9, 5
      %p118 = por %p116, %p117
      %p119 = scmp.ne.s32.totalorder %s111, %s114
      %p120 = scmp.eq.s32.totalorder %s9, 0
      %p121 = por %p119, %p120
      %p122 = scmp.ne.s32.totalorder %s111, %s114
      %p123 = scmp.eq.s32.totalorder %s14, 5
      %p124 = por %p122, %p123
      %p125 = scmp.ne.s32.totalorder %s114, %s115
      %p126 = scmp.eq.s32.totalorder %s14, 0
      %p127 = por %p125, %p126
      %p128 = scmp.ne.s32.totalorder %s114, %s115
      %p129 = scmp.eq.s32.totalorder %s15, 5
      %p130 = por %p128, %p129
      %p132 = scmp.ne.s32.totalorder %s115, %s131
      %p133 = scmp.eq.s32.totalorder %s15, 0
      %p134 = por %p132, %p133
      %p135 = scmp.le.s32.totalorder 1, %s9
      %p136 = scmp.lt.s32.totalorder %s9, 7
      %p137 = pnand %p135, %p136
      %p138 = pneg %p137
      // Predicated region
      $region9: #{_lambda_.14} parent=5 // pred_check
        _
      $region10: #{_lambda_.14} parent=5 // pred_check_branch
        %140 = sbr.rel (%p137) target = $region12
      $region11: #{_lambda_.14} parent=5 // pred_region
        %s141 = ssub.s32 %s9, 1
      $region12: #{_lambda_.14} parent=5 // pred_fallthru
        _
      %p142 = scmp.lt.s32.totalorder %s9, 6
      // Predicated region
      $region13: #{_lambda_.14} parent=5 // pred_check
        %p143 = pneg %p142
      $region14: #{_lambda_.14} parent=5 // pred_check_branch
        %145 = sbr.rel (%p143) target = $region16
      $region15: #{_lambda_.14} parent=5 // pred_region
        // Predicated region
        $region17: #{_lambda_.14} parent=15 // pred_check
          %p146 = pneg %p41
        $region18: #{_lambda_.14} parent=15 // pred_check_branch
          %148 = sbr.rel (%p146) target = $region20
        $region19: #{_lambda_.14} parent=15 // pred_region
          %s149 = smul.u32 2, %s16
          %p150 = scmp.lt.s32.totalorder %s149, 3
          %s151 = scalar_select %p150, %s149, 3
          %s152 = smul.addr %s151, 2
          %s153 = smul.addr %s152, 4
          %s154 = scalar_lea.vmem %s0, %s153
          %s155 = smul.u32 2, %s16
        $region20: #{_lambda_.14} parent=15 // pred_fallthru
          _
        // Predicated region
        $region21: #{_lambda_.14} parent=15 // pred_check
          %p156 = pneg %p67
        $region22: #{_lambda_.14} parent=15 // pred_check_branch
          %158 = sbr.rel (%p156) target = $region24
        $region23: #{_lambda_.14} parent=15 // pred_region
          %s159 = sand.u32 %s57, 1
          %s160 = sand.u32 %s57, 1
          %s161 = smul.addr %s160, 256
          %s162 = scalar_lea.vmem [#allocation2], %s161
          %s163 = smul.u32 2, %s17
          %s164 = smul.addr %s163, 4
          %s165 = scalar_lea.vmem %s1, %s164
          // Predicated region
          $region25: #{_lambda_.14} parent=23 // pred_check
            _
          $region26: #{_lambda_.14} parent=23 // pred_check_branch
            %167 = sbr.rel (0) target = $region28
          $region27: #{_lambda_.14} parent=23 // pred_region
            // Predicated region
            $region29: #{_lambda_.14} parent=27 // pred_check
              _
            $region30: #{_lambda_.14} parent=27 // pred_check_branch
              %169 = sbr.rel (0) target = $region32
            $region31: #{_lambda_.14} parent=27 // pred_region
              // Predicated region
              $region44: #{_lambda_.14} parent=31 // pred_check
                _
              $region45: #{_lambda_.14} parent=31 // pred_check_branch
                %246 = sbr.rel (0) target = $region47
              $region46: #{_lambda_.14} parent=31 // pred_region
                loop: start=0, step=1, limit=1
                $region48: #{_lambda_.14} parent=46 // loop_pre_header
                  _
                $region49: #{_lambda_.14} parent=46 // loop_header
                  %s248 = sphi 0, %s252
                  %p249 = scmp.ge.s32.totalorder %s248, 1
                  %s253 = sphi %s165, %s165
                  %s254 = sphi %s162, %s162
                $region50: #{_lambda_.14} parent=46 // loop_header_branch
                  %251 = sbr.rel (%p249) target = $region54
                $region51: #{_lambda_.14} parent=46 // loop_body
                  %v255 = vld [vmem:[%s253] sm:$0xff]
                  %256 = vst [vmem:[%s254] sm:$0xff] %v255
                  %v257 = vld [vmem:[%s253 + $0x18] sm:$0xff]
                  %258 = vst [vmem:[%s254 + $0x8] sm:$0xff] %v257
                  %v259 = vld [vmem:[%s253 + $0x30] sm:$0xff]
                  %260 = vst [vmem:[%s254 + $0x10] sm:$0xff] %v259
                  %v261 = vld [vmem:[%s253 + $0x48] sm:$0xff]
                  %262 = vst [vmem:[%s254 + $0x18] sm:$0xff] %v261
                  %v263 = vld [vmem:[%s253 + $0x60] sm:$0xff]
                  %264 = vst [vmem:[%s254 + $0x20] sm:$0xff] %v263
                  %v265 = vld [vmem:[%s253 + $0x78] sm:$0xff]
                  %266 = vst [vmem:[%s254 + $0x28] sm:$0xff] %v265
                  %v267 = vld [vmem:[%s253 + $0x90] sm:$0xff]
                  %268 = vst [vmem:[%s254 + $0x30] sm:$0xff] %v267
                  %v269 = vld [vmem:[%s253 + $0xa8] sm:$0xff]
                  %270 = vst [vmem:[%s254 + $0x38] sm:$0xff] %v269
                  %v271 = vld [vmem:[%s253 + $0xc0] sm:$0xff]
                  %272 = vst [vmem:[%s254 + $0x40] sm:$0xff] %v271
                  %v273 = vld [vmem:[%s253 + $0xd8] sm:$0xff]
                  %274 = vst [vmem:[%s254 + $0x48] sm:$0xff] %v273
                  %v275 = vld [vmem:[%s253 + $0xf0] sm:$0xff]
                  %276 = vst [vmem:[%s254 + $0x50] sm:$0xff] %v275
                  %v277 = vld [vmem:[%s253 + $0x108] sm:$0xff]
                  %278 = vst [vmem:[%s254 + $0x58] sm:$0xff] %v277
                  %v279 = vld [vmem:[%s253 + $0x120] sm:$0xff]
                  %280 = vst [vmem:[%s254 + $0x60] sm:$0xff] %v279
                  %v281 = vld [vmem:[%s253 + $0x138] sm:$0xff]
                  %282 = vst [vmem:[%s254 + $0x68] sm:$0xff] %v281
                  %v283 = vld [vmem:[%s253 + $0x150] sm:$0xff]
                  %284 = vst [vmem:[%s254 + $0x70] sm:$0xff] %v283
                  %v285 = vld [vmem:[%s253 + $0x168] sm:$0xff]
                  %286 = vst [vmem:[%s254 + $0x78] sm:$0xff] %v285
                  %v287 = vld [vmem:[%s253 + $0x180] sm:$0xff]
                  %288 = vst [vmem:[%s254 + $0x80] sm:$0xff] %v287
                  %v289 = vld [vmem:[%s253 + $0x198] sm:$0xff]
                  %290 = vst [vmem:[%s254 + $0x88] sm:$0xff] %v289
                  %v291 = vld [vmem:[%s253 + $0x1b0] sm:$0xff]
                  %292 = vst [vmem:[%s254 + $0x90] sm:$0xff] %v291
                  %v293 = vld [vmem:[%s253 + $0x1c8] sm:$0xff]
                  %294 = vst [vmem:[%s254 + $0x98] sm:$0xff] %v293
                  %v295 = vld [vmem:[%s253 + $0x1e0] sm:$0xff]
                  %296 = vst [vmem:[%s254 + $0xa0] sm:$0xff] %v295
                  %v297 = vld [vmem:[%s253 + $0x1f8] sm:$0xff]
                  %298 = vst [vmem:[%s254 + $0xa8] sm:$0xff] %v297
                  %v299 = vld [vmem:[%s253 + $0x210] sm:$0xff]
                  %300 = vst [vmem:[%s254 + $0xb0] sm:$0xff] %v299
                  %v301 = vld [vmem:[%s253 + $0x228] sm:$0xff]
                  %302 = vst [vmem:[%s254 + $0xb8] sm:$0xff] %v301
                  %v303 = vld [vmem:[%s253 + $0x240] sm:$0xff]
                  %304 = vst [vmem:[%s254 + $0xc0] sm:$0xff] %v303
                  %v305 = vld [vmem:[%s253 + $0x258] sm:$0xff]
                  %306 = vst [vmem:[%s254 + $0xc8] sm:$0xff] %v305
                  %v307 = vld [vmem:[%s253 + $0x270] sm:$0xff]
                  %308 = vst [vmem:[%s254 + $0xd0] sm:$0xff] %v307
                  %v309 = vld [vmem:[%s253 + $0x288] sm:$0xff]
                  %310 = vst [vmem:[%s254 + $0xd8] sm:$0xff] %v309
                  %v311 = vld [vmem:[%s253 + $0x2a0] sm:$0xff]
                  %312 = vst [vmem:[%s254 + $0xe0] sm:$0xff] %v311
                  %v313 = vld [vmem:[%s253 + $0x2b8] sm:$0xff]
                  %314 = vst [vmem:[%s254 + $0xe8] sm:$0xff] %v313
                  %v315 = vld [vmem:[%s253 + $0x2d0] sm:$0xff]
                  %316 = vst [vmem:[%s254 + $0xf0] sm:$0xff] %v315
                  %v317 = vld [vmem:[%s253 + $0x2e8] sm:$0xff]
                  %318 = vst [vmem:[%s254 + $0xf8] sm:$0xff] %v317
                $region52: #{_lambda_.14} parent=46 // loop_footer
                  %s252 = sadd.s32 1, %s248
                $region53: #{_lambda_.14} parent=46 // loop_footer_branch
                  %247 = sbr.rel target = $region49
                $region54: #{_lambda_.14} parent=46 // loop_exit
                  _
              $region47: #{_lambda_.14} parent=31 // pred_fallthru
                _
              // Predicated region
              $region55: #{_lambda_.14} parent=31 // pred_check
                _
              $region56: #{_lambda_.14} parent=31 // pred_check_branch
                %320 = sbr.rel target = $region58
              $region57: #{_lambda_.14} parent=31 // pred_region
                _
              $region58: #{_lambda_.14} parent=31 // pred_fallthru
                _
            $region32: #{_lambda_.14} parent=27 // pred_fallthru
              _
            // Predicated region
            $region33: #{_lambda_.14} parent=27 // pred_check
              _
            $region34: #{_lambda_.14} parent=27 // pred_check_branch
              %171 = sbr.rel target = $region36
            $region35: #{_lambda_.14} parent=27 // pred_region
              loop: start=0, step=1, limit=1
              $region37: #{_lambda_.14} parent=35 // loop_pre_header
                _
              $region38: #{_lambda_.14} parent=35 // loop_header
                %s174 = sphi 0, %s178
                %p175 = scmp.ge.s32.totalorder %s174, 1
                %s179 = sphi %s165, %s165
                %s180 = sphi %s162, %s162
              $region39: #{_lambda_.14} parent=35 // loop_header_branch
                %177 = sbr.rel (%p175) target = $region43
              $region40: #{_lambda_.14} parent=35 // loop_body
                %v181 = vld [vmem:[%s179] sm:$0xff]
                %182 = vst [vmem:[%s180] sm:$0xff] %v181
                %v183 = vld [vmem:[%s179 + $0x18] sm:$0xff]
                %184 = vst [vmem:[%s180 + $0x8] sm:$0xff] %v183
                %v185 = vld [vmem:[%s179 + $0x30] sm:$0xff]
                %186 = vst [vmem:[%s180 + $0x10] sm:$0xff] %v185
                %v187 = vld [vmem:[%s179 + $0x48] sm:$0xff]
                %188 = vst [vmem:[%s180 + $0x18] sm:$0xff] %v187
                %v189 = vld [vmem:[%s179 + $0x60] sm:$0xff]
                %190 = vst [vmem:[%s180 + $0x20] sm:$0xff] %v189
                %v191 = vld [vmem:[%s179 + $0x78] sm:$0xff]
                %192 = vst [vmem:[%s180 + $0x28] sm:$0xff] %v191
                %v193 = vld [vmem:[%s179 + $0x90] sm:$0xff]
                %194 = vst [vmem:[%s180 + $0x30] sm:$0xff] %v193
                %v195 = vld [vmem:[%s179 + $0xa8] sm:$0xff]
                %196 = vst [vmem:[%s180 + $0x38] sm:$0xff] %v195
                %v197 = vld [vmem:[%s179 + $0xc0] sm:$0xff]
                %198 = vst [vmem:[%s180 + $0x40] sm:$0xff] %v197
                %v199 = vld [vmem:[%s179 + $0xd8] sm:$0xff]
                %200 = vst [vmem:[%s180 + $0x48] sm:$0xff] %v199
                %v201 = vld [vmem:[%s179 + $0xf0] sm:$0xff]
                %202 = vst [vmem:[%s180 + $0x50] sm:$0xff] %v201
                %v203 = vld [vmem:[%s179 + $0x108] sm:$0xff]
                %204 = vst [vmem:[%s180 + $0x58] sm:$0xff] %v203
                %v205 = vld [vmem:[%s179 + $0x120] sm:$0xff]
                %206 = vst [vmem:[%s180 + $0x60] sm:$0xff] %v205
                %v207 = vld [vmem:[%s179 + $0x138] sm:$0xff]
                %208 = vst [vmem:[%s180 + $0x68] sm:$0xff] %v207
                %v209 = vld [vmem:[%s179 + $0x150] sm:$0xff]
                %210 = vst [vmem:[%s180 + $0x70] sm:$0xff] %v209
                %v211 = vld [vmem:[%s179 + $0x168] sm:$0xff]
                %212 = vst [vmem:[%s180 + $0x78] sm:$0xff] %v211
                %v213 = vld [vmem:[%s179 + $0x180] sm:$0xff]
                %214 = vst [vmem:[%s180 + $0x80] sm:$0xff] %v213
                %v215 = vld [vmem:[%s179 + $0x198] sm:$0xff]
                %216 = vst [vmem:[%s180 + $0x88] sm:$0xff] %v215
                %v217 = vld [vmem:[%s179 + $0x1b0] sm:$0xff]
                %218 = vst [vmem:[%s180 + $0x90] sm:$0xff] %v217
                %v219 = vld [vmem:[%s179 + $0x1c8] sm:$0xff]
                %220 = vst [vmem:[%s180 + $0x98] sm:$0xff] %v219
                %v221 = vld [vmem:[%s179 + $0x1e0] sm:$0xff]
                %222 = vst [vmem:[%s180 + $0xa0] sm:$0xff] %v221
                %v223 = vld [vmem:[%s179 + $0x1f8] sm:$0xff]
                %224 = vst [vmem:[%s180 + $0xa8] sm:$0xff] %v223
                %v225 = vld [vmem:[%s179 + $0x210] sm:$0xff]
                %226 = vst [vmem:[%s180 + $0xb0] sm:$0xff] %v225
                %v227 = vld [vmem:[%s179 + $0x228] sm:$0xff]
                %228 = vst [vmem:[%s180 + $0xb8] sm:$0xff] %v227
                %v229 = vld [vmem:[%s179 + $0x240] sm:$0xff]
                %230 = vst [vmem:[%s180 + $0xc0] sm:$0xff] %v229
                %v231 = vld [vmem:[%s179 + $0x258] sm:$0xff]
                %232 = vst [vmem:[%s180 + $0xc8] sm:$0xff] %v231
                %v233 = vld [vmem:[%s179 + $0x270] sm:$0xff]
                %234 = vst [vmem:[%s180 + $0xd0] sm:$0xff] %v233
                %v235 = vld [vmem:[%s179 + $0x288] sm:$0xff]
                %236 = vst [vmem:[%s180 + $0xd8] sm:$0xff] %v235
                %v237 = vld [vmem:[%s179 + $0x2a0] sm:$0xff]
                %238 = vst [vmem:[%s180 + $0xe0] sm:$0xff] %v237
                %v239 = vld [vmem:[%s179 + $0x2b8] sm:$0xff]
                %240 = vst [vmem:[%s180 + $0xe8] sm:$0xff] %v239
                %v241 = vld [vmem:[%s179 + $0x2d0] sm:$0xff]
                %242 = vst [vmem:[%s180 + $0xf0] sm:$0xff] %v241
                %v243 = vld [vmem:[%s179 + $0x2e8] sm:$0xff]
                %244 = vst [vmem:[%s180 + $0xf8] sm:$0xff] %v243
              $region41: #{_lambda_.14} parent=35 // loop_footer
                %s178 = sadd.s32 1, %s174
              $region42: #{_lambda_.14} parent=35 // loop_footer_branch
                %173 = sbr.rel target = $region38
              $region43: #{_lambda_.14} parent=35 // loop_exit
                _
            $region36: #{_lambda_.14} parent=27 // pred_fallthru
              _
          $region28: #{_lambda_.14} parent=23 // pred_fallthru
            _
          %321 = vnop
        $region24: #{_lambda_.14} parent=15 // pred_fallthru
          _
        // Predicated region
        $region59: #{_lambda_.14} parent=15 // pred_check
          %p322 = pneg %p93
        $region60: #{_lambda_.14} parent=15 // pred_check_branch
          %324 = sbr.rel (%p322) target = $region62
        $region61: #{_lambda_.14} parent=15 // pred_region
          %s325 = smul.u32 2, %s17
          %p326 = scmp.lt.s32.totalorder %s325, 5
          %s327 = scalar_select %p326, %s325, 5
          %s328 = scalar_lea.vmem %s2, %s327
          %s329 = smul.u32 2, %s17
        $region62: #{_lambda_.14} parent=15 // pred_fallthru
          _
      $region16: #{_lambda_.14} parent=5 // pred_fallthru
        _
      %p330 = scmp.le.s32.totalorder 1, %s9
      %p331 = scmp.lt.s32.totalorder %s9, 7
      %p332 = pnand %p330, %p331
      %p333 = pneg %p332
      // Predicated region
      $region63: #{_lambda_.14} parent=5 // pred_check
        _
      $region64: #{_lambda_.14} parent=5 // pred_check_branch
        %335 = sbr.rel (%p332) target = $region66
      $region65: #{_lambda_.14} parent=5 // pred_region
        %s336 = ssub.s32 %s9, 1
        %s337 = sand.u32 %s60, 1
        %s338 = sand.u32 %s60, 1
        %s339 = smul.addr %s338, 256
        %s340 = scalar_lea.vmem [#allocation2], %s339
        // Predicated region
        $region67: #{_lambda_.14} parent=65 // pred_check
          %p341 = pneg %p73
        $region68: #{_lambda_.14} parent=65 // pred_check_branch
          %343 = sbr.rel (%p341) target = $region70
        $region69: #{_lambda_.14} parent=65 // pred_region
          _
        $region70: #{_lambda_.14} parent=65 // pred_fallthru
          _
        %s344 = smul.u32 2, %s18
        %p345 = scmp.lt.s32.totalorder %s344, 3
        %s346 = scalar_select %p345, %s344, 3
        %s347 = smul.addr %s346, 2
        %s348 = smul.addr %s347, 4
        %s349 = scalar_lea.vmem %s0, %s348
        %p350 = pneg %p47
        %p351 = pneg %p44
        %s352 = sand.u32 %s60, 1
        %s353 = sand.u32 %s60, 1
        %s354 = smul.addr %s353, 256
        %s355 = scalar_lea.vmem [#allocation2], %s354
        %p356 = pneg %p73
        %p357 = pneg %p70
        %s358 = smul.u32 2, %s19
        %p359 = scmp.lt.s32.totalorder %s358, 5
        %s360 = scalar_select %p359, %s358, 5
        %s361 = scalar_lea.vmem %s2, %s360
        %p362 = pneg %p99
        %p363 = pneg %p96
        %p364 = pneg %p127
        %p365 = pneg %p124
        %s366 = sand.u32 %s114, 1
        %s367 = sand.u32 %s114, 1
        %s368 = smul.addr %s367, 16
        %s369 = scalar_lea.vmem [#allocation3], %s368
        %s370 = smul.u32 2, %s18
        %p371 = scmp.lt.s32.totalorder %s370, 3
        %s372 = scalar_select %p371, %s370, 3
        %s373 = smul.addr %s372, 2
        %s374 = smul.addr %s373, 4
        %s375 = scalar_lea.vmem %s0, %s374
        %s376 = smul.u32 2, %s18
        %s377 = smul.u32 2, %s19
        %s378 = smul.u32 2, %s19
        %p379 = scmp.lt.s32.totalorder %s378, 5
        %s380 = scalar_select %p379, %s378, 5
        %s381 = scalar_lea.vmem %s2, %s380
        %s382 = smul.u32 2, %s19
        %s383 = smul.u32 2, %s18
        %s384 = smul.u32 2, %s19
        %v385 = vld [vmem:[%s375] sm:$0xff]
        %v386 = vld [vmem:[%s375 + $0x8] sm:$0xff]
        %v387 = vld [vmem:[%s340] sm:$0xff]
        %v388 = vld [vmem:[%s340 + $0x8] sm:$0xff]
        %v389 = vld [vmem:[%s340 + $0x10] sm:$0xff]
        %v390 = vld [vmem:[%s340 + $0x18] sm:$0xff]
        %v391 = vld [vmem:[%s340 + $0x20] sm:$0xff]
        %v392 = vld [vmem:[%s340 + $0x28] sm:$0xff]
        %v393 = vld [vmem:[%s340 + $0x30] sm:$0xff]
        %v394 = vld [vmem:[%s340 + $0x38] sm:$0xff]
        %v395 = vld [vmem:[%s340 + $0x40] sm:$0xff]
        %v396 = vld [vmem:[%s340 + $0x48] sm:$0xff]
        %v397 = vld [vmem:[%s340 + $0x50] sm:$0xff]
        %v398 = vld [vmem:[%s340 + $0x58] sm:$0xff]
        %v399 = vld [vmem:[%s340 + $0x60] sm:$0xff]
        %v400 = vld [vmem:[%s340 + $0x68] sm:$0xff]
        %v401 = vld [vmem:[%s340 + $0x70] sm:$0xff]
        %v402 = vld [vmem:[%s340 + $0x78] sm:$0xff]
        %v403 = vld [vmem:[%s340 + $0x80] sm:$0xff]
        %v404 = vld [vmem:[%s340 + $0x88] sm:$0xff]
        %v405 = vld [vmem:[%s340 + $0x90] sm:$0xff]
        %v406 = vld [vmem:[%s340 + $0x98] sm:$0xff]
        %v407 = vld [vmem:[%s340 + $0xa0] sm:$0xff]
        %v408 = vld [vmem:[%s340 + $0xa8] sm:$0xff]
        %v409 = vld [vmem:[%s340 + $0xb0] sm:$0xff]
        %v410 = vld [vmem:[%s340 + $0xb8] sm:$0xff]
        %v411 = vld [vmem:[%s340 + $0xc0] sm:$0xff]
        %v412 = vld [vmem:[%s340 + $0xc8] sm:$0xff]
        %v413 = vld [vmem:[%s340 + $0xd0] sm:$0xff]
        %v414 = vld [vmem:[%s340 + $0xd8] sm:$0xff]
        %v415 = vld [vmem:[%s340 + $0xe0] sm:$0xff]
        %v416 = vld [vmem:[%s340 + $0xe8] sm:$0xff]
        %v417 = vld [vmem:[%s340 + $0xf0] sm:$0xff]
        %v418 = vld [vmem:[%s340 + $0xf8] sm:$0xff]
        %v419 = vld [vmem:[%s381] sm:$0x3]
        %v421 = vlaneseq
        %v422 = vshrl.u32 %v421, 7
        %v423 = vsub.s32 0, %v422
        %v424 = vrot.slane %v419, %v423
        %v425 = vlaneseq
        %v426 = vshrl.u32 %v425, 7
        %v427 = vsub.s32 1, %v426
        %v428 = vrot.slane %v419, %v427
        %v433 = vunpack.c.l.b16 %v385
        %v434 = vunpack.c.h.b16 %v385
        %v435 = vunpack.c.l.b16 %v386
        %v436 = vunpack.c.h.b16 %v386
        %v437 = vpack.c.b16 %v435, %v433
        %v438 = vpack.c.b16 %v436, %v434
        %v473 = vunpack.c.l.b16 %v387
        %v474 = vunpack.c.h.b16 %v387
        %v475 = vunpack.c.l.b16 %v388
        %v476 = vunpack.c.h.b16 %v388
        %v477 = vunpack.c.l.b16 %v389
        %v478 = vunpack.c.h.b16 %v389
        %v479 = vunpack.c.l.b16 %v390
        %v480 = vunpack.c.h.b16 %v390
        %v481 = vunpack.c.l.b16 %v391
        %v482 = vunpack.c.h.b16 %v391
        %v483 = vunpack.c.l.b16 %v392
        %v484 = vunpack.c.h.b16 %v392
        %v485 = vunpack.c.l.b16 %v393
        %v486 = vunpack.c.h.b16 %v393
        %v487 = vunpack.c.l.b16 %v394
        %v488 = vunpack.c.h.b16 %v394
        %v489 = vunpack.c.l.b16 %v395
        %v490 = vunpack.c.h.b16 %v395
        %v491 = vunpack.c.l.b16 %v396
        %v492 = vunpack.c.h.b16 %v396
        %v493 = vunpack.c.l.b16 %v397
        %v494 = vunpack.c.h.b16 %v397
        %v495 = vunpack.c.l.b16 %v398
        %v496 = vunpack.c.h.b16 %v398
        %v497 = vunpack.c.l.b16 %v399
        %v498 = vunpack.c.h.b16 %v399
        %v499 = vunpack.c.l.b16 %v400
        %v500 = vunpack.c.h.b16 %v400
        %v501 = vunpack.c.l.b16 %v401
        %v502 = vunpack.c.h.b16 %v401
        %v503 = vunpack.c.l.b16 %v402
        %v504 = vunpack.c.h.b16 %v402
        %v505 = vunpack.c.l.b16 %v403
        %v506 = vunpack.c.h.b16 %v403
        %v507 = vunpack.c.l.b16 %v404
        %v508 = vunpack.c.h.b16 %v404
        %v509 = vunpack.c.l.b16 %v405
        %v510 = vunpack.c.h.b16 %v405
        %v511 = vunpack.c.l.b16 %v406
        %v512 = vunpack.c.h.b16 %v406
        %v513 = vunpack.c.l.b16 %v407
        %v514 = vunpack.c.h.b16 %v407
        %v515 = vunpack.c.l.b16 %v408
        %v516 = vunpack.c.h.b16 %v408
        %v517 = vunpack.c.l.b16 %v409
        %v518 = vunpack.c.h.b16 %v409
        %v519 = vunpack.c.l.b16 %v410
        %v520 = vunpack.c.h.b16 %v410
        %v521 = vunpack.c.l.b16 %v411
        %v522 = vunpack.c.h.b16 %v411
        %v523 = vunpack.c.l.b16 %v412
        %v524 = vunpack.c.h.b16 %v412
        %v525 = vunpack.c.l.b16 %v413
        %v526 = vunpack.c.h.b16 %v413
        %v527 = vunpack.c.l.b16 %v414
        %v528 = vunpack.c.h.b16 %v414
        %v529 = vunpack.c.l.b16 %v415
        %v530 = vunpack.c.h.b16 %v415
        %v531 = vunpack.c.l.b16 %v416
        %v532 = vunpack.c.h.b16 %v416
        %v533 = vunpack.c.l.b16 %v417
        %v534 = vunpack.c.h.b16 %v417
        %v535 = vunpack.c.l.b16 %v418
        %v536 = vunpack.c.h.b16 %v418
        %v537 = vpack.c.b16 %v475, %v473
        %v538 = vpack.c.b16 %v476, %v474
        %v539 = vpack.c.b16 %v479, %v477
        %v540 = vpack.c.b16 %v480, %v478
        %v541 = vpack.c.b16 %v483, %v481
        %v542 = vpack.c.b16 %v484, %v482
        %v543 = vpack.c.b16 %v487, %v485
        %v544 = vpack.c.b16 %v488, %v486
        %v545 = vpack.c.b16 %v491, %v489
        %v546 = vpack.c.b16 %v492, %v490
        %v547 = vpack.c.b16 %v495, %v493
        %v548 = vpack.c.b16 %v496, %v494
        %v549 = vpack.c.b16 %v499, %v497
        %v550 = vpack.c.b16 %v500, %v498
        %v551 = vpack.c.b16 %v503, %v501
        %v552 = vpack.c.b16 %v504, %v502
        %v553 = vpack.c.b16 %v507, %v505
        %v554 = vpack.c.b16 %v508, %v506
        %v555 = vpack.c.b16 %v511, %v509
        %v556 = vpack.c.b16 %v512, %v510
        %v557 = vpack.c.b16 %v515, %v513
        %v558 = vpack.c.b16 %v516, %v514
        %v559 = vpack.c.b16 %v519, %v517
        %v560 = vpack.c.b16 %v520, %v518
        %v561 = vpack.c.b16 %v523, %v521
        %v562 = vpack.c.b16 %v524, %v522
        %v563 = vpack.c.b16 %v527, %v525
        %v564 = vpack.c.b16 %v528, %v526
        %v565 = vpack.c.b16 %v531, %v529
        %v566 = vpack.c.b16 %v532, %v530
        %v567 = vpack.c.b16 %v535, %v533
        %v568 = vpack.c.b16 %v536, %v534
        %601 = vmatprep.subr.bf16.mxu0 %v538
        %602 = vmatpush1.bf16.msra.mxu0 %v537
        %603 = vmatprep.subr.bf16.mxu0 %v540
        %604 = vmatpush1.bf16.msra.mxu0 %v539
        %605 = vmatprep.subr.bf16.mxu0 %v542
        %606 = vmatpush1.bf16.msra.mxu0 %v541
        %607 = vmatprep.subr.bf16.mxu0 %v544
        %608 = vmatpush1.bf16.msra.mxu0 %v543
        %609 = vmatprep.subr.bf16.mxu0 %v546
        %610 = vmatpush1.bf16.msra.mxu0 %v545
        %611 = vmatprep.subr.bf16.mxu0 %v548
        %612 = vmatpush1.bf16.msra.mxu0 %v547
        %613 = vmatprep.subr.bf16.mxu0 %v550
        %614 = vmatpush1.bf16.msra.mxu0 %v549
        %615 = vmatprep.subr.bf16.mxu0 %v552
        %616 = vmatpush1.bf16.msra.mxu0 %v551
        %617 = vmatprep.subr.bf16.mxu0 %v554
        %618 = vmatpush1.bf16.msra.mxu0 %v553
        %619 = vmatprep.subr.bf16.mxu0 %v556
        %620 = vmatpush1.bf16.msra.mxu0 %v555
        %621 = vmatprep.subr.bf16.mxu0 %v558
        %622 = vmatpush1.bf16.msra.mxu0 %v557
        %623 = vmatprep.subr.bf16.mxu0 %v560
        %624 = vmatpush1.bf16.msra.mxu0 %v559
        %625 = vmatprep.subr.bf16.mxu0 %v562
        %626 = vmatpush1.bf16.msra.mxu0 %v561
        %627 = vmatprep.subr.bf16.mxu0 %v564
        %628 = vmatpush1.bf16.msra.mxu0 %v563
        %629 = vmatprep.subr.bf16.mxu0 %v566
        %630 = vmatpush1.bf16.msra.mxu0 %v565
        %631 = vmatprep.subr.bf16.mxu0 %v568
        %632 = vmatpush1.bf16.msra.mxu0 %v567
        %633 = vmatprep.mubr.bf16.mxu0 %v438
        %634 = vmatmul.mubr.bf16.gmra.mrb[0].mxu0 %v437
        %v635 = vpop.f32.mrb[0].mxu0
        %v636 = vadd.f32 %v424, %v635
        %v637 = vpop.f32.mrb[0].mxu0
        %v638 = vadd.f32 %v428, %v637
        %v639 = vpop.f32.mrb[0].mxu0
        %v640 = vadd.f32 %v424, %v639
        %v641 = vpop.f32.mrb[0].mxu0
        %v642 = vadd.f32 %v428, %v641
        %643 = vdwg.mxu0
        %v644 = vpack.c.bf16 %v640, %v636
        %v645 = vpack.c.bf16 %v642, %v638
        %v648 = vunpack.c.l.b16 %v644
        %v649 = vunpack.c.l.b16 %v645
        %v650 = vunpack.c.h.b16 %v644
        %v651 = vunpack.c.h.b16 %v645
        %v652 = vpack.c.b16 %v649, %v648
        %v653 = vpack.c.b16 %v651, %v650
        %656 = vst [vmem:[%s369] sm:$0xff] %v652
        %657 = vst [vmem:[%s369 + $0x8] sm:$0xff] %v653
        %s658 = sand.u32 %s114, 1
        %s659 = sand.u32 %s114, 1
        %s660 = smul.addr %s659, 16
        %s661 = scalar_lea.vmem [#allocation3], %s660
        // Predicated region
        $region71: #{_lambda_.14} parent=65 // pred_check
          %p662 = pneg %p124
        $region72: #{_lambda_.14} parent=65 // pred_check_branch
          %664 = sbr.rel (%p662) target = $region74
        $region73: #{_lambda_.14} parent=65 // pred_region
          %s665 = smul.u32 2, %s18
          %s666 = smul.u32 2, %s19
          %s667 = smul.addr %s665, 6
          %s668 = sadd.s32 %s666, %s667
          %s669 = smul.addr %s668, 4
          %s670 = scalar_lea.vmem %s3, %s669
          // Predicated region
          $region75: #{_lambda_.14} parent=73 // pred_check
            _
          $region76: #{_lambda_.14} parent=73 // pred_check_branch
            %672 = sbr.rel (0) target = $region78
          $region77: #{_lambda_.14} parent=73 // pred_region
            // Predicated region
            $region79: #{_lambda_.14} parent=77 // pred_check
              _
            $region80: #{_lambda_.14} parent=77 // pred_check_branch
              %674 = sbr.rel (0) target = $region82
            $region81: #{_lambda_.14} parent=77 // pred_region
              // Predicated region
              $region94: #{_lambda_.14} parent=81 // pred_check
                _
              $region95: #{_lambda_.14} parent=81 // pred_check_branch
                %691 = sbr.rel (0) target = $region97
              $region96: #{_lambda_.14} parent=81 // pred_region
                loop: start=0, step=1, limit=1
                $region98: #{_lambda_.14} parent=96 // loop_pre_header
                  _
                $region99: #{_lambda_.14} parent=96 // loop_header
                  %s693 = sphi 0, %s697
                  %p694 = scmp.ge.s32.totalorder %s693, 1
                  %s698 = sphi %s661, %s661
                  %s699 = sphi %s670, %s670
                $region100: #{_lambda_.14} parent=96 // loop_header_branch
                  %696 = sbr.rel (%p694) target = $region104
                $region101: #{_lambda_.14} parent=96 // loop_body
                  %v700 = vld [vmem:[%s698] sm:$0xff]
                  %701 = vst [vmem:[%s699] sm:$0xff] %v700
                  %v702 = vld [vmem:[%s698 + $0x8] sm:$0xff]
                  %703 = vst [vmem:[%s699 + $0x18] sm:$0xff] %v702
                $region102: #{_lambda_.14} parent=96 // loop_footer
                  %s697 = sadd.s32 1, %s693
                $region103: #{_lambda_.14} parent=96 // loop_footer_branch
                  %692 = sbr.rel target = $region99
                $region104: #{_lambda_.14} parent=96 // loop_exit
                  _
              $region97: #{_lambda_.14} parent=81 // pred_fallthru
                _
              // Predicated region
              $region105: #{_lambda_.14} parent=81 // pred_check
                _
              $region106: #{_lambda_.14} parent=81 // pred_check_branch
                %705 = sbr.rel target = $region108
              $region107: #{_lambda_.14} parent=81 // pred_region
                _
              $region108: #{_lambda_.14} parent=81 // pred_fallthru
                _
            $region82: #{_lambda_.14} parent=77 // pred_fallthru
              _
            // Predicated region
            $region83: #{_lambda_.14} parent=77 // pred_check
              _
            $region84: #{_lambda_.14} parent=77 // pred_check_branch
              %676 = sbr.rel target = $region86
            $region85: #{_lambda_.14} parent=77 // pred_region
              loop: start=0, step=1, limit=1
              $region87: #{_lambda_.14} parent=85 // loop_pre_header
                _
              $region88: #{_lambda_.14} parent=85 // loop_header
                %s679 = sphi 0, %s683
                %p680 = scmp.ge.s32.totalorder %s679, 1
                %s684 = sphi %s661, %s661
                %s685 = sphi %s670, %s670
              $region89: #{_lambda_.14} parent=85 // loop_header_branch
                %682 = sbr.rel (%p680) target = $region93
              $region90: #{_lambda_.14} parent=85 // loop_body
                %v686 = vld [vmem:[%s684] sm:$0xff]
                %687 = vst [vmem:[%s685] sm:$0xff] %v686
                %v688 = vld [vmem:[%s684 + $0x8] sm:$0xff]
                %689 = vst [vmem:[%s685 + $0x18] sm:$0xff] %v688
              $region91: #{_lambda_.14} parent=85 // loop_footer
                %s683 = sadd.s32 1, %s679
              $region92: #{_lambda_.14} parent=85 // loop_footer_branch
                %678 = sbr.rel target = $region88
              $region93: #{_lambda_.14} parent=85 // loop_exit
                _
            $region86: #{_lambda_.14} parent=77 // pred_fallthru
              _
          $region78: #{_lambda_.14} parent=73 // pred_fallthru
            _
          %706 = vnop
        $region74: #{_lambda_.14} parent=65 // pred_fallthru
          _
      $region66: #{_lambda_.14} parent=5 // pred_fallthru
        _
      %p707 = scmp.le.s32.totalorder 2, %s9
      // Predicated region
      $region109: #{_lambda_.14} parent=5 // pred_check
        %p708 = pneg %p707
      $region110: #{_lambda_.14} parent=5 // pred_check_branch
        %710 = sbr.rel (%p708) target = $region112
      $region111: #{_lambda_.14} parent=5 // pred_region
        %s711 = ssub.s32 %s9, 2
        // Predicated region
        $region113: #{_lambda_.14} parent=111 // pred_check
          %p712 = pneg %p130
        $region114: #{_lambda_.14} parent=111 // pred_check_branch
          %714 = sbr.rel (%p712) target = $region116
        $region115: #{_lambda_.14} parent=111 // pred_region
          %s715 = sand.u32 %s115, 1
          %s716 = sand.u32 %s115, 1
          %s717 = smul.addr %s716, 16
          %s718 = scalar_lea.vmem [#allocation3], %s717
        $region116: #{_lambda_.14} parent=111 // pred_fallthru
          _
      $region112: #{_lambda_.14} parent=5 // pred_fallthru
        _
    $region6: #{_lambda_.14} parent=1 // loop_footer
      %s13 = sadd.s32 1, %s9
    $region7: #{_lambda_.14} parent=1 // loop_footer_branch
      %8 = sbr.rel target = $region3
    $region8: #{_lambda_.14} parent=1 // loop_exit
      _

// kernel: _lambda_.15
$region0: #{_lambda_.15}
  #allocation0 [shape = 'u32[]', space=smem, size = 0x4, offset = 0x4, fixed_abs, tag = 'smem constant byte address 0x4 - core index']
  #allocation1 [shape = 'u32[144,128]{1,0:T(1,128)}', space=vmem, size = 0x12000, scoped, tag = 'internal scratch']
  %s0 = inlined_call_operand.vmem [shape: bf16[2,4,16,64], index: 0, kind: input, shape index: {}]
  %s1 = inlined_call_operand.vmem [shape: bf16[2,4,16,64], index: 1, kind: input, shape index: {}]
  %s2 = inlined_call_operand.vmem [shape: bf16[2,4,16,64], index: 2, kind: input, shape index: {}]
  %s3 = inlined_call_operand.vmem [shape: f32[2,1,16], index: 3, kind: input, shape index: {}]
  %s4 = inlined_call_operand.vmem [shape: bf16[2,4,16,64], index: 4, kind: output, shape index: {}]
  %s5 = sld [smem:[#allocation0]]
  $region49: #{_lambda_.15} parent=0
    _
  %s7 = ssub.s32 1, %s5
  %s8 = scalar_select 0, %s7, %s5
  loop: start=0, step=1, limit=10
  $region2: #{_lambda_.15} parent=0 // loop_pre_header
    _
  $region3: #{_lambda_.15} parent=0 // loop_header
    %s10 = sphi 0, %s14
    %p11 = scmp.ge.s32.totalorder %s10, 10
    %s17 = sphi 0, %s29
    %s18 = sphi 0, %s25
    %s19 = sphi 0, %s17
    %s20 = sphi 0, %s18
    %s21 = sphi 0, %s19
    %s22 = sphi 0, %s20
    %s34 = sphi 0, %s36
    %s37 = sphi 0, %s34
    %s38 = sphi 0, %s37
    %s54 = sphi 0, %s38
    %s62 = sphi 0, %s64
    %s65 = sphi 0, %s62
    %s66 = sphi 0, %s65
    %s82 = sphi 0, %s66
    %s90 = sphi 0, %s92
    %s93 = sphi 0, %s90
    %s94 = sphi 0, %s93
    %s110 = sphi 0, %s94
    %s116 = sphi 0, %s118
    %s119 = sphi 0, %s116
    %s120 = sphi 0, %s119
    %s136 = sphi 0, %s120
    %s144 = sphi 0, %s146
    %s147 = sphi 0, %s144
    %s148 = sphi 0, %s147
    %s164 = sphi 0, %s148
  $region4: #{_lambda_.15} parent=0 // loop_header_branch
    %13 = sbr.rel (%p11) target = $region8
  $region5: #{_lambda_.15} parent=0 // loop_body
    %s15 = ssub.s32 %s10, 1
    %s16 = ssub.s32 %s10, 2
    %s23 = sadd.s32 1, %s18
    %p24 = scmp.ge.s32.totalorder %s23, 4
    %s25 = scalar_select %p24, 0, %s23
    %s26 = sadd.s32 1, %s17
    %s27 = scalar_select %p24, %s26, %s17
    %p28 = scmp.ge.s32.totalorder %s27, 2
    %s29 = scalar_select %p28, 0, %s27
    %s30 = ssub.s32 %s17, %s29
    %s31 = ssub.s32 %s18, %s25
    %s32 = sor.u32 %s30, %s31
    %p33 = scmp.eq.s32.totalorder %s32, 0
    %s35 = sadd.s32 %s34, 1
    %s36 = scalar_select %p33, %s34, %s35
    %p39 = pneg %p33
    %p40 = scmp.eq.s32.totalorder %s10, 7
    %p41 = por %p39, %p40
    %p42 = scmp.ne.s32.totalorder %s34, %s37
    %p43 = scmp.eq.s32.totalorder %s10, 0
    %p44 = por %p42, %p43
    %p45 = scmp.ne.s32.totalorder %s34, %s37
    %p46 = scmp.eq.s32.totalorder %s15, 7
    %p47 = por %p45, %p46
    %p48 = scmp.ne.s32.totalorder %s37, %s38
    %p49 = scmp.eq.s32.totalorder %s15, 0
    %p50 = por %p48, %p49
    %p51 = scmp.ne.s32.totalorder %s37, %s38
    %p52 = scmp.eq.s32.totalorder %s16, 7
    %p53 = por %p51, %p52
    %p55 = scmp.ne.s32.totalorder %s38, %s54
    %p56 = scmp.eq.s32.totalorder %s16, 0
    %p57 = por %p55, %p56
    %s58 = ssub.s32 %s17, %s29
    %s59 = ssub.s32 %s18, %s25
    %s60 = sor.u32 %s58, %s59
    %p61 = scmp.eq.s32.totalorder %s60, 0
    %s63 = sadd.s32 %s62, 1
    %s64 = scalar_select %p61, %s62, %s63
    %p67 = pneg %p61
    %p68 = scmp.eq.s32.totalorder %s10, 7
    %p69 = por %p67, %p68
    %p70 = scmp.ne.s32.totalorder %s62, %s65
    %p71 = scmp.eq.s32.totalorder %s10, 0
    %p72 = por %p70, %p71
    %p73 = scmp.ne.s32.totalorder %s62, %s65
    %p74 = scmp.eq.s32.totalorder %s15, 7
    %p75 = por %p73, %p74
    %p76 = scmp.ne.s32.totalorder %s65, %s66
    %p77 = scmp.eq.s32.totalorder %s15, 0
    %p78 = por %p76, %p77
    %p79 = scmp.ne.s32.totalorder %s65, %s66
    %p80 = scmp.eq.s32.totalorder %s16, 7
    %p81 = por %p79, %p80
    %p83 = scmp.ne.s32.totalorder %s66, %s82
    %p84 = scmp.eq.s32.totalorder %s16, 0
    %p85 = por %p83, %p84
    %s86 = ssub.s32 %s17, %s29
    %s87 = ssub.s32 %s18, %s25
    %s88 = sor.u32 %s86, %s87
    %p89 = scmp.eq.s32.totalorder %s88, 0
    %s91 = sadd.s32 %s90, 1
    %s92 = scalar_select %p89, %s90, %s91
    %p95 = pneg %p89
    %p96 = scmp.eq.s32.totalorder %s10, 7
    %p97 = por %p95, %p96
    %p98 = scmp.ne.s32.totalorder %s90, %s93
    %p99 = scmp.eq.s32.totalorder %s10, 0
    %p100 = por %p98, %p99
    %p101 = scmp.ne.s32.totalorder %s90, %s93
    %p102 = scmp.eq.s32.totalorder %s15, 7
    %p103 = por %p101, %p102
    %p104 = scmp.ne.s32.totalorder %s93, %s94
    %p105 = scmp.eq.s32.totalorder %s15, 0
    %p106 = por %p104, %p105
    %p107 = scmp.ne.s32.totalorder %s93, %s94
    %p108 = scmp.eq.s32.totalorder %s16, 7
    %p109 = por %p107, %p108
    %p111 = scmp.ne.s32.totalorder %s94, %s110
    %p112 = scmp.eq.s32.totalorder %s16, 0
    %p113 = por %p111, %p112
    %s114 = ssub.s32 %s17, %s29
    %p115 = scmp.eq.s32.totalorder %s114, 0
    %s117 = sadd.s32 %s116, 1
    %s118 = scalar_select %p115, %s116, %s117
    %p121 = pneg %p115
    %p122 = scmp.eq.s32.totalorder %s10, 7
    %p123 = por %p121, %p122
    %p124 = scmp.ne.s32.totalorder %s116, %s119
    %p125 = scmp.eq.s32.totalorder %s10, 0
    %p126 = por %p124, %p125
    %p127 = scmp.ne.s32.totalorder %s116, %s119
    %p128 = scmp.eq.s32.totalorder %s15, 7
    %p129 = por %p127, %p128
    %p130 = scmp.ne.s32.totalorder %s119, %s120
    %p131 = scmp.eq.s32.totalorder %s15, 0
    %p132 = por %p130, %p131
    %p133 = scmp.ne.s32.totalorder %s119, %s120
    %p134 = scmp.eq.s32.totalorder %s16, 7
    %p135 = por %p133, %p134
    %p137 = scmp.ne.s32.totalorder %s120, %s136
    %p138 = scmp.eq.s32.totalorder %s16, 0
    %p139 = por %p137, %p138
    %s140 = ssub.s32 %s17, %s29
    %s141 = ssub.s32 %s18, %s25
    %s142 = sor.u32 %s140, %s141
    %p143 = scmp.eq.s32.totalorder %s142, 0
    %s145 = sadd.s32 %s144, 1
    %s146 = scalar_select %p143, %s144, %s145
    %p149 = pneg %p143
    %p150 = scmp.eq.s32.totalorder %s10, 7
    %p151 = por %p149, %p150
    %p152 = scmp.ne.s32.totalorder %s144, %s147
    %p153 = scmp.eq.s32.totalorder %s10, 0
    %p154 = por %p152, %p153
    %p155 = scmp.ne.s32.totalorder %s144, %s147
    %p156 = scmp.eq.s32.totalorder %s15, 7
    %p157 = por %p155, %p156
    %p158 = scmp.ne.s32.totalorder %s147, %s148
    %p159 = scmp.eq.s32.totalorder %s15, 0
    %p160 = por %p158, %p159
    %p161 = scmp.ne.s32.totalorder %s147, %s148
    %p162 = scmp.eq.s32.totalorder %s16, 7
    %p163 = por %p161, %p162
    %p165 = scmp.ne.s32.totalorder %s148, %s164
    %p166 = scmp.eq.s32.totalorder %s16, 0
    %p167 = por %p165, %p166
    %p168 = scmp.le.s32.totalorder 1, %s10
    %p169 = scmp.lt.s32.totalorder %s10, 9
    %p170 = pnand %p168, %p169
    %p171 = pneg %p170
    // Predicated region
    $region9: #{_lambda_.15} parent=5 // pred_check
      _
    $region10: #{_lambda_.15} parent=5 // pred_check_branch
      %173 = sbr.rel (%p170) target = $region12
    $region11: #{_lambda_.15} parent=5 // pred_region
      %s174 = ssub.s32 %s10, 1
    $region12: #{_lambda_.15} parent=5 // pred_fallthru
      _
    %p175 = scmp.lt.s32.totalorder %s10, 8
    // Predicated region
    $region13: #{_lambda_.15} parent=5 // pred_check
      %p176 = pneg %p175
    $region14: #{_lambda_.15} parent=5 // pred_check_branch
      %178 = sbr.rel (%p176) target = $region16
    $region15: #{_lambda_.15} parent=5 // pred_region
      // Predicated region
      $region17: #{_lambda_.15} parent=15 // pred_check
        %p179 = pneg %p44
      $region18: #{_lambda_.15} parent=15 // pred_check_branch
        %181 = sbr.rel (%p179) target = $region20
      $region19: #{_lambda_.15} parent=15 // pred_region
        %p182 = scmp.lt.s32.totalorder %s17, 1
        %s183 = scalar_select %p182, %s17, 1
        %p184 = scmp.lt.s32.totalorder %s18, 3
        %s185 = scalar_select %p184, %s18, 3
        %s186 = smul.addr %s185, 2
        %s187 = smul.addr %s183, 8
        %s188 = sadd.s32 %s186, %s187
        %s189 = smul.addr %s188, 4
        %s190 = scalar_lea.vmem %s0, %s189
      $region20: #{_lambda_.15} parent=15 // pred_fallthru
        _
      // Predicated region
      $region21: #{_lambda_.15} parent=15 // pred_check
        %p191 = pneg %p72
      $region22: #{_lambda_.15} parent=15 // pred_check_branch
        %193 = sbr.rel (%p191) target = $region24
      $region23: #{_lambda_.15} parent=15 // pred_region
        %p194 = scmp.lt.s32.totalorder %s17, 1
        %s195 = scalar_select %p194, %s17, 1
        %p196 = scmp.lt.s32.totalorder %s18, 3
        %s197 = scalar_select %p196, %s18, 3
        %s198 = smul.addr %s197, 2
        %s199 = smul.addr %s195, 8
        %s200 = sadd.s32 %s198, %s199
        %s201 = smul.addr %s200, 4
        %s202 = scalar_lea.vmem %s1, %s201
      $region24: #{_lambda_.15} parent=15 // pred_fallthru
        _
      // Predicated region
      $region25: #{_lambda_.15} parent=15 // pred_check
        %p203 = pneg %p100
      $region26: #{_lambda_.15} parent=15 // pred_check_branch
        %205 = sbr.rel (%p203) target = $region28
      $region27: #{_lambda_.15} parent=15 // pred_region
        %p206 = scmp.lt.s32.totalorder %s17, 1
        %s207 = scalar_select %p206, %s17, 1
        %p208 = scmp.lt.s32.totalorder %s18, 3
        %s209 = scalar_select %p208, %s18, 3
        %s210 = smul.addr %s209, 2
        %s211 = smul.addr %s207, 8
        %s212 = sadd.s32 %s210, %s211
        %s213 = smul.addr %s212, 4
        %s214 = scalar_lea.vmem %s2, %s213
      $region28: #{_lambda_.15} parent=15 // pred_fallthru
        _
      // Predicated region
      $region29: #{_lambda_.15} parent=15 // pred_check
        %p215 = pneg %p126
      $region30: #{_lambda_.15} parent=15 // pred_check_branch
        %217 = sbr.rel (%p215) target = $region32
      $region31: #{_lambda_.15} parent=15 // pred_region
        %p218 = scmp.lt.s32.totalorder %s17, 1
        %s219 = scalar_select %p218, %s17, 1
        %s220 = scalar_lea.vmem %s3, %s219
      $region32: #{_lambda_.15} parent=15 // pred_fallthru
        _
    $region16: #{_lambda_.15} parent=5 // pred_fallthru
      _
    %p221 = scmp.le.s32.totalorder 1, %s10
    %p222 = scmp.lt.s32.totalorder %s10, 9
    %p223 = pnand %p221, %p222
    %p224 = pneg %p223
    // Predicated region
    $region33: #{_lambda_.15} parent=5 // pred_check
      _
    $region34: #{_lambda_.15} parent=5 // pred_check_branch
      %226 = sbr.rel (%p223) target = $region36
    $region35: #{_lambda_.15} parent=5 // pred_region
      %s227 = ssub.s32 %s10, 1
      %p228 = scmp.lt.s32.totalorder %s19, 1
      %s229 = scalar_select %p228, %s19, 1
      %p230 = scmp.lt.s32.totalorder %s20, 3
      %s231 = scalar_select %p230, %s20, 3
      %s232 = smul.addr %s231, 2
      %s233 = smul.addr %s229, 8
      %s234 = sadd.s32 %s232, %s233
      %s235 = smul.addr %s234, 4
      %s236 = scalar_lea.vmem %s0, %s235
      %p237 = pneg %p50
      %p238 = pneg %p47
      %p239 = scmp.lt.s32.totalorder %s19, 1
      %s240 = scalar_select %p239, %s19, 1
      %p241 = scmp.lt.s32.totalorder %s20, 3
      %s242 = scalar_select %p241, %s20, 3
      %s243 = smul.addr %s242, 2
      %s244 = smul.addr %s240, 8
      %s245 = sadd.s32 %s243, %s244
      %s246 = smul.addr %s245, 4
      %s247 = scalar_lea.vmem %s1, %s246
      %p248 = pneg %p78
      %p249 = pneg %p75
      %p250 = scmp.lt.s32.totalorder %s19, 1
      %s251 = scalar_select %p250, %s19, 1
      %p252 = scmp.lt.s32.totalorder %s20, 3
      %s253 = scalar_select %p252, %s20, 3
      %s254 = smul.addr %s253, 2
      %s255 = smul.addr %s251, 8
      %s256 = sadd.s32 %s254, %s255
      %s257 = smul.addr %s256, 4
      %s258 = scalar_lea.vmem %s2, %s257
      %p259 = pneg %p106
      %p260 = pneg %p103
      %p261 = scmp.lt.s32.totalorder %s19, 1
      %s262 = scalar_select %p261, %s19, 1
      %s263 = scalar_lea.vmem %s3, %s262
      %p264 = pneg %p132
      %p265 = pneg %p129
      %p266 = pneg %p160
      %p267 = pneg %p157
      %p268 = scmp.lt.s32.totalorder %s19, 1
      %s269 = scalar_select %p268, %s19, 1
      %p270 = scmp.lt.s32.totalorder %s20, 3
      %s271 = scalar_select %p270, %s20, 3
      %s272 = smul.addr %s271, 2
      %s273 = smul.addr %s269, 8
      %s274 = sadd.s32 %s272, %s273
      %s275 = smul.addr %s274, 4
      %s276 = scalar_lea.vmem %s4, %s275
      %p277 = scmp.lt.s32.totalorder %s19, 1
      %s278 = scalar_select %p277, %s19, 1
      %p279 = scmp.lt.s32.totalorder %s20, 3
      %s280 = scalar_select %p279, %s20, 3
      %s281 = smul.addr %s280, 2
      %s282 = smul.addr %s278, 8
      %s283 = sadd.s32 %s281, %s282
      %s284 = smul.addr %s283, 4
      %s285 = scalar_lea.vmem %s0, %s284
      %p286 = scmp.lt.s32.totalorder %s19, 1
      %s287 = scalar_select %p286, %s19, 1
      %p288 = scmp.lt.s32.totalorder %s20, 3
      %s289 = scalar_select %p288, %s20, 3
      %s290 = smul.addr %s289, 2
      %s291 = smul.addr %s287, 8
      %s292 = sadd.s32 %s290, %s291
      %s293 = smul.addr %s292, 4
      %s294 = scalar_lea.vmem %s1, %s293
      %p295 = scmp.lt.s32.totalorder %s19, 1
      %s296 = scalar_select %p295, %s19, 1
      %p297 = scmp.lt.s32.totalorder %s20, 3
      %s298 = scalar_select %p297, %s20, 3
      %s299 = smul.addr %s298, 2
      %s300 = smul.addr %s296, 8
      %s301 = sadd.s32 %s299, %s300
      %s302 = smul.addr %s301, 4
      %s303 = scalar_lea.vmem %s2, %s302
      %p304 = scmp.lt.s32.totalorder %s19, 1
      %s305 = scalar_select %p304, %s19, 1
      %s306 = scalar_lea.vmem %s3, %s305
      %p307 = scmp.lt.s32.totalorder %s19, 1
      %s308 = scalar_select %p307, %s19, 1
      %p309 = scmp.lt.s32.totalorder %s20, 3
      %s310 = scalar_select %p309, %s20, 3
      %s311 = smul.addr %s310, 2
      %s312 = smul.addr %s308, 8
      %s313 = sadd.s32 %s311, %s312
      %s314 = smul.addr %s313, 4
      %s315 = scalar_lea.vmem %s4, %s314
      %v318 = vld [vmem:[%s285] sm:$0xf]
      %v319 = vld [vmem:[%s285 + $0x4] sm:$0xf]
      %v320 = vmul.bf16 %v318, 1040203264
      %v321 = vmul.bf16 %v319, 1040203264
      %v322 = vld [vmem:[%s294] sm:$0xf]
      %v323 = vld [vmem:[%s294 + $0x4] sm:$0xf]
      %v324 = vld [vmem:[%s303] sm:$0xf]
      %v325 = vld [vmem:[%s303 + $0x4] sm:$0xf]
      %v326 = vld [vmem:[%s306] sm:$0x1]
      %v328 = vlaneseq
      %v329 = vshrl.u32 %v328, 7
      %v330 = vsub.s32 0, %v329
      %v331 = vrot.slane %v326, %v330
      %v335 = vunpack.c.l.b16 %v320
      %v336 = vunpack.c.l.b16 %v321
      %v337 = vpack.c.b16 %v336, %v335
      %v340 = vunpack.c.l.b16 %v322
      %v341 = vunpack.c.l.b16 %v323
      %v342 = vpack.c.b16 %v341, %v340
      %vm343 = vcmask 523264
      %v345 = vsel %vm343, %v337, 0
      %v348 = vsel %vm343, %v342, 0
      %350 = vmatprep.subr.bf16.mxu0 0
      %351 = vmatpush1.bf16.xpose.msra.mxu0 %v348
      %352 = vmatprep.subr.bf16.mxu0 0
      %353 = vmatpush1.bf16.xpose.msra.mxu0 0
      %354 = vmatprep.subr.bf16.mxu0 0
      %355 = vmatpush1.bf16.xpose.msra.mxu0 0
      %356 = vmatprep.subr.bf16.mxu0 0
      %357 = vmatpush1.bf16.xpose.msra.mxu0 0
      %358 = vmatprep.subr.bf16.mxu0 0
      %359 = vmatpush1.bf16.xpose.msra.mxu0 0
      %360 = vmatprep.subr.bf16.mxu0 0
      %361 = vmatpush1.bf16.xpose.msra.mxu0 0
      %362 = vmatprep.subr.bf16.mxu0 0
      %363 = vmatpush1.bf16.xpose.msra.mxu0 0
      %364 = vmatprep.subr.bf16.mxu0 0
      %365 = vmatpush1.bf16.xpose.msra.mxu0 0
      %366 = vmatprep.subr.bf16.mxu0 0
      %367 = vmatpush1.bf16.xpose.msra.mxu0 0
      %368 = vmatprep.subr.bf16.mxu0 0
      %369 = vmatpush1.bf16.xpose.msra.mxu0 0
      %370 = vmatprep.subr.bf16.mxu0 0
      %371 = vmatpush1.bf16.xpose.msra.mxu0 0
      %372 = vmatprep.subr.bf16.mxu0 0
      %373 = vmatpush1.bf16.xpose.msra.mxu0 0
      %374 = vmatprep.subr.bf16.mxu0 0
      %375 = vmatpush1.bf16.xpose.msra.mxu0 0
      %376 = vmatprep.subr.bf16.mxu0 0
      %377 = vmatpush1.bf16.xpose.msra.mxu0 0
      %378 = vmatprep.subr.bf16.mxu0 0
      %379 = vmatpush1.bf16.xpose.msra.mxu0 0
      %380 = vmatprep.subr.bf16.mxu0 0
      %381 = vmatpush1.bf16.xpose.msra.mxu0 0
      %382 = vmatprep.mubr.bf16.mxu0 0
      %383 = vmatmul.mubr.bf16.gmra.mrb[0].mxu0 %v345
      %v384 = vpop.f32.mrb[0].mxu0
      %v385 = vadd.f32 %v331, %v384
      %v386 = vpop.f32.mrb[0].mxu0
      %v387 = vpop.f32.mrb[0].mxu0
      %v388 = vadd.f32 %v331, %v387
      %v389 = vpop.f32.mrb[0].mxu0
      %390 = vdwg.mxu0
      %vm391 = vcmask 130048
      %v392 = vsel %vm391, %v385, -inf
      %393 = vmax.xlane.f32.xlu0 %v392
      %v394 = vpop.xlane.xlu0 %393
      %v395 = vsel %vm391, %v388, -inf
      %396 = vmax.xlane.f32.xlu0 %v395
      %v397 = vpop.xlane.xlu0 %396
      %v398 = vsub.f32 %v385, %v394
      %v399 = vsub.f32 %v388, %v397
      %v400 = vmul.f32 %v398, 1.442695
      %v401 = vpow.pop %v400
      %v402 = vmul.f32 %v399, 1.442695
      %v403 = vpow.pop %v402
      %v404 = vsel %vm391, %v401, 0.0
      %405 = vadd.xlane.f32.xlu0 %v404
      %v406 = vpop.xlane.xlu0 %405
      %v407 = vsel %vm391, %v403, 0.0
      %408 = vadd.xlane.f32.xlu0 %v407
      %v409 = vpop.xlane.xlu0 %408
      %v410 = vrcp.pop %v406
      %v411 = vrcp.pop %v409
      %v412 = vmul.f32 %v401, %v410
      %v413 = vmul.f32 %v403, %v411
      %v414 = vpack.c.bf16 %v413, %v412
      %v417 = vunpack.c.l.b16 %v324
      %v418 = vunpack.c.l.b16 %v325
      %v419 = vpack.c.b16 %v418, %v417
      %v422 = vsel %vm391, %v414, 0
      %424 = vmatprep.subr.bf16.mxu0 0
      %425 = vmatpush1.bf16.msra.mxu0 %v419
      %426 = vmatprep.subr.bf16.mxu0 0
      %427 = vmatpush1.bf16.msra.mxu0 0
      %428 = vmatprep.subr.bf16.mxu0 0
      %429 = vmatpush1.bf16.msra.mxu0 0
      %430 = vmatprep.subr.bf16.mxu0 0
      %431 = vmatpush1.bf16.msra.mxu0 0
      %432 = vmatprep.subr.bf16.mxu0 0
      %433 = vmatpush1.bf16.msra.mxu0 0
      %434 = vmatprep.subr.bf16.mxu0 0
      %435 = vmatpush1.bf16.msra.mxu0 0
      %436 = vmatprep.subr.bf16.mxu0 0
      %437 = vmatpush1.bf16.msra.mxu0 0
      %438 = vmatprep.subr.bf16.mxu0 0
      %439 = vmatpush1.bf16.msra.mxu0 0
      %440 = vmatprep.subr.bf16.mxu0 0
      %441 = vmatpush1.bf16.msra.mxu0 0
      %442 = vmatprep.subr.bf16.mxu0 0
      %443 = vmatpush1.bf16.msra.mxu0 0
      %444 = vmatprep.subr.bf16.mxu0 0
      %445 = vmatpush1.bf16.msra.mxu0 0
      %446 = vmatprep.subr.bf16.mxu0 0
      %447 = vmatpush1.bf16.msra.mxu0 0
      %448 = vmatprep.subr.bf16.mxu0 0
      %449 = vmatpush1.bf16.msra.mxu0 0
      %450 = vmatprep.subr.bf16.mxu0 0
      %451 = vmatpush1.bf16.msra.mxu0 0
      %452 = vmatprep.subr.bf16.mxu0 0
      %453 = vmatpush1.bf16.msra.mxu0 0
      %454 = vmatprep.subr.bf16.mxu0 0
      %455 = vmatpush1.bf16.msra.mxu0 0
      %456 = vmatprep.mubr.bf16.mxu0 0
      %457 = vmatmul.mubr.bf16.gmra.mrb[0].mxu0 %v422
      %v458 = vpop.f32.mrb[0].mxu0
      %v459 = vadd.f32 0.0, %v458
      %v460 = vpop.f32.mrb[0].mxu0
      %v461 = vpop.f32.mrb[0].mxu0
      %v462 = vadd.f32 0.0, %v461
      %v463 = vpop.f32.mrb[0].mxu0
      %464 = vdwg.mxu0
      %v465 = vpack.c.bf16 %v462, %v459
      %v467 = vunpack.c.l.b16 %v465
      %v468 = vunpack.c.h.b16 %v465
      %v469 = vpack.c.b16 %v467, %v467
      %v470 = vpack.c.b16 %v468, %v468
      %vm473 = vcmask 519168
      %474 = vst.msk [vmem:[%s315] sm:$0xf] %vm473, %v469
      %475 = vst.msk [vmem:[%s315 + $0x4] sm:$0xf] %vm473, %v470
      %p476 = scmp.lt.s32.totalorder %s19, 1
      %s477 = scalar_select %p476, %s19, 1
      %p478 = scmp.lt.s32.totalorder %s20, 3
      %s479 = scalar_select %p478, %s20, 3
      %s480 = smul.addr %s479, 2
      %s481 = smul.addr %s477, 8
      %s482 = sadd.s32 %s480, %s481
      %s483 = smul.addr %s482, 4
      %s484 = scalar_lea.vmem %s4, %s483
      // Predicated region
      $region37: #{_lambda_.15} parent=35 // pred_check
        %p485 = pneg %p157
      $region38: #{_lambda_.15} parent=35 // pred_check_branch
        %487 = sbr.rel (%p485) target = $region40
      $region39: #{_lambda_.15} parent=35 // pred_region
        _
      $region40: #{_lambda_.15} parent=35 // pred_fallthru
        _
    $region36: #{_lambda_.15} parent=5 // pred_fallthru
      _
    %p488 = scmp.le.s32.totalorder 2, %s10
    // Predicated region
    $region41: #{_lambda_.15} parent=5 // pred_check
      %p489 = pneg %p488
    $region42: #{_lambda_.15} parent=5 // pred_check_branch
      %491 = sbr.rel (%p489) target = $region44
    $region43: #{_lambda_.15} parent=5 // pred_region
      %s492 = ssub.s32 %s10, 2
      // Predicated region
      $region45: #{_lambda_.15} parent=43 // pred_check
        %p493 = pneg %p163
      $region46: #{_lambda_.15} parent=43 // pred_check_branch
        %495 = sbr.rel (%p493) target = $region48
      $region47: #{_lambda_.15} parent=43 // pred_region
        %p496 = scmp.lt.s32.totalorder %s21, 1
        %s497 = scalar_select %p496, %s21, 1
        %p498 = scmp.lt.s32.totalorder %s22, 3
        %s499 = scalar_select %p498, %s22, 3
        %s500 = smul.addr %s499, 2
        %s501 = smul.addr %s497, 8
        %s502 = sadd.s32 %s500, %s501
        %s503 = smul.addr %s502, 4
        %s504 = scalar_lea.vmem %s4, %s503
      $region48: #{_lambda_.15} parent=43 // pred_fallthru
        _
    $region44: #{_lambda_.15} parent=5 // pred_fallthru
      _
  $region6: #{_lambda_.15} parent=0 // loop_footer
    %s14 = sadd.s32 1, %s10
  $region7: #{_lambda_.15} parent=0 // loop_footer_branch
    %9 = sbr.rel target = $region3
  $region8: #{_lambda_.15} parent=0 // loop_exit
    _

// kernel: _lambda_.16
$region0: #{_lambda_.16}
  #allocation0 [shape = 'u32[]', space=smem, size = 0x4, offset = 0x4, fixed_abs, tag = 'smem constant byte address 0x4 - core index']
  #allocation1 [shape = 'u32[144,128]{1,0:T(1,128)}', space=vmem, size = 0x12000, scoped, tag = 'internal scratch']
  #allocation2 [shape = 'f32[16,256]{1,0:T(8,128)}', space=vmem, size = 0x4000, scoped, tag = 'scratch operand']
  %s0 = inlined_call_operand.vmem [shape: bf16[32,256], index: 0, kind: input, shape index: {}]
  %s1 = inlined_call_operand.vmem [shape: bf16[256,256], index: 1, kind: input, shape index: {}]
  %s2 = inlined_call_operand.vmem [shape: f32[1,256], index: 2, kind: input, shape index: {}]
  %s3 = inlined_call_operand.vmem [shape: bf16[32,256], index: 3, kind: input, shape index: {}]
  %s4 = inlined_call_operand.vmem [shape: f32[1,256], index: 4, kind: input, shape index: {}]
  %s5 = inlined_call_operand.vmem [shape: f32[1,256], index: 5, kind: input, shape index: {}]
  %s6 = inlined_call_operand.vmem [shape: bf16[32,256], index: 6, kind: output, shape index: {}]
  %s7 = sld [smem:[#allocation0]]
  $region65: #{_lambda_.16} parent=0
    _
  %s9 = ssub.s32 1, %s7
  %s10 = scalar_select 0, %s9, %s7
  loop: start=0, step=1, limit=4
  $region2: #{_lambda_.16} parent=0 // loop_pre_header
    _
  $region3: #{_lambda_.16} parent=0 // loop_header
    %s12 = sphi 0, %s16
    %p13 = scmp.ge.s32.totalorder %s12, 4
    %s19 = sphi 0, %s31
    %s20 = sphi 0, %s27
    %s21 = sphi 0, %s19
    %s22 = sphi 0, %s20
    %s23 = sphi 0, %s21
    %s24 = sphi 0, %s22
    %s36 = sphi 0, %s38
    %s39 = sphi 0, %s36
    %s40 = sphi 0, %s39
    %s56 = sphi 0, %s40
    %s62 = sphi 0, %s64
    %s65 = sphi 0, %s62
    %s66 = sphi 0, %s65
    %s82 = sphi 0, %s66
    %s86 = sphi 0, %s86
    %s88 = sphi 0, %s86
    %s89 = sphi 0, %s88
    %s103 = sphi 0, %s89
    %s109 = sphi 0, %s111
    %s112 = sphi 0, %s109
    %s113 = sphi 0, %s112
    %s129 = sphi 0, %s113
    %s133 = sphi 0, %s133
    %s135 = sphi 0, %s133
    %s136 = sphi 0, %s135
    %s150 = sphi 0, %s136
    %s154 = sphi 0, %s154
    %s156 = sphi 0, %s154
    %s157 = sphi 0, %s156
    %s171 = sphi 0, %s157
    %s177 = sphi 0, %s179
    %s180 = sphi 0, %s177
    %s181 = sphi 0, %s180
    %s197 = sphi 0, %s181
  $region4: #{_lambda_.16} parent=0 // loop_header_branch
    %15 = sbr.rel (%p13) target = $region8
  $region5: #{_lambda_.16} parent=0 // loop_body
    %s17 = ssub.s32 %s12, 1
    %s18 = ssub.s32 %s12, 2
    %s25 = sadd.s32 1, %s20
    %p26 = scmp.ge.s32.totalorder %s25, 1
    %s27 = scalar_select %p26, 0, %s25
    %s28 = sadd.s32 1, %s19
    %s29 = scalar_select %p26, %s28, %s19
    %p30 = scmp.ge.s32.totalorder %s29, 2
    %s31 = scalar_select %p30, 0, %s29
    %s32 = ssub.s32 %s19, %s31
    %s33 = ssub.s32 %s20, %s27
    %s34 = sor.u32 %s32, %s33
    %p35 = scmp.eq.s32.totalorder %s34, 0
    %s37 = sadd.s32 %s36, 1
    %s38 = scalar_select %p35, %s36, %s37
    %p41 = pneg %p35
    %p42 = scmp.eq.s32.totalorder %s12, 1
    %p43 = por %p41, %p42
    %p44 = scmp.ne.s32.totalorder %s36, %s39
    %p45 = scmp.eq.s32.totalorder %s12, 0
    %p46 = por %p44, %p45
    %p47 = scmp.ne.s32.totalorder %s36, %s39
    %p48 = scmp.eq.s32.totalorder %s17, 1
    %p49 = por %p47, %p48
    %p50 = scmp.ne.s32.totalorder %s39, %s40
    %p51 = scmp.eq.s32.totalorder %s17, 0
    %p52 = por %p50, %p51
    %p53 = scmp.ne.s32.totalorder %s39, %s40
    %p54 = scmp.eq.s32.totalorder %s18, 1
    %p55 = por %p53, %p54
    %p57 = scmp.ne.s32.totalorder %s40, %s56
    %p58 = scmp.eq.s32.totalorder %s18, 0
    %p59 = por %p57, %p58
    %s60 = ssub.s32 %s20, %s27
    %p61 = scmp.eq.s32.totalorder %s60, 0
    %s63 = sadd.s32 %s62, 1
    %s64 = scalar_select %p61, %s62, %s63
    %p67 = pneg %p61
    %p68 = scmp.eq.s32.totalorder %s12, 1
    %p69 = por %p67, %p68
    %p70 = scmp.ne.s32.totalorder %s62, %s65
    %p71 = scmp.eq.s32.totalorder %s12, 0
    %p72 = por %p70, %p71
    %p73 = scmp.ne.s32.totalorder %s62, %s65
    %p74 = scmp.eq.s32.totalorder %s17, 1
    %p75 = por %p73, %p74
    %p76 = scmp.ne.s32.totalorder %s65, %s66
    %p77 = scmp.eq.s32.totalorder %s17, 0
    %p78 = por %p76, %p77
    %p79 = scmp.ne.s32.totalorder %s65, %s66
    %p80 = scmp.eq.s32.totalorder %s18, 1
    %p81 = por %p79, %p80
    %p83 = scmp.ne.s32.totalorder %s66, %s82
    %p84 = scmp.eq.s32.totalorder %s18, 0
    %p85 = por %p83, %p84
    %s87 = sadd.s32 %s86, 1
    %p90 = scmp.eq.s32.totalorder %s12, 1
    %p91 = scmp.ne.s32.totalorder %s86, %s88
    %p92 = scmp.eq.s32.totalorder %s12, 0
    %p93 = por %p91, %p92
    %p94 = scmp.ne.s32.totalorder %s86, %s88
    %p95 = scmp.eq.s32.totalorder %s17, 1
    %p96 = por %p94, %p95
    %p97 = scmp.ne.s32.totalorder %s88, %s89
    %p98 = scmp.eq.s32.totalorder %s17, 0
    %p99 = por %p97, %p98
    %p100 = scmp.ne.s32.totalorder %s88, %s89
    %p101 = scmp.eq.s32.totalorder %s18, 1
    %p102 = por %p100, %p101
    %p104 = scmp.ne.s32.totalorder %s89, %s103
    %p105 = scmp.eq.s32.totalorder %s18, 0
    %p106 = por %p104, %p105
    %s107 = ssub.s32 %s19, %s31
    %p108 = scmp.eq.s32.totalorder %s107, 0
    %s110 = sadd.s32 %s109, 1
    %s111 = scalar_select %p108, %s109, %s110
    %p114 = pneg %p108
    %p115 = scmp.eq.s32.totalorder %s12, 1
    %p116 = por %p114, %p115
    %p117 = scmp.ne.s32.totalorder %s109, %s112
    %p118 = scmp.eq.s32.totalorder %s12, 0
    %p119 = por %p117, %p118
    %p120 = scmp.ne.s32.totalorder %s109, %s112
    %p121 = scmp.eq.s32.totalorder %s17, 1
    %p122 = por %p120, %p121
    %p123 = scmp.ne.s32.totalorder %s112, %s113
    %p124 = scmp.eq.s32.totalorder %s17, 0
    %p125 = por %p123, %p124
    %p126 = scmp.ne.s32.totalorder %s112, %s113
    %p127 = scmp.eq.s32.totalorder %s18, 1
    %p128 = por %p126, %p127
    %p130 = scmp.ne.s32.totalorder %s113, %s129
    %p131 = scmp.eq.s32.totalorder %s18, 0
    %p132 = por %p130, %p131
    %s134 = sadd.s32 %s133, 1
    %p137 = scmp.eq.s32.totalorder %s12, 1
    %p138 = scmp.ne.s32.totalorder %s133, %s135
    %p139 = scmp.eq.s32.totalorder %s12, 0
    %p140 = por %p138, %p139
    %p141 = scmp.ne.s32.totalorder %s133, %s135
    %p142 = scmp.eq.s32.totalorder %s17, 1
    %p143 = por %p141, %p142
    %p144 = scmp.ne.s32.totalorder %s135, %s136
    %p145 = scmp.eq.s32.totalorder %s17, 0
    %p146 = por %p144, %p145
    %p147 = scmp.ne.s32.totalorder %s135, %s136
    %p148 = scmp.eq.s32.totalorder %s18, 1
    %p149 = por %p147, %p148
    %p151 = scmp.ne.s32.totalorder %s136, %s150
    %p152 = scmp.eq.s32.totalorder %s18, 0
    %p153 = por %p151, %p152
    %s155 = sadd.s32 %s154, 1
    %p158 = scmp.eq.s32.totalorder %s12, 1
    %p159 = scmp.ne.s32.totalorder %s154, %s156
    %p160 = scmp.eq.s32.totalorder %s12, 0
    %p161 = por %p159, %p160
    %p162 = scmp.ne.s32.totalorder %s154, %s156
    %p163 = scmp.eq.s32.totalorder %s17, 1
    %p164 = por %p162, %p163
    %p165 = scmp.ne.s32.totalorder %s156, %s157
    %p166 = scmp.eq.s32.totalorder %s17, 0
    %p167 = por %p165, %p166
    %p168 = scmp.ne.s32.totalorder %s156, %s157
    %p169 = scmp.eq.s32.totalorder %s18, 1
    %p170 = por %p168, %p169
    %p172 = scmp.ne.s32.totalorder %s157, %s171
    %p173 = scmp.eq.s32.totalorder %s18, 0
    %p174 = por %p172, %p173
    %s175 = ssub.s32 %s19, %s31
    %p176 = scmp.eq.s32.totalorder %s175, 0
    %s178 = sadd.s32 %s177, 1
    %s179 = scalar_select %p176, %s177, %s178
    %p182 = pneg %p176
    %p183 = scmp.eq.s32.totalorder %s12, 1
    %p184 = por %p182, %p183
    %p185 = scmp.ne.s32.totalorder %s177, %s180
    %p186 = scmp.eq.s32.totalorder %s12, 0
    %p187 = por %p185, %p186
    %p188 = scmp.ne.s32.totalorder %s177, %s180
    %p189 = scmp.eq.s32.totalorder %s17, 1
    %p190 = por %p188, %p189
    %p191 = scmp.ne.s32.totalorder %s180, %s181
    %p192 = scmp.eq.s32.totalorder %s17, 0
    %p193 = por %p191, %p192
    %p194 = scmp.ne.s32.totalorder %s180, %s181
    %p195 = scmp.eq.s32.totalorder %s18, 1
    %p196 = por %p194, %p195
    %p198 = scmp.ne.s32.totalorder %s181, %s197
    %p199 = scmp.eq.s32.totalorder %s18, 0
    %p200 = por %p198, %p199
    %p201 = scmp.le.s32.totalorder 1, %s12
    %p202 = scmp.lt.s32.totalorder %s12, 3
    %p203 = pnand %p201, %p202
    %p204 = pneg %p203
    // Predicated region
    $region9: #{_lambda_.16} parent=5 // pred_check
      _
    $region10: #{_lambda_.16} parent=5 // pred_check_branch
      %206 = sbr.rel (%p203) target = $region12
    $region11: #{_lambda_.16} parent=5 // pred_region
      %s207 = ssub.s32 %s12, 1
      // Predicated region
      $region13: #{_lambda_.16} parent=11 // pred_check
        %p208 = pneg %p78
      $region14: #{_lambda_.16} parent=11 // pred_check_branch
        %210 = sbr.rel (%p208) target = $region16
      $region15: #{_lambda_.16} parent=11 // pred_region
        %s211 = smul.u32 32, %s22
        %p212 = scmp.lt.s32.totalorder %s211, 31
        %s213 = scalar_select %p212, %s211, 31
        %s214 = smul.addr %s213, 2
        %s215 = smul.addr %s214, 4
        %s216 = scalar_lea.vmem %s1, %s215
        %s217 = smul.u32 32, %s22
      $region16: #{_lambda_.16} parent=11 // pred_fallthru
        _
      // Predicated region
      $region17: #{_lambda_.16} parent=11 // pred_check
        %p218 = pneg %p99
      $region18: #{_lambda_.16} parent=11 // pred_check_branch
        %220 = sbr.rel (%p218) target = $region20
      $region19: #{_lambda_.16} parent=11 // pred_region
        _
      $region20: #{_lambda_.16} parent=11 // pred_fallthru
        _
      // Predicated region
      $region21: #{_lambda_.16} parent=11 // pred_check
        %p221 = pneg %p146
      $region22: #{_lambda_.16} parent=11 // pred_check_branch
        %223 = sbr.rel (%p221) target = $region24
      $region23: #{_lambda_.16} parent=11 // pred_region
        _
      $region24: #{_lambda_.16} parent=11 // pred_fallthru
        _
      // Predicated region
      $region25: #{_lambda_.16} parent=11 // pred_check
        %p224 = pneg %p167
      $region26: #{_lambda_.16} parent=11 // pred_check_branch
        %226 = sbr.rel (%p224) target = $region28
      $region27: #{_lambda_.16} parent=11 // pred_region
        _
      $region28: #{_lambda_.16} parent=11 // pred_fallthru
        _
    $region12: #{_lambda_.16} parent=5 // pred_fallthru
      _
    %p227 = scmp.lt.s32.totalorder %s12, 2
    // Predicated region
    $region29: #{_lambda_.16} parent=5 // pred_check
      %p228 = pneg %p227
    $region30: #{_lambda_.16} parent=5 // pred_check_branch
      %230 = sbr.rel (%p228) target = $region32
    $region31: #{_lambda_.16} parent=5 // pred_region
      // Predicated region
      $region33: #{_lambda_.16} parent=31 // pred_check
        %p231 = pneg %p46
      $region34: #{_lambda_.16} parent=31 // pred_check_branch
        %233 = sbr.rel (%p231) target = $region36
      $region35: #{_lambda_.16} parent=31 // pred_region
        %s234 = smul.u32 2, %s19
        %s235 = smul.u32 2, %s20
        %p236 = scmp.lt.s32.totalorder %s234, 3
        %s237 = scalar_select %p236, %s234, 3
        %p238 = scmp.lt.s32.totalorder %s235, 1
        %s239 = scalar_select %p238, %s235, 1
        %s240 = smul.addr %s237, 2
        %s241 = sadd.s32 %s239, %s240
        %s242 = smul.addr %s241, 4
        %s243 = scalar_lea.vmem %s0, %s242
        %s244 = smul.u32 2, %s19
        %s245 = smul.u32 2, %s20
      $region36: #{_lambda_.16} parent=31 // pred_fallthru
        _
      // Predicated region
      $region37: #{_lambda_.16} parent=31 // pred_check
        %p246 = pneg %p119
      $region38: #{_lambda_.16} parent=31 // pred_check_branch
        %248 = sbr.rel (%p246) target = $region40
      $region39: #{_lambda_.16} parent=31 // pred_region
        %s249 = smul.u32 2, %s19
        %p250 = scmp.lt.s32.totalorder %s249, 3
        %s251 = scalar_select %p250, %s249, 3
        %s252 = smul.addr %s251, 2
        %s253 = smul.addr %s252, 4
        %s254 = scalar_lea.vmem %s3, %s253
        %s255 = smul.u32 2, %s19
      $region40: #{_lambda_.16} parent=31 // pred_fallthru
        _
    $region32: #{_lambda_.16} parent=5 // pred_fallthru
      _
    %p256 = scmp.le.s32.totalorder 1, %s12
    %p257 = scmp.lt.s32.totalorder %s12, 3
    %p258 = pnand %p256, %p257
    %p259 = pneg %p258
    // Predicated region
    $region41: #{_lambda_.16} parent=5 // pred_check
      _
    $region42: #{_lambda_.16} parent=5 // pred_check_branch
      %261 = sbr.rel (%p258) target = $region44
    $region43: #{_lambda_.16} parent=5 // pred_region
      %s262 = ssub.s32 %s12, 1
      %s263 = smul.u32 2, %s21
      %s264 = smul.u32 2, %s22
      %p265 = scmp.lt.s32.totalorder %s263, 3
      %s266 = scalar_select %p265, %s263, 3
      %p267 = scmp.lt.s32.totalorder %s264, 1
      %s268 = scalar_select %p267, %s264, 1
      %s269 = smul.addr %s266, 2
      %s270 = sadd.s32 %s268, %s269
      %s271 = smul.addr %s270, 4
      %s272 = scalar_lea.vmem %s0, %s271
      %p273 = pneg %p52
      %p274 = pneg %p49
      %s275 = smul.u32 32, %s22
      %p276 = scmp.lt.s32.totalorder %s275, 31
      %s277 = scalar_select %p276, %s275, 31
      %s278 = smul.addr %s277, 2
      %s279 = smul.addr %s278, 4
      %s280 = scalar_lea.vmem %s1, %s279
      %p281 = pneg %p78
      %p282 = pneg %p75
      %p283 = pneg %p99
      %p284 = pneg %p96
      %s285 = smul.u32 2, %s21
      %p286 = scmp.lt.s32.totalorder %s285, 3
      %s287 = scalar_select %p286, %s285, 3
      %s288 = smul.addr %s287, 2
      %s289 = smul.addr %s288, 4
      %s290 = scalar_lea.vmem %s3, %s289
      %p291 = pneg %p125
      %p292 = pneg %p122
      %p293 = pneg %p146
      %p294 = pneg %p143
      %p295 = pneg %p167
      %p296 = pneg %p164
      %p297 = pneg %p193
      %p298 = pneg %p190
      %s299 = smul.u32 2, %s21
      %p300 = scmp.lt.s32.totalorder %s299, 3
      %s301 = scalar_select %p300, %s299, 3
      %s302 = smul.addr %s301, 2
      %s303 = smul.addr %s302, 4
      %s304 = scalar_lea.vmem %s6, %s303
      %s305 = smul.u32 2, %s21
      %s306 = smul.u32 2, %s22
      %p307 = scmp.lt.s32.totalorder %s305, 3
      %s308 = scalar_select %p307, %s305, 3
      %p309 = scmp.lt.s32.totalorder %s306, 1
      %s310 = scalar_select %p309, %s306, 1
      %s311 = smul.addr %s308, 2
      %s312 = sadd.s32 %s310, %s311
      %s313 = smul.addr %s312, 4
      %s314 = scalar_lea.vmem %s0, %s313
      %s315 = smul.u32 2, %s21
      %s316 = smul.u32 2, %s22
      %s317 = smul.u32 32, %s22
      %p318 = scmp.lt.s32.totalorder %s317, 31
      %s319 = scalar_select %p318, %s317, 31
      %s320 = smul.addr %s319, 2
      %s321 = smul.addr %s320, 4
      %s322 = scalar_lea.vmem %s1, %s321
      %s323 = smul.u32 32, %s22
      %s324 = smul.u32 2, %s21
      %p325 = scmp.lt.s32.totalorder %s324, 3
      %s326 = scalar_select %p325, %s324, 3
      %s327 = smul.addr %s326, 2
      %s328 = smul.addr %s327, 4
      %s329 = scalar_lea.vmem %s3, %s328
      %s330 = smul.u32 2, %s21
      %s331 = smul.u32 2, %s21
      %p332 = scmp.lt.s32.totalorder %s331, 3
      %s333 = scalar_select %p332, %s331, 3
      %s334 = smul.addr %s333, 2
      %s335 = smul.addr %s334, 4
      %s336 = scalar_lea.vmem %s6, %s335
      %s337 = smul.u32 2, %s21
      %p338 = scmp.eq.s32.totalorder %s22, 0
      // Predicated region
      $region45: #{_lambda_.16} parent=43 // pred_check
        %p339 = pneg %p338
      $region46: #{_lambda_.16} parent=43 // pred_check_branch
        %341 = sbr.rel (%p339) target = $region48
      $region47: #{_lambda_.16} parent=43 // pred_region
        %342 = vst [vmem:[#allocation2] sm:$0xff] 0.0
        %343 = vst [vmem:[#allocation2 + $0x8] sm:$0xff] 0.0
        %344 = vst [vmem:[#allocation2 + $0x10] sm:$0xff] 0.0
        %345 = vst [vmem:[#allocation2 + $0x18] sm:$0xff] 0.0
      $region48: #{_lambda_.16} parent=43 // pred_fallthru
        _
      %v346 = vld [vmem:[#allocation2] sm:$0xff]
      %v347 = vld [vmem:[#allocation2 + $0x8] sm:$0xff]
      %v348 = vld [vmem:[#allocation2 + $0x10] sm:$0xff]
      %v349 = vld [vmem:[#allocation2 + $0x18] sm:$0xff]
      %v350 = vld [vmem:[%s314] sm:$0xff]
      %v351 = vld [vmem:[%s314 + $0x8] sm:$0xff]
      %v352 = vld [vmem:[%s322] sm:$0xff]
      %v353 = vld [vmem:[%s322 + $0x8] sm:$0xff]
      %v354 = vld [vmem:[%s322 + $0x10] sm:$0xff]
      %v355 = vld [vmem:[%s322 + $0x18] sm:$0xff]
      %v356 = vld [vmem:[%s322 + $0x20] sm:$0xff]
      %v357 = vld [vmem:[%s322 + $0x28] sm:$0xff]
      %v358 = vld [vmem:[%s322 + $0x30] sm:$0xff]
      %v359 = vld [vmem:[%s322 + $0x38] sm:$0xff]
      %v360 = vld [vmem:[%s322 + $0x40] sm:$0xff]
      %v361 = vld [vmem:[%s322 + $0x48] sm:$0xff]
      %v362 = vld [vmem:[%s322 + $0x50] sm:$0xff]
      %v363 = vld [vmem:[%s322 + $0x58] sm:$0xff]
      %v364 = vld [vmem:[%s322 + $0x60] sm:$0xff]
      %v365 = vld [vmem:[%s322 + $0x68] sm:$0xff]
      %v366 = vld [vmem:[%s322 + $0x70] sm:$0xff]
      %v367 = vld [vmem:[%s322 + $0x78] sm:$0xff]
      %v368 = vld [vmem:[%s322 + $0x80] sm:$0xff]
      %v369 = vld [vmem:[%s322 + $0x88] sm:$0xff]
      %v370 = vld [vmem:[%s322 + $0x90] sm:$0xff]
      %v371 = vld [vmem:[%s322 + $0x98] sm:$0xff]
      %v372 = vld [vmem:[%s322 + $0xa0] sm:$0xff]
      %v373 = vld [vmem:[%s322 + $0xa8] sm:$0xff]
      %v374 = vld [vmem:[%s322 + $0xb0] sm:$0xff]
      %v375 = vld [vmem:[%s322 + $0xb8] sm:$0xff]
      %v376 = vld [vmem:[%s322 + $0xc0] sm:$0xff]
      %v377 = vld [vmem:[%s322 + $0xc8] sm:$0xff]
      %v378 = vld [vmem:[%s322 + $0xd0] sm:$0xff]
      %v379 = vld [vmem:[%s322 + $0xd8] sm:$0xff]
      %v380 = vld [vmem:[%s322 + $0xe0] sm:$0xff]
      %v381 = vld [vmem:[%s322 + $0xe8] sm:$0xff]
      %v382 = vld [vmem:[%s322 + $0xf0] sm:$0xff]
      %v383 = vld [vmem:[%s322 + $0xf8] sm:$0xff]
      %v386 = vunpack.c.l.b16 %v350
      %v387 = vunpack.c.h.b16 %v350
      %v388 = vunpack.c.l.b16 %v351
      %v389 = vunpack.c.h.b16 %v351
      %v390 = vpack.c.b16 %v388, %v386
      %v391 = vpack.c.b16 %v389, %v387
      %v426 = vunpack.c.l.b16 %v352
      %v427 = vunpack.c.h.b16 %v352
      %v428 = vunpack.c.l.b16 %v353
      %v429 = vunpack.c.h.b16 %v353
      %v430 = vunpack.c.l.b16 %v354
      %v431 = vunpack.c.h.b16 %v354
      %v432 = vunpack.c.l.b16 %v355
      %v433 = vunpack.c.h.b16 %v355
      %v434 = vunpack.c.l.b16 %v356
      %v435 = vunpack.c.h.b16 %v356
      %v436 = vunpack.c.l.b16 %v357
      %v437 = vunpack.c.h.b16 %v357
      %v438 = vunpack.c.l.b16 %v358
      %v439 = vunpack.c.h.b16 %v358
      %v440 = vunpack.c.l.b16 %v359
      %v441 = vunpack.c.h.b16 %v359
      %v442 = vunpack.c.l.b16 %v360
      %v443 = vunpack.c.h.b16 %v360
      %v444 = vunpack.c.l.b16 %v361
      %v445 = vunpack.c.h.b16 %v361
      %v446 = vunpack.c.l.b16 %v362
      %v447 = vunpack.c.h.b16 %v362
      %v448 = vunpack.c.l.b16 %v363
      %v449 = vunpack.c.h.b16 %v363
      %v450 = vunpack.c.l.b16 %v364
      %v451 = vunpack.c.h.b16 %v364
      %v452 = vunpack.c.l.b16 %v365
      %v453 = vunpack.c.h.b16 %v365
      %v454 = vunpack.c.l.b16 %v366
      %v455 = vunpack.c.h.b16 %v366
      %v456 = vunpack.c.l.b16 %v367
      %v457 = vunpack.c.h.b16 %v367
      %v458 = vunpack.c.l.b16 %v368
      %v459 = vunpack.c.h.b16 %v368
      %v460 = vunpack.c.l.b16 %v369
      %v461 = vunpack.c.h.b16 %v369
      %v462 = vunpack.c.l.b16 %v370
      %v463 = vunpack.c.h.b16 %v370
      %v464 = vunpack.c.l.b16 %v371
      %v465 = vunpack.c.h.b16 %v371
      %v466 = vunpack.c.l.b16 %v372
      %v467 = vunpack.c.h.b16 %v372
      %v468 = vunpack.c.l.b16 %v373
      %v469 = vunpack.c.h.b16 %v373
      %v470 = vunpack.c.l.b16 %v374
      %v471 = vunpack.c.h.b16 %v374
      %v472 = vunpack.c.l.b16 %v375
      %v473 = vunpack.c.h.b16 %v375
      %v474 = vunpack.c.l.b16 %v376
      %v475 = vunpack.c.h.b16 %v376
      %v476 = vunpack.c.l.b16 %v377
      %v477 = vunpack.c.h.b16 %v377
      %v478 = vunpack.c.l.b16 %v378
      %v479 = vunpack.c.h.b16 %v378
      %v480 = vunpack.c.l.b16 %v379
      %v481 = vunpack.c.h.b16 %v379
      %v482 = vunpack.c.l.b16 %v380
      %v483 = vunpack.c.h.b16 %v380
      %v484 = vunpack.c.l.b16 %v381
      %v485 = vunpack.c.h.b16 %v381
      %v486 = vunpack.c.l.b16 %v382
      %v487 = vunpack.c.h.b16 %v382
      %v488 = vunpack.c.l.b16 %v383
      %v489 = vunpack.c.h.b16 %v383
      %v490 = vpack.c.b16 %v428, %v426
      %v491 = vpack.c.b16 %v429, %v427
      %v492 = vpack.c.b16 %v432, %v430
      %v493 = vpack.c.b16 %v433, %v431
      %v494 = vpack.c.b16 %v436, %v434
      %v495 = vpack.c.b16 %v437, %v435
      %v496 = vpack.c.b16 %v440, %v438
      %v497 = vpack.c.b16 %v441, %v439
      %v498 = vpack.c.b16 %v444, %v442
      %v499 = vpack.c.b16 %v445, %v443
      %v500 = vpack.c.b16 %v448, %v446
      %v501 = vpack.c.b16 %v449, %v447
      %v502 = vpack.c.b16 %v452, %v450
      %v503 = vpack.c.b16 %v453, %v451
      %v504 = vpack.c.b16 %v456, %v454
      %v505 = vpack.c.b16 %v457, %v455
      %v506 = vpack.c.b16 %v460, %v458
      %v507 = vpack.c.b16 %v461, %v459
      %v508 = vpack.c.b16 %v464, %v462
      %v509 = vpack.c.b16 %v465, %v463
      %v510 = vpack.c.b16 %v468, %v466
      %v511 = vpack.c.b16 %v469, %v467
      %v512 = vpack.c.b16 %v472, %v470
      %v513 = vpack.c.b16 %v473, %v471
      %v514 = vpack.c.b16 %v476, %v474
      %v515 = vpack.c.b16 %v477, %v475
      %v516 = vpack.c.b16 %v480, %v478
      %v517 = vpack.c.b16 %v481, %v479
      %v518 = vpack.c.b16 %v484, %v482
      %v519 = vpack.c.b16 %v485, %v483
      %v520 = vpack.c.b16 %v488, %v486
      %v521 = vpack.c.b16 %v489, %v487
      %554 = vmatprep.subr.bf16.mxu0 %v491
      %555 = vmatpush1.bf16.msra.mxu0 %v490
      %556 = vmatprep.subr.bf16.mxu0 %v493
      %557 = vmatpush1.bf16.msra.mxu0 %v492
      %558 = vmatprep.subr.bf16.mxu0 %v495
      %559 = vmatpush1.bf16.msra.mxu0 %v494
      %560 = vmatprep.subr.bf16.mxu0 %v497
      %561 = vmatpush1.bf16.msra.mxu0 %v496
      %562 = vmatprep.subr.bf16.mxu0 %v499
      %563 = vmatpush1.bf16.msra.mxu0 %v498
      %564 = vmatprep.subr.bf16.mxu0 %v501
      %565 = vmatpush1.bf16.msra.mxu0 %v500
      %566 = vmatprep.subr.bf16.mxu0 %v503
      %567 = vmatpush1.bf16.msra.mxu0 %v502
      %568 = vmatprep.subr.bf16.mxu0 %v505
      %569 = vmatpush1.bf16.msra.mxu0 %v504
      %570 = vmatprep.subr.bf16.mxu0 %v507
      %571 = vmatpush1.bf16.msra.mxu0 %v506
      %572 = vmatprep.subr.bf16.mxu0 %v509
      %573 = vmatpush1.bf16.msra.mxu0 %v508
      %574 = vmatprep.subr.bf16.mxu0 %v511
      %575 = vmatpush1.bf16.msra.mxu0 %v510
      %576 = vmatprep.subr.bf16.mxu0 %v513
      %577 = vmatpush1.bf16.msra.mxu0 %v512
      %578 = vmatprep.subr.bf16.mxu0 %v515
      %579 = vmatpush1.bf16.msra.mxu0 %v514
      %580 = vmatprep.subr.bf16.mxu0 %v517
      %581 = vmatpush1.bf16.msra.mxu0 %v516
      %582 = vmatprep.subr.bf16.mxu0 %v519
      %583 = vmatpush1.bf16.msra.mxu0 %v518
      %584 = vmatprep.subr.bf16.mxu0 %v521
      %585 = vmatpush1.bf16.msra.mxu0 %v520
      %586 = vmatprep.mubr.bf16.mxu0 %v391
      %587 = vmatmul.mubr.bf16.gmra.mrb[0].mxu0 %v390
      %v588 = vpop.f32.mrb[0].mxu0
      %v589 = vadd.f32 0.0, %v588
      %v590 = vpop.f32.mrb[0].mxu0
      %v591 = vadd.f32 0.0, %v590
      %v592 = vpop.f32.mrb[0].mxu0
      %v593 = vadd.f32 0.0, %v592
      %v594 = vpop.f32.mrb[0].mxu0
      %v595 = vadd.f32 0.0, %v594
      %596 = vdwg.mxu0
      %v597 = vadd.f32 %v346, %v589
      %v598 = vadd.f32 %v347, %v591
      %v599 = vadd.f32 %v348, %v593
      %v600 = vadd.f32 %v349, %v595
      %601 = vst [vmem:[#allocation2] sm:$0xff] %v597
      %602 = vst [vmem:[#allocation2 + $0x8] sm:$0xff] %v598
      %603 = vst [vmem:[#allocation2 + $0x10] sm:$0xff] %v599
      %604 = vst [vmem:[#allocation2 + $0x18] sm:$0xff] %v600
      // Predicated region
      $region49: #{_lambda_.16} parent=43 // pred_check
        %p605 = pneg %p338
      $region50: #{_lambda_.16} parent=43 // pred_check_branch
        %607 = sbr.rel (%p605) target = $region52
      $region51: #{_lambda_.16} parent=43 // pred_region
        %v608 = vld [vmem:[#allocation2] sm:$0xff]
        %v609 = vld [vmem:[#allocation2 + $0x8] sm:$0xff]
        %v610 = vld [vmem:[#allocation2 + $0x10] sm:$0xff]
        %v611 = vld [vmem:[#allocation2 + $0x18] sm:$0xff]
        %v612 = vld [vmem:[%s2] sm:$0x3]
        %v614 = vlaneseq
        %v615 = vshrl.u32 %v614, 7
        %v616 = vsub.s32 0, %v615
        %v617 = vrot.slane %v612, %v616
        %v618 = vlaneseq
        %v619 = vshrl.u32 %v618, 7
        %v620 = vsub.s32 1, %v619
        %v621 = vrot.slane %v612, %v620
        %v624 = vadd.f32 %v608, %v617
        %v625 = vadd.f32 %v609, %v621
        %v626 = vadd.f32 %v610, %v617
        %v627 = vadd.f32 %v611, %v621
        %v628 = vld [vmem:[%s329] sm:$0xff]
        %v629 = vld [vmem:[%s329 + $0x8] sm:$0xff]
        %v630 = vunpack.c.l.bf16 %v628
        %v631 = vunpack.c.h.bf16 %v628
        %v632 = vunpack.c.l.bf16 %v629
        %v633 = vunpack.c.h.bf16 %v629
        %v634 = vadd.f32 %v624, %v630
        %v635 = vadd.f32 %v625, %v631
        %v636 = vadd.f32 %v626, %v632
        %v637 = vadd.f32 %v627, %v633
        %v638 = vadd.f32 %v634, %v635
        %639 = vadd.xlane.f32.xlu0 %v638
        %v640 = vpop.xlane.xlu0 %639
        %v641 = vadd.f32 %v636, %v637
        %642 = vadd.xlane.f32.xlu0 %v641
        %v643 = vpop.xlane.xlu0 %642
        %v644 = vrcp.pop 256.0
        %v645 = vmul.f32 %v640, %v644
        %v646 = vmul.f32 %v643, %v644
        %v647 = vsub.f32 %v634, %v645
        %v648 = vsub.f32 %v635, %v645
        %v649 = vsub.f32 %v636, %v646
        %v650 = vsub.f32 %v637, %v646
        %v651 = vmul.f32 %v647, %v647
        %v652 = vmul.f32 %v648, %v648
        %v653 = vmul.f32 %v649, %v649
        %v654 = vmul.f32 %v650, %v650
        %v655 = vadd.f32 %v651, %v652
        %656 = vadd.xlane.f32.xlu0 %v655
        %v657 = vpop.xlane.xlu0 %656
        %v658 = vadd.f32 %v653, %v654
        %659 = vadd.xlane.f32.xlu0 %v658
        %v660 = vpop.xlane.xlu0 %659
        %v661 = vmul.f32 %v657, %v644
        %v662 = vmul.f32 %v660, %v644
        %v663 = vadd.f32 %v661, 1e-12
        %v664 = vadd.f32 %v662, 1e-12
        %v665 = vrsqrt.pop %v663
        %v666 = vrsqrt.pop %v664
        %v667 = vmul.f32 %v647, %v665
        %v668 = vmul.f32 %v648, %v665
        %v669 = vmul.f32 %v649, %v666
        %v670 = vmul.f32 %v650, %v666
        %v671 = vld [vmem:[%s4] sm:$0x3]
        %v673 = vlaneseq
        %v674 = vshrl.u32 %v673, 7
        %v675 = vsub.s32 0, %v674
        %v676 = vrot.slane %v671, %v675
        %v677 = vlaneseq
        %v678 = vshrl.u32 %v677, 7
        %v679 = vsub.s32 1, %v678
        %v680 = vrot.slane %v671, %v679
        %v683 = vmul.f32 %v667, %v676
        %v684 = vmul.f32 %v668, %v680
        %v685 = vmul.f32 %v669, %v676
        %v686 = vmul.f32 %v670, %v680
        %v687 = vld [vmem:[%s5] sm:$0x3]
        %v689 = vlaneseq
        %v690 = vshrl.u32 %v689, 7
        %v691 = vsub.s32 0, %v690
        %v692 = vrot.slane %v687, %v691
        %v693 = vlaneseq
        %v694 = vshrl.u32 %v693, 7
        %v695 = vsub.s32 1, %v694
        %v696 = vrot.slane %v687, %v695
        %v699 = vadd.f32 %v683, %v692
        %v700 = vadd.f32 %v684, %v696
        %v701 = vadd.f32 %v685, %v692
        %v702 = vadd.f32 %v686, %v696
        %v703 = vpack.c.bf16 %v701, %v699
        %v704 = vpack.c.bf16 %v702, %v700
        %v707 = vunpack.c.l.b16 %v703
        %v708 = vunpack.c.l.b16 %v704
        %v709 = vunpack.c.h.b16 %v703
        %v710 = vunpack.c.h.b16 %v704
        %v711 = vpack.c.b16 %v708, %v707
        %v712 = vpack.c.b16 %v710, %v709
        %715 = vst [vmem:[%s336] sm:$0xff] %v711
        %716 = vst [vmem:[%s336 + $0x8] sm:$0xff] %v712
      $region52: #{_lambda_.16} parent=43 // pred_fallthru
        _
      %s717 = smul.u32 2, %s21
      %p718 = scmp.lt.s32.totalorder %s717, 3
      %s719 = scalar_select %p718, %s717, 3
      %s720 = smul.addr %s719, 2
      %s721 = smul.addr %s720, 4
      %s722 = scalar_lea.vmem %s6, %s721
      // Predicated region
      $region53: #{_lambda_.16} parent=43 // pred_check
        %p723 = pneg %p190
      $region54: #{_lambda_.16} parent=43 // pred_check_branch
        %725 = sbr.rel (%p723) target = $region56
      $region55: #{_lambda_.16} parent=43 // pred_region
        %s726 = smul.u32 2, %s21
      $region56: #{_lambda_.16} parent=43 // pred_fallthru
        _
    $region44: #{_lambda_.16} parent=5 // pred_fallthru
      _
    %p727 = scmp.le.s32.totalorder 2, %s12
    // Predicated region
    $region57: #{_lambda_.16} parent=5 // pred_check
      %p728 = pneg %p727
    $region58: #{_lambda_.16} parent=5 // pred_check_branch
      %730 = sbr.rel (%p728) target = $region60
    $region59: #{_lambda_.16} parent=5 // pred_region
      %s731 = ssub.s32 %s12, 2
      // Predicated region
      $region61: #{_lambda_.16} parent=59 // pred_check
        %p732 = pneg %p196
      $region62: #{_lambda_.16} parent=59 // pred_check_branch
        %734 = sbr.rel (%p732) target = $region64
      $region63: #{_lambda_.16} parent=59 // pred_region
        %s735 = smul.u32 2, %s23
        %p736 = scmp.lt.s32.totalorder %s735, 3
        %s737 = scalar_select %p736, %s735, 3
        %s738 = smul.addr %s737, 2
        %s739 = smul.addr %s738, 4
        %s740 = scalar_lea.vmem %s6, %s739
      $region64: #{_lambda_.16} parent=59 // pred_fallthru
        _
    $region60: #{_lambda_.16} parent=5 // pred_fallthru
      _
  $region6: #{_lambda_.16} parent=0 // loop_footer
    %s16 = sadd.s32 1, %s12
  $region7: #{_lambda_.16} parent=0 // loop_footer_branch
    %11 = sbr.rel target = $region3
  $region8: #{_lambda_.16} parent=0 // loop_exit
    _

// kernel: _lambda_.18
$region0: #{_lambda_.18}
  #allocation0 [shape = 'u32[]', space=smem, size = 0x4, offset = 0x4, fixed_abs, tag = 'smem constant byte address 0x4 - core index']
  #allocation1 [shape = 'u32[144,128]{1,0:T(1,128)}', space=vmem, size = 0x12000, scoped, tag = 'internal scratch']
  #allocation2 [shape = 'f32[16,256]{1,0:T(8,128)}', space=vmem, size = 0x4000, scoped, tag = 'scratch operand']
  %s0 = inlined_call_operand.vmem [shape: bf16[32,1024], index: 0, kind: input, shape index: {}]
  %s1 = inlined_call_operand.vmem [shape: bf16[1024,256], index: 1, kind: input, shape index: {}]
  %s2 = inlined_call_operand.vmem [shape: f32[1,256], index: 2, kind: input, shape index: {}]
  %s3 = inlined_call_operand.vmem [shape: bf16[32,256], index: 3, kind: input, shape index: {}]
  %s4 = inlined_call_operand.vmem [shape: f32[1,256], index: 4, kind: input, shape index: {}]
  %s5 = inlined_call_operand.vmem [shape: f32[1,256], index: 5, kind: input, shape index: {}]
  %s6 = inlined_call_operand.vmem [shape: bf16[32,256], index: 6, kind: output, shape index: {}]
  %s7 = sld [smem:[#allocation0]]
  $region88: #{_lambda_.18} parent=0
    _
  %s9 = ssub.s32 1, %s7
  %s10 = scalar_select 0, %s9, %s7
  $region1: #{_lambda_.18} parent=0
    #allocation3 [shape = 'u8[32768]{0}', space=vmem, size = 0x8000, scoped, tag = 'input window, operand 0']
    loop: start=0, step=1, limit=6
    $region2: #{_lambda_.18} parent=1 // loop_pre_header
      _
    $region3: #{_lambda_.18} parent=1 // loop_header
      %s12 = sphi 0, %s16
      %p13 = scmp.ge.s32.totalorder %s12, 6
      %s19 = sphi 0, %s31
      %s20 = sphi 0, %s27
      %s21 = sphi 0, %s19
      %s22 = sphi 0, %s20
      %s23 = sphi 0, %s21
      %s24 = sphi 0, %s22
      %s36 = sphi 0, %s38
      %s39 = sphi 0, %s36
      %s40 = sphi 0, %s39
      %s56 = sphi 0, %s40
      %s62 = sphi 0, %s64
      %s65 = sphi 0, %s62
      %s66 = sphi 0, %s65
      %s82 = sphi 0, %s66
      %s86 = sphi 0, %s86
      %s88 = sphi 0, %s86
      %s89 = sphi 0, %s88
      %s103 = sphi 0, %s89
      %s109 = sphi 0, %s111
      %s112 = sphi 0, %s109
      %s113 = sphi 0, %s112
      %s129 = sphi 0, %s113
      %s133 = sphi 0, %s133
      %s135 = sphi 0, %s133
      %s136 = sphi 0, %s135
      %s150 = sphi 0, %s136
      %s154 = sphi 0, %s154
      %s156 = sphi 0, %s154
      %s157 = sphi 0, %s156
      %s171 = sphi 0, %s157
      %s177 = sphi 0, %s179
      %s180 = sphi 0, %s177
      %s181 = sphi 0, %s180
      %s197 = sphi 0, %s181
    $region4: #{_lambda_.18} parent=1 // loop_header_branch
      %15 = sbr.rel (%p13) target = $region8
    $region5: #{_lambda_.18} parent=1 // loop_body
      %s17 = ssub.s32 %s12, 1
      %s18 = ssub.s32 %s12, 2
      %s25 = sadd.s32 1, %s20
      %p26 = scmp.ge.s32.totalorder %s25, 2
      %s27 = scalar_select %p26, 0, %s25
      %s28 = sadd.s32 1, %s19
      %s29 = scalar_select %p26, %s28, %s19
      %p30 = scmp.ge.s32.totalorder %s29, 2
      %s31 = scalar_select %p30, 0, %s29
      %s32 = ssub.s32 %s19, %s31
      %s33 = ssub.s32 %s20, %s27
      %s34 = sor.u32 %s32, %s33
      %p35 = scmp.eq.s32.totalorder %s34, 0
      %s37 = sadd.s32 %s36, 1
      %s38 = scalar_select %p35, %s36, %s37
      %p41 = pneg %p35
      %p42 = scmp.eq.s32.totalorder %s12, 3
      %p43 = por %p41, %p42
      %p44 = scmp.ne.s32.totalorder %s36, %s39
      %p45 = scmp.eq.s32.totalorder %s12, 0
      %p46 = por %p44, %p45
      %p47 = scmp.ne.s32.totalorder %s36, %s39
      %p48 = scmp.eq.s32.totalorder %s17, 3
      %p49 = por %p47, %p48
      %p50 = scmp.ne.s32.totalorder %s39, %s40
      %p51 = scmp.eq.s32.totalorder %s17, 0
      %p52 = por %p50, %p51
      %p53 = scmp.ne.s32.totalorder %s39, %s40
      %p54 = scmp.eq.s32.totalorder %s18, 3
      %p55 = por %p53, %p54
      %p57 = scmp.ne.s32.totalorder %s40, %s56
      %p58 = scmp.eq.s32.totalorder %s18, 0
      %p59 = por %p57, %p58
      %s60 = ssub.s32 %s20, %s27
      %p61 = scmp.eq.s32.totalorder %s60, 0
      %s63 = sadd.s32 %s62, 1
      %s64 = scalar_select %p61, %s62, %s63
      %p67 = pneg %p61
      %p68 = scmp.eq.s32.totalorder %s12, 3
      %p69 = por %p67, %p68
      %p70 = scmp.ne.s32.totalorder %s62, %s65
      %p71 = scmp.eq.s32.totalorder %s12, 0
      %p72 = por %p70, %p71
      %p73 = scmp.ne.s32.totalorder %s62, %s65
      %p74 = scmp.eq.s32.totalorder %s17, 3
      %p75 = por %p73, %p74
      %p76 = scmp.ne.s32.totalorder %s65, %s66
      %p77 = scmp.eq.s32.totalorder %s17, 0
      %p78 = por %p76, %p77
      %p79 = scmp.ne.s32.totalorder %s65, %s66
      %p80 = scmp.eq.s32.totalorder %s18, 3
      %p81 = por %p79, %p80
      %p83 = scmp.ne.s32.totalorder %s66, %s82
      %p84 = scmp.eq.s32.totalorder %s18, 0
      %p85 = por %p83, %p84
      %s87 = sadd.s32 %s86, 1
      %p90 = scmp.eq.s32.totalorder %s12, 3
      %p91 = scmp.ne.s32.totalorder %s86, %s88
      %p92 = scmp.eq.s32.totalorder %s12, 0
      %p93 = por %p91, %p92
      %p94 = scmp.ne.s32.totalorder %s86, %s88
      %p95 = scmp.eq.s32.totalorder %s17, 3
      %p96 = por %p94, %p95
      %p97 = scmp.ne.s32.totalorder %s88, %s89
      %p98 = scmp.eq.s32.totalorder %s17, 0
      %p99 = por %p97, %p98
      %p100 = scmp.ne.s32.totalorder %s88, %s89
      %p101 = scmp.eq.s32.totalorder %s18, 3
      %p102 = por %p100, %p101
      %p104 = scmp.ne.s32.totalorder %s89, %s103
      %p105 = scmp.eq.s32.totalorder %s18, 0
      %p106 = por %p104, %p105
      %s107 = ssub.s32 %s19, %s31
      %p108 = scmp.eq.s32.totalorder %s107, 0
      %s110 = sadd.s32 %s109, 1
      %s111 = scalar_select %p108, %s109, %s110
      %p114 = pneg %p108
      %p115 = scmp.eq.s32.totalorder %s12, 3
      %p116 = por %p114, %p115
      %p117 = scmp.ne.s32.totalorder %s109, %s112
      %p118 = scmp.eq.s32.totalorder %s12, 0
      %p119 = por %p117, %p118
      %p120 = scmp.ne.s32.totalorder %s109, %s112
      %p121 = scmp.eq.s32.totalorder %s17, 3
      %p122 = por %p120, %p121
      %p123 = scmp.ne.s32.totalorder %s112, %s113
      %p124 = scmp.eq.s32.totalorder %s17, 0
      %p125 = por %p123, %p124
      %p126 = scmp.ne.s32.totalorder %s112, %s113
      %p127 = scmp.eq.s32.totalorder %s18, 3
      %p128 = por %p126, %p127
      %p130 = scmp.ne.s32.totalorder %s113, %s129
      %p131 = scmp.eq.s32.totalorder %s18, 0
      %p132 = por %p130, %p131
      %s134 = sadd.s32 %s133, 1
      %p137 = scmp.eq.s32.totalorder %s12, 3
      %p138 = scmp.ne.s32.totalorder %s133, %s135
      %p139 = scmp.eq.s32.totalorder %s12, 0
      %p140 = por %p138, %p139
      %p141 = scmp.ne.s32.totalorder %s133, %s135
      %p142 = scmp.eq.s32.totalorder %s17, 3
      %p143 = por %p141, %p142
      %p144 = scmp.ne.s32.totalorder %s135, %s136
      %p145 = scmp.eq.s32.totalorder %s17, 0
      %p146 = por %p144, %p145
      %p147 = scmp.ne.s32.totalorder %s135, %s136
      %p148 = scmp.eq.s32.totalorder %s18, 3
      %p149 = por %p147, %p148
      %p151 = scmp.ne.s32.totalorder %s136, %s150
      %p152 = scmp.eq.s32.totalorder %s18, 0
      %p153 = por %p151, %p152
      %s155 = sadd.s32 %s154, 1
      %p158 = scmp.eq.s32.totalorder %s12, 3
      %p159 = scmp.ne.s32.totalorder %s154, %s156
      %p160 = scmp.eq.s32.totalorder %s12, 0
      %p161 = por %p159, %p160
      %p162 = scmp.ne.s32.totalorder %s154, %s156
      %p163 = scmp.eq.s32.totalorder %s17, 3
      %p164 = por %p162, %p163
      %p165 = scmp.ne.s32.totalorder %s156, %s157
      %p166 = scmp.eq.s32.totalorder %s17, 0
      %p167 = por %p165, %p166
      %p168 = scmp.ne.s32.totalorder %s156, %s157
      %p169 = scmp.eq.s32.totalorder %s18, 3
      %p170 = por %p168, %p169
      %p172 = scmp.ne.s32.totalorder %s157, %s171
      %p173 = scmp.eq.s32.totalorder %s18, 0
      %p174 = por %p172, %p173
      %s175 = ssub.s32 %s19, %s31
      %p176 = scmp.eq.s32.totalorder %s175, 0
      %s178 = sadd.s32 %s177, 1
      %s179 = scalar_select %p176, %s177, %s178
      %p182 = pneg %p176
      %p183 = scmp.eq.s32.totalorder %s12, 3
      %p184 = por %p182, %p183
      %p185 = scmp.ne.s32.totalorder %s177, %s180
      %p186 = scmp.eq.s32.totalorder %s12, 0
      %p187 = por %p185, %p186
      %p188 = scmp.ne.s32.totalorder %s177, %s180
      %p189 = scmp.eq.s32.totalorder %s17, 3
      %p190 = por %p188, %p189
      %p191 = scmp.ne.s32.totalorder %s180, %s181
      %p192 = scmp.eq.s32.totalorder %s17, 0
      %p193 = por %p191, %p192
      %p194 = scmp.ne.s32.totalorder %s180, %s181
      %p195 = scmp.eq.s32.totalorder %s18, 3
      %p196 = por %p194, %p195
      %p198 = scmp.ne.s32.totalorder %s181, %s197
      %p199 = scmp.eq.s32.totalorder %s18, 0
      %p200 = por %p198, %p199
      %p201 = scmp.le.s32.totalorder 1, %s12
      %p202 = scmp.lt.s32.totalorder %s12, 5
      %p203 = pnand %p201, %p202
      %p204 = pneg %p203
      // Predicated region
      $region9: #{_lambda_.18} parent=5 // pred_check
        _
      $region10: #{_lambda_.18} parent=5 // pred_check_branch
        %206 = sbr.rel (%p203) target = $region12
      $region11: #{_lambda_.18} parent=5 // pred_region
        %s207 = ssub.s32 %s12, 1
        // Predicated region
        $region13: #{_lambda_.18} parent=11 // pred_check
          %p208 = pneg %p99
        $region14: #{_lambda_.18} parent=11 // pred_check_branch
          %210 = sbr.rel (%p208) target = $region16
        $region15: #{_lambda_.18} parent=11 // pred_region
          _
        $region16: #{_lambda_.18} parent=11 // pred_fallthru
          _
        // Predicated region
        $region17: #{_lambda_.18} parent=11 // pred_check
          %p211 = pneg %p146
        $region18: #{_lambda_.18} parent=11 // pred_check_branch
          %213 = sbr.rel (%p211) target = $region20
        $region19: #{_lambda_.18} parent=11 // pred_region
          _
        $region20: #{_lambda_.18} parent=11 // pred_fallthru
          _
        // Predicated region
        $region21: #{_lambda_.18} parent=11 // pred_check
          %p214 = pneg %p167
        $region22: #{_lambda_.18} parent=11 // pred_check_branch
          %216 = sbr.rel (%p214) target = $region24
        $region23: #{_lambda_.18} parent=11 // pred_region
          _
        $region24: #{_lambda_.18} parent=11 // pred_fallthru
          _
      $region12: #{_lambda_.18} parent=5 // pred_fallthru
        _
      %p217 = scmp.lt.s32.totalorder %s12, 4
      // Predicated region
      $region25: #{_lambda_.18} parent=5 // pred_check
        %p218 = pneg %p217
      $region26: #{_lambda_.18} parent=5 // pred_check_branch
        %220 = sbr.rel (%p218) target = $region28
      $region27: #{_lambda_.18} parent=5 // pred_region
        // Predicated region
        $region29: #{_lambda_.18} parent=27 // pred_check
          %p221 = pneg %p46
        $region30: #{_lambda_.18} parent=27 // pred_check_branch
          %223 = sbr.rel (%p221) target = $region32
        $region31: #{_lambda_.18} parent=27 // pred_region
          %s224 = sand.u32 %s36, 1
          %s225 = sand.u32 %s36, 1
          %s226 = smul.addr %s225, 32
          %s227 = scalar_lea.vmem [#allocation3], %s226
          %s228 = smul.u32 2, %s19
          %s229 = smul.u32 4, %s20
          %s230 = smul.addr %s228, 8
          %s231 = sadd.s32 %s229, %s230
          %s232 = smul.addr %s231, 4
          %s233 = scalar_lea.vmem %s0, %s232
          // Predicated region
          $region33: #{_lambda_.18} parent=31 // pred_check
            _
          $region34: #{_lambda_.18} parent=31 // pred_check_branch
            %235 = sbr.rel (0) target = $region36
          $region35: #{_lambda_.18} parent=31 // pred_region
            // Predicated region
            $region37: #{_lambda_.18} parent=35 // pred_check
              _
            $region38: #{_lambda_.18} parent=35 // pred_check_branch
              %237 = sbr.rel (0) target = $region40
            $region39: #{_lambda_.18} parent=35 // pred_region
              loop: start=0, step=1, limit=1
              $region41: #{_lambda_.18} parent=39 // loop_pre_header
                _
              $region42: #{_lambda_.18} parent=39 // loop_header
                %s239 = sphi 0, %s243
                %p240 = scmp.ge.s32.totalorder %s239, 1
                %s244 = sphi %s233, %s233
                %s245 = sphi %s227, %s227
              $region43: #{_lambda_.18} parent=39 // loop_header_branch
                %242 = sbr.rel (%p240) target = $region47
              $region44: #{_lambda_.18} parent=39 // loop_body
                %v246 = vld [vmem:[%s244] sm:$0xff]
                %247 = vst [vmem:[%s245] sm:$0xff] %v246
                %v248 = vld [vmem:[%s244 + $0x8] sm:$0xff]
                %249 = vst [vmem:[%s245 + $0x8] sm:$0xff] %v248
                %v250 = vld [vmem:[%s244 + $0x20] sm:$0xff]
                %251 = vst [vmem:[%s245 + $0x10] sm:$0xff] %v250
                %v252 = vld [vmem:[%s244 + $0x28] sm:$0xff]
                %253 = vst [vmem:[%s245 + $0x18] sm:$0xff] %v252
              $region45: #{_lambda_.18} parent=39 // loop_footer
                %s243 = sadd.s32 1, %s239
              $region46: #{_lambda_.18} parent=39 // loop_footer_branch
                %238 = sbr.rel target = $region42
              $region47: #{_lambda_.18} parent=39 // loop_exit
                _
            $region40: #{_lambda_.18} parent=35 // pred_fallthru
              _
            // Predicated region
            $region48: #{_lambda_.18} parent=35 // pred_check
              _
            $region49: #{_lambda_.18} parent=35 // pred_check_branch
              %255 = sbr.rel target = $region51
            $region50: #{_lambda_.18} parent=35 // pred_region
              _
            $region51: #{_lambda_.18} parent=35 // pred_fallthru
              _
          $region36: #{_lambda_.18} parent=31 // pred_fallthru
            _
          %256 = vnop
        $region32: #{_lambda_.18} parent=27 // pred_fallthru
          _
        // Predicated region
        $region52: #{_lambda_.18} parent=27 // pred_check
          %p257 = pneg %p72
        $region53: #{_lambda_.18} parent=27 // pred_check_branch
          %259 = sbr.rel (%p257) target = $region55
        $region54: #{_lambda_.18} parent=27 // pred_region
          %s260 = smul.u32 64, %s20
          %p261 = scmp.lt.s32.totalorder %s260, 127
          %s262 = scalar_select %p261, %s260, 127
          %s263 = smul.addr %s262, 2
          %s264 = smul.addr %s263, 4
          %s265 = scalar_lea.vmem %s1, %s264
          %s266 = smul.u32 64, %s20
        $region55: #{_lambda_.18} parent=27 // pred_fallthru
          _
        // Predicated region
        $region56: #{_lambda_.18} parent=27 // pred_check
          %p267 = pneg %p119
        $region57: #{_lambda_.18} parent=27 // pred_check_branch
          %269 = sbr.rel (%p267) target = $region59
        $region58: #{_lambda_.18} parent=27 // pred_region
          %s270 = smul.u32 2, %s19
          %p271 = scmp.lt.s32.totalorder %s270, 3
          %s272 = scalar_select %p271, %s270, 3
          %s273 = smul.addr %s272, 2
          %s274 = smul.addr %s273, 4
          %s275 = scalar_lea.vmem %s3, %s274
          %s276 = smul.u32 2, %s19
        $region59: #{_lambda_.18} parent=27 // pred_fallthru
          _
      $region28: #{_lambda_.18} parent=5 // pred_fallthru
        _
      %p277 = scmp.le.s32.totalorder 1, %s12
      %p278 = scmp.lt.s32.totalorder %s12, 5
      %p279 = pnand %p277, %p278
      %p280 = pneg %p279
      // Predicated region
      $region60: #{_lambda_.18} parent=5 // pred_check
        _
      $region61: #{_lambda_.18} parent=5 // pred_check_branch
        %282 = sbr.rel (%p279) target = $region63
      $region62: #{_lambda_.18} parent=5 // pred_region
        %s283 = ssub.s32 %s12, 1
        %s284 = sand.u32 %s39, 1
        %s285 = sand.u32 %s39, 1
        %s286 = smul.addr %s285, 32
        %s287 = scalar_lea.vmem [#allocation3], %s286
        // Predicated region
        $region64: #{_lambda_.18} parent=62 // pred_check
          %p288 = pneg %p52
        $region65: #{_lambda_.18} parent=62 // pred_check_branch
          %290 = sbr.rel (%p288) target = $region67
        $region66: #{_lambda_.18} parent=62 // pred_region
          _
        $region67: #{_lambda_.18} parent=62 // pred_fallthru
          _
        %s291 = sand.u32 %s39, 1
        %s292 = sand.u32 %s39, 1
        %s293 = smul.addr %s292, 32
        %s294 = scalar_lea.vmem [#allocation3], %s293
        %p295 = pneg %p52
        %p296 = pneg %p49
        %s297 = smul.u32 64, %s22
        %p298 = scmp.lt.s32.totalorder %s297, 127
        %s299 = scalar_select %p298, %s297, 127
        %s300 = smul.addr %s299, 2
        %s301 = smul.addr %s300, 4
        %s302 = scalar_lea.vmem %s1, %s301
        %p303 = pneg %p78
        %p304 = pneg %p75
        %p305 = pneg %p99
        %p306 = pneg %p96
        %s307 = smul.u32 2, %s21
        %p308 = scmp.lt.s32.totalorder %s307, 3
        %s309 = scalar_select %p308, %s307, 3
        %s310 = smul.addr %s309, 2
        %s311 = smul.addr %s310, 4
        %s312 = scalar_lea.vmem %s3, %s311
        %p313 = pneg %p125
        %p314 = pneg %p122
        %p315 = pneg %p146
        %p316 = pneg %p143
        %p317 = pneg %p167
        %p318 = pneg %p164
        %p319 = pneg %p193
        %p320 = pneg %p190
        %s321 = smul.u32 2, %s21
        %p322 = scmp.lt.s32.totalorder %s321, 3
        %s323 = scalar_select %p322, %s321, 3
        %s324 = smul.addr %s323, 2
        %s325 = smul.addr %s324, 4
        %s326 = scalar_lea.vmem %s6, %s325
        %s327 = smul.u32 2, %s21
        %s328 = smul.u32 4, %s22
        %s329 = smul.u32 64, %s22
        %p330 = scmp.lt.s32.totalorder %s329, 127
        %s331 = scalar_select %p330, %s329, 127
        %s332 = smul.addr %s331, 2
        %s333 = smul.addr %s332, 4
        %s334 = scalar_lea.vmem %s1, %s333
        %s335 = smul.u32 64, %s22
        %s336 = smul.u32 2, %s21
        %p337 = scmp.lt.s32.totalorder %s336, 3
        %s338 = scalar_select %p337, %s336, 3
        %s339 = smul.addr %s338, 2
        %s340 = smul.addr %s339, 4
        %s341 = scalar_lea.vmem %s3, %s340
        %s342 = smul.u32 2, %s21
        %s343 = smul.u32 2, %s21
        %p344 = scmp.lt.s32.totalorder %s343, 3
        %s345 = scalar_select %p344, %s343, 3
        %s346 = smul.addr %s345, 2
        %s347 = smul.addr %s346, 4
        %s348 = scalar_lea.vmem %s6, %s347
        %s349 = smul.u32 2, %s21
        %p350 = scmp.eq.s32.totalorder %s22, 0
        // Predicated region
        $region68: #{_lambda_.18} parent=62 // pred_check
          %p351 = pneg %p350
        $region69: #{_lambda_.18} parent=62 // pred_check_branch
          %353 = sbr.rel (%p351) target = $region71
        $region70: #{_lambda_.18} parent=62 // pred_region
          %354 = vst [vmem:[#allocation2] sm:$0xff] 0.0
          %355 = vst [vmem:[#allocation2 + $0x8] sm:$0xff] 0.0
          %356 = vst [vmem:[#allocation2 + $0x10] sm:$0xff] 0.0
          %357 = vst [vmem:[#allocation2 + $0x18] sm:$0xff] 0.0
        $region71: #{_lambda_.18} parent=62 // pred_fallthru
          _
        %v358 = vld [vmem:[#allocation2] sm:$0xff]
        %v359 = vld [vmem:[#allocation2 + $0x8] sm:$0xff]
        %v360 = vld [vmem:[#allocation2 + $0x10] sm:$0xff]
        %v361 = vld [vmem:[#allocation2 + $0x18] sm:$0xff]
        %v362 = vld [vmem:[%s287] sm:$0xff]
        %v363 = vld [vmem:[%s287 + $0x8] sm:$0xff]
        %v364 = vld [vmem:[%s287 + $0x10] sm:$0xff]
        %v365 = vld [vmem:[%s287 + $0x18] sm:$0xff]
        %v366 = vld [vmem:[%s334] sm:$0xff]
        %v367 = vld [vmem:[%s334 + $0x8] sm:$0xff]
        %v368 = vld [vmem:[%s334 + $0x10] sm:$0xff]
        %v369 = vld [vmem:[%s334 + $0x18] sm:$0xff]
        %v370 = vld [vmem:[%s334 + $0x20] sm:$0xff]
        %v371 = vld [vmem:[%s334 + $0x28] sm:$0xff]
        %v372 = vld [vmem:[%s334 + $0x30] sm:$0xff]
        %v373 = vld [vmem:[%s334 + $0x38] sm:$0xff]
        %v374 = vld [vmem:[%s334 + $0x40] sm:$0xff]
        %v375 = vld [vmem:[%s334 + $0x48] sm:$0xff]
        %v376 = vld [vmem:[%s334 + $0x50] sm:$0xff]
        %v377 = vld [vmem:[%s334 + $0x58] sm:$0xff]
        %v378 = vld [vmem:[%s334 + $0x60] sm:$0xff]
        %v379 = vld [vmem:[%s334 + $0x68] sm:$0xff]
        %v380 = vld [vmem:[%s334 + $0x70] sm:$0xff]
        %v381 = vld [vmem:[%s334 + $0x78] sm:$0xff]
        %v382 = vld [vmem:[%s334 + $0x80] sm:$0xff]
        %v383 = vld [vmem:[%s334 + $0x88] sm:$0xff]
        %v384 = vld [vmem:[%s334 + $0x90] sm:$0xff]
        %v385 = vld [vmem:[%s334 + $0x98] sm:$0xff]
        %v386 = vld [vmem:[%s334 + $0xa0] sm:$0xff]
        %v387 = vld [vmem:[%s334 + $0xa8] sm:$0xff]
        %v388 = vld [vmem:[%s334 + $0xb0] sm:$0xff]
        %v389 = vld [vmem:[%s334 + $0xb8] sm:$0xff]
        %v390 = vld [vmem:[%s334 + $0xc0] sm:$0xff]
        %v391 = vld [vmem:[%s334 + $0xc8] sm:$0xff]
        %v392 = vld [vmem:[%s334 + $0xd0] sm:$0xff]
        %v393 = vld [vmem:[%s334 + $0xd8] sm:$0xff]
        %v394 = vld [vmem:[%s334 + $0xe0] sm:$0xff]
        %v395 = vld [vmem:[%s334 + $0xe8] sm:$0xff]
        %v396 = vld [vmem:[%s334 + $0xf0] sm:$0xff]
        %v397 = vld [vmem:[%s334 + $0xf8] sm:$0xff]
        %v398 = vld [vmem:[%s334 + $0x100] sm:$0xff]
        %v399 = vld [vmem:[%s334 + $0x108] sm:$0xff]
        %v400 = vld [vmem:[%s334 + $0x110] sm:$0xff]
        %v401 = vld [vmem:[%s334 + $0x118] sm:$0xff]
        %v402 = vld [vmem:[%s334 + $0x120] sm:$0xff]
        %v403 = vld [vmem:[%s334 + $0x128] sm:$0xff]
        %v404 = vld [vmem:[%s334 + $0x130] sm:$0xff]
        %v405 = vld [vmem:[%s334 + $0x138] sm:$0xff]
        %v406 = vld [vmem:[%s334 + $0x140] sm:$0xff]
        %v407 = vld [vmem:[%s334 + $0x148] sm:$0xff]
        %v408 = vld [vmem:[%s334 + $0x150] sm:$0xff]
        %v409 = vld [vmem:[%s334 + $0x158] sm:$0xff]
        %v410 = vld [vmem:[%s334 + $0x160] sm:$0xff]
        %v411 = vld [vmem:[%s334 + $0x168] sm:$0xff]
        %v412 = vld [vmem:[%s334 + $0x170] sm:$0xff]
        %v413 = vld [vmem:[%s334 + $0x178] sm:$0xff]
        %v414 = vld [vmem:[%s334 + $0x180] sm:$0xff]
        %v415 = vld [vmem:[%s334 + $0x188] sm:$0xff]
        %v416 = vld [vmem:[%s334 + $0x190] sm:$0xff]
        %v417 = vld [vmem:[%s334 + $0x198] sm:$0xff]
        %v418 = vld [vmem:[%s334 + $0x1a0] sm:$0xff]
        %v419 = vld [vmem:[%s334 + $0x1a8] sm:$0xff]
        %v420 = vld [vmem:[%s334 + $0x1b0] sm:$0xff]
        %v421 = vld [vmem:[%s334 + $0x1b8] sm:$0xff]
        %v422 = vld [vmem:[%s334 + $0x1c0] sm:$0xff]
        %v423 = vld [vmem:[%s334 + $0x1c8] sm:$0xff]
        %v424 = vld [vmem:[%s334 + $0x1d0] sm:$0xff]
        %v425 = vld [vmem:[%s334 + $0x1d8] sm:$0xff]
        %v426 = vld [vmem:[%s334 + $0x1e0] sm:$0xff]
        %v427 = vld [vmem:[%s334 + $0x1e8] sm:$0xff]
        %v428 = vld [vmem:[%s334 + $0x1f0] sm:$0xff]
        %v429 = vld [vmem:[%s334 + $0x1f8] sm:$0xff]
        %v434 = vunpack.c.l.b16 %v362
        %v435 = vunpack.c.h.b16 %v362
        %v436 = vunpack.c.l.b16 %v363
        %v437 = vunpack.c.h.b16 %v363
        %v438 = vunpack.c.l.b16 %v364
        %v439 = vunpack.c.h.b16 %v364
        %v440 = vunpack.c.l.b16 %v365
        %v441 = vunpack.c.h.b16 %v365
        %v442 = vpack.c.b16 %v438, %v434
        %v443 = vpack.c.b16 %v439, %v435
        %v444 = vpack.c.b16 %v440, %v436
        %v445 = vpack.c.b16 %v441, %v437
        %v514 = vunpack.c.l.b16 %v366
        %v515 = vunpack.c.h.b16 %v366
        %v516 = vunpack.c.l.b16 %v367
        %v517 = vunpack.c.h.b16 %v367
        %v518 = vunpack.c.l.b16 %v368
        %v519 = vunpack.c.h.b16 %v368
        %v520 = vunpack.c.l.b16 %v369
        %v521 = vunpack.c.h.b16 %v369
        %v522 = vunpack.c.l.b16 %v370
        %v523 = vunpack.c.h.b16 %v370
        %v524 = vunpack.c.l.b16 %v371
        %v525 = vunpack.c.h.b16 %v371
        %v526 = vunpack.c.l.b16 %v372
        %v527 = vunpack.c.h.b16 %v372
        %v528 = vunpack.c.l.b16 %v373
        %v529 = vunpack.c.h.b16 %v373
        %v530 = vunpack.c.l.b16 %v374
        %v531 = vunpack.c.h.b16 %v374
        %v532 = vunpack.c.l.b16 %v375
        %v533 = vunpack.c.h.b16 %v375
        %v534 = vunpack.c.l.b16 %v376
        %v535 = vunpack.c.h.b16 %v376
        %v536 = vunpack.c.l.b16 %v377
        %v537 = vunpack.c.h.b16 %v377
        %v538 = vunpack.c.l.b16 %v378
        %v539 = vunpack.c.h.b16 %v378
        %v540 = vunpack.c.l.b16 %v379
        %v541 = vunpack.c.h.b16 %v379
        %v542 = vunpack.c.l.b16 %v380
        %v543 = vunpack.c.h.b16 %v380
        %v544 = vunpack.c.l.b16 %v381
        %v545 = vunpack.c.h.b16 %v381
        %v546 = vunpack.c.l.b16 %v382
        %v547 = vunpack.c.h.b16 %v382
        %v548 = vunpack.c.l.b16 %v383
        %v549 = vunpack.c.h.b16 %v383
        %v550 = vunpack.c.l.b16 %v384
        %v551 = vunpack.c.h.b16 %v384
        %v552 = vunpack.c.l.b16 %v385
        %v553 = vunpack.c.h.b16 %v385
        %v554 = vunpack.c.l.b16 %v386
        %v555 = vunpack.c.h.b16 %v386
        %v556 = vunpack.c.l.b16 %v387
        %v557 = vunpack.c.h.b16 %v387
        %v558 = vunpack.c.l.b16 %v388
        %v559 = vunpack.c.h.b16 %v388
        %v560 = vunpack.c.l.b16 %v389
        %v561 = vunpack.c.h.b16 %v389
        %v562 = vunpack.c.l.b16 %v390
        %v563 = vunpack.c.h.b16 %v390
        %v564 = vunpack.c.l.b16 %v391
        %v565 = vunpack.c.h.b16 %v391
        %v566 = vunpack.c.l.b16 %v392
        %v567 = vunpack.c.h.b16 %v392
        %v568 = vunpack.c.l.b16 %v393
        %v569 = vunpack.c.h.b16 %v393
        %v570 = vunpack.c.l.b16 %v394
        %v571 = vunpack.c.h.b16 %v394
        %v572 = vunpack.c.l.b16 %v395
        %v573 = vunpack.c.h.b16 %v395
        %v574 = vunpack.c.l.b16 %v396
        %v575 = vunpack.c.h.b16 %v396
        %v576 = vunpack.c.l.b16 %v397
        %v577 = vunpack.c.h.b16 %v397
        %v578 = vunpack.c.l.b16 %v398
        %v579 = vunpack.c.h.b16 %v398
        %v580 = vunpack.c.l.b16 %v399
        %v581 = vunpack.c.h.b16 %v399
        %v582 = vunpack.c.l.b16 %v400
        %v583 = vunpack.c.h.b16 %v400
        %v584 = vunpack.c.l.b16 %v401
        %v585 = vunpack.c.h.b16 %v401
        %v586 = vunpack.c.l.b16 %v402
        %v587 = vunpack.c.h.b16 %v402
        %v588 = vunpack.c.l.b16 %v403
        %v589 = vunpack.c.h.b16 %v403
        %v590 = vunpack.c.l.b16 %v404
        %v591 = vunpack.c.h.b16 %v404
        %v592 = vunpack.c.l.b16 %v405
        %v593 = vunpack.c.h.b16 %v405
        %v594 = vunpack.c.l.b16 %v406
        %v595 = vunpack.c.h.b16 %v406
        %v596 = vunpack.c.l.b16 %v407
        %v597 = vunpack.c.h.b16 %v407
        %v598 = vunpack.c.l.b16 %v408
        %v599 = vunpack.c.h.b16 %v408
        %v600 = vunpack.c.l.b16 %v409
        %v601 = vunpack.c.h.b16 %v409
        %v602 = vunpack.c.l.b16 %v410
        %v603 = vunpack.c.h.b16 %v410
        %v604 = vunpack.c.l.b16 %v411
        %v605 = vunpack.c.h.b16 %v411
        %v606 = vunpack.c.l.b16 %v412
        %v607 = vunpack.c.h.b16 %v412
        %v608 = vunpack.c.l.b16 %v413
        %v609 = vunpack.c.h.b16 %v413
        %v610 = vunpack.c.l.b16 %v414
        %v611 = vunpack.c.h.b16 %v414
        %v612 = vunpack.c.l.b16 %v415
        %v613 = vunpack.c.h.b16 %v415
        %v614 = vunpack.c.l.b16 %v416
        %v615 = vunpack.c.h.b16 %v416
        %v616 = vunpack.c.l.b16 %v417
        %v617 = vunpack.c.h.b16 %v417
        %v618 = vunpack.c.l.b16 %v418
        %v619 = vunpack.c.h.b16 %v418
        %v620 = vunpack.c.l.b16 %v419
        %v621 = vunpack.c.h.b16 %v419
        %v622 = vunpack.c.l.b16 %v420
        %v623 = vunpack.c.h.b16 %v420
        %v624 = vunpack.c.l.b16 %v421
        %v625 = vunpack.c.h.b16 %v421
        %v626 = vunpack.c.l.b16 %v422
        %v627 = vunpack.c.h.b16 %v422
        %v628 = vunpack.c.l.b16 %v423
        %v629 = vunpack.c.h.b16 %v423
        %v630 = vunpack.c.l.b16 %v424
        %v631 = vunpack.c.h.b16 %v424
        %v632 = vunpack.c.l.b16 %v425
        %v633 = vunpack.c.h.b16 %v425
        %v634 = vunpack.c.l.b16 %v426
        %v635 = vunpack.c.h.b16 %v426
        %v636 = vunpack.c.l.b16 %v427
        %v637 = vunpack.c.h.b16 %v427
        %v638 = vunpack.c.l.b16 %v428
        %v639 = vunpack.c.h.b16 %v428
        %v640 = vunpack.c.l.b16 %v429
        %v641 = vunpack.c.h.b16 %v429
        %v642 = vpack.c.b16 %v516, %v514
        %v643 = vpack.c.b16 %v517, %v515
        %v644 = vpack.c.b16 %v520, %v518
        %v645 = vpack.c.b16 %v521, %v519
        %v646 = vpack.c.b16 %v524, %v522
        %v647 = vpack.c.b16 %v525, %v523
        %v648 = vpack.c.b16 %v528, %v526
        %v649 = vpack.c.b16 %v529, %v527
        %v650 = vpack.c.b16 %v532, %v530
        %v651 = vpack.c.b16 %v533, %v531
        %v652 = vpack.c.b16 %v536, %v534
        %v653 = vpack.c.b16 %v537, %v535
        %v654 = vpack.c.b16 %v540, %v538
        %v655 = vpack.c.b16 %v541, %v539
        %v656 = vpack.c.b16 %v544, %v542
        %v657 = vpack.c.b16 %v545, %v543
        %v658 = vpack.c.b16 %v548, %v546
        %v659 = vpack.c.b16 %v549, %v547
        %v660 = vpack.c.b16 %v552, %v550
        %v661 = vpack.c.b16 %v553, %v551
        %v662 = vpack.c.b16 %v556, %v554
        %v663 = vpack.c.b16 %v557, %v555
        %v664 = vpack.c.b16 %v560, %v558
        %v665 = vpack.c.b16 %v561, %v559
        %v666 = vpack.c.b16 %v564, %v562
        %v667 = vpack.c.b16 %v565, %v563
        %v668 = vpack.c.b16 %v568, %v566
        %v669 = vpack.c.b16 %v569, %v567
        %v670 = vpack.c.b16 %v572, %v570
        %v671 = vpack.c.b16 %v573, %v571
        %v672 = vpack.c.b16 %v576, %v574
        %v673 = vpack.c.b16 %v577, %v575
        %v674 = vpack.c.b16 %v580, %v578
        %v675 = vpack.c.b16 %v581, %v579
        %v676 = vpack.c.b16 %v584, %v582
        %v677 = vpack.c.b16 %v585, %v583
        %v678 = vpack.c.b16 %v588, %v586
        %v679 = vpack.c.b16 %v589, %v587
        %v680 = vpack.c.b16 %v592, %v590
        %v681 = vpack.c.b16 %v593, %v591
        %v682 = vpack.c.b16 %v596, %v594
        %v683 = vpack.c.b16 %v597, %v595
        %v684 = vpack.c.b16 %v600, %v598
        %v685 = vpack.c.b16 %v601, %v599
        %v686 = vpack.c.b16 %v604, %v602
        %v687 = vpack.c.b16 %v605, %v603
        %v688 = vpack.c.b16 %v608, %v606
        %v689 = vpack.c.b16 %v609, %v607
        %v690 = vpack.c.b16 %v612, %v610
        %v691 = vpack.c.b16 %v613, %v611
        %v692 = vpack.c.b16 %v616, %v614
        %v693 = vpack.c.b16 %v617, %v615
        %v694 = vpack.c.b16 %v620, %v618
        %v695 = vpack.c.b16 %v621, %v619
        %v696 = vpack.c.b16 %v624, %v622
        %v697 = vpack.c.b16 %v625, %v623
        %v698 = vpack.c.b16 %v628, %v626
        %v699 = vpack.c.b16 %v629, %v627
        %v700 = vpack.c.b16 %v632, %v630
        %v701 = vpack.c.b16 %v633, %v631
        %v702 = vpack.c.b16 %v636, %v634
        %v703 = vpack.c.b16 %v637, %v635
        %v704 = vpack.c.b16 %v640, %v638
        %v705 = vpack.c.b16 %v641, %v639
        %770 = vmatprep.subr.bf16.mxu0 %v643
        %771 = vmatpush1.bf16.msra.mxu0 %v642
        %772 = vmatprep.subr.bf16.mxu0 %v645
        %773 = vmatpush1.bf16.msra.mxu0 %v644
        %774 = vmatprep.subr.bf16.mxu0 %v647
        %775 = vmatpush1.bf16.msra.mxu0 %v646
        %776 = vmatprep.subr.bf16.mxu0 %v649
        %777 = vmatpush1.bf16.msra.mxu0 %v648
        %778 = vmatprep.subr.bf16.mxu0 %v651
        %779 = vmatpush1.bf16.msra.mxu0 %v650
        %780 = vmatprep.subr.bf16.mxu0 %v653
        %781 = vmatpush1.bf16.msra.mxu0 %v652
        %782 = vmatprep.subr.bf16.mxu0 %v655
        %783 = vmatpush1.bf16.msra.mxu0 %v654
        %784 = vmatprep.subr.bf16.mxu0 %v657
        %785 = vmatpush1.bf16.msra.mxu0 %v656
        %786 = vmatprep.subr.bf16.mxu0 %v659
        %787 = vmatpush1.bf16.msra.mxu0 %v658
        %788 = vmatprep.subr.bf16.mxu0 %v661
        %789 = vmatpush1.bf16.msra.mxu0 %v660
        %790 = vmatprep.subr.bf16.mxu0 %v663
        %791 = vmatpush1.bf16.msra.mxu0 %v662
        %792 = vmatprep.subr.bf16.mxu0 %v665
        %793 = vmatpush1.bf16.msra.mxu0 %v664
        %794 = vmatprep.subr.bf16.mxu0 %v667
        %795 = vmatpush1.bf16.msra.mxu0 %v666
        %796 = vmatprep.subr.bf16.mxu0 %v669
        %797 = vmatpush1.bf16.msra.mxu0 %v668
        %798 = vmatprep.subr.bf16.mxu0 %v671
        %799 = vmatpush1.bf16.msra.mxu0 %v670
        %800 = vmatprep.subr.bf16.mxu0 %v673
        %801 = vmatpush1.bf16.msra.mxu0 %v672
        %802 = vmatprep.mubr.bf16.mxu0 %v443
        %803 = vmatmul.mubr.bf16.gmra.mrb[0].mxu0 %v442
        %v804 = vpop.f32.mrb[0].mxu0
        %v805 = vadd.f32 0.0, %v804
        %v806 = vpop.f32.mrb[0].mxu0
        %v807 = vadd.f32 0.0, %v806
        %v808 = vpop.f32.mrb[0].mxu0
        %v809 = vadd.f32 0.0, %v808
        %v810 = vpop.f32.mrb[0].mxu0
        %v811 = vadd.f32 0.0, %v810
        %812 = vdwg.mxu0
        %813 = vmatprep.subr.bf16.mxu0 %v675
        %814 = vmatpush1.bf16.msra.mxu0 %v674
        %815 = vmatprep.subr.bf16.mxu0 %v677
        %816 = vmatpush1.bf16.msra.mxu0 %v676
        %817 = vmatprep.subr.bf16.mxu0 %v679
        %818 = vmatpush1.bf16.msra.mxu0 %v678
        %819 = vmatprep.subr.bf16.mxu0 %v681
        %820 = vmatpush1.bf16.msra.mxu0 %v680
        %821 = vmatprep.subr.bf16.mxu0 %v683
        %822 = vmatpush1.bf16.msra.mxu0 %v682
        %823 = vmatprep.subr.bf16.mxu0 %v685
        %824 = vmatpush1.bf16.msra.mxu0 %v684
        %825 = vmatprep.subr.bf16.mxu0 %v687
        %826 = vmatpush1.bf16.msra.mxu0 %v686
        %827 = vmatprep.subr.bf16.mxu0 %v689
        %828 = vmatpush1.bf16.msra.mxu0 %v688
        %829 = vmatprep.subr.bf16.mxu0 %v691
        %830 = vmatpush1.bf16.msra.mxu0 %v690
        %831 = vmatprep.subr.bf16.mxu0 %v693
        %832 = vmatpush1.bf16.msra.mxu0 %v692
        %833 = vmatprep.subr.bf16.mxu0 %v695
        %834 = vmatpush1.bf16.msra.mxu0 %v694
        %835 = vmatprep.subr.bf16.mxu0 %v697
        %836 = vmatpush1.bf16.msra.mxu0 %v696
        %837 = vmatprep.subr.bf16.mxu0 %v699
        %838 = vmatpush1.bf16.msra.mxu0 %v698
        %839 = vmatprep.subr.bf16.mxu0 %v701
        %840 = vmatpush1.bf16.msra.mxu0 %v700
        %841 = vmatprep.subr.bf16.mxu0 %v703
        %842 = vmatpush1.bf16.msra.mxu0 %v702
        %843 = vmatprep.subr.bf16.mxu0 %v705
        %844 = vmatpush1.bf16.msra.mxu0 %v704
        %845 = vmatprep.mubr.bf16.mxu0 %v445
        %846 = vmatmul.mubr.bf16.gmra.mrb[0].mxu0 %v444
        %v847 = vpop.f32.mrb[0].mxu0
        %v848 = vadd.f32 %v805, %v847
        %v849 = vpop.f32.mrb[0].mxu0
        %v850 = vadd.f32 %v807, %v849
        %v851 = vpop.f32.mrb[0].mxu0
        %v852 = vadd.f32 %v809, %v851
        %v853 = vpop.f32.mrb[0].mxu0
        %v854 = vadd.f32 %v811, %v853
        %855 = vdwg.mxu0
        %v856 = vadd.f32 %v358, %v848
        %v857 = vadd.f32 %v359, %v850
        %v858 = vadd.f32 %v360, %v852
        %v859 = vadd.f32 %v361, %v854
        %860 = vst [vmem:[#allocation2] sm:$0xff] %v856
        %861 = vst [vmem:[#allocation2 + $0x8] sm:$0xff] %v857
        %862 = vst [vmem:[#allocation2 + $0x10] sm:$0xff] %v858
        %863 = vst [vmem:[#allocation2 + $0x18] sm:$0xff] %v859
        %p864 = scmp.eq.s32.totalorder %s22, 1
        // Predicated region
        $region72: #{_lambda_.18} parent=62 // pred_check
          %p865 = pneg %p864
        $region73: #{_lambda_.18} parent=62 // pred_check_branch
          %867 = sbr.rel (%p865) target = $region75
        $region74: #{_lambda_.18} parent=62 // pred_region
          %v868 = vld [vmem:[#allocation2] sm:$0xff]
          %v869 = vld [vmem:[#allocation2 + $0x8] sm:$0xff]
          %v870 = vld [vmem:[#allocation2 + $0x10] sm:$0xff]
          %v871 = vld [vmem:[#allocation2 + $0x18] sm:$0xff]
          %v872 = vld [vmem:[%s2] sm:$0x3]
          %v874 = vlaneseq
          %v875 = vshrl.u32 %v874, 7
          %v876 = vsub.s32 0, %v875
          %v877 = vrot.slane %v872, %v876
          %v878 = vlaneseq
          %v879 = vshrl.u32 %v878, 7
          %v880 = vsub.s32 1, %v879
          %v881 = vrot.slane %v872, %v880
          %v884 = vadd.f32 %v868, %v877
          %v885 = vadd.f32 %v869, %v881
          %v886 = vadd.f32 %v870, %v877
          %v887 = vadd.f32 %v871, %v881
          %v888 = vld [vmem:[%s341] sm:$0xff]
          %v889 = vld [vmem:[%s341 + $0x8] sm:$0xff]
          %v890 = vunpack.c.l.bf16 %v888
          %v891 = vunpack.c.h.bf16 %v888
          %v892 = vunpack.c.l.bf16 %v889
          %v893 = vunpack.c.h.bf16 %v889
          %v894 = vadd.f32 %v884, %v890
          %v895 = vadd.f32 %v885, %v891
          %v896 = vadd.f32 %v886, %v892
          %v897 = vadd.f32 %v887, %v893
          %v898 = vadd.f32 %v894, %v895
          %899 = vadd.xlane.f32.xlu0 %v898
          %v900 = vpop.xlane.xlu0 %899
          %v901 = vadd.f32 %v896, %v897
          %902 = vadd.xlane.f32.xlu0 %v901
          %v903 = vpop.xlane.xlu0 %902
          %v904 = vrcp.pop 256.0
          %v905 = vmul.f32 %v900, %v904
          %v906 = vmul.f32 %v903, %v904
          %v907 = vsub.f32 %v894, %v905
          %v908 = vsub.f32 %v895, %v905
          %v909 = vsub.f32 %v896, %v906
          %v910 = vsub.f32 %v897, %v906
          %v911 = vmul.f32 %v907, %v907
          %v912 = vmul.f32 %v908, %v908
          %v913 = vmul.f32 %v909, %v909
          %v914 = vmul.f32 %v910, %v910
          %v915 = vadd.f32 %v911, %v912
          %916 = vadd.xlane.f32.xlu0 %v915
          %v917 = vpop.xlane.xlu0 %916
          %v918 = vadd.f32 %v913, %v914
          %919 = vadd.xlane.f32.xlu0 %v918
          %v920 = vpop.xlane.xlu0 %919
          %v921 = vmul.f32 %v917, %v904
          %v922 = vmul.f32 %v920, %v904
          %v923 = vadd.f32 %v921, 1e-12
          %v924 = vadd.f32 %v922, 1e-12
          %v925 = vrsqrt.pop %v923
          %v926 = vrsqrt.pop %v924
          %v927 = vmul.f32 %v907, %v925
          %v928 = vmul.f32 %v908, %v925
          %v929 = vmul.f32 %v909, %v926
          %v930 = vmul.f32 %v910, %v926
          %v931 = vld [vmem:[%s4] sm:$0x3]
          %v933 = vlaneseq
          %v934 = vshrl.u32 %v933, 7
          %v935 = vsub.s32 0, %v934
          %v936 = vrot.slane %v931, %v935
          %v937 = vlaneseq
          %v938 = vshrl.u32 %v937, 7
          %v939 = vsub.s32 1, %v938
          %v940 = vrot.slane %v931, %v939
          %v943 = vmul.f32 %v927, %v936
          %v944 = vmul.f32 %v928, %v940
          %v945 = vmul.f32 %v929, %v936
          %v946 = vmul.f32 %v930, %v940
          %v947 = vld [vmem:[%s5] sm:$0x3]
          %v949 = vlaneseq
          %v950 = vshrl.u32 %v949, 7
          %v951 = vsub.s32 0, %v950
          %v952 = vrot.slane %v947, %v951
          %v953 = vlaneseq
          %v954 = vshrl.u32 %v953, 7
          %v955 = vsub.s32 1, %v954
          %v956 = vrot.slane %v947, %v955
          %v959 = vadd.f32 %v943, %v952
          %v960 = vadd.f32 %v944, %v956
          %v961 = vadd.f32 %v945, %v952
          %v962 = vadd.f32 %v946, %v956
          %v963 = vpack.c.bf16 %v961, %v959
          %v964 = vpack.c.bf16 %v962, %v960
          %v967 = vunpack.c.l.b16 %v963
          %v968 = vunpack.c.l.b16 %v964
          %v969 = vunpack.c.h.b16 %v963
          %v970 = vunpack.c.h.b16 %v964
          %v971 = vpack.c.b16 %v968, %v967
          %v972 = vpack.c.b16 %v970, %v969
          %975 = vst [vmem:[%s348] sm:$0xff] %v971
          %976 = vst [vmem:[%s348 + $0x8] sm:$0xff] %v972
        $region75: #{_lambda_.18} parent=62 // pred_fallthru
          _
        %s977 = smul.u32 2, %s21
        %p978 = scmp.lt.s32.totalorder %s977, 3
        %s979 = scalar_select %p978, %s977, 3
        %s980 = smul.addr %s979, 2
        %s981 = smul.addr %s980, 4
        %s982 = scalar_lea.vmem %s6, %s981
        // Predicated region
        $region76: #{_lambda_.18} parent=62 // pred_check
          %p983 = pneg %p190
        $region77: #{_lambda_.18} parent=62 // pred_check_branch
          %985 = sbr.rel (%p983) target = $region79
        $region78: #{_lambda_.18} parent=62 // pred_region
          %s986 = smul.u32 2, %s21
        $region79: #{_lambda_.18} parent=62 // pred_fallthru
          _
      $region63: #{_lambda_.18} parent=5 // pred_fallthru
        _
      %p987 = scmp.le.s32.totalorder 2, %s12
      // Predicated region
      $region80: #{_lambda_.18} parent=5 // pred_check
        %p988 = pneg %p987
      $region81: #{_lambda_.18} parent=5 // pred_check_branch
        %990 = sbr.rel (%p988) target = $region83
      $region82: #{_lambda_.18} parent=5 // pred_region
        %s991 = ssub.s32 %s12, 2
        // Predicated region
        $region84: #{_lambda_.18} parent=82 // pred_check
          %p992 = pneg %p196
        $region85: #{_lambda_.18} parent=82 // pred_check_branch
          %994 = sbr.rel (%p992) target = $region87
        $region86: #{_lambda_.18} parent=82 // pred_region
          %s995 = smul.u32 2, %s23
          %p996 = scmp.lt.s32.totalorder %s995, 3
          %s997 = scalar_select %p996, %s995, 3
          %s998 = smul.addr %s997, 2
          %s999 = smul.addr %s998, 4
          %s1000 = scalar_lea.vmem %s6, %s999
        $region87: #{_lambda_.18} parent=82 // pred_fallthru
          _
      $region83: #{_lambda_.18} parent=5 // pred_fallthru
        _
    $region6: #{_lambda_.18} parent=1 // loop_footer
      %s16 = sadd.s32 1, %s12
    $region7: #{_lambda_.18} parent=1 // loop_footer_branch
      %11 = sbr.rel target = $region3
    $region8: #{_lambda_.18} parent=1 // loop_exit
      _

// kernel: _lambda_.17
$region0: #{_lambda_.17}
  #allocation0 [shape = 'u32[]', space=smem, size = 0x4, offset = 0x4, fixed_abs, tag = 'smem constant byte address 0x4 - core index']
  #allocation1 [shape = 'u32[144,128]{1,0:T(1,128)}', space=vmem, size = 0x12000, scoped, tag = 'internal scratch']
  %s0 = inlined_call_operand.vmem [shape: bf16[32,256], index: 0, kind: input, shape index: {}]
  %s1 = inlined_call_operand.vmem [shape: bf16[256,1024], index: 1, kind: input, shape index: {}]
  %s2 = inlined_call_operand.vmem [shape: f32[1,1024], index: 2, kind: input, shape index: {}]
  %s3 = inlined_call_operand.vmem [shape: bf16[32,1024], index: 3, kind: output, shape index: {}]
  %s4 = sld [smem:[#allocation0]]
  $region87: #{_lambda_.17} parent=0
    _
  %s6 = ssub.s32 1, %s4
  %s7 = scalar_select 0, %s6, %s4
  $region1: #{_lambda_.17} parent=0
    #allocation2 [shape = 'u8[524288]{0}', space=vmem, size = 0x80000, scoped, tag = 'input window, operand 1']
    #allocation3 [shape = 'u8[32768]{0}', space=vmem, size = 0x8000, scoped, tag = 'output window, operand 0']
    loop: start=0, step=1, limit=6
    $region2: #{_lambda_.17} parent=1 // loop_pre_header
      _
    $region3: #{_lambda_.17} parent=1 // loop_header
      %s9 = sphi 0, %s13
      %p10 = scmp.ge.s32.totalorder %s9, 6
      %s16 = sphi 0, %s28
      %s17 = sphi 0, %s24
      %s18 = sphi 0, %s16
      %s19 = sphi 0, %s17
      %s20 = sphi 0, %s18
      %s21 = sphi 0, %s19
      %s31 = sphi 0, %s33
      %s34 = sphi 0, %s31
      %s35 = sphi 0, %s34
      %s51 = sphi 0, %s35
      %s57 = sphi 0, %s59
      %s60 = sphi 0, %s57
      %s61 = sphi 0, %s60
      %s77 = sphi 0, %s61
      %s83 = sphi 0, %s85
      %s86 = sphi 0, %s83
      %s87 = sphi 0, %s86
      %s103 = sphi 0, %s87
      %s111 = sphi 0, %s113
      %s114 = sphi 0, %s111
      %s115 = sphi 0, %s114
      %s131 = sphi 0, %s115
    $region4: #{_lambda_.17} parent=1 // loop_header_branch
      %12 = sbr.rel (%p10) target = $region8
    $region5: #{_lambda_.17} parent=1 // loop_body
      %s14 = ssub.s32 %s9, 1
      %s15 = ssub.s32 %s9, 2
      %s22 = sadd.s32 1, %s17
      %p23 = scmp.ge.s32.totalorder %s22, 2
      %s24 = scalar_select %p23, 0, %s22
      %s25 = sadd.s32 1, %s16
      %s26 = scalar_select %p23, %s25, %s16
      %p27 = scmp.ge.s32.totalorder %s26, 2
      %s28 = scalar_select %p27, 0, %s26
      %s29 = ssub.s32 %s16, %s28
      %p30 = scmp.eq.s32.totalorder %s29, 0
      %s32 = sadd.s32 %s31, 1
      %s33 = scalar_select %p30, %s31, %s32
      %p36 = pneg %p30
      %p37 = scmp.eq.s32.totalorder %s9, 3
      %p38 = por %p36, %p37
      %p39 = scmp.ne.s32.totalorder %s31, %s34
      %p40 = scmp.eq.s32.totalorder %s9, 0
      %p41 = por %p39, %p40
      %p42 = scmp.ne.s32.totalorder %s31, %s34
      %p43 = scmp.eq.s32.totalorder %s14, 3
      %p44 = por %p42, %p43
      %p45 = scmp.ne.s32.totalorder %s34, %s35
      %p46 = scmp.eq.s32.totalorder %s14, 0
      %p47 = por %p45, %p46
      %p48 = scmp.ne.s32.totalorder %s34, %s35
      %p49 = scmp.eq.s32.totalorder %s15, 3
      %p50 = por %p48, %p49
      %p52 = scmp.ne.s32.totalorder %s35, %s51
      %p53 = scmp.eq.s32.totalorder %s15, 0
      %p54 = por %p52, %p53
      %s55 = ssub.s32 %s17, %s24
      %p56 = scmp.eq.s32.totalorder %s55, 0
      %s58 = sadd.s32 %s57, 1
      %s59 = scalar_select %p56, %s57, %s58
      %p62 = pneg %p56
      %p63 = scmp.eq.s32.totalorder %s9, 3
      %p64 = por %p62, %p63
      %p65 = scmp.ne.s32.totalorder %s57, %s60
      %p66 = scmp.eq.s32.totalorder %s9, 0
      %p67 = por %p65, %p66
      %p68 = scmp.ne.s32.totalorder %s57, %s60
      %p69 = scmp.eq.s32.totalorder %s14, 3
      %p70 = por %p68, %p69
      %p71 = scmp.ne.s32.totalorder %s60, %s61
      %p72 = scmp.eq.s32.totalorder %s14, 0
      %p73 = por %p71, %p72
      %p74 = scmp.ne.s32.totalorder %s60, %s61
      %p75 = scmp.eq.s32.totalorder %s15, 3
      %p76 = por %p74, %p75
      %p78 = scmp.ne.s32.totalorder %s61, %s77
      %p79 = scmp.eq.s32.totalorder %s15, 0
      %p80 = por %p78, %p79
      %s81 = ssub.s32 %s17, %s24
      %p82 = scmp.eq.s32.totalorder %s81, 0
      %s84 = sadd.s32 %s83, 1
      %s85 = scalar_select %p82, %s83, %s84
      %p88 = pneg %p82
      %p89 = scmp.eq.s32.totalorder %s9, 3
      %p90 = por %p88, %p89
      %p91 = scmp.ne.s32.totalorder %s83, %s86
      %p92 = scmp.eq.s32.totalorder %s9, 0
      %p93 = por %p91, %p92
      %p94 = scmp.ne.s32.totalorder %s83, %s86
      %p95 = scmp.eq.s32.totalorder %s14, 3
      %p96 = por %p94, %p95
      %p97 = scmp.ne.s32.totalorder %s86, %s87
      %p98 = scmp.eq.s32.totalorder %s14, 0
      %p99 = por %p97, %p98
      %p100 = scmp.ne.s32.totalorder %s86, %s87
      %p101 = scmp.eq.s32.totalorder %s15, 3
      %p102 = por %p100, %p101
      %p104 = scmp.ne.s32.totalorder %s87, %s103
      %p105 = scmp.eq.s32.totalorder %s15, 0
      %p106 = por %p104, %p105
      %s107 = ssub.s32 %s16, %s28
      %s108 = ssub.s32 %s17, %s24
      %s109 = sor.u32 %s107, %s108
      %p110 = scmp.eq.s32.totalorder %s109, 0
      %s112 = sadd.s32 %s111, 1
      %s113 = scalar_select %p110, %s111, %s112
      %p116 = pneg %p110
      %p117 = scmp.eq.s32.totalorder %s9, 3
      %p118 = por %p116, %p117
      %p119 = scmp.ne.s32.totalorder %s111, %s114
      %p120 = scmp.eq.s32.totalorder %s9, 0
      %p121 = por %p119, %p120
      %p122 = scmp.ne.s32.totalorder %s111, %s114
      %p123 = scmp.eq.s32.totalorder %s14, 3
      %p124 = por %p122, %p123
      %p125 = scmp.ne.s32.totalorder %s114, %s115
      %p126 = scmp.eq.s32.totalorder %s14, 0
      %p127 = por %p125, %p126
      %p128 = scmp.ne.s32.totalorder %s114, %s115
      %p129 = scmp.eq.s32.totalorder %s15, 3
      %p130 = por %p128, %p129
      %p132 = scmp.ne.s32.totalorder %s115, %s131
      %p133 = scmp.eq.s32.totalorder %s15, 0
      %p134 = por %p132, %p133
      %p135 = scmp.le.s32.totalorder 1, %s9
      %p136 = scmp.lt.s32.totalorder %s9, 5
      %p137 = pnand %p135, %p136
      %p138 = pneg %p137
      // Predicated region
      $region9: #{_lambda_.17} parent=5 // pred_check
        _
      $region10: #{_lambda_.17} parent=5 // pred_check_branch
        %140 = sbr.rel (%p137) target = $region12
      $region11: #{_lambda_.17} parent=5 // pred_region
        %s141 = ssub.s32 %s9, 1
      $region12: #{_lambda_.17} parent=5 // pred_fallthru
        _
      %p142 = scmp.lt.s32.totalorder %s9, 4
      // Predicated region
      $region13: #{_lambda_.17} parent=5 // pred_check
        %p143 = pneg %p142
      $region14: #{_lambda_.17} parent=5 // pred_check_branch
        %145 = sbr.rel (%p143) target = $region16
      $region15: #{_lambda_.17} parent=5 // pred_region
        // Predicated region
        $region17: #{_lambda_.17} parent=15 // pred_check
          %p146 = pneg %p41
        $region18: #{_lambda_.17} parent=15 // pred_check_branch
          %148 = sbr.rel (%p146) target = $region20
        $region19: #{_lambda_.17} parent=15 // pred_region
          %s149 = smul.u32 2, %s16
          %p150 = scmp.lt.s32.totalorder %s149, 3
          %s151 = scalar_select %p150, %s149, 3
          %s152 = smul.addr %s151, 2
          %s153 = smul.addr %s152, 4
          %s154 = scalar_lea.vmem %s0, %s153
          %s155 = smul.u32 2, %s16
        $region20: #{_lambda_.17} parent=15 // pred_fallthru
          _
        // Predicated region
        $region21: #{_lambda_.17} parent=15 // pred_check
          %p156 = pneg %p67
        $region22: #{_lambda_.17} parent=15 // pred_check_branch
          %158 = sbr.rel (%p156) target = $region24
        $region23: #{_lambda_.17} parent=15 // pred_region
          %s159 = sand.u32 %s57, 1
          %s160 = sand.u32 %s57, 1
          %s161 = smul.addr %s160, 512
          %s162 = scalar_lea.vmem [#allocation2], %s161
          %s163 = smul.u32 4, %s17
          %s164 = smul.addr %s163, 4
          %s165 = scalar_lea.vmem %s1, %s164
          // Predicated region
          $region25: #{_lambda_.17} parent=23 // pred_check
            _
          $region26: #{_lambda_.17} parent=23 // pred_check_branch
            %167 = sbr.rel (0) target = $region28
          $region27: #{_lambda_.17} parent=23 // pred_region
            // Predicated region
            $region29: #{_lambda_.17} parent=27 // pred_check
              _
            $region30: #{_lambda_.17} parent=27 // pred_check_branch
              %169 = sbr.rel (0) target = $region32
            $region31: #{_lambda_.17} parent=27 // pred_region
              loop: start=0, step=1, limit=1
              $region33: #{_lambda_.17} parent=31 // loop_pre_header
                _
              $region34: #{_lambda_.17} parent=31 // loop_header
                %s171 = sphi 0, %s175
                %p172 = scmp.ge.s32.totalorder %s171, 1
                %s176 = sphi %s165, %s165
                %s177 = sphi %s162, %s162
              $region35: #{_lambda_.17} parent=31 // loop_header_branch
                %174 = sbr.rel (%p172) target = $region39
              $region36: #{_lambda_.17} parent=31 // loop_body
                %v178 = vld [vmem:[%s176] sm:$0xff]
                %179 = vst [vmem:[%s177] sm:$0xff] %v178
                %v180 = vld [vmem:[%s176 + $0x8] sm:$0xff]
                %181 = vst [vmem:[%s177 + $0x8] sm:$0xff] %v180
                %v182 = vld [vmem:[%s176 + $0x20] sm:$0xff]
                %183 = vst [vmem:[%s177 + $0x10] sm:$0xff] %v182
                %v184 = vld [vmem:[%s176 + $0x28] sm:$0xff]
                %185 = vst [vmem:[%s177 + $0x18] sm:$0xff] %v184
                %v186 = vld [vmem:[%s176 + $0x40] sm:$0xff]
                %187 = vst [vmem:[%s177 + $0x20] sm:$0xff] %v186
                %v188 = vld [vmem:[%s176 + $0x48] sm:$0xff]
                %189 = vst [vmem:[%s177 + $0x28] sm:$0xff] %v188
                %v190 = vld [vmem:[%s176 + $0x60] sm:$0xff]
                %191 = vst [vmem:[%s177 + $0x30] sm:$0xff] %v190
                %v192 = vld [vmem:[%s176 + $0x68] sm:$0xff]
                %193 = vst [vmem:[%s177 + $0x38] sm:$0xff] %v192
                %v194 = vld [vmem:[%s176 + $0x80] sm:$0xff]
                %195 = vst [vmem:[%s177 + $0x40] sm:$0xff] %v194
                %v196 = vld [vmem:[%s176 + $0x88] sm:$0xff]
                %197 = vst [vmem:[%s177 + $0x48] sm:$0xff] %v196
                %v198 = vld [vmem:[%s176 + $0xa0] sm:$0xff]
                %199 = vst [vmem:[%s177 + $0x50] sm:$0xff] %v198
                %v200 = vld [vmem:[%s176 + $0xa8] sm:$0xff]
                %201 = vst [vmem:[%s177 + $0x58] sm:$0xff] %v200
                %v202 = vld [vmem:[%s176 + $0xc0] sm:$0xff]
                %203 = vst [vmem:[%s177 + $0x60] sm:$0xff] %v202
                %v204 = vld [vmem:[%s176 + $0xc8] sm:$0xff]
                %205 = vst [vmem:[%s177 + $0x68] sm:$0xff] %v204
                %v206 = vld [vmem:[%s176 + $0xe0] sm:$0xff]
                %207 = vst [vmem:[%s177 + $0x70] sm:$0xff] %v206
                %v208 = vld [vmem:[%s176 + $0xe8] sm:$0xff]
                %209 = vst [vmem:[%s177 + $0x78] sm:$0xff] %v208
                %v210 = vld [vmem:[%s176 + $0x100] sm:$0xff]
                %211 = vst [vmem:[%s177 + $0x80] sm:$0xff] %v210
                %v212 = vld [vmem:[%s176 + $0x108] sm:$0xff]
                %213 = vst [vmem:[%s177 + $0x88] sm:$0xff] %v212
                %v214 = vld [vmem:[%s176 + $0x120] sm:$0xff]
                %215 = vst [vmem:[%s177 + $0x90] sm:$0xff] %v214
                %v216 = vld [vmem:[%s176 + $0x128] sm:$0xff]
                %217 = vst [vmem:[%s177 + $0x98] sm:$0xff] %v216
                %v218 = vld [vmem:[%s176 + $0x140] sm:$0xff]
                %219 = vst [vmem:[%s177 + $0xa0] sm:$0xff] %v218
                %v220 = vld [vmem:[%s176 + $0x148] sm:$0xff]
                %221 = vst [vmem:[%s177 + $0xa8] sm:$0xff] %v220
                %v222 = vld [vmem:[%s176 + $0x160] sm:$0xff]
                %223 = vst [vmem:[%s177 + $0xb0] sm:$0xff] %v222
                %v224 = vld [vmem:[%s176 + $0x168] sm:$0xff]
                %225 = vst [vmem:[%s177 + $0xb8] sm:$0xff] %v224
                %v226 = vld [vmem:[%s176 + $0x180] sm:$0xff]
                %227 = vst [vmem:[%s177 + $0xc0] sm:$0xff] %v226
                %v228 = vld [vmem:[%s176 + $0x188] sm:$0xff]
                %229 = vst [vmem:[%s177 + $0xc8] sm:$0xff] %v228
                %v230 = vld [vmem:[%s176 + $0x1a0] sm:$0xff]
                %231 = vst [vmem:[%s177 + $0xd0] sm:$0xff] %v230
                %v232 = vld [vmem:[%s176 + $0x1a8] sm:$0xff]
                %233 = vst [vmem:[%s177 + $0xd8] sm:$0xff] %v232
                %v234 = vld [vmem:[%s176 + $0x1c0] sm:$0xff]
                %235 = vst [vmem:[%s177 + $0xe0] sm:$0xff] %v234
                %v236 = vld [vmem:[%s176 + $0x1c8] sm:$0xff]
                %237 = vst [vmem:[%s177 + $0xe8] sm:$0xff] %v236
                %v238 = vld [vmem:[%s176 + $0x1e0] sm:$0xff]
                %239 = vst [vmem:[%s177 + $0xf0] sm:$0xff] %v238
                %v240 = vld [vmem:[%s176 + $0x1e8] sm:$0xff]
                %241 = vst [vmem:[%s177 + $0xf8] sm:$0xff] %v240
                %v242 = vld [vmem:[%s176 + $0x200] sm:$0xff]
                %243 = vst [vmem:[%s177 + $0x100] sm:$0xff] %v242
                %v244 = vld [vmem:[%s176 + $0x208] sm:$0xff]
                %245 = vst [vmem:[%s177 + $0x108] sm:$0xff] %v244
                %v246 = vld [vmem:[%s176 + $0x220] sm:$0xff]
                %247 = vst [vmem:[%s177 + $0x110] sm:$0xff] %v246
                %v248 = vld [vmem:[%s176 + $0x228] sm:$0xff]
                %249 = vst [vmem:[%s177 + $0x118] sm:$0xff] %v248
                %v250 = vld [vmem:[%s176 + $0x240] sm:$0xff]
                %251 = vst [vmem:[%s177 + $0x120] sm:$0xff] %v250
                %v252 = vld [vmem:[%s176 + $0x248] sm:$0xff]
                %253 = vst [vmem:[%s177 + $0x128] sm:$0xff] %v252
                %v254 = vld [vmem:[%s176 + $0x260] sm:$0xff]
                %255 = vst [vmem:[%s177 + $0x130] sm:$0xff] %v254
                %v256 = vld [vmem:[%s176 + $0x268] sm:$0xff]
                %257 = vst [vmem:[%s177 + $0x138] sm:$0xff] %v256
                %v258 = vld [vmem:[%s176 + $0x280] sm:$0xff]
                %259 = vst [vmem:[%s177 + $0x140] sm:$0xff] %v258
                %v260 = vld [vmem:[%s176 + $0x288] sm:$0xff]
                %261 = vst [vmem:[%s177 + $0x148] sm:$0xff] %v260
                %v262 = vld [vmem:[%s176 + $0x2a0] sm:$0xff]
                %263 = vst [vmem:[%s177 + $0x150] sm:$0xff] %v262
                %v264 = vld [vmem:[%s176 + $0x2a8] sm:$0xff]
                %265 = vst [vmem:[%s177 + $0x158] sm:$0xff] %v264
                %v266 = vld [vmem:[%s176 + $0x2c0] sm:$0xff]
                %267 = vst [vmem:[%s177 + $0x160] sm:$0xff] %v266
                %v268 = vld [vmem:[%s176 + $0x2c8] sm:$0xff]
                %269 = vst [vmem:[%s177 + $0x168] sm:$0xff] %v268
                %v270 = vld [vmem:[%s176 + $0x2e0] sm:$0xff]
                %271 = vst [vmem:[%s177 + $0x170] sm:$0xff] %v270
                %v272 = vld [vmem:[%s176 + $0x2e8] sm:$0xff]
                %273 = vst [vmem:[%s177 + $0x178] sm:$0xff] %v272
                %v274 = vld [vmem:[%s176 + $0x300] sm:$0xff]
                %275 = vst [vmem:[%s177 + $0x180] sm:$0xff] %v274
                %v276 = vld [vmem:[%s176 + $0x308] sm:$0xff]
                %277 = vst [vmem:[%s177 + $0x188] sm:$0xff] %v276
                %v278 = vld [vmem:[%s176 + $0x320] sm:$0xff]
                %279 = vst [vmem:[%s177 + $0x190] sm:$0xff] %v278
                %v280 = vld [vmem:[%s176 + $0x328] sm:$0xff]
                %281 = vst [vmem:[%s177 + $0x198] sm:$0xff] %v280
                %v282 = vld [vmem:[%s176 + $0x340] sm:$0xff]
                %283 = vst [vmem:[%s177 + $0x1a0] sm:$0xff] %v282
                %v284 = vld [vmem:[%s176 + $0x348] sm:$0xff]
                %285 = vst [vmem:[%s177 + $0x1a8] sm:$0xff] %v284
                %v286 = vld [vmem:[%s176 + $0x360] sm:$0xff]
                %287 = vst [vmem:[%s177 + $0x1b0] sm:$0xff] %v286
                %v288 = vld [vmem:[%s176 + $0x368] sm:$0xff]
                %289 = vst [vmem:[%s177 + $0x1b8] sm:$0xff] %v288
                %v290 = vld [vmem:[%s176 + $0x380] sm:$0xff]
                %291 = vst [vmem:[%s177 + $0x1c0] sm:$0xff] %v290
                %v292 = vld [vmem:[%s176 + $0x388] sm:$0xff]
                %293 = vst [vmem:[%s177 + $0x1c8] sm:$0xff] %v292
                %v294 = vld [vmem:[%s176 + $0x3a0] sm:$0xff]
                %295 = vst [vmem:[%s177 + $0x1d0] sm:$0xff] %v294
                %v296 = vld [vmem:[%s176 + $0x3a8] sm:$0xff]
                %297 = vst [vmem:[%s177 + $0x1d8] sm:$0xff] %v296
                %v298 = vld [vmem:[%s176 + $0x3c0] sm:$0xff]
                %299 = vst [vmem:[%s177 + $0x1e0] sm:$0xff] %v298
                %v300 = vld [vmem:[%s176 + $0x3c8] sm:$0xff]
                %301 = vst [vmem:[%s177 + $0x1e8] sm:$0xff] %v300
                %v302 = vld [vmem:[%s176 + $0x3e0] sm:$0xff]
                %303 = vst [vmem:[%s177 + $0x1f0] sm:$0xff] %v302
                %v304 = vld [vmem:[%s176 + $0x3e8] sm:$0xff]
                %305 = vst [vmem:[%s177 + $0x1f8] sm:$0xff] %v304
              $region37: #{_lambda_.17} parent=31 // loop_footer
                %s175 = sadd.s32 1, %s171
              $region38: #{_lambda_.17} parent=31 // loop_footer_branch
                %170 = sbr.rel target = $region34
              $region39: #{_lambda_.17} parent=31 // loop_exit
                _
            $region32: #{_lambda_.17} parent=27 // pred_fallthru
              _
            // Predicated region
            $region40: #{_lambda_.17} parent=27 // pred_check
              _
            $region41: #{_lambda_.17} parent=27 // pred_check_branch
              %307 = sbr.rel target = $region43
            $region42: #{_lambda_.17} parent=27 // pred_region
              _
            $region43: #{_lambda_.17} parent=27 // pred_fallthru
              _
          $region28: #{_lambda_.17} parent=23 // pred_fallthru
            _
          %308 = vnop
        $region24: #{_lambda_.17} parent=15 // pred_fallthru
          _
        // Predicated region
        $region44: #{_lambda_.17} parent=15 // pred_check
          %p309 = pneg %p93
        $region45: #{_lambda_.17} parent=15 // pred_check_branch
          %311 = sbr.rel (%p309) target = $region47
        $region46: #{_lambda_.17} parent=15 // pred_region
          %s312 = smul.u32 4, %s17
          %p313 = scmp.lt.s32.totalorder %s312, 7
          %s314 = scalar_select %p313, %s312, 7
          %s315 = scalar_lea.vmem %s2, %s314
          %s316 = smul.u32 4, %s17
        $region47: #{_lambda_.17} parent=15 // pred_fallthru
          _
      $region16: #{_lambda_.17} parent=5 // pred_fallthru
        _
      %p317 = scmp.le.s32.totalorder 1, %s9
      %p318 = scmp.lt.s32.totalorder %s9, 5
      %p319 = pnand %p317, %p318
      %p320 = pneg %p319
      // Predicated region
      $region48: #{_lambda_.17} parent=5 // pred_check
        _
      $region49: #{_lambda_.17} parent=5 // pred_check_branch
        %322 = sbr.rel (%p319) target = $region51
      $region50: #{_lambda_.17} parent=5 // pred_region
        %s323 = ssub.s32 %s9, 1
        %s324 = sand.u32 %s60, 1
        %s325 = sand.u32 %s60, 1
        %s326 = smul.addr %s325, 512
        %s327 = scalar_lea.vmem [#allocation2], %s326
        // Predicated region
        $region52: #{_lambda_.17} parent=50 // pred_check
          %p328 = pneg %p73
        $region53: #{_lambda_.17} parent=50 // pred_check_branch
          %330 = sbr.rel (%p328) target = $region55
        $region54: #{_lambda_.17} parent=50 // pred_region
          _
        $region55: #{_lambda_.17} parent=50 // pred_fallthru
          _
        %s331 = smul.u32 2, %s18
        %p332 = scmp.lt.s32.totalorder %s331, 3
        %s333 = scalar_select %p332, %s331, 3
        %s334 = smul.addr %s333, 2
        %s335 = smul.addr %s334, 4
        %s336 = scalar_lea.vmem %s0, %s335
        %p337 = pneg %p47
        %p338 = pneg %p44
        %s339 = sand.u32 %s60, 1
        %s340 = sand.u32 %s60, 1
        %s341 = smul.addr %s340, 512
        %s342 = scalar_lea.vmem [#allocation2], %s341
        %p343 = pneg %p73
        %p344 = pneg %p70
        %s345 = smul.u32 4, %s19
        %p346 = scmp.lt.s32.totalorder %s345, 7
        %s347 = scalar_select %p346, %s345, 7
        %s348 = scalar_lea.vmem %s2, %s347
        %p349 = pneg %p99
        %p350 = pneg %p96
        %p351 = pneg %p127
        %p352 = pneg %p124
        %s353 = sand.u32 %s114, 1
        %s354 = sand.u32 %s114, 1
        %s355 = smul.addr %s354, 32
        %s356 = scalar_lea.vmem [#allocation3], %s355
        %s357 = smul.u32 2, %s18
        %p358 = scmp.lt.s32.totalorder %s357, 3
        %s359 = scalar_select %p358, %s357, 3
        %s360 = smul.addr %s359, 2
        %s361 = smul.addr %s360, 4
        %s362 = scalar_lea.vmem %s0, %s361
        %s363 = smul.u32 2, %s18
        %s364 = smul.u32 4, %s19
        %s365 = smul.u32 4, %s19
        %p366 = scmp.lt.s32.totalorder %s365, 7
        %s367 = scalar_select %p366, %s365, 7
        %s368 = scalar_lea.vmem %s2, %s367
        %s369 = smul.u32 4, %s19
        %s370 = smul.u32 2, %s18
        %s371 = smul.u32 4, %s19
        %v372 = vld [vmem:[%s362] sm:$0xff]
        %v373 = vld [vmem:[%s362 + $0x8] sm:$0xff]
        %v374 = vld [vmem:[%s327] sm:$0xff]
        %v375 = vld [vmem:[%s327 + $0x8] sm:$0xff]
        %v376 = vld [vmem:[%s327 + $0x10] sm:$0xff]
        %v377 = vld [vmem:[%s327 + $0x18] sm:$0xff]
        %v378 = vld [vmem:[%s327 + $0x20] sm:$0xff]
        %v379 = vld [vmem:[%s327 + $0x28] sm:$0xff]
        %v380 = vld [vmem:[%s327 + $0x30] sm:$0xff]
        %v381 = vld [vmem:[%s327 + $0x38] sm:$0xff]
        %v382 = vld [vmem:[%s327 + $0x40] sm:$0xff]
        %v383 = vld [vmem:[%s327 + $0x48] sm:$0xff]
        %v384 = vld [vmem:[%s327 + $0x50] sm:$0xff]
        %v385 = vld [vmem:[%s327 + $0x58] sm:$0xff]
        %v386 = vld [vmem:[%s327 + $0x60] sm:$0xff]
        %v387 = vld [vmem:[%s327 + $0x68] sm:$0xff]
        %v388 = vld [vmem:[%s327 + $0x70] sm:$0xff]
        %v389 = vld [vmem:[%s327 + $0x78] sm:$0xff]
        %v390 = vld [vmem:[%s327 + $0x80] sm:$0xff]
        %v391 = vld [vmem:[%s327 + $0x88] sm:$0xff]
        %v392 = vld [vmem:[%s327 + $0x90] sm:$0xff]
        %v393 = vld [vmem:[%s327 + $0x98] sm:$0xff]
        %v394 = vld [vmem:[%s327 + $0xa0] sm:$0xff]
        %v395 = vld [vmem:[%s327 + $0xa8] sm:$0xff]
        %v396 = vld [vmem:[%s327 + $0xb0] sm:$0xff]
        %v397 = vld [vmem:[%s327 + $0xb8] sm:$0xff]
        %v398 = vld [vmem:[%s327 + $0xc0] sm:$0xff]
        %v399 = vld [vmem:[%s327 + $0xc8] sm:$0xff]
        %v400 = vld [vmem:[%s327 + $0xd0] sm:$0xff]
        %v401 = vld [vmem:[%s327 + $0xd8] sm:$0xff]
        %v402 = vld [vmem:[%s327 + $0xe0] sm:$0xff]
        %v403 = vld [vmem:[%s327 + $0xe8] sm:$0xff]
        %v404 = vld [vmem:[%s327 + $0xf0] sm:$0xff]
        %v405 = vld [vmem:[%s327 + $0xf8] sm:$0xff]
        %v406 = vld [vmem:[%s327 + $0x100] sm:$0xff]
        %v407 = vld [vmem:[%s327 + $0x108] sm:$0xff]
        %v408 = vld [vmem:[%s327 + $0x110] sm:$0xff]
        %v409 = vld [vmem:[%s327 + $0x118] sm:$0xff]
        %v410 = vld [vmem:[%s327 + $0x120] sm:$0xff]
        %v411 = vld [vmem:[%s327 + $0x128] sm:$0xff]
        %v412 = vld [vmem:[%s327 + $0x130] sm:$0xff]
        %v413 = vld [vmem:[%s327 + $0x138] sm:$0xff]
        %v414 = vld [vmem:[%s327 + $0x140] sm:$0xff]
        %v415 = vld [vmem:[%s327 + $0x148] sm:$0xff]
        %v416 = vld [vmem:[%s327 + $0x150] sm:$0xff]
        %v417 = vld [vmem:[%s327 + $0x158] sm:$0xff]
        %v418 = vld [vmem:[%s327 + $0x160] sm:$0xff]
        %v419 = vld [vmem:[%s327 + $0x168] sm:$0xff]
        %v420 = vld [vmem:[%s327 + $0x170] sm:$0xff]
        %v421 = vld [vmem:[%s327 + $0x178] sm:$0xff]
        %v422 = vld [vmem:[%s327 + $0x180] sm:$0xff]
        %v423 = vld [vmem:[%s327 + $0x188] sm:$0xff]
        %v424 = vld [vmem:[%s327 + $0x190] sm:$0xff]
        %v425 = vld [vmem:[%s327 + $0x198] sm:$0xff]
        %v426 = vld [vmem:[%s327 + $0x1a0] sm:$0xff]
        %v427 = vld [vmem:[%s327 + $0x1a8] sm:$0xff]
        %v428 = vld [vmem:[%s327 + $0x1b0] sm:$0xff]
        %v429 = vld [vmem:[%s327 + $0x1b8] sm:$0xff]
        %v430 = vld [vmem:[%s327 + $0x1c0] sm:$0xff]
        %v431 = vld [vmem:[%s327 + $0x1c8] sm:$0xff]
        %v432 = vld [vmem:[%s327 + $0x1d0] sm:$0xff]
        %v433 = vld [vmem:[%s327 + $0x1d8] sm:$0xff]
        %v434 = vld [vmem:[%s327 + $0x1e0] sm:$0xff]
        %v435 = vld [vmem:[%s327 + $0x1e8] sm:$0xff]
        %v436 = vld [vmem:[%s327 + $0x1f0] sm:$0xff]
        %v437 = vld [vmem:[%s327 + $0x1f8] sm:$0xff]
        %v438 = vld [vmem:[%s368] sm:$0xf]
        %v440 = vlaneseq
        %v441 = vshrl.u32 %v440, 7
        %v442 = vsub.s32 0, %v441
        %v443 = vrot.slane %v438, %v442
        %v444 = vlaneseq
        %v445 = vshrl.u32 %v444, 7
        %v446 = vsub.s32 1, %v445
        %v447 = vrot.slane %v438, %v446
        %v448 = vlaneseq
        %v449 = vshrl.u32 %v448, 7
        %v450 = vsub.s32 2, %v449
        %v451 = vrot.slane %v438, %v450
        %v452 = vlaneseq
        %v453 = vshrl.u32 %v452, 7
        %v454 = vsub.s32 3, %v453
        %v455 = vrot.slane %v438, %v454
        %v462 = vunpack.c.l.b16 %v372
        %v463 = vunpack.c.h.b16 %v372
        %v464 = vunpack.c.l.b16 %v373
        %v465 = vunpack.c.h.b16 %v373
        %v466 = vpack.c.b16 %v464, %v462
        %v467 = vpack.c.b16 %v465, %v463
        %v534 = vunpack.c.l.b16 %v374
        %v535 = vunpack.c.h.b16 %v374
        %v536 = vunpack.c.l.b16 %v375
        %v537 = vunpack.c.h.b16 %v375
        %v538 = vunpack.c.l.b16 %v376
        %v539 = vunpack.c.h.b16 %v376
        %v540 = vunpack.c.l.b16 %v377
        %v541 = vunpack.c.h.b16 %v377
        %v542 = vunpack.c.l.b16 %v378
        %v543 = vunpack.c.h.b16 %v378
        %v544 = vunpack.c.l.b16 %v379
        %v545 = vunpack.c.h.b16 %v379
        %v546 = vunpack.c.l.b16 %v380
        %v547 = vunpack.c.h.b16 %v380
        %v548 = vunpack.c.l.b16 %v381
        %v549 = vunpack.c.h.b16 %v381
        %v550 = vunpack.c.l.b16 %v382
        %v551 = vunpack.c.h.b16 %v382
        %v552 = vunpack.c.l.b16 %v383
        %v553 = vunpack.c.h.b16 %v383
        %v554 = vunpack.c.l.b16 %v384
        %v555 = vunpack.c.h.b16 %v384
        %v556 = vunpack.c.l.b16 %v385
        %v557 = vunpack.c.h.b16 %v385
        %v558 = vunpack.c.l.b16 %v386
        %v559 = vunpack.c.h.b16 %v386
        %v560 = vunpack.c.l.b16 %v387
        %v561 = vunpack.c.h.b16 %v387
        %v562 = vunpack.c.l.b16 %v388
        %v563 = vunpack.c.h.b16 %v388
        %v564 = vunpack.c.l.b16 %v389
        %v565 = vunpack.c.h.b16 %v389
        %v566 = vunpack.c.l.b16 %v390
        %v567 = vunpack.c.h.b16 %v390
        %v568 = vunpack.c.l.b16 %v391
        %v569 = vunpack.c.h.b16 %v391
        %v570 = vunpack.c.l.b16 %v392
        %v571 = vunpack.c.h.b16 %v392
        %v572 = vunpack.c.l.b16 %v393
        %v573 = vunpack.c.h.b16 %v393
        %v574 = vunpack.c.l.b16 %v394
        %v575 = vunpack.c.h.b16 %v394
        %v576 = vunpack.c.l.b16 %v395
        %v577 = vunpack.c.h.b16 %v395
        %v578 = vunpack.c.l.b16 %v396
        %v579 = vunpack.c.h.b16 %v396
        %v580 = vunpack.c.l.b16 %v397
        %v581 = vunpack.c.h.b16 %v397
        %v582 = vunpack.c.l.b16 %v398
        %v583 = vunpack.c.h.b16 %v398
        %v584 = vunpack.c.l.b16 %v399
        %v585 = vunpack.c.h.b16 %v399
        %v586 = vunpack.c.l.b16 %v400
        %v587 = vunpack.c.h.b16 %v400
        %v588 = vunpack.c.l.b16 %v401
        %v589 = vunpack.c.h.b16 %v401
        %v590 = vunpack.c.l.b16 %v402
        %v591 = vunpack.c.h.b16 %v402
        %v592 = vunpack.c.l.b16 %v403
        %v593 = vunpack.c.h.b16 %v403
        %v594 = vunpack.c.l.b16 %v404
        %v595 = vunpack.c.h.b16 %v404
        %v596 = vunpack.c.l.b16 %v405
        %v597 = vunpack.c.h.b16 %v405
        %v598 = vunpack.c.l.b16 %v406
        %v599 = vunpack.c.h.b16 %v406
        %v600 = vunpack.c.l.b16 %v407
        %v601 = vunpack.c.h.b16 %v407
        %v602 = vunpack.c.l.b16 %v408
        %v603 = vunpack.c.h.b16 %v408
        %v604 = vunpack.c.l.b16 %v409
        %v605 = vunpack.c.h.b16 %v409
        %v606 = vunpack.c.l.b16 %v410
        %v607 = vunpack.c.h.b16 %v410
        %v608 = vunpack.c.l.b16 %v411
        %v609 = vunpack.c.h.b16 %v411
        %v610 = vunpack.c.l.b16 %v412
        %v611 = vunpack.c.h.b16 %v412
        %v612 = vunpack.c.l.b16 %v413
        %v613 = vunpack.c.h.b16 %v413
        %v614 = vunpack.c.l.b16 %v414
        %v615 = vunpack.c.h.b16 %v414
        %v616 = vunpack.c.l.b16 %v415
        %v617 = vunpack.c.h.b16 %v415
        %v618 = vunpack.c.l.b16 %v416
        %v619 = vunpack.c.h.b16 %v416
        %v620 = vunpack.c.l.b16 %v417
        %v621 = vunpack.c.h.b16 %v417
        %v622 = vunpack.c.l.b16 %v418
        %v623 = vunpack.c.h.b16 %v418
        %v624 = vunpack.c.l.b16 %v419
        %v625 = vunpack.c.h.b16 %v419
        %v626 = vunpack.c.l.b16 %v420
        %v627 = vunpack.c.h.b16 %v420
        %v628 = vunpack.c.l.b16 %v421
        %v629 = vunpack.c.h.b16 %v421
        %v630 = vunpack.c.l.b16 %v422
        %v631 = vunpack.c.h.b16 %v422
        %v632 = vunpack.c.l.b16 %v423
        %v633 = vunpack.c.h.b16 %v423
        %v634 = vunpack.c.l.b16 %v424
        %v635 = vunpack.c.h.b16 %v424
        %v636 = vunpack.c.l.b16 %v425
        %v637 = vunpack.c.h.b16 %v425
        %v638 = vunpack.c.l.b16 %v426
        %v639 = vunpack.c.h.b16 %v426
        %v640 = vunpack.c.l.b16 %v427
        %v641 = vunpack.c.h.b16 %v427
        %v642 = vunpack.c.l.b16 %v428
        %v643 = vunpack.c.h.b16 %v428
        %v644 = vunpack.c.l.b16 %v429
        %v645 = vunpack.c.h.b16 %v429
        %v646 = vunpack.c.l.b16 %v430
        %v647 = vunpack.c.h.b16 %v430
        %v648 = vunpack.c.l.b16 %v431
        %v649 = vunpack.c.h.b16 %v431
        %v650 = vunpack.c.l.b16 %v432
        %v651 = vunpack.c.h.b16 %v432
        %v652 = vunpack.c.l.b16 %v433
        %v653 = vunpack.c.h.b16 %v433
        %v654 = vunpack.c.l.b16 %v434
        %v655 = vunpack.c.h.b16 %v434
        %v656 = vunpack.c.l.b16 %v435
        %v657 = vunpack.c.h.b16 %v435
        %v658 = vunpack.c.l.b16 %v436
        %v659 = vunpack.c.h.b16 %v436
        %v660 = vunpack.c.l.b16 %v437
        %v661 = vunpack.c.h.b16 %v437
        %v662 = vpack.c.b16 %v538, %v534
        %v663 = vpack.c.b16 %v539, %v535
        %v664 = vpack.c.b16 %v540, %v536
        %v665 = vpack.c.b16 %v541, %v537
        %v666 = vpack.c.b16 %v546, %v542
        %v667 = vpack.c.b16 %v547, %v543
        %v668 = vpack.c.b16 %v548, %v544
        %v669 = vpack.c.b16 %v549, %v545
        %v670 = vpack.c.b16 %v554, %v550
        %v671 = vpack.c.b16 %v555, %v551
        %v672 = vpack.c.b16 %v556, %v552
        %v673 = vpack.c.b16 %v557, %v553
        %v674 = vpack.c.b16 %v562, %v558
        %v675 = vpack.c.b16 %v563, %v559
        %v676 = vpack.c.b16 %v564, %v560
        %v677 = vpack.c.b16 %v565, %v561
        %v678 = vpack.c.b16 %v570, %v566
        %v679 = vpack.c.b16 %v571, %v567
        %v680 = vpack.c.b16 %v572, %v568
        %v681 = vpack.c.b16 %v573, %v569
        %v682 = vpack.c.b16 %v578, %v574
        %v683 = vpack.c.b16 %v579, %v575
        %v684 = vpack.c.b16 %v580, %v576
        %v685 = vpack.c.b16 %v581, %v577
        %v686 = vpack.c.b16 %v586, %v582
        %v687 = vpack.c.b16 %v587, %v583
        %v688 = vpack.c.b16 %v588, %v584
        %v689 = vpack.c.b16 %v589, %v585
        %v690 = vpack.c.b16 %v594, %v590
        %v691 = vpack.c.b16 %v595, %v591
        %v692 = vpack.c.b16 %v596, %v592
        %v693 = vpack.c.b16 %v597, %v593
        %v694 = vpack.c.b16 %v602, %v598
        %v695 = vpack.c.b16 %v603, %v599
        %v696 = vpack.c.b16 %v604, %v600
        %v697 = vpack.c.b16 %v605, %v601
        %v698 = vpack.c.b16 %v610, %v606
        %v699 = vpack.c.b16 %v611, %v607
        %v700 = vpack.c.b16 %v612, %v608
        %v701 = vpack.c.b16 %v613, %v609
        %v702 = vpack.c.b16 %v618, %v614
        %v703 = vpack.c.b16 %v619, %v615
        %v704 = vpack.c.b16 %v620, %v616
        %v705 = vpack.c.b16 %v621, %v617
        %v706 = vpack.c.b16 %v626, %v622
        %v707 = vpack.c.b16 %v627, %v623
        %v708 = vpack.c.b16 %v628, %v624
        %v709 = vpack.c.b16 %v629, %v625
        %v710 = vpack.c.b16 %v634, %v630
        %v711 = vpack.c.b16 %v635, %v631
        %v712 = vpack.c.b16 %v636, %v632
        %v713 = vpack.c.b16 %v637, %v633
        %v714 = vpack.c.b16 %v642, %v638
        %v715 = vpack.c.b16 %v643, %v639
        %v716 = vpack.c.b16 %v644, %v640
        %v717 = vpack.c.b16 %v645, %v641
        %v718 = vpack.c.b16 %v650, %v646
        %v719 = vpack.c.b16 %v651, %v647
        %v720 = vpack.c.b16 %v652, %v648
        %v721 = vpack.c.b16 %v653, %v649
        %v722 = vpack.c.b16 %v658, %v654
        %v723 = vpack.c.b16 %v659, %v655
        %v724 = vpack.c.b16 %v660, %v656
        %v725 = vpack.c.b16 %v661, %v657
        %790 = vmatprep.subr.bf16.mxu0 %v663
        %791 = vmatpush1.bf16.msra.mxu0 %v662
        %792 = vmatprep.subr.bf16.mxu0 %v667
        %793 = vmatpush1.bf16.msra.mxu0 %v666
        %794 = vmatprep.subr.bf16.mxu0 %v671
        %795 = vmatpush1.bf16.msra.mxu0 %v670
        %796 = vmatprep.subr.bf16.mxu0 %v675
        %797 = vmatpush1.bf16.msra.mxu0 %v674
        %798 = vmatprep.subr.bf16.mxu0 %v679
        %799 = vmatpush1.bf16.msra.mxu0 %v678
        %800 = vmatprep.subr.bf16.mxu0 %v683
        %801 = vmatpush1.bf16.msra.mxu0 %v682
        %802 = vmatprep.subr.bf16.mxu0 %v687
        %803 = vmatpush1.bf16.msra.mxu0 %v686
        %804 = vmatprep.subr.bf16.mxu0 %v691
        %805 = vmatpush1.bf16.msra.mxu0 %v690
        %806 = vmatprep.subr.bf16.mxu0 %v695
        %807 = vmatpush1.bf16.msra.mxu0 %v694
        %808 = vmatprep.subr.bf16.mxu0 %v699
        %809 = vmatpush1.bf16.msra.mxu0 %v698
        %810 = vmatprep.subr.bf16.mxu0 %v703
        %811 = vmatpush1.bf16.msra.mxu0 %v702
        %812 = vmatprep.subr.bf16.mxu0 %v707
        %813 = vmatpush1.bf16.msra.mxu0 %v706
        %814 = vmatprep.subr.bf16.mxu0 %v711
        %815 = vmatpush1.bf16.msra.mxu0 %v710
        %816 = vmatprep.subr.bf16.mxu0 %v715
        %817 = vmatpush1.bf16.msra.mxu0 %v714
        %818 = vmatprep.subr.bf16.mxu0 %v719
        %819 = vmatpush1.bf16.msra.mxu0 %v718
        %820 = vmatprep.subr.bf16.mxu0 %v723
        %821 = vmatpush1.bf16.msra.mxu0 %v722
        %822 = vmatprep.mubr.bf16.mxu0 %v467
        %823 = vmatmul.mubr.bf16.gmra.mrb[0].mxu0 %v466
        %v824 = vpop.f32.mrb[0].mxu0
        %v825 = vadd.f32 %v443, %v824
        %v826 = vpop.f32.mrb[0].mxu0
        %v827 = vadd.f32 %v447, %v826
        %v828 = vpop.f32.mrb[0].mxu0
        %v829 = vadd.f32 %v443, %v828
        %v830 = vpop.f32.mrb[0].mxu0
        %v831 = vadd.f32 %v447, %v830
        %832 = vdwg.mxu0
        %833 = vmatprep.subr.bf16.mxu0 %v665
        %834 = vmatpush1.bf16.msra.mxu0 %v664
        %835 = vmatprep.subr.bf16.mxu0 %v669
        %836 = vmatpush1.bf16.msra.mxu0 %v668
        %837 = vmatprep.subr.bf16.mxu0 %v673
        %838 = vmatpush1.bf16.msra.mxu0 %v672
        %839 = vmatprep.subr.bf16.mxu0 %v677
        %840 = vmatpush1.bf16.msra.mxu0 %v676
        %841 = vmatprep.subr.bf16.mxu0 %v681
        %842 = vmatpush1.bf16.msra.mxu0 %v680
        %843 = vmatprep.subr.bf16.mxu0 %v685
        %844 = vmatpush1.bf16.msra.mxu0 %v684
        %845 = vmatprep.subr.bf16.mxu0 %v689
        %846 = vmatpush1.bf16.msra.mxu0 %v688
        %847 = vmatprep.subr.bf16.mxu0 %v693
        %848 = vmatpush1.bf16.msra.mxu0 %v692
        %849 = vmatprep.subr.bf16.mxu0 %v697
        %850 = vmatpush1.bf16.msra.mxu0 %v696
        %851 = vmatprep.subr.bf16.mxu0 %v701
        %852 = vmatpush1.bf16.msra.mxu0 %v700
        %853 = vmatprep.subr.bf16.mxu0 %v705
        %854 = vmatpush1.bf16.msra.mxu0 %v704
        %855 = vmatprep.subr.bf16.mxu0 %v709
        %856 = vmatpush1.bf16.msra.mxu0 %v708
        %857 = vmatprep.subr.bf16.mxu0 %v713
        %858 = vmatpush1.bf16.msra.mxu0 %v712
        %859 = vmatprep.subr.bf16.mxu0 %v717
        %860 = vmatpush1.bf16.msra.mxu0 %v716
        %861 = vmatprep.subr.bf16.mxu0 %v721
        %862 = vmatpush1.bf16.msra.mxu0 %v720
        %863 = vmatprep.subr.bf16.mxu0 %v725
        %864 = vmatpush1.bf16.msra.mxu0 %v724
        %865 = vmatprep.mubr.bf16.mxu0 %v467
        %866 = vmatmul.mubr.bf16.gmra.mrb[0].mxu0 %v466
        %v867 = vpop.f32.mrb[0].mxu0
        %v868 = vadd.f32 %v451, %v867
        %v869 = vpop.f32.mrb[0].mxu0
        %v870 = vadd.f32 %v455, %v869
        %v871 = vpop.f32.mrb[0].mxu0
        %v872 = vadd.f32 %v451, %v871
        %v873 = vpop.f32.mrb[0].mxu0
        %v874 = vadd.f32 %v455, %v873
        %875 = vdwg.mxu0
        %v876 = vmul.f32 %v825, 0.5
        %v877 = vmul.f32 %v827, 0.5
        %v878 = vmul.f32 %v868, 0.5
        %v879 = vmul.f32 %v870, 0.5
        %v880 = vmul.f32 %v829, 0.5
        %v881 = vmul.f32 %v831, 0.5
        %v882 = vmul.f32 %v872, 0.5
        %v883 = vmul.f32 %v874, 0.5
        %v884 = vmul.f32 %v825, 0.044715
        %v885 = vmul.f32 %v827, 0.044715
        %v886 = vmul.f32 %v868, 0.044715
        %v887 = vmul.f32 %v870, 0.044715
        %v888 = vmul.f32 %v829, 0.044715
        %v889 = vmul.f32 %v831, 0.044715
        %v890 = vmul.f32 %v872, 0.044715
        %v891 = vmul.f32 %v874, 0.044715
        %v892 = vmul.f32 %v884, %v825
        %v893 = vmul.f32 %v885, %v827
        %v894 = vmul.f32 %v886, %v868
        %v895 = vmul.f32 %v887, %v870
        %v896 = vmul.f32 %v888, %v829
        %v897 = vmul.f32 %v889, %v831
        %v898 = vmul.f32 %v890, %v872
        %v899 = vmul.f32 %v891, %v874
        %v900 = vmul.f32 %v892, %v825
        %v901 = vmul.f32 %v893, %v827
        %v902 = vmul.f32 %v894, %v868
        %v903 = vmul.f32 %v895, %v870
        %v904 = vmul.f32 %v896, %v829
        %v905 = vmul.f32 %v897, %v831
        %v906 = vmul.f32 %v898, %v872
        %v907 = vmul.f32 %v899, %v874
        %v908 = vadd.f32 %v825, %v900
        %v909 = vadd.f32 %v827, %v901
        %v910 = vadd.f32 %v868, %v902
        %v911 = vadd.f32 %v870, %v903
        %v912 = vadd.f32 %v829, %v904
        %v913 = vadd.f32 %v831, %v905
        %v914 = vadd.f32 %v872, %v906
        %v915 = vadd.f32 %v874, %v907
        %v916 = vmul.f32 %v908, 0.7978846
        %v917 = vmul.f32 %v909, 0.7978846
        %v918 = vmul.f32 %v910, 0.7978846
        %v919 = vmul.f32 %v911, 0.7978846
        %v920 = vmul.f32 %v912, 0.7978846
        %v921 = vmul.f32 %v913, 0.7978846
        %v922 = vmul.f32 %v914, 0.7978846
        %v923 = vmul.f32 %v915, 0.7978846
        %v924 = vtanh.pop %v916
        %v925 = vtanh.pop %v917
        %v926 = vtanh.pop %v918
        %v927 = vtanh.pop %v919
        %v928 = vtanh.pop %v920
        %v929 = vtanh.pop %v921
        %v930 = vtanh.pop %v922
        %v931 = vtanh.pop %v923
        %v932 = vadd.f32 %v924, 1.0
        %v933 = vadd.f32 %v925, 1.0
        %v934 = vadd.f32 %v926, 1.0
        %v935 = vadd.f32 %v927, 1.0
        %v936 = vadd.f32 %v928, 1.0
        %v937 = vadd.f32 %v929, 1.0
        %v938 = vadd.f32 %v930, 1.0
        %v939 = vadd.f32 %v931, 1.0
        %v940 = vmul.f32 %v876, %v932
        %v941 = vmul.f32 %v877, %v933
        %v942 = vmul.f32 %v878, %v934
        %v943 = vmul.f32 %v879, %v935
        %v944 = vmul.f32 %v880, %v936
        %v945 = vmul.f32 %v881, %v937
        %v946 = vmul.f32 %v882, %v938
        %v947 = vmul.f32 %v883, %v939
        %v948 = vpack.c.bf16 %v944, %v940
        %v949 = vpack.c.bf16 %v945, %v941
        %v950 = vpack.c.bf16 %v946, %v942
        %v951 = vpack.c.bf16 %v947, %v943
        %v956 = vunpack.c.l.b16 %v948
        %v957 = vunpack.c.l.b16 %v949
        %v958 = vunpack.c.l.b16 %v950
        %v959 = vunpack.c.l.b16 %v951
        %v960 = vunpack.c.h.b16 %v948
        %v961 = vunpack.c.h.b16 %v949
        %v962 = vunpack.c.h.b16 %v950
        %v963 = vunpack.c.h.b16 %v951
        %v964 = vpack.c.b16 %v957, %v956
        %v965 = vpack.c.b16 %v959, %v958
        %v966 = vpack.c.b16 %v961, %v960
        %v967 = vpack.c.b16 %v963, %v962
        %972 = vst [vmem:[%s356] sm:$0xff] %v964
        %973 = vst [vmem:[%s356 + $0x8] sm:$0xff] %v965
        %974 = vst [vmem:[%s356 + $0x10] sm:$0xff] %v966
        %975 = vst [vmem:[%s356 + $0x18] sm:$0xff] %v967
        %s976 = sand.u32 %s114, 1
        %s977 = sand.u32 %s114, 1
        %s978 = smul.addr %s977, 32
        %s979 = scalar_lea.vmem [#allocation3], %s978
        // Predicated region
        $region56: #{_lambda_.17} parent=50 // pred_check
          %p980 = pneg %p124
        $region57: #{_lambda_.17} parent=50 // pred_check_branch
          %982 = sbr.rel (%p980) target = $region59
        $region58: #{_lambda_.17} parent=50 // pred_region
          %s983 = smul.u32 2, %s18
          %s984 = smul.u32 4, %s19
          %s985 = smul.addr %s983, 8
          %s986 = sadd.s32 %s984, %s985
          %s987 = smul.addr %s986, 4
          %s988 = scalar_lea.vmem %s3, %s987
          // Predicated region
          $region60: #{_lambda_.17} parent=58 // pred_check
            _
          $region61: #{_lambda_.17} parent=58 // pred_check_branch
            %990 = sbr.rel (0) target = $region63
          $region62: #{_lambda_.17} parent=58 // pred_region
            // Predicated region
            $region64: #{_lambda_.17} parent=62 // pred_check
              _
            $region65: #{_lambda_.17} parent=62 // pred_check_branch
              %992 = sbr.rel (0) target = $region67
            $region66: #{_lambda_.17} parent=62 // pred_region
              loop: start=0, step=1, limit=1
              $region68: #{_lambda_.17} parent=66 // loop_pre_header
                _
              $region69: #{_lambda_.17} parent=66 // loop_header
                %s994 = sphi 0, %s998
                %p995 = scmp.ge.s32.totalorder %s994, 1
                %s999 = sphi %s979, %s979
                %s1000 = sphi %s988, %s988
              $region70: #{_lambda_.17} parent=66 // loop_header_branch
                %997 = sbr.rel (%p995) target = $region74
              $region71: #{_lambda_.17} parent=66 // loop_body
                %v1001 = vld [vmem:[%s999] sm:$0xff]
                %1002 = vst [vmem:[%s1000] sm:$0xff] %v1001
                %v1003 = vld [vmem:[%s999 + $0x8] sm:$0xff]
                %1004 = vst [vmem:[%s1000 + $0x8] sm:$0xff] %v1003
                %v1005 = vld [vmem:[%s999 + $0x10] sm:$0xff]
                %1006 = vst [vmem:[%s1000 + $0x20] sm:$0xff] %v1005
                %v1007 = vld [vmem:[%s999 + $0x18] sm:$0xff]
                %1008 = vst [vmem:[%s1000 + $0x28] sm:$0xff] %v1007
              $region72: #{_lambda_.17} parent=66 // loop_footer
                %s998 = sadd.s32 1, %s994
              $region73: #{_lambda_.17} parent=66 // loop_footer_branch
                %993 = sbr.rel target = $region69
              $region74: #{_lambda_.17} parent=66 // loop_exit
                _
            $region67: #{_lambda_.17} parent=62 // pred_fallthru
              _
            // Predicated region
            $region75: #{_lambda_.17} parent=62 // pred_check
              _
            $region76: #{_lambda_.17} parent=62 // pred_check_branch
              %1010 = sbr.rel target = $region78
            $region77: #{_lambda_.17} parent=62 // pred_region
              _
            $region78: #{_lambda_.17} parent=62 // pred_fallthru
              _
          $region63: #{_lambda_.17} parent=58 // pred_fallthru
            _
          %1011 = vnop
        $region59: #{_lambda_.17} parent=50 // pred_fallthru
          _
      $region51: #{_lambda_.17} parent=5 // pred_fallthru
        _
      %p1012 = scmp.le.s32.totalorder 2, %s9
      // Predicated region
      $region79: #{_lambda_.17} parent=5 // pred_check
        %p1013 = pneg %p1012
      $region80: #{_lambda_.17} parent=5 // pred_check_branch
        %1015 = sbr.rel (%p1013) target = $region82
      $region81: #{_lambda_.17} parent=5 // pred_region
        %s1016 = ssub.s32 %s9, 2
        // Predicated region
        $region83: #{_lambda_.17} parent=81 // pred_check
          %p1017 = pneg %p130
        $region84: #{_lambda_.17} parent=81 // pred_check_branch
          %1019 = sbr.rel (%p1017) target = $region86
        $region85: #{_lambda_.17} parent=81 // pred_region
          %s1020 = sand.u32 %s115, 1
          %s1021 = sand.u32 %s115, 1
          %s1022 = smul.addr %s1021, 32
          %s1023 = scalar_lea.vmem [#allocation3], %s1022
        $region86: #{_lambda_.17} parent=81 // pred_fallthru
          _
      $region82: #{_lambda_.17} parent=5 // pred_fallthru
        _
    $region6: #{_lambda_.17} parent=1 // loop_footer
      %s13 = sadd.s32 1, %s9
    $region7: #{_lambda_.17} parent=1 // loop_footer_branch
      %8 = sbr.rel target = $region3
    $region8: #{_lambda_.17} parent=1 // loop_exit
      _

// kernel: _lambda_.25
$region0: #{_lambda_.25}
  #allocation0 [shape = 'u32[]', space=smem, size = 0x4, offset = 0x4, fixed_abs, tag = 'smem constant byte address 0x4 - core index']
  #allocation1 [shape = 'u32[144,128]{1,0:T(1,128)}', space=vmem, size = 0x12000, scoped, tag = 'internal scratch']
  %s0 = inlined_call_operand.vmem [shape: bf16[32,1024], index: 0, kind: input, shape index: {}]
  %s1 = inlined_call_operand.vmem [shape: f32[32,1], index: 1, kind: input, shape index: {}]
  %s2 = inlined_call_operand.hbm [shape: bf16[32,1024], index: 2, kind: output, shape index: {}]
  %s3 = sld [smem:[#allocation0]]
  $region64: #{_lambda_.25} parent=0
    _
  %s5 = ssub.s32 1, %s3
  %s6 = scalar_select 0, %s5, %s3
  $region1: #{_lambda_.25} parent=0
    #allocation2 [shape = 'u8[32768]{0}', space=vmem, size = 0x8000, scoped, tag = 'input window, operand 0']
    #allocation3 [shape = 'u8[32768]{0}', space=vmem, size = 0x8000, scoped, tag = 'output window, operand 0']
    #allocation4 [shape = 's32[2]{0}', space=sflag, size = 0x8, scoped, tag = 'scoped memory for _lambda_.25']
    %7 = vsyncpa [#allocation4], 0
    %s8 = scalar_lea.sflag [#allocation4], 1
    %9 = vsyncpa %s8, 0
    loop: start=0, step=1, limit=6
    $region2: #{_lambda_.25} parent=1 // loop_pre_header
      _
    $region3: #{_lambda_.25} parent=1 // loop_header
      %s11 = sphi 0, %s15
      %p12 = scmp.ge.s32.totalorder %s11, 6
      %s18 = sphi 0, %s30
      %s19 = sphi 0, %s26
      %s20 = sphi 0, %s18
      %s21 = sphi 0, %s19
      %s22 = sphi 0, %s20
      %s23 = sphi 0, %s21
      %s35 = sphi 0, %s37
      %s38 = sphi 0, %s35
      %s39 = sphi 0, %s38
      %s55 = sphi 0, %s39
      %s61 = sphi 0, %s63
      %s64 = sphi 0, %s61
      %s65 = sphi 0, %s64
      %s81 = sphi 0, %s65
      %s89 = sphi 0, %s91
      %s92 = sphi 0, %s89
      %s93 = sphi 0, %s92
      %s109 = sphi 0, %s93
    $region4: #{_lambda_.25} parent=1 // loop_header_branch
      %14 = sbr.rel (%p12) target = $region8
    $region5: #{_lambda_.25} parent=1 // loop_body
      %s16 = ssub.s32 %s11, 1
      %s17 = ssub.s32 %s11, 2
      %s24 = sadd.s32 1, %s19
      %p25 = scmp.ge.s32.totalorder %s24, 2
      %s26 = scalar_select %p25, 0, %s24
      %s27 = sadd.s32 1, %s18
      %s28 = scalar_select %p25, %s27, %s18
      %p29 = scmp.ge.s32.totalorder %s28, 2
      %s30 = scalar_select %p29, 0, %s28
      %s31 = ssub.s32 %s18, %s30
      %s32 = ssub.s32 %s19, %s26
      %s33 = sor.u32 %s31, %s32
      %p34 = scmp.eq.s32.totalorder %s33, 0
      %s36 = sadd.s32 %s35, 1
      %s37 = scalar_select %p34, %s35, %s36
      %p40 = pneg %p34
      %p41 = scmp.eq.s32.totalorder %s11, 3
      %p42 = por %p40, %p41
      %p43 = scmp.ne.s32.totalorder %s35, %s38
      %p44 = scmp.eq.s32.totalorder %s11, 0
      %p45 = por %p43, %p44
      %p46 = scmp.ne.s32.totalorder %s35, %s38
      %p47 = scmp.eq.s32.totalorder %s16, 3
      %p48 = por %p46, %p47
      %p49 = scmp.ne.s32.totalorder %s38, %s39
      %p50 = scmp.eq.s32.totalorder %s16, 0
      %p51 = por %p49, %p50
      %p52 = scmp.ne.s32.totalorder %s38, %s39
      %p53 = scmp.eq.s32.totalorder %s17, 3
      %p54 = por %p52, %p53
      %p56 = scmp.ne.s32.totalorder %s39, %s55
      %p57 = scmp.eq.s32.totalorder %s17, 0
      %p58 = por %p56, %p57
      %s59 = ssub.s32 %s18, %s30
      %p60 = scmp.eq.s32.totalorder %s59, 0
      %s62 = sadd.s32 %s61, 1
      %s63 = scalar_select %p60, %s61, %s62
      %p66 = pneg %p60
      %p67 = scmp.eq.s32.totalorder %s11, 3
      %p68 = por %p66, %p67
      %p69 = scmp.ne.s32.totalorder %s61, %s64
      %p70 = scmp.eq.s32.totalorder %s11, 0
      %p71 = por %p69, %p70
      %p72 = scmp.ne.s32.totalorder %s61, %s64
      %p73 = scmp.eq.s32.totalorder %s16, 3
      %p74 = por %p72, %p73
      %p75 = scmp.ne.s32.totalorder %s64, %s65
      %p76 = scmp.eq.s32.totalorder %s16, 0
      %p77 = por %p75, %p76
      %p78 = scmp.ne.s32.totalorder %s64, %s65
      %p79 = scmp.eq.s32.totalorder %s17, 3
      %p80 = por %p78, %p79
      %p82 = scmp.ne.s32.totalorder %s65, %s81
      %p83 = scmp.eq.s32.totalorder %s17, 0
      %p84 = por %p82, %p83
      %s85 = ssub.s32 %s18, %s30
      %s86 = ssub.s32 %s19, %s26
      %s87 = sor.u32 %s85, %s86
      %p88 = scmp.eq.s32.totalorder %s87, 0
      %s90 = sadd.s32 %s89, 1
      %s91 = scalar_select %p88, %s89, %s90
      %p94 = pneg %p88
      %p95 = scmp.eq.s32.totalorder %s11, 3
      %p96 = por %p94, %p95
      %p97 = scmp.ne.s32.totalorder %s89, %s92
      %p98 = scmp.eq.s32.totalorder %s11, 0
      %p99 = por %p97, %p98
      %p100 = scmp.ne.s32.totalorder %s89, %s92
      %p101 = scmp.eq.s32.totalorder %s16, 3
      %p102 = por %p100, %p101
      %p103 = scmp.ne.s32.totalorder %s92, %s93
      %p104 = scmp.eq.s32.totalorder %s16, 0
      %p105 = por %p103, %p104
      %p106 = scmp.ne.s32.totalorder %s92, %s93
      %p107 = scmp.eq.s32.totalorder %s17, 3
      %p108 = por %p106, %p107
      %p110 = scmp.ne.s32.totalorder %s93, %s109
      %p111 = scmp.eq.s32.totalorder %s17, 0
      %p112 = por %p110, %p111
      %p113 = scmp.le.s32.totalorder 1, %s11
      %p114 = scmp.lt.s32.totalorder %s11, 5
      %p115 = pnand %p113, %p114
      %p116 = pneg %p115
      // Predicated region
      $region9: #{_lambda_.25} parent=5 // pred_check
        _
      $region10: #{_lambda_.25} parent=5 // pred_check_branch
        %118 = sbr.rel (%p115) target = $region12
      $region11: #{_lambda_.25} parent=5 // pred_region
        %s119 = ssub.s32 %s11, 1
      $region12: #{_lambda_.25} parent=5 // pred_fallthru
        _
      %p120 = scmp.lt.s32.totalorder %s11, 4
      // Predicated region
      $region13: #{_lambda_.25} parent=5 // pred_check
        %p121 = pneg %p120
      $region14: #{_lambda_.25} parent=5 // pred_check_branch
        %123 = sbr.rel (%p121) target = $region16
      $region15: #{_lambda_.25} parent=5 // pred_region
        // Predicated region
        $region17: #{_lambda_.25} parent=15 // pred_check
          %p124 = pneg %p45
        $region18: #{_lambda_.25} parent=15 // pred_check_branch
          %126 = sbr.rel (%p124) target = $region20
        $region19: #{_lambda_.25} parent=15 // pred_region
          %s127 = sand.u32 %s35, 1
          %s128 = sand.u32 %s35, 1
          %s129 = smul.addr %s128, 32
          %s130 = scalar_lea.vmem [#allocation2], %s129
          %s131 = smul.u32 2, %s18
          %s132 = smul.u32 4, %s19
          %s133 = smul.addr %s131, 8
          %s134 = sadd.s32 %s132, %s133
          %s135 = smul.addr %s134, 4
          %s136 = scalar_lea.vmem %s0, %s135
          // Predicated region
          $region21: #{_lambda_.25} parent=19 // pred_check
            _
          $region22: #{_lambda_.25} parent=19 // pred_check_branch
            %138 = sbr.rel (0) target = $region24
          $region23: #{_lambda_.25} parent=19 // pred_region
            // Predicated region
            $region25: #{_lambda_.25} parent=23 // pred_check
              _
            $region26: #{_lambda_.25} parent=23 // pred_check_branch
              %140 = sbr.rel (0) target = $region28
            $region27: #{_lambda_.25} parent=23 // pred_region
              loop: start=0, step=1, limit=1
              $region29: #{_lambda_.25} parent=27 // loop_pre_header
                _
              $region30: #{_lambda_.25} parent=27 // loop_header
                %s142 = sphi 0, %s146
                %p143 = scmp.ge.s32.totalorder %s142, 1
                %s147 = sphi %s136, %s136
                %s148 = sphi %s130, %s130
              $region31: #{_lambda_.25} parent=27 // loop_header_branch
                %145 = sbr.rel (%p143) target = $region35
              $region32: #{_lambda_.25} parent=27 // loop_body
                %v149 = vld [vmem:[%s147] sm:$0xff]
                %150 = vst [vmem:[%s148] sm:$0xff] %v149
                %v151 = vld [vmem:[%s147 + $0x8] sm:$0xff]
                %152 = vst [vmem:[%s148 + $0x8] sm:$0xff] %v151
                %v153 = vld [vmem:[%s147 + $0x20] sm:$0xff]
                %154 = vst [vmem:[%s148 + $0x10] sm:$0xff] %v153
                %v155 = vld [vmem:[%s147 + $0x28] sm:$0xff]
                %156 = vst [vmem:[%s148 + $0x18] sm:$0xff] %v155
              $region33: #{_lambda_.25} parent=27 // loop_footer
                %s146 = sadd.s32 1, %s142
              $region34: #{_lambda_.25} parent=27 // loop_footer_branch
                %141 = sbr.rel target = $region30
              $region35: #{_lambda_.25} parent=27 // loop_exit
                _
            $region28: #{_lambda_.25} parent=23 // pred_fallthru
              _
            // Predicated region
            $region36: #{_lambda_.25} parent=23 // pred_check
              _
            $region37: #{_lambda_.25} parent=23 // pred_check_branch
              %158 = sbr.rel target = $region39
            $region38: #{_lambda_.25} parent=23 // pred_region
              _
            $region39: #{_lambda_.25} parent=23 // pred_fallthru
              _
          $region24: #{_lambda_.25} parent=19 // pred_fallthru
            _
          %159 = vnop
        $region20: #{_lambda_.25} parent=15 // pred_fallthru
          _
        // Predicated region
        $region40: #{_lambda_.25} parent=15 // pred_check
          %p160 = pneg %p71
        $region41: #{_lambda_.25} parent=15 // pred_check_branch
          %162 = sbr.rel (%p160) target = $region43
        $region42: #{_lambda_.25} parent=15 // pred_region
          %s163 = smul.u32 2, %s18
          %p164 = scmp.lt.s32.totalorder %s163, 3
          %s165 = scalar_select %p164, %s163, 3
          %s166 = smul.addr %s165, 8
          %s167 = scalar_lea.vmem %s1, %s166
          %s168 = smul.u32 2, %s18
        $region43: #{_lambda_.25} parent=15 // pred_fallthru
          _
      $region16: #{_lambda_.25} parent=5 // pred_fallthru
        _
      %p169 = scmp.le.s32.totalorder 1, %s11
      %p170 = scmp.lt.s32.totalorder %s11, 5
      %p171 = pnand %p169, %p170
      %p172 = pneg %p171
      // Predicated region
      $region44: #{_lambda_.25} parent=5 // pred_check
        _
      $region45: #{_lambda_.25} parent=5 // pred_check_branch
        %174 = sbr.rel (%p171) target = $region47
      $region46: #{_lambda_.25} parent=5 // pred_region
        %s175 = ssub.s32 %s11, 1
        %s176 = sand.u32 %s38, 1
        %s177 = sand.u32 %s38, 1
        %s178 = smul.addr %s177, 32
        %s179 = scalar_lea.vmem [#allocation2], %s178
        // Predicated region
        $region48: #{_lambda_.25} parent=46 // pred_check
          %p180 = pneg %p51
        $region49: #{_lambda_.25} parent=46 // pred_check_branch
          %182 = sbr.rel (%p180) target = $region51
        $region50: #{_lambda_.25} parent=46 // pred_region
          _
        $region51: #{_lambda_.25} parent=46 // pred_fallthru
          _
        %s183 = sand.u32 %s38, 1
        %s184 = sand.u32 %s38, 1
        %s185 = smul.addr %s184, 32
        %s186 = scalar_lea.vmem [#allocation2], %s185
        %p187 = pneg %p51
        %p188 = pneg %p48
        %s189 = smul.u32 2, %s20
        %p190 = scmp.lt.s32.totalorder %s189, 3
        %s191 = scalar_select %p190, %s189, 3
        %s192 = smul.addr %s191, 8
        %s193 = scalar_lea.vmem %s1, %s192
        %p194 = pneg %p77
        %p195 = pneg %p74
        %p196 = pneg %p105
        %p197 = pneg %p102
        %s198 = sand.u32 %s92, 1
        %s199 = scalar_lea.sflag [#allocation4], %s198
        %s200 = sand.u32 %s92, 1
        %s201 = smul.addr %s200, 32
        %s202 = scalar_lea.vmem [#allocation3], %s201
        %s203 = smul.u32 2, %s20
        %s204 = smul.u32 4, %s21
        %s205 = smul.u32 2, %s20
        %p206 = scmp.lt.s32.totalorder %s205, 3
        %s207 = scalar_select %p206, %s205, 3
        %s208 = smul.addr %s207, 8
        %s209 = scalar_lea.vmem %s1, %s208
        %s210 = smul.u32 2, %s20
        %s211 = smul.u32 2, %s20
        %s212 = smul.u32 4, %s21
        %v213 = vld [vmem:[%s179] sm:$0xff]
        %v214 = vld [vmem:[%s179 + $0x8] sm:$0xff]
        %v215 = vld [vmem:[%s179 + $0x10] sm:$0xff]
        %v216 = vld [vmem:[%s179 + $0x18] sm:$0xff]
        %v217 = vunpack.c.l.bf16 %v213
        %v218 = vunpack.c.h.bf16 %v213
        %v219 = vunpack.c.l.bf16 %v214
        %v220 = vunpack.c.h.bf16 %v214
        %v221 = vunpack.c.l.bf16 %v215
        %v222 = vunpack.c.h.bf16 %v215
        %v223 = vunpack.c.l.bf16 %v216
        %v224 = vunpack.c.h.bf16 %v216
        %v225 = vld [vmem:[%s209] sm:$0xff]
        %v226 = vld [vmem:[%s209 + $0x8] sm:$0xff]
        %228 = vset.pattern.permute.xlu0 0
        %229 = vperm.xlu0 %228, %v225
        %v230 = vpop.permute.xlu0 %229
        %233 = vset.pattern.permute.xlu0 0
        %234 = vperm.xlu0 %233, %v226
        %v235 = vpop.permute.xlu0 %234
        %v237 = vsub.f32 %v217, %v230
        %v238 = vsub.f32 %v218, %v230
        %v239 = vsub.f32 %v219, %v230
        %v240 = vsub.f32 %v220, %v230
        %v241 = vsub.f32 %v221, %v235
        %v242 = vsub.f32 %v222, %v235
        %v243 = vsub.f32 %v223, %v235
        %v244 = vsub.f32 %v224, %v235
        %v245 = vmul.f32 %v237, 1.442695
        %v246 = vpow.pop %v245
        %v247 = vmul.f32 %v238, 1.442695
        %v248 = vpow.pop %v247
        %v249 = vmul.f32 %v239, 1.442695
        %v250 = vpow.pop %v249
        %v251 = vmul.f32 %v240, 1.442695
        %v252 = vpow.pop %v251
        %v253 = vmul.f32 %v241, 1.442695
        %v254 = vpow.pop %v253
        %v255 = vmul.f32 %v242, 1.442695
        %v256 = vpow.pop %v255
        %v257 = vmul.f32 %v243, 1.442695
        %v258 = vpow.pop %v257
        %v259 = vmul.f32 %v244, 1.442695
        %v260 = vpow.pop %v259
        %v261 = vpack.c.bf16 %v254, %v246
        %v262 = vpack.c.bf16 %v256, %v248
        %v263 = vpack.c.bf16 %v258, %v250
        %v264 = vpack.c.bf16 %v260, %v252
        %v269 = vunpack.c.l.b16 %v261
        %v270 = vunpack.c.l.b16 %v262
        %v271 = vunpack.c.l.b16 %v263
        %v272 = vunpack.c.l.b16 %v264
        %v273 = vunpack.c.h.b16 %v261
        %v274 = vunpack.c.h.b16 %v262
        %v275 = vunpack.c.h.b16 %v263
        %v276 = vunpack.c.h.b16 %v264
        %v277 = vpack.c.b16 %v270, %v269
        %v278 = vpack.c.b16 %v272, %v271
        %v279 = vpack.c.b16 %v274, %v273
        %v280 = vpack.c.b16 %v276, %v275
        %285 = vst [vmem:[%s202] sm:$0xff] %v277
        %286 = vst [vmem:[%s202 + $0x8] sm:$0xff] %v278
        %287 = vst [vmem:[%s202 + $0x10] sm:$0xff] %v279
        %288 = vst [vmem:[%s202 + $0x18] sm:$0xff] %v280
        %s289 = sand.u32 %s92, 1
        %s290 = scalar_lea.sflag [#allocation4], %s289
        %s291 = sand.u32 %s92, 1
        %s292 = smul.addr %s291, 32
        %s293 = scalar_lea.vmem [#allocation3], %s292
        // Predicated region
        $region52: #{_lambda_.25} parent=46 // pred_check
          %p294 = pneg %p102
        $region53: #{_lambda_.25} parent=46 // pred_check_branch
          %296 = sbr.rel (%p294) target = $region55
        $region54: #{_lambda_.25} parent=46 // pred_region
          %s297 = smul.u32 2, %s20
          %s298 = smul.u32 4, %s21
          %s300 = ssub.s32 512, 512
          %301 = vsyncadd %s290, %s300
          %s302 = smul.addr %s297, 8
          %s303 = sadd.s32 %s298, %s302
          %s304 = smul.addr %s303, 64
          %s305 = scalar_lea.hbm %s2, %s304
          %s306 = sshll.u32 %s293, 4
          %s307 = int_to_ptr.vmem [resolvable:$true] %s306
          %312 = dma.vmem_to_hbm [thread:$0]  %s307, 512, %s305, %s290, 256, 512, 16
        $region55: #{_lambda_.25} parent=46 // pred_fallthru
          _
      $region47: #{_lambda_.25} parent=5 // pred_fallthru
        _
      %p313 = scmp.le.s32.totalorder 2, %s11
      // Predicated region
      $region56: #{_lambda_.25} parent=5 // pred_check
        %p314 = pneg %p313
      $region57: #{_lambda_.25} parent=5 // pred_check_branch
        %316 = sbr.rel (%p314) target = $region59
      $region58: #{_lambda_.25} parent=5 // pred_region
        %s317 = ssub.s32 %s11, 2
        // Predicated region
        $region60: #{_lambda_.25} parent=58 // pred_check
          %p318 = pneg %p108
        $region61: #{_lambda_.25} parent=58 // pred_check_branch
          %320 = sbr.rel (%p318) target = $region63
        $region62: #{_lambda_.25} parent=58 // pred_region
          %s321 = sand.u32 %s93, 1
          %s322 = scalar_lea.sflag [#allocation4], %s321
          %s323 = sand.u32 %s93, 1
          %s324 = smul.addr %s323, 32
          %s325 = scalar_lea.vmem [#allocation3], %s324
          %326 = dma.done %s322, 512
        $region63: #{_lambda_.25} parent=58 // pred_fallthru
          _
      $region59: #{_lambda_.25} parent=5 // pred_fallthru
        _
    $region6: #{_lambda_.25} parent=1 // loop_footer
      %s15 = sadd.s32 1, %s11
    $region7: #{_lambda_.25} parent=1 // loop_footer_branch
      %10 = sbr.rel target = $region3
    $region8: #{_lambda_.25} parent=1 // loop_exit
      _
    %327 = vsyncpa [#allocation4], 1
    %s328 = scalar_lea.sflag [#allocation4], 1
    %329 = vsyncpa %s328, 1

// kernel: _lambda_.24
$region0: #{_lambda_.24}
  #allocation0 [shape = 'u32[]', space=smem, size = 0x4, offset = 0x4, fixed_abs, tag = 'smem constant byte address 0x4 - core index']
  #allocation1 [shape = 'u32[144,128]{1,0:T(1,128)}', space=vmem, size = 0x12000, scoped, tag = 'internal scratch']
  #allocation2 [shape = 'f32[16,1]{1,0:T(8,128)}', space=vmem, size = 0x2000, scoped, tag = 'scratch operand']
  #allocation3 [shape = 'f32[16,1]{1,0:T(8,128)}', space=vmem, size = 0x2000, scoped, tag = 'scratch operand']
  %s0 = inlined_call_operand.vmem [shape: bf16[32,256], index: 0, kind: input, shape index: {}]
  %s1 = inlined_call_operand.vmem [shape: bf16[256,1024], index: 1, kind: input, shape index: {}]
  %s2 = inlined_call_operand.vmem [shape: f32[1,1024], index: 2, kind: input, shape index: {}]
  %s3 = inlined_call_operand.vmem [shape: bf16[32,1024], index: 3, kind: output, shape index: {0}]
  %s4 = inlined_call_operand.vmem [shape: f32[32,1], index: 4, kind: output, shape index: {1}]
  %5 = xla_tuple %s3, %s4
  %s6 = sld [smem:[#allocation0]]
  $region103: #{_lambda_.24} parent=0
    _
  %s8 = ssub.s32 1, %s6
  %s9 = scalar_select 0, %s8, %s6
  $region1: #{_lambda_.24} parent=0
    #allocation4 [shape = 'u8[524288]{0}', space=vmem, size = 0x80000, scoped, tag = 'input window, operand 1']
    #allocation5 [shape = 'u8[32768]{0}', space=vmem, size = 0x8000, scoped, tag = 'output window, operand 0']
    loop: start=0, step=1, limit=6
    $region2: #{_lambda_.24} parent=1 // loop_pre_header
      _
    $region3: #{_lambda_.24} parent=1 // loop_header
      %s11 = sphi 0, %s15
      %p12 = scmp.ge.s32.totalorder %s11, 6
      %s18 = sphi 0, %s30
      %s19 = sphi 0, %s26
      %s20 = sphi 0, %s18
      %s21 = sphi 0, %s19
      %s22 = sphi 0, %s20
      %s23 = sphi 0, %s21
      %s33 = sphi 0, %s35
      %s36 = sphi 0, %s33
      %s37 = sphi 0, %s36
      %s53 = sphi 0, %s37
      %s59 = sphi 0, %s61
      %s62 = sphi 0, %s59
      %s63 = sphi 0, %s62
      %s79 = sphi 0, %s63
      %s85 = sphi 0, %s87
      %s88 = sphi 0, %s85
      %s89 = sphi 0, %s88
      %s105 = sphi 0, %s89
      %s113 = sphi 0, %s115
      %s116 = sphi 0, %s113
      %s117 = sphi 0, %s116
      %s133 = sphi 0, %s117
      %s139 = sphi 0, %s141
      %s142 = sphi 0, %s139
      %s143 = sphi 0, %s142
      %s159 = sphi 0, %s143
    $region4: #{_lambda_.24} parent=1 // loop_header_branch
      %14 = sbr.rel (%p12) target = $region8
    $region5: #{_lambda_.24} parent=1 // loop_body
      %s16 = ssub.s32 %s11, 1
      %s17 = ssub.s32 %s11, 2
      %s24 = sadd.s32 1, %s19
      %p25 = scmp.ge.s32.totalorder %s24, 2
      %s26 = scalar_select %p25, 0, %s24
      %s27 = sadd.s32 1, %s18
      %s28 = scalar_select %p25, %s27, %s18
      %p29 = scmp.ge.s32.totalorder %s28, 2
      %s30 = scalar_select %p29, 0, %s28
      %s31 = ssub.s32 %s18, %s30
      %p32 = scmp.eq.s32.totalorder %s31, 0
      %s34 = sadd.s32 %s33, 1
      %s35 = scalar_select %p32, %s33, %s34
      %p38 = pneg %p32
      %p39 = scmp.eq.s32.totalorder %s11, 3
      %p40 = por %p38, %p39
      %p41 = scmp.ne.s32.totalorder %s33, %s36
      %p42 = scmp.eq.s32.totalorder %s11, 0
      %p43 = por %p41, %p42
      %p44 = scmp.ne.s32.totalorder %s33, %s36
      %p45 = scmp.eq.s32.totalorder %s16, 3
      %p46 = por %p44, %p45
      %p47 = scmp.ne.s32.totalorder %s36, %s37
      %p48 = scmp.eq.s32.totalorder %s16, 0
      %p49 = por %p47, %p48
      %p50 = scmp.ne.s32.totalorder %s36, %s37
      %p51 = scmp.eq.s32.totalorder %s17, 3
      %p52 = por %p50, %p51
      %p54 = scmp.ne.s32.totalorder %s37, %s53
      %p55 = scmp.eq.s32.totalorder %s17, 0
      %p56 = por %p54, %p55
      %s57 = ssub.s32 %s19, %s26
      %p58 = scmp.eq.s32.totalorder %s57, 0
      %s60 = sadd.s32 %s59, 1
      %s61 = scalar_select %p58, %s59, %s60
      %p64 = pneg %p58
      %p65 = scmp.eq.s32.totalorder %s11, 3
      %p66 = por %p64, %p65
      %p67 = scmp.ne.s32.totalorder %s59, %s62
      %p68 = scmp.eq.s32.totalorder %s11, 0
      %p69 = por %p67, %p68
      %p70 = scmp.ne.s32.totalorder %s59, %s62
      %p71 = scmp.eq.s32.totalorder %s16, 3
      %p72 = por %p70, %p71
      %p73 = scmp.ne.s32.totalorder %s62, %s63
      %p74 = scmp.eq.s32.totalorder %s16, 0
      %p75 = por %p73, %p74
      %p76 = scmp.ne.s32.totalorder %s62, %s63
      %p77 = scmp.eq.s32.totalorder %s17, 3
      %p78 = por %p76, %p77
      %p80 = scmp.ne.s32.totalorder %s63, %s79
      %p81 = scmp.eq.s32.totalorder %s17, 0
      %p82 = por %p80, %p81
      %s83 = ssub.s32 %s19, %s26
      %p84 = scmp.eq.s32.totalorder %s83, 0
      %s86 = sadd.s32 %s85, 1
      %s87 = scalar_select %p84, %s85, %s86
      %p90 = pneg %p84
      %p91 = scmp.eq.s32.totalorder %s11, 3
      %p92 = por %p90, %p91
      %p93 = scmp.ne.s32.totalorder %s85, %s88
      %p94 = scmp.eq.s32.totalorder %s11, 0
      %p95 = por %p93, %p94
      %p96 = scmp.ne.s32.totalorder %s85, %s88
      %p97 = scmp.eq.s32.totalorder %s16, 3
      %p98 = por %p96, %p97
      %p99 = scmp.ne.s32.totalorder %s88, %s89
      %p100 = scmp.eq.s32.totalorder %s16, 0
      %p101 = por %p99, %p100
      %p102 = scmp.ne.s32.totalorder %s88, %s89
      %p103 = scmp.eq.s32.totalorder %s17, 3
      %p104 = por %p102, %p103
      %p106 = scmp.ne.s32.totalorder %s89, %s105
      %p107 = scmp.eq.s32.totalorder %s17, 0
      %p108 = por %p106, %p107
      %s109 = ssub.s32 %s18, %s30
      %s110 = ssub.s32 %s19, %s26
      %s111 = sor.u32 %s109, %s110
      %p112 = scmp.eq.s32.totalorder %s111, 0
      %s114 = sadd.s32 %s113, 1
      %s115 = scalar_select %p112, %s113, %s114
      %p118 = pneg %p112
      %p119 = scmp.eq.s32.totalorder %s11, 3
      %p120 = por %p118, %p119
      %p121 = scmp.ne.s32.totalorder %s113, %s116
      %p122 = scmp.eq.s32.totalorder %s11, 0
      %p123 = por %p121, %p122
      %p124 = scmp.ne.s32.totalorder %s113, %s116
      %p125 = scmp.eq.s32.totalorder %s16, 3
      %p126 = por %p124, %p125
      %p127 = scmp.ne.s32.totalorder %s116, %s117
      %p128 = scmp.eq.s32.totalorder %s16, 0
      %p129 = por %p127, %p128
      %p130 = scmp.ne.s32.totalorder %s116, %s117
      %p131 = scmp.eq.s32.totalorder %s17, 3
      %p132 = por %p130, %p131
      %p134 = scmp.ne.s32.totalorder %s117, %s133
      %p135 = scmp.eq.s32.totalorder %s17, 0
      %p136 = por %p134, %p135
      %s137 = ssub.s32 %s18, %s30
      %p138 = scmp.eq.s32.totalorder %s137, 0
      %s140 = sadd.s32 %s139, 1
      %s141 = scalar_select %p138, %s139, %s140
      %p144 = pneg %p138
      %p145 = scmp.eq.s32.totalorder %s11, 3
      %p146 = por %p144, %p145
      %p147 = scmp.ne.s32.totalorder %s139, %s142
      %p148 = scmp.eq.s32.totalorder %s11, 0
      %p149 = por %p147, %p148
      %p150 = scmp.ne.s32.totalorder %s139, %s142
      %p151 = scmp.eq.s32.totalorder %s16, 3
      %p152 = por %p150, %p151
      %p153 = scmp.ne.s32.totalorder %s142, %s143
      %p154 = scmp.eq.s32.totalorder %s16, 0
      %p155 = por %p153, %p154
      %p156 = scmp.ne.s32.totalorder %s142, %s143
      %p157 = scmp.eq.s32.totalorder %s17, 3
      %p158 = por %p156, %p157
      %p160 = scmp.ne.s32.totalorder %s143, %s159
      %p161 = scmp.eq.s32.totalorder %s17, 0
      %p162 = por %p160, %p161
      %p163 = scmp.le.s32.totalorder 1, %s11
      %p164 = scmp.lt.s32.totalorder %s11, 5
      %p165 = pnand %p163, %p164
      %p166 = pneg %p165
      // Predicated region
      $region9: #{_lambda_.24} parent=5 // pred_check
        _
      $region10: #{_lambda_.24} parent=5 // pred_check_branch
        %168 = sbr.rel (%p165) target = $region12
      $region11: #{_lambda_.24} parent=5 // pred_region
        %s169 = ssub.s32 %s11, 1
      $region12: #{_lambda_.24} parent=5 // pred_fallthru
        _
      %p170 = scmp.lt.s32.totalorder %s11, 4
      // Predicated region
      $region13: #{_lambda_.24} parent=5 // pred_check
        %p171 = pneg %p170
      $region14: #{_lambda_.24} parent=5 // pred_check_branch
        %173 = sbr.rel (%p171) target = $region16
      $region15: #{_lambda_.24} parent=5 // pred_region
        // Predicated region
        $region17: #{_lambda_.24} parent=15 // pred_check
          %p174 = pneg %p43
        $region18: #{_lambda_.24} parent=15 // pred_check_branch
          %176 = sbr.rel (%p174) target = $region20
        $region19: #{_lambda_.24} parent=15 // pred_region
          %s177 = smul.u32 2, %s18
          %p178 = scmp.lt.s32.totalorder %s177, 3
          %s179 = scalar_select %p178, %s177, 3
          %s180 = smul.addr %s179, 2
          %s181 = smul.addr %s180, 4
          %s182 = scalar_lea.vmem %s0, %s181
          %s183 = smul.u32 2, %s18
        $region20: #{_lambda_.24} parent=15 // pred_fallthru
          _
        // Predicated region
        $region21: #{_lambda_.24} parent=15 // pred_check
          %p184 = pneg %p69
        $region22: #{_lambda_.24} parent=15 // pred_check_branch
          %186 = sbr.rel (%p184) target = $region24
        $region23: #{_lambda_.24} parent=15 // pred_region
          %s187 = sand.u32 %s59, 1
          %s188 = sand.u32 %s59, 1
          %s189 = smul.addr %s188, 512
          %s190 = scalar_lea.vmem [#allocation4], %s189
          %s191 = smul.u32 4, %s19
          %s192 = smul.addr %s191, 4
          %s193 = scalar_lea.vmem %s1, %s192
          // Predicated region
          $region25: #{_lambda_.24} parent=23 // pred_check
            _
          $region26: #{_lambda_.24} parent=23 // pred_check_branch
            %195 = sbr.rel (0) target = $region28
          $region27: #{_lambda_.24} parent=23 // pred_region
            // Predicated region
            $region29: #{_lambda_.24} parent=27 // pred_check
              _
            $region30: #{_lambda_.24} parent=27 // pred_check_branch
              %197 = sbr.rel (0) target = $region32
            $region31: #{_lambda_.24} parent=27 // pred_region
              loop: start=0, step=1, limit=1
              $region33: #{_lambda_.24} parent=31 // loop_pre_header
                _
              $region34: #{_lambda_.24} parent=31 // loop_header
                %s199 = sphi 0, %s203
                %p200 = scmp.ge.s32.totalorder %s199, 1
                %s204 = sphi %s193, %s193
                %s205 = sphi %s190, %s190
              $region35: #{_lambda_.24} parent=31 // loop_header_branch
                %202 = sbr.rel (%p200) target = $region39
              $region36: #{_lambda_.24} parent=31 // loop_body
                %v206 = vld [vmem:[%s204] sm:$0xff]
                %207 = vst [vmem:[%s205] sm:$0xff] %v206
                %v208 = vld [vmem:[%s204 + $0x8] sm:$0xff]
                %209 = vst [vmem:[%s205 + $0x8] sm:$0xff] %v208
                %v210 = vld [vmem:[%s204 + $0x20] sm:$0xff]
                %211 = vst [vmem:[%s205 + $0x10] sm:$0xff] %v210
                %v212 = vld [vmem:[%s204 + $0x28] sm:$0xff]
                %213 = vst [vmem:[%s205 + $0x18] sm:$0xff] %v212
                %v214 = vld [vmem:[%s204 + $0x40] sm:$0xff]
                %215 = vst [vmem:[%s205 + $0x20] sm:$0xff] %v214
                %v216 = vld [vmem:[%s204 + $0x48] sm:$0xff]
                %217 = vst [vmem:[%s205 + $0x28] sm:$0xff] %v216
                %v218 = vld [vmem:[%s204 + $0x60] sm:$0xff]
                %219 = vst [vmem:[%s205 + $0x30] sm:$0xff] %v218
                %v220 = vld [vmem:[%s204 + $0x68] sm:$0xff]
                %221 = vst [vmem:[%s205 + $0x38] sm:$0xff] %v220
                %v222 = vld [vmem:[%s204 + $0x80] sm:$0xff]
                %223 = vst [vmem:[%s205 + $0x40] sm:$0xff] %v222
                %v224 = vld [vmem:[%s204 + $0x88] sm:$0xff]
                %225 = vst [vmem:[%s205 + $0x48] sm:$0xff] %v224
                %v226 = vld [vmem:[%s204 + $0xa0] sm:$0xff]
                %227 = vst [vmem:[%s205 + $0x50] sm:$0xff] %v226
                %v228 = vld [vmem:[%s204 + $0xa8] sm:$0xff]
                %229 = vst [vmem:[%s205 + $0x58] sm:$0xff] %v228
                %v230 = vld [vmem:[%s204 + $0xc0] sm:$0xff]
                %231 = vst [vmem:[%s205 + $0x60] sm:$0xff] %v230
                %v232 = vld [vmem:[%s204 + $0xc8] sm:$0xff]
                %233 = vst [vmem:[%s205 + $0x68] sm:$0xff] %v232
                %v234 = vld [vmem:[%s204 + $0xe0] sm:$0xff]
                %235 = vst [vmem:[%s205 + $0x70] sm:$0xff] %v234
                %v236 = vld [vmem:[%s204 + $0xe8] sm:$0xff]
                %237 = vst [vmem:[%s205 + $0x78] sm:$0xff] %v236
                %v238 = vld [vmem:[%s204 + $0x100] sm:$0xff]
                %239 = vst [vmem:[%s205 + $0x80] sm:$0xff] %v238
                %v240 = vld [vmem:[%s204 + $0x108] sm:$0xff]
                %241 = vst [vmem:[%s205 + $0x88] sm:$0xff] %v240
                %v242 = vld [vmem:[%s204 + $0x120] sm:$0xff]
                %243 = vst [vmem:[%s205 + $0x90] sm:$0xff] %v242
                %v244 = vld [vmem:[%s204 + $0x128] sm:$0xff]
                %245 = vst [vmem:[%s205 + $0x98] sm:$0xff] %v244
                %v246 = vld [vmem:[%s204 + $0x140] sm:$0xff]
                %247 = vst [vmem:[%s205 + $0xa0] sm:$0xff] %v246
                %v248 = vld [vmem:[%s204 + $0x148] sm:$0xff]
                %249 = vst [vmem:[%s205 + $0xa8] sm:$0xff] %v248
                %v250 = vld [vmem:[%s204 + $0x160] sm:$0xff]
                %251 = vst [vmem:[%s205 + $0xb0] sm:$0xff] %v250
                %v252 = vld [vmem:[%s204 + $0x168] sm:$0xff]
                %253 = vst [vmem:[%s205 + $0xb8] sm:$0xff] %v252
                %v254 = vld [vmem:[%s204 + $0x180] sm:$0xff]
                %255 = vst [vmem:[%s205 + $0xc0] sm:$0xff] %v254
                %v256 = vld [vmem:[%s204 + $0x188] sm:$0xff]
                %257 = vst [vmem:[%s205 + $0xc8] sm:$0xff] %v256
                %v258 = vld [vmem:[%s204 + $0x1a0] sm:$0xff]
                %259 = vst [vmem:[%s205 + $0xd0] sm:$0xff] %v258
                %v260 = vld [vmem:[%s204 + $0x1a8] sm:$0xff]
                %261 = vst [vmem:[%s205 + $0xd8] sm:$0xff] %v260
                %v262 = vld [vmem:[%s204 + $0x1c0] sm:$0xff]
                %263 = vst [vmem:[%s205 + $0xe0] sm:$0xff] %v262
                %v264 = vld [vmem:[%s204 + $0x1c8] sm:$0xff]
                %265 = vst [vmem:[%s205 + $0xe8] sm:$0xff] %v264
                %v266 = vld [vmem:[%s204 + $0x1e0] sm:$0xff]
                %267 = vst [vmem:[%s205 + $0xf0] sm:$0xff] %v266
                %v268 = vld [vmem:[%s204 + $0x1e8] sm:$0xff]
                %269 = vst [vmem:[%s205 + $0xf8] sm:$0xff] %v268
                %v270 = vld [vmem:[%s204 + $0x200] sm:$0xff]
                %271 = vst [vmem:[%s205 + $0x100] sm:$0xff] %v270
                %v272 = vld [vmem:[%s204 + $0x208] sm:$0xff]
                %273 = vst [vmem:[%s205 + $0x108] sm:$0xff] %v272
                %v274 = vld [vmem:[%s204 + $0x220] sm:$0xff]
                %275 = vst [vmem:[%s205 + $0x110] sm:$0xff] %v274
                %v276 = vld [vmem:[%s204 + $0x228] sm:$0xff]
                %277 = vst [vmem:[%s205 + $0x118] sm:$0xff] %v276
                %v278 = vld [vmem:[%s204 + $0x240] sm:$0xff]
                %279 = vst [vmem:[%s205 + $0x120] sm:$0xff] %v278
                %v280 = vld [vmem:[%s204 + $0x248] sm:$0xff]
                %281 = vst [vmem:[%s205 + $0x128] sm:$0xff] %v280
                %v282 = vld [vmem:[%s204 + $0x260] sm:$0xff]
                %283 = vst [vmem:[%s205 + $0x130] sm:$0xff] %v282
                %v284 = vld [vmem:[%s204 + $0x268] sm:$0xff]
                %285 = vst [vmem:[%s205 + $0x138] sm:$0xff] %v284
                %v286 = vld [vmem:[%s204 + $0x280] sm:$0xff]
                %287 = vst [vmem:[%s205 + $0x140] sm:$0xff] %v286
                %v288 = vld [vmem:[%s204 + $0x288] sm:$0xff]
                %289 = vst [vmem:[%s205 + $0x148] sm:$0xff] %v288
                %v290 = vld [vmem:[%s204 + $0x2a0] sm:$0xff]
                %291 = vst [vmem:[%s205 + $0x150] sm:$0xff] %v290
                %v292 = vld [vmem:[%s204 + $0x2a8] sm:$0xff]
                %293 = vst [vmem:[%s205 + $0x158] sm:$0xff] %v292
                %v294 = vld [vmem:[%s204 + $0x2c0] sm:$0xff]
                %295 = vst [vmem:[%s205 + $0x160] sm:$0xff] %v294
                %v296 = vld [vmem:[%s204 + $0x2c8] sm:$0xff]
                %297 = vst [vmem:[%s205 + $0x168] sm:$0xff] %v296
                %v298 = vld [vmem:[%s204 + $0x2e0] sm:$0xff]
                %299 = vst [vmem:[%s205 + $0x170] sm:$0xff] %v298
                %v300 = vld [vmem:[%s204 + $0x2e8] sm:$0xff]
                %301 = vst [vmem:[%s205 + $0x178] sm:$0xff] %v300
                %v302 = vld [vmem:[%s204 + $0x300] sm:$0xff]
                %303 = vst [vmem:[%s205 + $0x180] sm:$0xff] %v302
                %v304 = vld [vmem:[%s204 + $0x308] sm:$0xff]
                %305 = vst [vmem:[%s205 + $0x188] sm:$0xff] %v304
                %v306 = vld [vmem:[%s204 + $0x320] sm:$0xff]
                %307 = vst [vmem:[%s205 + $0x190] sm:$0xff] %v306
                %v308 = vld [vmem:[%s204 + $0x328] sm:$0xff]
                %309 = vst [vmem:[%s205 + $0x198] sm:$0xff] %v308
                %v310 = vld [vmem:[%s204 + $0x340] sm:$0xff]
                %311 = vst [vmem:[%s205 + $0x1a0] sm:$0xff] %v310
                %v312 = vld [vmem:[%s204 + $0x348] sm:$0xff]
                %313 = vst [vmem:[%s205 + $0x1a8] sm:$0xff] %v312
                %v314 = vld [vmem:[%s204 + $0x360] sm:$0xff]
                %315 = vst [vmem:[%s205 + $0x1b0] sm:$0xff] %v314
                %v316 = vld [vmem:[%s204 + $0x368] sm:$0xff]
                %317 = vst [vmem:[%s205 + $0x1b8] sm:$0xff] %v316
                %v318 = vld [vmem:[%s204 + $0x380] sm:$0xff]
                %319 = vst [vmem:[%s205 + $0x1c0] sm:$0xff] %v318
                %v320 = vld [vmem:[%s204 + $0x388] sm:$0xff]
                %321 = vst [vmem:[%s205 + $0x1c8] sm:$0xff] %v320
                %v322 = vld [vmem:[%s204 + $0x3a0] sm:$0xff]
                %323 = vst [vmem:[%s205 + $0x1d0] sm:$0xff] %v322
                %v324 = vld [vmem:[%s204 + $0x3a8] sm:$0xff]
                %325 = vst [vmem:[%s205 + $0x1d8] sm:$0xff] %v324
                %v326 = vld [vmem:[%s204 + $0x3c0] sm:$0xff]
                %327 = vst [vmem:[%s205 + $0x1e0] sm:$0xff] %v326
                %v328 = vld [vmem:[%s204 + $0x3c8] sm:$0xff]
                %329 = vst [vmem:[%s205 + $0x1e8] sm:$0xff] %v328
                %v330 = vld [vmem:[%s204 + $0x3e0] sm:$0xff]
                %331 = vst [vmem:[%s205 + $0x1f0] sm:$0xff] %v330
                %v332 = vld [vmem:[%s204 + $0x3e8] sm:$0xff]
                %333 = vst [vmem:[%s205 + $0x1f8] sm:$0xff] %v332
              $region37: #{_lambda_.24} parent=31 // loop_footer
                %s203 = sadd.s32 1, %s199
              $region38: #{_lambda_.24} parent=31 // loop_footer_branch
                %198 = sbr.rel target = $region34
              $region39: #{_lambda_.24} parent=31 // loop_exit
                _
            $region32: #{_lambda_.24} parent=27 // pred_fallthru
              _
            // Predicated region
            $region40: #{_lambda_.24} parent=27 // pred_check
              _
            $region41: #{_lambda_.24} parent=27 // pred_check_branch
              %335 = sbr.rel target = $region43
            $region42: #{_lambda_.24} parent=27 // pred_region
              _
            $region43: #{_lambda_.24} parent=27 // pred_fallthru
              _
          $region28: #{_lambda_.24} parent=23 // pred_fallthru
            _
          %336 = vnop
        $region24: #{_lambda_.24} parent=15 // pred_fallthru
          _
        // Predicated region
        $region44: #{_lambda_.24} parent=15 // pred_check
          %p337 = pneg %p95
        $region45: #{_lambda_.24} parent=15 // pred_check_branch
          %339 = sbr.rel (%p337) target = $region47
        $region46: #{_lambda_.24} parent=15 // pred_region
          %s340 = smul.u32 4, %s19
          %p341 = scmp.lt.s32.totalorder %s340, 7
          %s342 = scalar_select %p341, %s340, 7
          %s343 = scalar_lea.vmem %s2, %s342
          %s344 = smul.u32 4, %s19
        $region47: #{_lambda_.24} parent=15 // pred_fallthru
          _
      $region16: #{_lambda_.24} parent=5 // pred_fallthru
        _
      %p345 = scmp.le.s32.totalorder 1, %s11
      %p346 = scmp.lt.s32.totalorder %s11, 5
      %p347 = pnand %p345, %p346
      %p348 = pneg %p347
      // Predicated region
      $region48: #{_lambda_.24} parent=5 // pred_check
        _
      $region49: #{_lambda_.24} parent=5 // pred_check_branch
        %350 = sbr.rel (%p347) target = $region51
      $region50: #{_lambda_.24} parent=5 // pred_region
        %s351 = ssub.s32 %s11, 1
        %s352 = sand.u32 %s62, 1
        %s353 = sand.u32 %s62, 1
        %s354 = smul.addr %s353, 512
        %s355 = scalar_lea.vmem [#allocation4], %s354
        // Predicated region
        $region52: #{_lambda_.24} parent=50 // pred_check
          %p356 = pneg %p75
        $region53: #{_lambda_.24} parent=50 // pred_check_branch
          %358 = sbr.rel (%p356) target = $region55
        $region54: #{_lambda_.24} parent=50 // pred_region
          _
        $region55: #{_lambda_.24} parent=50 // pred_fallthru
          _
        %s359 = smul.u32 2, %s20
        %p360 = scmp.lt.s32.totalorder %s359, 3
        %s361 = scalar_select %p360, %s359, 3
        %s362 = smul.addr %s361, 2
        %s363 = smul.addr %s362, 4
        %s364 = scalar_lea.vmem %s0, %s363
        %p365 = pneg %p49
        %p366 = pneg %p46
        %s367 = sand.u32 %s62, 1
        %s368 = sand.u32 %s62, 1
        %s369 = smul.addr %s368, 512
        %s370 = scalar_lea.vmem [#allocation4], %s369
        %p371 = pneg %p75
        %p372 = pneg %p72
        %s373 = smul.u32 4, %s21
        %p374 = scmp.lt.s32.totalorder %s373, 7
        %s375 = scalar_select %p374, %s373, 7
        %s376 = scalar_lea.vmem %s2, %s375
        %p377 = pneg %p101
        %p378 = pneg %p98
        %p379 = pneg %p129
        %p380 = pneg %p126
        %s381 = sand.u32 %s116, 1
        %s382 = sand.u32 %s116, 1
        %s383 = smul.addr %s382, 32
        %s384 = scalar_lea.vmem [#allocation5], %s383
        %p385 = pneg %p155
        %p386 = pneg %p152
        %s387 = smul.u32 2, %s20
        %p388 = scmp.lt.s32.totalorder %s387, 3
        %s389 = scalar_select %p388, %s387, 3
        %s390 = smul.addr %s389, 8
        %s391 = scalar_lea.vmem %s4, %s390
        %s392 = smul.u32 2, %s20
        %p393 = scmp.lt.s32.totalorder %s392, 3
        %s394 = scalar_select %p393, %s392, 3
        %s395 = smul.addr %s394, 2
        %s396 = smul.addr %s395, 4
        %s397 = scalar_lea.vmem %s0, %s396
        %s398 = smul.u32 2, %s20
        %s399 = smul.u32 4, %s21
        %s400 = smul.u32 4, %s21
        %p401 = scmp.lt.s32.totalorder %s400, 7
        %s402 = scalar_select %p401, %s400, 7
        %s403 = scalar_lea.vmem %s2, %s402
        %s404 = smul.u32 4, %s21
        %s405 = smul.u32 2, %s20
        %s406 = smul.u32 4, %s21
        %s407 = smul.u32 2, %s20
        %p408 = scmp.lt.s32.totalorder %s407, 3
        %s409 = scalar_select %p408, %s407, 3
        %s410 = smul.addr %s409, 8
        %s411 = scalar_lea.vmem %s4, %s410
        %s412 = smul.u32 2, %s20
        %p413 = scmp.eq.s32.totalorder %s21, 0
        // Predicated region
        $region56: #{_lambda_.24} parent=50 // pred_check
          %p414 = pneg %p413
        $region57: #{_lambda_.24} parent=50 // pred_check_branch
          %416 = sbr.rel (%p414) target = $region59
        $region58: #{_lambda_.24} parent=50 // pred_region
          %vm417 = vcmask 7168
          %418 = vst.msk [vmem:[#allocation2] sm:$0xff] %vm417, -inf
          %419 = vst.msk [vmem:[#allocation2 + $0x8] sm:$0xff] %vm417, -inf
          %420 = vst.msk [vmem:[#allocation3] sm:$0xff] %vm417, 0.0
          %421 = vst.msk [vmem:[#allocation3 + $0x8] sm:$0xff] %vm417, 0.0
        $region59: #{_lambda_.24} parent=50 // pred_fallthru
          _
        %v422 = vld [vmem:[%s397] sm:$0xff]
        %v423 = vld [vmem:[%s397 + $0x8] sm:$0xff]
        %v424 = vld [vmem:[%s355] sm:$0xff]
        %v425 = vld [vmem:[%s355 + $0x8] sm:$0xff]
        %v426 = vld [vmem:[%s355 + $0x10] sm:$0xff]
        %v427 = vld [vmem:[%s355 + $0x18] sm:$0xff]
        %v428 = vld [vmem:[%s355 + $0x20] sm:$0xff]
        %v429 = vld [vmem:[%s355 + $0x28] sm:$0xff]
        %v430 = vld [vmem:[%s355 + $0x30] sm:$0xff]
        %v431 = vld [vmem:[%s355 + $0x38] sm:$0xff]
        %v432 = vld [vmem:[%s355 + $0x40] sm:$0xff]
        %v433 = vld [vmem:[%s355 + $0x48] sm:$0xff]
        %v434 = vld [vmem:[%s355 + $0x50] sm:$0xff]
        %v435 = vld [vmem:[%s355 + $0x58] sm:$0xff]
        %v436 = vld [vmem:[%s355 + $0x60] sm:$0xff]
        %v437 = vld [vmem:[%s355 + $0x68] sm:$0xff]
        %v438 = vld [vmem:[%s355 + $0x70] sm:$0xff]
        %v439 = vld [vmem:[%s355 + $0x78] sm:$0xff]
        %v440 = vld [vmem:[%s355 + $0x80] sm:$0xff]
        %v441 = vld [vmem:[%s355 + $0x88] sm:$0xff]
        %v442 = vld [vmem:[%s355 + $0x90] sm:$0xff]
        %v443 = vld [vmem:[%s355 + $0x98] sm:$0xff]
        %v444 = vld [vmem:[%s355 + $0xa0] sm:$0xff]
        %v445 = vld [vmem:[%s355 + $0xa8] sm:$0xff]
        %v446 = vld [vmem:[%s355 + $0xb0] sm:$0xff]
        %v447 = vld [vmem:[%s355 + $0xb8] sm:$0xff]
        %v448 = vld [vmem:[%s355 + $0xc0] sm:$0xff]
        %v449 = vld [vmem:[%s355 + $0xc8] sm:$0xff]
        %v450 = vld [vmem:[%s355 + $0xd0] sm:$0xff]
        %v451 = vld [vmem:[%s355 + $0xd8] sm:$0xff]
        %v452 = vld [vmem:[%s355 + $0xe0] sm:$0xff]
        %v453 = vld [vmem:[%s355 + $0xe8] sm:$0xff]
        %v454 = vld [vmem:[%s355 + $0xf0] sm:$0xff]
        %v455 = vld [vmem:[%s355 + $0xf8] sm:$0xff]
        %v456 = vld [vmem:[%s355 + $0x100] sm:$0xff]
        %v457 = vld [vmem:[%s355 + $0x108] sm:$0xff]
        %v458 = vld [vmem:[%s355 + $0x110] sm:$0xff]
        %v459 = vld [vmem:[%s355 + $0x118] sm:$0xff]
        %v460 = vld [vmem:[%s355 + $0x120] sm:$0xff]
        %v461 = vld [vmem:[%s355 + $0x128] sm:$0xff]
        %v462 = vld [vmem:[%s355 + $0x130] sm:$0xff]
        %v463 = vld [vmem:[%s355 + $0x138] sm:$0xff]
        %v464 = vld [vmem:[%s355 + $0x140] sm:$0xff]
        %v465 = vld [vmem:[%s355 + $0x148] sm:$0xff]
        %v466 = vld [vmem:[%s355 + $0x150] sm:$0xff]
        %v467 = vld [vmem:[%s355 + $0x158] sm:$0xff]
        %v468 = vld [vmem:[%s355 + $0x160] sm:$0xff]
        %v469 = vld [vmem:[%s355 + $0x168] sm:$0xff]
        %v470 = vld [vmem:[%s355 + $0x170] sm:$0xff]
        %v471 = vld [vmem:[%s355 + $0x178] sm:$0xff]
        %v472 = vld [vmem:[%s355 + $0x180] sm:$0xff]
        %v473 = vld [vmem:[%s355 + $0x188] sm:$0xff]
        %v474 = vld [vmem:[%s355 + $0x190] sm:$0xff]
        %v475 = vld [vmem:[%s355 + $0x198] sm:$0xff]
        %v476 = vld [vmem:[%s355 + $0x1a0] sm:$0xff]
        %v477 = vld [vmem:[%s355 + $0x1a8] sm:$0xff]
        %v478 = vld [vmem:[%s355 + $0x1b0] sm:$0xff]
        %v479 = vld [vmem:[%s355 + $0x1b8] sm:$0xff]
        %v480 = vld [vmem:[%s355 + $0x1c0] sm:$0xff]
        %v481 = vld [vmem:[%s355 + $0x1c8] sm:$0xff]
        %v482 = vld [vmem:[%s355 + $0x1d0] sm:$0xff]
        %v483 = vld [vmem:[%s355 + $0x1d8] sm:$0xff]
        %v484 = vld [vmem:[%s355 + $0x1e0] sm:$0xff]
        %v485 = vld [vmem:[%s355 + $0x1e8] sm:$0xff]
        %v486 = vld [vmem:[%s355 + $0x1f0] sm:$0xff]
        %v487 = vld [vmem:[%s355 + $0x1f8] sm:$0xff]
        %v488 = vld [vmem:[%s403] sm:$0xf]
        %v490 = vlaneseq
        %v491 = vshrl.u32 %v490, 7
        %v492 = vsub.s32 0, %v491
        %v493 = vrot.slane %v488, %v492
        %v494 = vlaneseq
        %v495 = vshrl.u32 %v494, 7
        %v496 = vsub.s32 1, %v495
        %v497 = vrot.slane %v488, %v496
        %v498 = vlaneseq
        %v499 = vshrl.u32 %v498, 7
        %v500 = vsub.s32 2, %v499
        %v501 = vrot.slane %v488, %v500
        %v502 = vlaneseq
        %v503 = vshrl.u32 %v502, 7
        %v504 = vsub.s32 3, %v503
        %v505 = vrot.slane %v488, %v504
        %v512 = vunpack.c.l.b16 %v422
        %v513 = vunpack.c.h.b16 %v422
        %v514 = vunpack.c.l.b16 %v423
        %v515 = vunpack.c.h.b16 %v423
        %v516 = vpack.c.b16 %v514, %v512
        %v517 = vpack.c.b16 %v515, %v513
        %v584 = vunpack.c.l.b16 %v424
        %v585 = vunpack.c.h.b16 %v424
        %v586 = vunpack.c.l.b16 %v425
        %v587 = vunpack.c.h.b16 %v425
        %v588 = vunpack.c.l.b16 %v426
        %v589 = vunpack.c.h.b16 %v426
        %v590 = vunpack.c.l.b16 %v427
        %v591 = vunpack.c.h.b16 %v427
        %v592 = vunpack.c.l.b16 %v428
        %v593 = vunpack.c.h.b16 %v428
        %v594 = vunpack.c.l.b16 %v429
        %v595 = vunpack.c.h.b16 %v429
        %v596 = vunpack.c.l.b16 %v430
        %v597 = vunpack.c.h.b16 %v430
        %v598 = vunpack.c.l.b16 %v431
        %v599 = vunpack.c.h.b16 %v431
        %v600 = vunpack.c.l.b16 %v432
        %v601 = vunpack.c.h.b16 %v432
        %v602 = vunpack.c.l.b16 %v433
        %v603 = vunpack.c.h.b16 %v433
        %v604 = vunpack.c.l.b16 %v434
        %v605 = vunpack.c.h.b16 %v434
        %v606 = vunpack.c.l.b16 %v435
        %v607 = vunpack.c.h.b16 %v435
        %v608 = vunpack.c.l.b16 %v436
        %v609 = vunpack.c.h.b16 %v436
        %v610 = vunpack.c.l.b16 %v437
        %v611 = vunpack.c.h.b16 %v437
        %v612 = vunpack.c.l.b16 %v438
        %v613 = vunpack.c.h.b16 %v438
        %v614 = vunpack.c.l.b16 %v439
        %v615 = vunpack.c.h.b16 %v439
        %v616 = vunpack.c.l.b16 %v440
        %v617 = vunpack.c.h.b16 %v440
        %v618 = vunpack.c.l.b16 %v441
        %v619 = vunpack.c.h.b16 %v441
        %v620 = vunpack.c.l.b16 %v442
        %v621 = vunpack.c.h.b16 %v442
        %v622 = vunpack.c.l.b16 %v443
        %v623 = vunpack.c.h.b16 %v443
        %v624 = vunpack.c.l.b16 %v444
        %v625 = vunpack.c.h.b16 %v444
        %v626 = vunpack.c.l.b16 %v445
        %v627 = vunpack.c.h.b16 %v445
        %v628 = vunpack.c.l.b16 %v446
        %v629 = vunpack.c.h.b16 %v446
        %v630 = vunpack.c.l.b16 %v447
        %v631 = vunpack.c.h.b16 %v447
        %v632 = vunpack.c.l.b16 %v448
        %v633 = vunpack.c.h.b16 %v448
        %v634 = vunpack.c.l.b16 %v449
        %v635 = vunpack.c.h.b16 %v449
        %v636 = vunpack.c.l.b16 %v450
        %v637 = vunpack.c.h.b16 %v450
        %v638 = vunpack.c.l.b16 %v451
        %v639 = vunpack.c.h.b16 %v451
        %v640 = vunpack.c.l.b16 %v452
        %v641 = vunpack.c.h.b16 %v452
        %v642 = vunpack.c.l.b16 %v453
        %v643 = vunpack.c.h.b16 %v453
        %v644 = vunpack.c.l.b16 %v454
        %v645 = vunpack.c.h.b16 %v454
        %v646 = vunpack.c.l.b16 %v455
        %v647 = vunpack.c.h.b16 %v455
        %v648 = vunpack.c.l.b16 %v456
        %v649 = vunpack.c.h.b16 %v456
        %v650 = vunpack.c.l.b16 %v457
        %v651 = vunpack.c.h.b16 %v457
        %v652 = vunpack.c.l.b16 %v458
        %v653 = vunpack.c.h.b16 %v458
        %v654 = vunpack.c.l.b16 %v459
        %v655 = vunpack.c.h.b16 %v459
        %v656 = vunpack.c.l.b16 %v460
        %v657 = vunpack.c.h.b16 %v460
        %v658 = vunpack.c.l.b16 %v461
        %v659 = vunpack.c.h.b16 %v461
        %v660 = vunpack.c.l.b16 %v462
        %v661 = vunpack.c.h.b16 %v462
        %v662 = vunpack.c.l.b16 %v463
        %v663 = vunpack.c.h.b16 %v463
        %v664 = vunpack.c.l.b16 %v464
        %v665 = vunpack.c.h.b16 %v464
        %v666 = vunpack.c.l.b16 %v465
        %v667 = vunpack.c.h.b16 %v465
        %v668 = vunpack.c.l.b16 %v466
        %v669 = vunpack.c.h.b16 %v466
        %v670 = vunpack.c.l.b16 %v467
        %v671 = vunpack.c.h.b16 %v467
        %v672 = vunpack.c.l.b16 %v468
        %v673 = vunpack.c.h.b16 %v468
        %v674 = vunpack.c.l.b16 %v469
        %v675 = vunpack.c.h.b16 %v469
        %v676 = vunpack.c.l.b16 %v470
        %v677 = vunpack.c.h.b16 %v470
        %v678 = vunpack.c.l.b16 %v471
        %v679 = vunpack.c.h.b16 %v471
        %v680 = vunpack.c.l.b16 %v472
        %v681 = vunpack.c.h.b16 %v472
        %v682 = vunpack.c.l.b16 %v473
        %v683 = vunpack.c.h.b16 %v473
        %v684 = vunpack.c.l.b16 %v474
        %v685 = vunpack.c.h.b16 %v474
        %v686 = vunpack.c.l.b16 %v475
        %v687 = vunpack.c.h.b16 %v475
        %v688 = vunpack.c.l.b16 %v476
        %v689 = vunpack.c.h.b16 %v476
        %v690 = vunpack.c.l.b16 %v477
        %v691 = vunpack.c.h.b16 %v477
        %v692 = vunpack.c.l.b16 %v478
        %v693 = vunpack.c.h.b16 %v478
        %v694 = vunpack.c.l.b16 %v479
        %v695 = vunpack.c.h.b16 %v479
        %v696 = vunpack.c.l.b16 %v480
        %v697 = vunpack.c.h.b16 %v480
        %v698 = vunpack.c.l.b16 %v481
        %v699 = vunpack.c.h.b16 %v481
        %v700 = vunpack.c.l.b16 %v482
        %v701 = vunpack.c.h.b16 %v482
        %v702 = vunpack.c.l.b16 %v483
        %v703 = vunpack.c.h.b16 %v483
        %v704 = vunpack.c.l.b16 %v484
        %v705 = vunpack.c.h.b16 %v484
        %v706 = vunpack.c.l.b16 %v485
        %v707 = vunpack.c.h.b16 %v485
        %v708 = vunpack.c.l.b16 %v486
        %v709 = vunpack.c.h.b16 %v486
        %v710 = vunpack.c.l.b16 %v487
        %v711 = vunpack.c.h.b16 %v487
        %v712 = vpack.c.b16 %v588, %v584
        %v713 = vpack.c.b16 %v589, %v585
        %v714 = vpack.c.b16 %v590, %v586
        %v715 = vpack.c.b16 %v591, %v587
        %v716 = vpack.c.b16 %v596, %v592
        %v717 = vpack.c.b16 %v597, %v593
        %v718 = vpack.c.b16 %v598, %v594
        %v719 = vpack.c.b16 %v599, %v595
        %v720 = vpack.c.b16 %v604, %v600
        %v721 = vpack.c.b16 %v605, %v601
        %v722 = vpack.c.b16 %v606, %v602
        %v723 = vpack.c.b16 %v607, %v603
        %v724 = vpack.c.b16 %v612, %v608
        %v725 = vpack.c.b16 %v613, %v609
        %v726 = vpack.c.b16 %v614, %v610
        %v727 = vpack.c.b16 %v615, %v611
        %v728 = vpack.c.b16 %v620, %v616
        %v729 = vpack.c.b16 %v621, %v617
        %v730 = vpack.c.b16 %v622, %v618
        %v731 = vpack.c.b16 %v623, %v619
        %v732 = vpack.c.b16 %v628, %v624
        %v733 = vpack.c.b16 %v629, %v625
        %v734 = vpack.c.b16 %v630, %v626
        %v735 = vpack.c.b16 %v631, %v627
        %v736 = vpack.c.b16 %v636, %v632
        %v737 = vpack.c.b16 %v637, %v633
        %v738 = vpack.c.b16 %v638, %v634
        %v739 = vpack.c.b16 %v639, %v635
        %v740 = vpack.c.b16 %v644, %v640
        %v741 = vpack.c.b16 %v645, %v641
        %v742 = vpack.c.b16 %v646, %v642
        %v743 = vpack.c.b16 %v647, %v643
        %v744 = vpack.c.b16 %v652, %v648
        %v745 = vpack.c.b16 %v653, %v649
        %v746 = vpack.c.b16 %v654, %v650
        %v747 = vpack.c.b16 %v655, %v651
        %v748 = vpack.c.b16 %v660, %v656
        %v749 = vpack.c.b16 %v661, %v657
        %v750 = vpack.c.b16 %v662, %v658
        %v751 = vpack.c.b16 %v663, %v659
        %v752 = vpack.c.b16 %v668, %v664
        %v753 = vpack.c.b16 %v669, %v665
        %v754 = vpack.c.b16 %v670, %v666
        %v755 = vpack.c.b16 %v671, %v667
        %v756 = vpack.c.b16 %v676, %v672
        %v757 = vpack.c.b16 %v677, %v673
        %v758 = vpack.c.b16 %v678, %v674
        %v759 = vpack.c.b16 %v679, %v675
        %v760 = vpack.c.b16 %v684, %v680
        %v761 = vpack.c.b16 %v685, %v681
        %v762 = vpack.c.b16 %v686, %v682
        %v763 = vpack.c.b16 %v687, %v683
        %v764 = vpack.c.b16 %v692, %v688
        %v765 = vpack.c.b16 %v693, %v689
        %v766 = vpack.c.b16 %v694, %v690
        %v767 = vpack.c.b16 %v695, %v691
        %v768 = vpack.c.b16 %v700, %v696
        %v769 = vpack.c.b16 %v701, %v697
        %v770 = vpack.c.b16 %v702, %v698
        %v771 = vpack.c.b16 %v703, %v699
        %v772 = vpack.c.b16 %v708, %v704
        %v773 = vpack.c.b16 %v709, %v705
        %v774 = vpack.c.b16 %v710, %v706
        %v775 = vpack.c.b16 %v711, %v707
        %840 = vmatprep.subr.bf16.mxu0 %v713
        %841 = vmatpush1.bf16.msra.mxu0 %v712
        %842 = vmatprep.subr.bf16.mxu0 %v717
        %843 = vmatpush1.bf16.msra.mxu0 %v716
        %844 = vmatprep.subr.bf16.mxu0 %v721
        %845 = vmatpush1.bf16.msra.mxu0 %v720
        %846 = vmatprep.subr.bf16.mxu0 %v725
        %847 = vmatpush1.bf16.msra.mxu0 %v724
        %848 = vmatprep.subr.bf16.mxu0 %v729
        %849 = vmatpush1.bf16.msra.mxu0 %v728
        %850 = vmatprep.subr.bf16.mxu0 %v733
        %851 = vmatpush1.bf16.msra.mxu0 %v732
        %852 = vmatprep.subr.bf16.mxu0 %v737
        %853 = vmatpush1.bf16.msra.mxu0 %v736
        %854 = vmatprep.subr.bf16.mxu0 %v741
        %855 = vmatpush1.bf16.msra.mxu0 %v740
        %856 = vmatprep.subr.bf16.mxu0 %v745
        %857 = vmatpush1.bf16.msra.mxu0 %v744
        %858 = vmatprep.subr.bf16.mxu0 %v749
        %859 = vmatpush1.bf16.msra.mxu0 %v748
        %860 = vmatprep.subr.bf16.mxu0 %v753
        %861 = vmatpush1.bf16.msra.mxu0 %v752
        %862 = vmatprep.subr.bf16.mxu0 %v757
        %863 = vmatpush1.bf16.msra.mxu0 %v756
        %864 = vmatprep.subr.bf16.mxu0 %v761
        %865 = vmatpush1.bf16.msra.mxu0 %v760
        %866 = vmatprep.subr.bf16.mxu0 %v765
        %867 = vmatpush1.bf16.msra.mxu0 %v764
        %868 = vmatprep.subr.bf16.mxu0 %v769
        %869 = vmatpush1.bf16.msra.mxu0 %v768
        %870 = vmatprep.subr.bf16.mxu0 %v773
        %871 = vmatpush1.bf16.msra.mxu0 %v772
        %872 = vmatprep.mubr.bf16.mxu0 %v517
        %873 = vmatmul.mubr.bf16.gmra.mrb[0].mxu0 %v516
        %v874 = vpop.f32.mrb[0].mxu0
        %v875 = vadd.f32 %v493, %v874
        %v876 = vpop.f32.mrb[0].mxu0
        %v877 = vadd.f32 %v497, %v876
        %v878 = vpop.f32.mrb[0].mxu0
        %v879 = vadd.f32 %v493, %v878
        %v880 = vpop.f32.mrb[0].mxu0
        %v881 = vadd.f32 %v497, %v880
        %882 = vdwg.mxu0
        %883 = vmatprep.subr.bf16.mxu0 %v715
        %884 = vmatpush1.bf16.msra.mxu0 %v714
        %885 = vmatprep.subr.bf16.mxu0 %v719
        %886 = vmatpush1.bf16.msra.mxu0 %v718
        %887 = vmatprep.subr.bf16.mxu0 %v723
        %888 = vmatpush1.bf16.msra.mxu0 %v722
        %889 = vmatprep.subr.bf16.mxu0 %v727
        %890 = vmatpush1.bf16.msra.mxu0 %v726
        %891 = vmatprep.subr.bf16.mxu0 %v731
        %892 = vmatpush1.bf16.msra.mxu0 %v730
        %893 = vmatprep.subr.bf16.mxu0 %v735
        %894 = vmatpush1.bf16.msra.mxu0 %v734
        %895 = vmatprep.subr.bf16.mxu0 %v739
        %896 = vmatpush1.bf16.msra.mxu0 %v738
        %897 = vmatprep.subr.bf16.mxu0 %v743
        %898 = vmatpush1.bf16.msra.mxu0 %v742
        %899 = vmatprep.subr.bf16.mxu0 %v747
        %900 = vmatpush1.bf16.msra.mxu0 %v746
        %901 = vmatprep.subr.bf16.mxu0 %v751
        %902 = vmatpush1.bf16.msra.mxu0 %v750
        %903 = vmatprep.subr.bf16.mxu0 %v755
        %904 = vmatpush1.bf16.msra.mxu0 %v754
        %905 = vmatprep.subr.bf16.mxu0 %v759
        %906 = vmatpush1.bf16.msra.mxu0 %v758
        %907 = vmatprep.subr.bf16.mxu0 %v763
        %908 = vmatpush1.bf16.msra.mxu0 %v762
        %909 = vmatprep.subr.bf16.mxu0 %v767
        %910 = vmatpush1.bf16.msra.mxu0 %v766
        %911 = vmatprep.subr.bf16.mxu0 %v771
        %912 = vmatpush1.bf16.msra.mxu0 %v770
        %913 = vmatprep.subr.bf16.mxu0 %v775
        %914 = vmatpush1.bf16.msra.mxu0 %v774
        %915 = vmatprep.mubr.bf16.mxu0 %v517
        %916 = vmatmul.mubr.bf16.gmra.mrb[0].mxu0 %v516
        %v917 = vpop.f32.mrb[0].mxu0
        %v918 = vadd.f32 %v501, %v917
        %v919 = vpop.f32.mrb[0].mxu0
        %v920 = vadd.f32 %v505, %v919
        %v921 = vpop.f32.mrb[0].mxu0
        %v922 = vadd.f32 %v501, %v921
        %v923 = vpop.f32.mrb[0].mxu0
        %v924 = vadd.f32 %v505, %v923
        %925 = vdwg.mxu0
        %v926 = vpack.c.bf16 %v879, %v875
        %v927 = vpack.c.bf16 %v881, %v877
        %v928 = vpack.c.bf16 %v922, %v918
        %v929 = vpack.c.bf16 %v924, %v920
        %v934 = vunpack.c.l.b16 %v926
        %v935 = vunpack.c.l.b16 %v927
        %v936 = vunpack.c.l.b16 %v928
        %v937 = vunpack.c.l.b16 %v929
        %v938 = vunpack.c.h.b16 %v926
        %v939 = vunpack.c.h.b16 %v927
        %v940 = vunpack.c.h.b16 %v928
        %v941 = vunpack.c.h.b16 %v929
        %v942 = vpack.c.b16 %v935, %v934
        %v943 = vpack.c.b16 %v937, %v936
        %v944 = vpack.c.b16 %v939, %v938
        %v945 = vpack.c.b16 %v941, %v940
        %950 = vst [vmem:[%s384] sm:$0xff] %v942
        %951 = vst [vmem:[%s384 + $0x8] sm:$0xff] %v943
        %952 = vst [vmem:[%s384 + $0x10] sm:$0xff] %v944
        %953 = vst [vmem:[%s384 + $0x18] sm:$0xff] %v945
        %v954 = vld [vmem:[#allocation2] sm:$0xff]
        %v955 = vld [vmem:[#allocation2 + $0x8] sm:$0xff]
        %v956 = vmax.f32 %v875, %v918
        %v957 = vmax.f32 %v877, %v920
        %v958 = vmax.f32 %v956, %v957
        %959 = vmax.xlane.f32.xlu0 %v958
        %v960 = vpop.xlane.xlu0 %959
        %v961 = vmax.f32 %v879, %v922
        %v962 = vmax.f32 %v881, %v924
        %v963 = vmax.f32 %v961, %v962
        %964 = vmax.xlane.f32.xlu0 %v963
        %v965 = vpop.xlane.xlu0 %964
        %v966 = vmax.f32 %v954, %v960
        %v967 = vmax.f32 %v955, %v965
        %v968 = vsub.f32 %v954, %v966
        %v969 = vsub.f32 %v955, %v967
        %v970 = vmul.f32 %v968, 1.442695
        %v971 = vpow.pop %v970
        %v972 = vmul.f32 %v969, 1.442695
        %v973 = vpow.pop %v972
        %v974 = vld [vmem:[#allocation3] sm:$0xff]
        %v975 = vld [vmem:[#allocation3 + $0x8] sm:$0xff]
        %v976 = vmul.f32 %v971, %v974
        %v977 = vmul.f32 %v973, %v975
        %979 = vset.pattern.permute.xlu0 0
        %980 = vperm.xlu0 %979, %v966
        %v981 = vpop.permute.xlu0 %980
        %984 = vset.pattern.permute.xlu0 0
        %985 = vperm.xlu0 %984, %v967
        %v986 = vpop.permute.xlu0 %985
        %v988 = vsub.f32 %v875, %v981
        %v989 = vsub.f32 %v877, %v981
        %v990 = vsub.f32 %v918, %v981
        %v991 = vsub.f32 %v920, %v981
        %v992 = vsub.f32 %v879, %v986
        %v993 = vsub.f32 %v881, %v986
        %v994 = vsub.f32 %v922, %v986
        %v995 = vsub.f32 %v924, %v986
        %v996 = vmul.f32 %v988, 1.442695
        %v997 = vpow.pop %v996
        %v998 = vmul.f32 %v989, 1.442695
        %v999 = vpow.pop %v998
        %v1000 = vmul.f32 %v990, 1.442695
        %v1001 = vpow.pop %v1000
        %v1002 = vmul.f32 %v991, 1.442695
        %v1003 = vpow.pop %v1002
        %v1004 = vmul.f32 %v992, 1.442695
        %v1005 = vpow.pop %v1004
        %v1006 = vmul.f32 %v993, 1.442695
        %v1007 = vpow.pop %v1006
        %v1008 = vmul.f32 %v994, 1.442695
        %v1009 = vpow.pop %v1008
        %v1010 = vmul.f32 %v995, 1.442695
        %v1011 = vpow.pop %v1010
        %v1012 = vadd.f32 %v997, %v999
        %v1013 = vadd.f32 %v1012, %v1001
        %v1014 = vadd.f32 %v1013, %v1003
        %1015 = vadd.xlane.f32.xlu0 %v1014
        %v1016 = vpop.xlane.xlu0 %1015
        %v1017 = vadd.f32 %v1005, %v1007
        %v1018 = vadd.f32 %v1017, %v1009
        %v1019 = vadd.f32 %v1018, %v1011
        %1020 = vadd.xlane.f32.xlu0 %v1019
        %v1021 = vpop.xlane.xlu0 %1020
        %v1022 = vadd.f32 %v976, %v1016
        %v1023 = vadd.f32 %v977, %v1021
        %vm1024 = vcmask 7168
        %1025 = vst.msk [vmem:[#allocation3] sm:$0xff] %vm1024, %v1022
        %1026 = vst.msk [vmem:[#allocation3 + $0x8] sm:$0xff] %vm1024, %v1023
        %1027 = vst.msk [vmem:[#allocation2] sm:$0xff] %vm1024, %v966
        %1028 = vst.msk [vmem:[#allocation2 + $0x8] sm:$0xff] %vm1024, %v967
        %p1029 = scmp.eq.s32.totalorder %s21, 1
        // Predicated region
        $region60: #{_lambda_.24} parent=50 // pred_check
          %p1030 = pneg %p1029
        $region61: #{_lambda_.24} parent=50 // pred_check_branch
          %1032 = sbr.rel (%p1030) target = $region63
        $region62: #{_lambda_.24} parent=50 // pred_region
          %v1033 = vld [vmem:[#allocation2] sm:$0xff]
          %v1034 = vld [vmem:[#allocation2 + $0x8] sm:$0xff]
          %v1035 = vld [vmem:[#allocation3] sm:$0xff]
          %v1036 = vld [vmem:[#allocation3 + $0x8] sm:$0xff]
          %v1037 = vlog2.pop %v1035
          %v1038 = vmul.f32 %v1037, 0.6931472
          %v1039 = vlog2.pop %v1036
          %v1040 = vmul.f32 %v1039, 0.6931472
          %v1041 = vadd.f32 %v1033, %v1038
          %v1042 = vadd.f32 %v1034, %v1040
          %1043 = vst.msk [vmem:[%s411] sm:$0xff] %vm1024, %v1041
          %1044 = vst.msk [vmem:[%s411 + $0x8] sm:$0xff] %vm1024, %v1042
        $region63: #{_lambda_.24} parent=50 // pred_fallthru
          _
        %s1045 = sand.u32 %s116, 1
        %s1046 = sand.u32 %s116, 1
        %s1047 = smul.addr %s1046, 32
        %s1048 = scalar_lea.vmem [#allocation5], %s1047
        %s1049 = smul.u32 2, %s20
        %p1050 = scmp.lt.s32.totalorder %s1049, 3
        %s1051 = scalar_select %p1050, %s1049, 3
        %s1052 = smul.addr %s1051, 8
        %s1053 = scalar_lea.vmem %s4, %s1052
        // Predicated region
        $region64: #{_lambda_.24} parent=50 // pred_check
          %p1054 = pneg %p126
        $region65: #{_lambda_.24} parent=50 // pred_check_branch
          %1056 = sbr.rel (%p1054) target = $region67
        $region66: #{_lambda_.24} parent=50 // pred_region
          %s1057 = smul.u32 2, %s20
          %s1058 = smul.u32 4, %s21
          %s1059 = smul.addr %s1057, 8
          %s1060 = sadd.s32 %s1058, %s1059
          %s1061 = smul.addr %s1060, 4
          %s1062 = scalar_lea.vmem %s3, %s1061
          // Predicated region
          $region68: #{_lambda_.24} parent=66 // pred_check
            _
          $region69: #{_lambda_.24} parent=66 // pred_check_branch
            %1064 = sbr.rel (0) target = $region71
          $region70: #{_lambda_.24} parent=66 // pred_region
            // Predicated region
            $region72: #{_lambda_.24} parent=70 // pred_check
              _
            $region73: #{_lambda_.24} parent=70 // pred_check_branch
              %1066 = sbr.rel (0) target = $region75
            $region74: #{_lambda_.24} parent=70 // pred_region
              loop: start=0, step=1, limit=1
              $region76: #{_lambda_.24} parent=74 // loop_pre_header
                _
              $region77: #{_lambda_.24} parent=74 // loop_header
                %s1068 = sphi 0, %s1072
                %p1069 = scmp.ge.s32.totalorder %s1068, 1
                %s1073 = sphi %s1048, %s1048
                %s1074 = sphi %s1062, %s1062
              $region78: #{_lambda_.24} parent=74 // loop_header_branch
                %1071 = sbr.rel (%p1069) target = $region82
              $region79: #{_lambda_.24} parent=74 // loop_body
                %v1075 = vld [vmem:[%s1073] sm:$0xff]
                %1076 = vst [vmem:[%s1074] sm:$0xff] %v1075
                %v1077 = vld [vmem:[%s1073 + $0x8] sm:$0xff]
                %1078 = vst [vmem:[%s1074 + $0x8] sm:$0xff] %v1077
                %v1079 = vld [vmem:[%s1073 + $0x10] sm:$0xff]
                %1080 = vst [vmem:[%s1074 + $0x20] sm:$0xff] %v1079
                %v1081 = vld [vmem:[%s1073 + $0x18] sm:$0xff]
                %1082 = vst [vmem:[%s1074 + $0x28] sm:$0xff] %v1081
              $region80: #{_lambda_.24} parent=74 // loop_footer
                %s1072 = sadd.s32 1, %s1068
              $region81: #{_lambda_.24} parent=74 // loop_footer_branch
                %1067 = sbr.rel target = $region77
              $region82: #{_lambda_.24} parent=74 // loop_exit
                _
            $region75: #{_lambda_.24} parent=70 // pred_fallthru
              _
            // Predicated region
            $region83: #{_lambda_.24} parent=70 // pred_check
              _
            $region84: #{_lambda_.24} parent=70 // pred_check_branch
              %1084 = sbr.rel target = $region86
            $region85: #{_lambda_.24} parent=70 // pred_region
              _
            $region86: #{_lambda_.24} parent=70 // pred_fallthru
              _
          $region71: #{_lambda_.24} parent=66 // pred_fallthru
            _
          %1085 = vnop
        $region67: #{_lambda_.24} parent=50 // pred_fallthru
          _
        // Predicated region
        $region87: #{_lambda_.24} parent=50 // pred_check
          %p1086 = pneg %p152
        $region88: #{_lambda_.24} parent=50 // pred_check_branch
          %1088 = sbr.rel (%p1086) target = $region90
        $region89: #{_lambda_.24} parent=50 // pred_region
          %s1089 = smul.u32 2, %s20
        $region90: #{_lambda_.24} parent=50 // pred_fallthru
          _
      $region51: #{_lambda_.24} parent=5 // pred_fallthru
        _
      %p1090 = scmp.le.s32.totalorder 2, %s11
      // Predicated region
      $region91: #{_lambda_.24} parent=5 // pred_check
        %p1091 = pneg %p1090
      $region92: #{_lambda_.24} parent=5 // pred_check_branch
        %1093 = sbr.rel (%p1091) target = $region94
      $region93: #{_lambda_.24} parent=5 // pred_region
        %s1094 = ssub.s32 %s11, 2
        // Predicated region
        $region95: #{_lambda_.24} parent=93 // pred_check
          %p1095 = pneg %p132
        $region96: #{_lambda_.24} parent=93 // pred_check_branch
          %1097 = sbr.rel (%p1095) target = $region98
        $region97: #{_lambda_.24} parent=93 // pred_region
          %s1098 = sand.u32 %s117, 1
          %s1099 = sand.u32 %s117, 1
          %s1100 = smul.addr %s1099, 32
          %s1101 = scalar_lea.vmem [#allocation5], %s1100
        $region98: #{_lambda_.24} parent=93 // pred_fallthru
          _
        // Predicated region
        $region99: #{_lambda_.24} parent=93 // pred_check
          %p1102 = pneg %p158
        $region100: #{_lambda_.24} parent=93 // pred_check_branch
          %1104 = sbr.rel (%p1102) target = $region102
        $region101: #{_lambda_.24} parent=93 // pred_region
          %s1105 = smul.u32 2, %s22
          %p1106 = scmp.lt.s32.totalorder %s1105, 3
          %s1107 = scalar_select %p1106, %s1105, 3
          %s1108 = smul.addr %s1107, 8
          %s1109 = scalar_lea.vmem %s4, %s1108
        $region102: #{_lambda_.24} parent=93 // pred_fallthru
          _
      $region94: #{_lambda_.24} parent=5 // pred_fallthru
        _
    $region6: #{_lambda_.24} parent=1 // loop_footer
      %s15 = sadd.s32 1, %s11
    $region7: #{_lambda_.24} parent=1 // loop_footer_branch
      %10 = sbr.rel target = $region3
    $region8: #{_lambda_.24} parent=1 // loop_exit
      _

</llo_original>
